<compile_context>
chip_gen: v5e
topology: v5e:2x2
jax: 0.10.0
libtpu: 0.0.40
codegen_flags: <defaults>
</compile_context>

<pallas_src>
import jax
import jax.numpy as jnp
from jax.experimental import pallas as pl
from jax.experimental.pallas import tpu as pltpu

# Model hyperparameters (from GPT_demo.py)
DROPOUT = 0.0
BLOCK_SIZE = 32
N_EMBED = 64
N_HEAD = 4
HEAD_SIZE = N_EMBED // N_HEAD
LN_EPS = 1e-5


# --------------------------------------------------------------------------- kernel
def block_kernel(x_ref,
                 wqkv_ref, bqkv_ref,
                 wp_ref, bp_ref,
                 w1_ref, b1_ref,
                 w2_ref, b2_ref,
                 o_ref):
    BB, T, C = x_ref.shape
    H, Hs = N_HEAD, C // N_HEAD
    R = BB * T
    mm_dtype = wqkv_ref.dtype          # f32 by default; bf16 if folded that way

    x = x_ref[...].reshape(R, C)       # all rows of this batch block as one slab

    # ---- x = x + proj(attn(ln1(x))) ----------------------------------------
    # LayerNorm1: gamma/beta already folded into wqkv/bqkv -> only mean/var here.
    mu = jnp.mean(x, axis=-1, keepdims=True)
    xc = x - mu
    var = jnp.mean(xc * xc, axis=-1, keepdims=True)
    hn = xc * jax.lax.rsqrt(var + LN_EPS)

    # Fused QKV matmul on the full row slab (M=R, N=3C). The C**-0.5 attention
    # scale is pre-folded into the q columns of wqkv/bqkv.
    qkv = jnp.dot(hn.astype(mm_dtype), wqkv_ref[...],
                  preferred_element_type=jnp.float32) + bqkv_ref[...]
    q, k, v = qkv[:, :C], qkv[:, C:2 * C], qkv[:, 2 * C:]

    # Head-batched attention: (H*BB, T, Hs) with head index major along axis 0.
    def split_heads(t):  # (R, C) -> (H*BB, T, Hs)
        return jnp.concatenate(
            [t[:, h * Hs:(h + 1) * Hs].reshape(BB, T, Hs) for h in range(H)],
            axis=0)

    qh, kh, vh = split_heads(q), split_heads(k), split_heads(v)

    row = jax.lax.broadcasted_iota(jnp.int32, (T, T), 0)
    col = jax.lax.broadcasted_iota(jnp.int32, (T, T), 1)
    causal = (row >= col)[None, :, :]                       # (1, T, T)

    wei = jnp.einsum('ntd,nsd->nts', qh, kh,
                     preferred_element_type=jnp.float32)    # (H*BB, T, T)
    # Diagonal is always unmasked -> no fully-masked softmax rows -> -inf is safe.
    wei = jnp.where(causal, wei, -jnp.inf)
    wei = jax.nn.softmax(wei, axis=-1)
    attn = jnp.einsum('nts,nsd->ntd', wei, vh,
                      preferred_element_type=jnp.float32)   # (H*BB, T, Hs)

    # Reassemble heads along the channel axis (== torch.cat over heads).
    sa = jnp.concatenate(
        [attn[h * BB:(h + 1) * BB].reshape(R, Hs) for h in range(H)], axis=-1)

    sa = jnp.dot(sa.astype(mm_dtype), wp_ref[...],
                 preferred_element_type=jnp.float32) + bp_ref[...]
    x1 = x + sa

    # ---- x = x + ffwd(ln2(x)) ------------------------------------------------
    # LayerNorm2: gamma/beta folded into w1/b1.
    mu2 = jnp.mean(x1, axis=-1, keepdims=True)
    xc2 = x1 - mu2
    var2 = jnp.mean(xc2 * xc2, axis=-1, keepdims=True)
    hn2 = xc2 * jax.lax.rsqrt(var2 + LN_EPS)

    ff = jnp.dot(hn2.astype(mm_dtype), w1_ref[...],
                 preferred_element_type=jnp.float32) + b1_ref[...]
    ff = jnp.maximum(ff, 0.0)                               # ReLU
    ff = jnp.dot(ff.astype(mm_dtype), w2_ref[...],
                 preferred_element_type=jnp.float32) + b2_ref[...]

    o_ref[...] = (x1 + ff).reshape(BB, T, C).astype(o_ref.dtype)


# --------------------------------------------------------------------------- wrapper
def _choose_block_b(B, T, target_rows=512, min_steps=2):
    """Biggest divisor of B whose row slab (BB*T) is ~target_rows, keeping >=2 grid steps."""
    bb = max(1, min(B, max(1, target_rows // max(T, 1))))
    if B > 1:
        bb = min(bb, max(1, B // min_steps))   # keep >=2 steps for v7x's 2 TensorCores
    while B % bb:
        bb -= 1
    return bb


def block_forward(x, fp, *, block_b=None):
    """x: (B, T, C) float32. fp: folded params (see fold_params)."""
    B, T, C = x.shape
    assert C == N_EMBED and T <= BLOCK_SIZE
    if block_b is None:
        block_b = _choose_block_b(B, T)
    assert B % block_b == 0
    grid = (B // block_b,)

    # Constant index_map -> weight blocks stay VMEM-resident across grid steps.
    const2d = lambda arr: pl.BlockSpec(arr.shape, lambda i: (0, 0))

    in_specs = [
        pl.BlockSpec((block_b, T, C), lambda i: (i, 0, 0)),           # x
        const2d(fp["wqkv"]), const2d(fp["bqkv"]),                     # fused QKV
        const2d(fp["wp"]),   const2d(fp["bp"]),                       # attn proj
        const2d(fp["w1"]),   const2d(fp["b1"]),                       # MLP up
        const2d(fp["w2"]),   const2d(fp["b2"]),                       # MLP down
    ]
    out_spec = pl.BlockSpec((block_b, T, C), lambda i: (i, 0, 0))

    fn = pl.pallas_call(
        block_kernel,
        out_shape=jax.ShapeDtypeStruct((B, T, C), x.dtype),
        grid=grid,
        in_specs=in_specs,
        out_specs=out_spec,
        compiler_params=pltpu.CompilerParams(
            dimension_semantics=("parallel",)),
    )
    return fn(x, fp["wqkv"], fp["bqkv"], fp["wp"], fp["bp"],
              fp["w1"], fp["b1"], fp["w2"], fp["b2"])


# --------------------------------------------------------------------------- params
def init_params(key):
    """Raw parameters, matching the PyTorch module's layout (weights stored (in, out))."""
    C = N_EMBED
    ks = jax.random.split(key, 8)
    n = lambda k, shape: (0.02 * jax.random.normal(k, shape)).astype(jnp.float32)
    return {
        "ln1_g": jnp.ones((1, C), jnp.float32),
        "ln1_b": jnp.zeros((1, C), jnp.float32),
        "ln2_g": jnp.ones((1, C), jnp.float32),
        "ln2_b": jnp.zeros((1, C), jnp.float32),
        "wq": n(ks[0], (C, C)),
        "wk": n(ks[1], (C, C)),
        "wv": n(ks[2], (C, C)),
        "wp": n(ks[3], (C, C)),
        "bp": n(ks[4], (1, C)),
        "w1": n(ks[5], (C, 4 * C)),
        "b1": jnp.zeros((1, 4 * C), jnp.float32),
        "w2": n(ks[6], (4 * C, C)),
        "b2": jnp.zeros((1, C), jnp.float32),
    }


def fold_params(p, matmul_dtype=jnp.float32):
    """One-time static weight transform for the kernel:
       - fuse Wq/Wk/Wv -> Wqkv (C, 3C)
       - fold ln1 gamma/beta into Wqkv (+ new bias), ln2 gamma/beta into W1/b1
       - fold the C**-0.5 attention scale into the q columns of Wqkv/bqkv.
       Set matmul_dtype=jnp.bfloat16 on v6e/v7x for ~2x MXU matmul throughput
       (accumulation stays f32 via preferred_element_type)."""
    C = N_EMBED
    scale = jnp.float32(C ** (-0.5))

    wqkv = jnp.concatenate([p["wq"], p["wk"], p["wv"]], axis=1)       # (C, 3C)
    bqkv = p["ln1_b"].reshape(1, C) @ wqkv                            # beta1 @ W  (1, 3C)
    wqkv = p["ln1_g"].reshape(C, 1) * wqkv                            # diag(gamma1) @ W
    qscale = jnp.concatenate(
        [jnp.full((1, C), scale, jnp.float32), jnp.ones((1, 2 * C), jnp.float32)], axis=1)
    wqkv = wqkv * qscale
    bqkv = bqkv * qscale

    w1 = p["w1"]
    b1 = p["ln2_b"].reshape(1, C) @ w1 + p["b1"].reshape(1, -1)       # (1, 4C)
    w1 = p["ln2_g"].reshape(C, 1) * w1

    return {
        "wqkv": wqkv.astype(matmul_dtype),
        "bqkv": bqkv.astype(jnp.float32),
        "wp": p["wp"].astype(matmul_dtype),
        "bp": p["bp"].reshape(1, C).astype(jnp.float32),
        "w1": w1.astype(matmul_dtype),
        "b1": b1.astype(jnp.float32),
        "w2": p["w2"].astype(matmul_dtype),
        "b2": p["b2"].reshape(1, C).astype(jnp.float32),
    }


# --------------------------------------------------------------------------- reference
def block_reference(x, p):
    """Pure-JAX reference mirroring the PyTorch forward pass (raw params)."""
    def ln(v, g, b):
        mu = v.mean(-1, keepdims=True)
        var = ((v - mu) ** 2).mean(-1, keepdims=True)
        return (v - mu) / jnp.sqrt(var + LN_EPS) * g[0] + b[0]

    B, T, C = x.shape
    h = ln(x, p["ln1_g"], p["ln1_b"])
    q = h @ p["wq"]; k = h @ p["wk"]; v = h @ p["wv"]
    mask = jnp.tril(jnp.ones((T, T), bool))
    outs = []
    for hd in range(N_HEAD):
        lo, hi = hd * HEAD_SIZE, (hd + 1) * HEAD_SIZE
        wei = q[:, :, lo:hi] @ jnp.swapaxes(k[:, :, lo:hi], -2, -1) * C ** (-0.5)
        wei = jnp.where(mask, wei, -jnp.inf)
        wei = jax.nn.softmax(wei, axis=-1)
        outs.append(wei @ v[:, :, lo:hi])
    sa = jnp.concatenate(outs, axis=-1) @ p["wp"] + p["bp"][0]
    x = x + sa
    h2 = ln(x, p["ln2_g"], p["ln2_b"])
    ff = jnp.maximum(h2 @ p["w1"] + p["b1"][0], 0.0) @ p["w2"] + p["b2"][0]
    return x + ff


# --------------------------------------------------------------------------- demo
if __name__ == "__main__":
    key = jax.random.PRNGKey(0)
    kx, kp, kg1, kb1, kg2, kb2 = jax.random.split(key, 6)

    B, T, C = 16, BLOCK_SIZE, N_EMBED          # 2 grid steps x 256-row slabs
    x = jax.random.normal(kx, (B, T, C), dtype=jnp.float32)
    params = init_params(kp)
    # Perturb LayerNorm affine params so the gamma/beta folding path is actually exercised.
    params["ln1_g"] = params["ln1_g"] + 0.1 * jax.random.normal(kg1, (1, C), jnp.float32)
    params["ln1_b"] = params["ln1_b"] + 0.1 * jax.random.normal(kb1, (1, C), jnp.float32)
    params["ln2_g"] = params["ln2_g"] + 0.1 * jax.random.normal(kg2, (1, C), jnp.float32)
    params["ln2_b"] = params["ln2_b"] + 0.1 * jax.random.normal(kb2, (1, C), jnp.float32)

    folded = fold_params(params)               # f32 here; use jnp.bfloat16 on v6e/v7x
    out = block_forward(x, folded)
    out = jax.block_until_ready(out)

    ref = block_reference(x, params)
    assert out.shape == (B, T, C)
    assert jnp.allclose(out, ref, atol=1e-4, rtol=1e-4), "mismatch vs reference"

    print("KERNEL_OK")
</pallas_src>

<mosaic_0001>
module attributes {stable_mosaic.version = 11 : i64} {
  func.func @block_kernel(%arg0: i32, %arg1: memref<8x32x64xf32, #tpu.memory_space<vmem>>, %arg2: memref<64x192xf32, #tpu.memory_space<vmem>>, %arg3: memref<1x192xf32, #tpu.memory_space<vmem>>, %arg4: memref<64x64xf32, #tpu.memory_space<vmem>>, %arg5: memref<1x64xf32, #tpu.memory_space<vmem>>, %arg6: memref<64x256xf32, #tpu.memory_space<vmem>>, %arg7: memref<1x256xf32, #tpu.memory_space<vmem>>, %arg8: memref<256x64xf32, #tpu.memory_space<vmem>>, %arg9: memref<1x64xf32, #tpu.memory_space<vmem>>, %arg10: memref<8x32x64xf32, #tpu.memory_space<vmem>>) attributes {dimension_semantics = [#tpu.dimension_semantics<parallel>], iteration_bounds = array<i64: 2>, scalar_prefetch = 0 : i64, scratch_operands = 0 : i64, tpu.core_type = #tpu.core_type<tc>, window_params = [{transform_indices = @transform_0, window_bounds = array<i64: 8, 32, 64>}, {pipeline_mode = #tpu.pipeline_mode<synchronous>, transform_indices = @transform_1, window_bounds = array<i64: 64, 192>}, {pipeline_mode = #tpu.pipeline_mode<synchronous>, transform_indices = @transform_2, window_bounds = array<i64: 1, 192>}, {pipeline_mode = #tpu.pipeline_mode<synchronous>, transform_indices = @transform_3, window_bounds = array<i64: 64, 64>}, {pipeline_mode = #tpu.pipeline_mode<synchronous>, transform_indices = @transform_4, window_bounds = array<i64: 1, 64>}, {pipeline_mode = #tpu.pipeline_mode<synchronous>, transform_indices = @transform_5, window_bounds = array<i64: 64, 256>}, {pipeline_mode = #tpu.pipeline_mode<synchronous>, transform_indices = @transform_6, window_bounds = array<i64: 1, 256>}, {pipeline_mode = #tpu.pipeline_mode<synchronous>, transform_indices = @transform_7, window_bounds = array<i64: 256, 64>}, {pipeline_mode = #tpu.pipeline_mode<synchronous>, transform_indices = @transform_8, window_bounds = array<i64: 1, 64>}, {transform_indices = @transform_9, window_bounds = array<i64: 8, 32, 64>}]} {
    %c0 = arith.constant 0 : index
    %c0_0 = arith.constant 0 : index
    %c0_1 = arith.constant 0 : index
    %0 = vector.load %arg1[%c0, %c0_0, %c0_1] : memref<8x32x64xf32, #tpu.memory_space<vmem>>, vector<8x32x64xf32>
    %1 = vector.shape_cast %0 : vector<8x32x64xf32> to vector<256x64xf32>
    %cst = arith.constant dense<0.000000e+00> : vector<256xf32>
    %2 = vector.multi_reduction <add>, %1, %cst [1] : vector<256x64xf32> to vector<256xf32>
    %3 = vector.shape_cast %2 : vector<256xf32> to vector<256x1xf32>
    %cst_2 = arith.constant 6.400000e+01 : f32
    %4 = vector.broadcast %cst_2 : f32 to vector<256x1xf32>
    %5 = arith.divf %3, %4 : vector<256x1xf32>
    %6 = vector.broadcast %5 : vector<256x1xf32> to vector<256x64xf32>
    %7 = arith.subf %1, %6 : vector<256x64xf32>
    %8 = arith.mulf %7, %7 : vector<256x64xf32>
    %cst_3 = arith.constant dense<0.000000e+00> : vector<256xf32>
    %9 = vector.multi_reduction <add>, %8, %cst_3 [1] : vector<256x64xf32> to vector<256xf32>
    %10 = vector.shape_cast %9 : vector<256xf32> to vector<256x1xf32>
    %cst_4 = arith.constant 6.400000e+01 : f32
    %11 = vector.broadcast %cst_4 : f32 to vector<256x1xf32>
    %12 = arith.divf %10, %11 : vector<256x1xf32>
    %cst_5 = arith.constant 9.99999974E-6 : f32
    %13 = vector.broadcast %cst_5 : f32 to vector<256x1xf32>
    %14 = arith.addf %12, %13 : vector<256x1xf32>
    %15 = math.rsqrt %14 : vector<256x1xf32>
    %16 = vector.broadcast %15 : vector<256x1xf32> to vector<256x64xf32>
    %17 = arith.mulf %7, %16 : vector<256x64xf32>
    %c0_6 = arith.constant 0 : index
    %c0_7 = arith.constant 0 : index
    %18 = vector.load %arg2[%c0_6, %c0_7] : memref<64x192xf32, #tpu.memory_space<vmem>>, vector<64x192xf32>
    %cst_8 = arith.constant dense<0.000000e+00> : vector<256x192xf32>
    %19 = tpu.matmul %17, %18, %cst_8 {dimension_numbers = #tpu.dot_dimension_numbers<[1], [0], [0], [1], [0, 0, 1, 1], [], []>} : vector<256x64xf32>, vector<64x192xf32>, vector<256x192xf32> -> vector<256x192xf32>
    %c0_9 = arith.constant 0 : index
    %c0_10 = arith.constant 0 : index
    %20 = vector.load %arg3[%c0_9, %c0_10] : memref<1x192xf32, #tpu.memory_space<vmem>>, vector<1x192xf32>
    %21 = vector.broadcast %20 : vector<1x192xf32> to vector<256x192xf32>
    %22 = arith.addf %19, %21 : vector<256x192xf32>
    %23 = vector.extract_strided_slice %22 {offsets = [0, 0], sizes = [256, 64], strides = [1, 1]} : vector<256x192xf32> to vector<256x64xf32>
    %24 = vector.extract_strided_slice %22 {offsets = [0, 64], sizes = [256, 64], strides = [1, 1]} : vector<256x192xf32> to vector<256x64xf32>
    %25 = vector.extract_strided_slice %22 {offsets = [0, 128], sizes = [256, 64], strides = [1, 1]} : vector<256x192xf32> to vector<256x64xf32>
    %26 = vector.extract_strided_slice %23 {offsets = [0, 0], sizes = [256, 16], strides = [1, 1]} : vector<256x64xf32> to vector<256x16xf32>
    %27 = vector.shape_cast %26 : vector<256x16xf32> to vector<8x32x16xf32>
    %28 = vector.extract_strided_slice %23 {offsets = [0, 16], sizes = [256, 16], strides = [1, 1]} : vector<256x64xf32> to vector<256x16xf32>
    %29 = vector.shape_cast %28 : vector<256x16xf32> to vector<8x32x16xf32>
    %30 = vector.extract_strided_slice %23 {offsets = [0, 32], sizes = [256, 16], strides = [1, 1]} : vector<256x64xf32> to vector<256x16xf32>
    %31 = vector.shape_cast %30 : vector<256x16xf32> to vector<8x32x16xf32>
    %32 = vector.extract_strided_slice %23 {offsets = [0, 48], sizes = [256, 16], strides = [1, 1]} : vector<256x64xf32> to vector<256x16xf32>
    %33 = vector.shape_cast %32 : vector<256x16xf32> to vector<8x32x16xf32>
    %34 = tpu.concatenate %27, %29, %31, %33 in 0 : vector<8x32x16xf32>, vector<8x32x16xf32>, vector<8x32x16xf32>, vector<8x32x16xf32> -> vector<32x32x16xf32>
    %35 = vector.extract_strided_slice %24 {offsets = [0, 0], sizes = [256, 16], strides = [1, 1]} : vector<256x64xf32> to vector<256x16xf32>
    %36 = vector.shape_cast %35 : vector<256x16xf32> to vector<8x32x16xf32>
    %37 = vector.extract_strided_slice %24 {offsets = [0, 16], sizes = [256, 16], strides = [1, 1]} : vector<256x64xf32> to vector<256x16xf32>
    %38 = vector.shape_cast %37 : vector<256x16xf32> to vector<8x32x16xf32>
    %39 = vector.extract_strided_slice %24 {offsets = [0, 32], sizes = [256, 16], strides = [1, 1]} : vector<256x64xf32> to vector<256x16xf32>
    %40 = vector.shape_cast %39 : vector<256x16xf32> to vector<8x32x16xf32>
    %41 = vector.extract_strided_slice %24 {offsets = [0, 48], sizes = [256, 16], strides = [1, 1]} : vector<256x64xf32> to vector<256x16xf32>
    %42 = vector.shape_cast %41 : vector<256x16xf32> to vector<8x32x16xf32>
    %43 = tpu.concatenate %36, %38, %40, %42 in 0 : vector<8x32x16xf32>, vector<8x32x16xf32>, vector<8x32x16xf32>, vector<8x32x16xf32> -> vector<32x32x16xf32>
    %44 = vector.extract_strided_slice %25 {offsets = [0, 0], sizes = [256, 16], strides = [1, 1]} : vector<256x64xf32> to vector<256x16xf32>
    %45 = vector.shape_cast %44 : vector<256x16xf32> to vector<8x32x16xf32>
    %46 = vector.extract_strided_slice %25 {offsets = [0, 16], sizes = [256, 16], strides = [1, 1]} : vector<256x64xf32> to vector<256x16xf32>
    %47 = vector.shape_cast %46 : vector<256x16xf32> to vector<8x32x16xf32>
    %48 = vector.extract_strided_slice %25 {offsets = [0, 32], sizes = [256, 16], strides = [1, 1]} : vector<256x64xf32> to vector<256x16xf32>
    %49 = vector.shape_cast %48 : vector<256x16xf32> to vector<8x32x16xf32>
    %50 = vector.extract_strided_slice %25 {offsets = [0, 48], sizes = [256, 16], strides = [1, 1]} : vector<256x64xf32> to vector<256x16xf32>
    %51 = vector.shape_cast %50 : vector<256x16xf32> to vector<8x32x16xf32>
    %52 = tpu.concatenate %45, %47, %49, %51 in 0 : vector<8x32x16xf32>, vector<8x32x16xf32>, vector<8x32x16xf32>, vector<8x32x16xf32> -> vector<32x32x16xf32>
    %53 = tpu.iota {dimensions = array<i32: 0>} : vector<32x32xi32>
    %54 = tpu.iota {dimensions = array<i32: 1>} : vector<32x32xi32>
    %55 = arith.cmpi sge, %53, %54 : vector<32x32xi32>
    %56 = vector.shape_cast %55 : vector<32x32xi1> to vector<1x32x32xi1>
    "tpu.trace_start"() <{level = 10 : i32, message = "ntd,nsd->nts"}> : () -> ()
    %cst_11 = arith.constant dense<0.000000e+00> : vector<32x32x32xf32>
    %57 = tpu.matmul %34, %43, %cst_11 {dimension_numbers = #tpu.dot_dimension_numbers<[2], [2], [1], [1], [0, 0, 0, 1, 1, 1], [0], [0]>} : vector<32x32x16xf32>, vector<32x32x16xf32>, vector<32x32x32xf32> -> vector<32x32x32xf32>
    %cst_12 = arith.constant 0xFF800000 : f32
    "tpu.trace_stop"() : () -> ()
    %58 = vector.shape_cast %56 : vector<1x32x32xi1> to vector<1x32x32xi1>
    %59 = vector.broadcast %58 : vector<1x32x32xi1> to vector<32x32x32xi1>
    %60 = vector.broadcast %cst_12 : f32 to vector<32x32x32xf32>
    %61 = arith.select %59, %57, %60 : vector<32x32x32xi1>, vector<32x32x32xf32>
    %cst_13 = arith.constant dense<0xFF800000> : vector<32x32xf32>
    %62 = vector.multi_reduction <maximumf>, %61, %cst_13 [2] : vector<32x32x32xf32> to vector<32x32xf32>
    %cst_14 = arith.constant 0xFF800000 : f32
    %63 = vector.broadcast %cst_14 : f32 to vector<32x32xf32>
    %64 = arith.maximumf %63, %62 : vector<32x32xf32>
    %65 = vector.shape_cast %64 : vector<32x32xf32> to vector<32x32x1xf32>
    %66 = vector.broadcast %65 : vector<32x32x1xf32> to vector<32x32x32xf32>
    %67 = arith.subf %61, %66 : vector<32x32x32xf32>
    %68 = math.exp %67 : vector<32x32x32xf32>
    %cst_15 = arith.constant dense<0.000000e+00> : vector<32x32xf32>
    %69 = vector.multi_reduction <add>, %68, %cst_15 [2] : vector<32x32x32xf32> to vector<32x32xf32>
    %70 = vector.shape_cast %69 : vector<32x32xf32> to vector<32x32x1xf32>
    %71 = vector.broadcast %70 : vector<32x32x1xf32> to vector<32x32x32xf32>
    %72 = arith.divf %68, %71 : vector<32x32x32xf32>
    "tpu.trace_start"() <{level = 10 : i32, message = "nts,nsd->ntd"}> : () -> ()
    %cst_16 = arith.constant dense<0.000000e+00> : vector<32x32x16xf32>
    %73 = tpu.matmul %72, %52, %cst_16 {dimension_numbers = #tpu.dot_dimension_numbers<[2], [1], [1], [2], [0, 0, 0, 1, 1, 2], [0], [0]>} : vector<32x32x32xf32>, vector<32x32x16xf32>, vector<32x32x16xf32> -> vector<32x32x16xf32>
    "tpu.trace_stop"() : () -> ()
    %74 = vector.extract_strided_slice %73 {offsets = [0, 0, 0], sizes = [8, 32, 16], strides = [1, 1, 1]} : vector<32x32x16xf32> to vector<8x32x16xf32>
    %75 = vector.shape_cast %74 : vector<8x32x16xf32> to vector<256x16xf32>
    %76 = vector.extract_strided_slice %73 {offsets = [8, 0, 0], sizes = [8, 32, 16], strides = [1, 1, 1]} : vector<32x32x16xf32> to vector<8x32x16xf32>
    %77 = vector.shape_cast %76 : vector<8x32x16xf32> to vector<256x16xf32>
    %78 = vector.extract_strided_slice %73 {offsets = [16, 0, 0], sizes = [8, 32, 16], strides = [1, 1, 1]} : vector<32x32x16xf32> to vector<8x32x16xf32>
    %79 = vector.shape_cast %78 : vector<8x32x16xf32> to vector<256x16xf32>
    %80 = vector.extract_strided_slice %73 {offsets = [24, 0, 0], sizes = [8, 32, 16], strides = [1, 1, 1]} : vector<32x32x16xf32> to vector<8x32x16xf32>
    %81 = vector.shape_cast %80 : vector<8x32x16xf32> to vector<256x16xf32>
    %82 = tpu.concatenate %75, %77, %79, %81 in 1 : vector<256x16xf32>, vector<256x16xf32>, vector<256x16xf32>, vector<256x16xf32> -> vector<256x64xf32>
    %c0_17 = arith.constant 0 : index
    %c0_18 = arith.constant 0 : index
    %83 = vector.load %arg4[%c0_17, %c0_18] : memref<64x64xf32, #tpu.memory_space<vmem>>, vector<64x64xf32>
    %cst_19 = arith.constant dense<0.000000e+00> : vector<256x64xf32>
    %84 = tpu.matmul %82, %83, %cst_19 {dimension_numbers = #tpu.dot_dimension_numbers<[1], [0], [0], [1], [0, 0, 1, 1], [], []>} : vector<256x64xf32>, vector<64x64xf32>, vector<256x64xf32> -> vector<256x64xf32>
    %c0_20 = arith.constant 0 : index
    %c0_21 = arith.constant 0 : index
    %85 = vector.load %arg5[%c0_20, %c0_21] : memref<1x64xf32, #tpu.memory_space<vmem>>, vector<1x64xf32>
    %86 = vector.broadcast %85 : vector<1x64xf32> to vector<256x64xf32>
    %87 = arith.addf %84, %86 : vector<256x64xf32>
    %88 = arith.addf %1, %87 : vector<256x64xf32>
    %cst_22 = arith.constant dense<0.000000e+00> : vector<256xf32>
    %89 = vector.multi_reduction <add>, %88, %cst_22 [1] : vector<256x64xf32> to vector<256xf32>
    %90 = vector.shape_cast %89 : vector<256xf32> to vector<256x1xf32>
    %cst_23 = arith.constant 6.400000e+01 : f32
    %91 = vector.broadcast %cst_23 : f32 to vector<256x1xf32>
    %92 = arith.divf %90, %91 : vector<256x1xf32>
    %93 = vector.broadcast %92 : vector<256x1xf32> to vector<256x64xf32>
    %94 = arith.subf %88, %93 : vector<256x64xf32>
    %95 = arith.mulf %94, %94 : vector<256x64xf32>
    %cst_24 = arith.constant dense<0.000000e+00> : vector<256xf32>
    %96 = vector.multi_reduction <add>, %95, %cst_24 [1] : vector<256x64xf32> to vector<256xf32>
    %97 = vector.shape_cast %96 : vector<256xf32> to vector<256x1xf32>
    %cst_25 = arith.constant 6.400000e+01 : f32
    %98 = vector.broadcast %cst_25 : f32 to vector<256x1xf32>
    %99 = arith.divf %97, %98 : vector<256x1xf32>
    %cst_26 = arith.constant 9.99999974E-6 : f32
    %100 = vector.broadcast %cst_26 : f32 to vector<256x1xf32>
    %101 = arith.addf %99, %100 : vector<256x1xf32>
    %102 = math.rsqrt %101 : vector<256x1xf32>
    %103 = vector.broadcast %102 : vector<256x1xf32> to vector<256x64xf32>
    %104 = arith.mulf %94, %103 : vector<256x64xf32>
    %c0_27 = arith.constant 0 : index
    %c0_28 = arith.constant 0 : index
    %105 = vector.load %arg6[%c0_27, %c0_28] : memref<64x256xf32, #tpu.memory_space<vmem>>, vector<64x256xf32>
    %cst_29 = arith.constant dense<0.000000e+00> : vector<256x256xf32>
    %106 = tpu.matmul %104, %105, %cst_29 {dimension_numbers = #tpu.dot_dimension_numbers<[1], [0], [0], [1], [0, 0, 1, 1], [], []>} : vector<256x64xf32>, vector<64x256xf32>, vector<256x256xf32> -> vector<256x256xf32>
    %c0_30 = arith.constant 0 : index
    %c0_31 = arith.constant 0 : index
    %107 = vector.load %arg7[%c0_30, %c0_31] : memref<1x256xf32, #tpu.memory_space<vmem>>, vector<1x256xf32>
    %108 = vector.broadcast %107 : vector<1x256xf32> to vector<256x256xf32>
    %109 = arith.addf %106, %108 : vector<256x256xf32>
    %cst_32 = arith.constant 0.000000e+00 : f32
    %110 = vector.broadcast %cst_32 : f32 to vector<256x256xf32>
    %111 = arith.maximumf %109, %110 : vector<256x256xf32>
    %c0_33 = arith.constant 0 : index
    %c0_34 = arith.constant 0 : index
    %112 = vector.load %arg8[%c0_33, %c0_34] : memref<256x64xf32, #tpu.memory_space<vmem>>, vector<256x64xf32>
    %cst_35 = arith.constant dense<0.000000e+00> : vector<256x64xf32>
    %113 = tpu.matmul %111, %112, %cst_35 {dimension_numbers = #tpu.dot_dimension_numbers<[1], [0], [0], [1], [0, 0, 1, 1], [], []>} : vector<256x256xf32>, vector<256x64xf32>, vector<256x64xf32> -> vector<256x64xf32>
    %c0_36 = arith.constant 0 : index
    %c0_37 = arith.constant 0 : index
    %114 = vector.load %arg9[%c0_36, %c0_37] : memref<1x64xf32, #tpu.memory_space<vmem>>, vector<1x64xf32>
    %115 = vector.broadcast %114 : vector<1x64xf32> to vector<256x64xf32>
    %116 = arith.addf %113, %115 : vector<256x64xf32>
    %117 = arith.addf %88, %116 : vector<256x64xf32>
    %118 = vector.shape_cast %117 : vector<256x64xf32> to vector<8x32x64xf32>
    %c0_38 = arith.constant 0 : index
    %c0_39 = arith.constant 0 : index
    %c0_40 = arith.constant 0 : index
    %119 = vector.load %arg10[%c0_38, %c0_39, %c0_40] : memref<8x32x64xf32, #tpu.memory_space<vmem>>, vector<8x32x64xf32>
    tpu.vector_store %arg10[%c0_38, %c0_39, %c0_40], %118 {strides = array<i32>} : memref<8x32x64xf32, #tpu.memory_space<vmem>>, vector<8x32x64xf32>,
    return
  }
  func.func @transform_0(%arg0: i32) -> (i32, i32, i32) {
    %c0_i32 = arith.constant 0 : i32
    %c0_i32_0 = arith.constant 0 : i32
    %c0_i32_1 = arith.constant 0 : i32
    return %arg0, %c0_i32, %c0_i32_0 : i32, i32, i32
  }
  func.func @transform_1(%arg0: i32) -> (i32, i32) {
    %c0_i32 = arith.constant 0 : i32
    %c0_i32_0 = arith.constant 0 : i32
    %c0_i32_1 = arith.constant 0 : i32
    return %c0_i32, %c0_i32_0 : i32, i32
  }
  func.func @transform_2(%arg0: i32) -> (i32, i32) {
    %c0_i32 = arith.constant 0 : i32
    %c0_i32_0 = arith.constant 0 : i32
    %c0_i32_1 = arith.constant 0 : i32
    return %c0_i32, %c0_i32_0 : i32, i32
  }
  func.func @transform_3(%arg0: i32) -> (i32, i32) {
    %c0_i32 = arith.constant 0 : i32
    %c0_i32_0 = arith.constant 0 : i32
    %c0_i32_1 = arith.constant 0 : i32
    return %c0_i32, %c0_i32_0 : i32, i32
  }
  func.func @transform_4(%arg0: i32) -> (i32, i32) {
    %c0_i32 = arith.constant 0 : i32
    %c0_i32_0 = arith.constant 0 : i32
    %c0_i32_1 = arith.constant 0 : i32
    return %c0_i32, %c0_i32_0 : i32, i32
  }
  func.func @transform_5(%arg0: i32) -> (i32, i32) {
    %c0_i32 = arith.constant 0 : i32
    %c0_i32_0 = arith.constant 0 : i32
    %c0_i32_1 = arith.constant 0 : i32
    return %c0_i32, %c0_i32_0 : i32, i32
  }
  func.func @transform_6(%arg0: i32) -> (i32, i32) {
    %c0_i32 = arith.constant 0 : i32
    %c0_i32_0 = arith.constant 0 : i32
    %c0_i32_1 = arith.constant 0 : i32
    return %c0_i32, %c0_i32_0 : i32, i32
  }
  func.func @transform_7(%arg0: i32) -> (i32, i32) {
    %c0_i32 = arith.constant 0 : i32
    %c0_i32_0 = arith.constant 0 : i32
    %c0_i32_1 = arith.constant 0 : i32
    return %c0_i32, %c0_i32_0 : i32, i32
  }
  func.func @transform_8(%arg0: i32) -> (i32, i32) {
    %c0_i32 = arith.constant 0 : i32
    %c0_i32_0 = arith.constant 0 : i32
    %c0_i32_1 = arith.constant 0 : i32
    return %c0_i32, %c0_i32_0 : i32, i32
  }
  func.func @transform_9(%arg0: i32) -> (i32, i32, i32) {
    %c0_i32 = arith.constant 0 : i32
    %c0_i32_0 = arith.constant 0 : i32
    %c0_i32_1 = arith.constant 0 : i32
    return %arg0, %c0_i32, %c0_i32_0 : i32, i32, i32
  }
}

</mosaic_0001>

<llo_original>
// kernel: tpu_custom_call.1
$region0: #{tpu_custom_call.1}
  #allocation0 [shape = 'u32[]', space=smem, size = 0x4, offset = 0x4, fixed_abs, tag = 'smem constant byte address 0x4 - core index']
  #allocation1 [shape = 'u32[72,128]{1,0:T(1,128)}', space=vmem, size = 0x9000, scoped, tag = 'internal scratch']
  %s0 = inlined_call_operand.hbm [shape: f32[16,32,64], index: 0, kind: input, shape index: {}]
  %s1 = inlined_call_operand.vmem [shape: f32[64,192], index: 1, kind: input, shape index: {}]
  %s2 = inlined_call_operand.vmem [shape: f32[1,192], index: 2, kind: input, shape index: {}]
  %s3 = inlined_call_operand.vmem [shape: f32[64,64], index: 3, kind: input, shape index: {}]
  %s4 = inlined_call_operand.vmem [shape: f32[1,64], index: 4, kind: input, shape index: {}]
  %s5 = inlined_call_operand.vmem [shape: f32[64,256], index: 5, kind: input, shape index: {}]
  %s6 = inlined_call_operand.vmem [shape: f32[1,256], index: 6, kind: input, shape index: {}]
  %s7 = inlined_call_operand.vmem [shape: f32[256,64], index: 7, kind: input, shape index: {}]
  %s8 = inlined_call_operand.vmem [shape: f32[1,64], index: 8, kind: input, shape index: {}]
  %s9 = inlined_call_operand.hbm [shape: f32[16,32,64], index: 9, kind: output, shape index: {}]
  %s10 = sld [smem:[#allocation0]]
  $region73: #{tpu_custom_call.1} parent=0
    _
  %s12 = ssub.s32 1, %s10
  %s13 = scalar_select 0, %s12, %s10
  $region1: #{tpu_custom_call.1} parent=0
    #allocation2 [shape = 'u8[262144]{0}', space=vmem, size = 0x40000, scoped, tag = 'input window, operand 0']
    #allocation3 [shape = 's32[2]{0}', space=sflag, size = 0x8, scoped, tag = 'scoped memory for tpu_custom_call.1']
    #allocation4 [shape = 's32[2]{0}', space=sflag, size = 0x8, scoped, tag = 'scoped memory for tpu_custom_call.1']
    #allocation5 [shape = 'u8[262144]{0}', space=vmem, size = 0x40000, scoped, tag = 'output window, operand 0']
    %14 = vsyncpa [#allocation3], 0
    %s15 = scalar_lea.sflag [#allocation3], 1
    %16 = vsyncpa %s15, 0
    %17 = vsyncpa [#allocation4], 0
    %s18 = scalar_lea.sflag [#allocation4], 1
    %19 = vsyncpa %s18, 0
    loop: start=0, step=1, limit=4
    $region2: #{tpu_custom_call.1} parent=1 // loop_pre_header
      _
    $region3: #{tpu_custom_call.1} parent=1 // loop_header
      %s21 = sphi 0, %s25
      %p22 = scmp.ge.s32.totalorder %s21, 4
      %s31 = sphi 0, %s33
      %s34 = sphi 0, %s31
      %s35 = sphi 0, %s34
      %s51 = sphi 0, %s35
      %s55 = sphi 0, %s55
      %s57 = sphi 0, %s55
      %s58 = sphi 0, %s57
      %s72 = sphi 0, %s58
      %s76 = sphi 0, %s76
      %s78 = sphi 0, %s76
      %s79 = sphi 0, %s78
      %s93 = sphi 0, %s79
      %s97 = sphi 0, %s97
      %s99 = sphi 0, %s97
      %s100 = sphi 0, %s99
      %s114 = sphi 0, %s100
      %s118 = sphi 0, %s118
      %s120 = sphi 0, %s118
      %s121 = sphi 0, %s120
      %s135 = sphi 0, %s121
      %s139 = sphi 0, %s139
      %s141 = sphi 0, %s139
      %s142 = sphi 0, %s141
      %s156 = sphi 0, %s142
      %s160 = sphi 0, %s160
      %s162 = sphi 0, %s160
      %s163 = sphi 0, %s162
      %s177 = sphi 0, %s163
      %s181 = sphi 0, %s181
      %s183 = sphi 0, %s181
      %s184 = sphi 0, %s183
      %s198 = sphi 0, %s184
      %s202 = sphi 0, %s202
      %s204 = sphi 0, %s202
      %s205 = sphi 0, %s204
      %s219 = sphi 0, %s205
      %s225 = sphi 0, %s227
      %s228 = sphi 0, %s225
      %s229 = sphi 0, %s228
      %s245 = sphi 0, %s229
    $region4: #{tpu_custom_call.1} parent=1 // loop_header_branch
      %24 = sbr.rel (%p22) target = $region8
    $region5: #{tpu_custom_call.1} parent=1 // loop_body
      %s26 = ssub.s32 %s21, 1
      %s27 = ssub.s32 %s21, 2
      %s28 = sadd.s32 %s21, 1
      %s29 = ssub.s32 %s21, %s28
      %p30 = scmp.eq.s32.totalorder %s29, 0
      %s32 = sadd.s32 %s31, 1
      %s33 = scalar_select %p30, %s31, %s32
      %p36 = pneg %p30
      %p37 = scmp.eq.s32.totalorder %s21, 1
      %p38 = por %p36, %p37
      %p39 = scmp.ne.s32.totalorder %s31, %s34
      %p40 = scmp.eq.s32.totalorder %s21, 0
      %p41 = por %p39, %p40
      %p42 = scmp.ne.s32.totalorder %s31, %s34
      %p43 = scmp.eq.s32.totalorder %s26, 1
      %p44 = por %p42, %p43
      %p45 = scmp.ne.s32.totalorder %s34, %s35
      %p46 = scmp.eq.s32.totalorder %s26, 0
      %p47 = por %p45, %p46
      %p48 = scmp.ne.s32.totalorder %s34, %s35
      %p49 = scmp.eq.s32.totalorder %s27, 1
      %p50 = por %p48, %p49
      %p52 = scmp.ne.s32.totalorder %s35, %s51
      %p53 = scmp.eq.s32.totalorder %s27, 0
      %p54 = por %p52, %p53
      %s56 = sadd.s32 %s55, 1
      %p59 = scmp.eq.s32.totalorder %s21, 1
      %p60 = scmp.ne.s32.totalorder %s55, %s57
      %p61 = scmp.eq.s32.totalorder %s21, 0
      %p62 = por %p60, %p61
      %p63 = scmp.ne.s32.totalorder %s55, %s57
      %p64 = scmp.eq.s32.totalorder %s26, 1
      %p65 = por %p63, %p64
      %p66 = scmp.ne.s32.totalorder %s57, %s58
      %p67 = scmp.eq.s32.totalorder %s26, 0
      %p68 = por %p66, %p67
      %p69 = scmp.ne.s32.totalorder %s57, %s58
      %p70 = scmp.eq.s32.totalorder %s27, 1
      %p71 = por %p69, %p70
      %p73 = scmp.ne.s32.totalorder %s58, %s72
      %p74 = scmp.eq.s32.totalorder %s27, 0
      %p75 = por %p73, %p74
      %s77 = sadd.s32 %s76, 1
      %p80 = scmp.eq.s32.totalorder %s21, 1
      %p81 = scmp.ne.s32.totalorder %s76, %s78
      %p82 = scmp.eq.s32.totalorder %s21, 0
      %p83 = por %p81, %p82
      %p84 = scmp.ne.s32.totalorder %s76, %s78
      %p85 = scmp.eq.s32.totalorder %s26, 1
      %p86 = por %p84, %p85
      %p87 = scmp.ne.s32.totalorder %s78, %s79
      %p88 = scmp.eq.s32.totalorder %s26, 0
      %p89 = por %p87, %p88
      %p90 = scmp.ne.s32.totalorder %s78, %s79
      %p91 = scmp.eq.s32.totalorder %s27, 1
      %p92 = por %p90, %p91
      %p94 = scmp.ne.s32.totalorder %s79, %s93
      %p95 = scmp.eq.s32.totalorder %s27, 0
      %p96 = por %p94, %p95
      %s98 = sadd.s32 %s97, 1
      %p101 = scmp.eq.s32.totalorder %s21, 1
      %p102 = scmp.ne.s32.totalorder %s97, %s99
      %p103 = scmp.eq.s32.totalorder %s21, 0
      %p104 = por %p102, %p103
      %p105 = scmp.ne.s32.totalorder %s97, %s99
      %p106 = scmp.eq.s32.totalorder %s26, 1
      %p107 = por %p105, %p106
      %p108 = scmp.ne.s32.totalorder %s99, %s100
      %p109 = scmp.eq.s32.totalorder %s26, 0
      %p110 = por %p108, %p109
      %p111 = scmp.ne.s32.totalorder %s99, %s100
      %p112 = scmp.eq.s32.totalorder %s27, 1
      %p113 = por %p111, %p112
      %p115 = scmp.ne.s32.totalorder %s100, %s114
      %p116 = scmp.eq.s32.totalorder %s27, 0
      %p117 = por %p115, %p116
      %s119 = sadd.s32 %s118, 1
      %p122 = scmp.eq.s32.totalorder %s21, 1
      %p123 = scmp.ne.s32.totalorder %s118, %s120
      %p124 = scmp.eq.s32.totalorder %s21, 0
      %p125 = por %p123, %p124
      %p126 = scmp.ne.s32.totalorder %s118, %s120
      %p127 = scmp.eq.s32.totalorder %s26, 1
      %p128 = por %p126, %p127
      %p129 = scmp.ne.s32.totalorder %s120, %s121
      %p130 = scmp.eq.s32.totalorder %s26, 0
      %p131 = por %p129, %p130
      %p132 = scmp.ne.s32.totalorder %s120, %s121
      %p133 = scmp.eq.s32.totalorder %s27, 1
      %p134 = por %p132, %p133
      %p136 = scmp.ne.s32.totalorder %s121, %s135
      %p137 = scmp.eq.s32.totalorder %s27, 0
      %p138 = por %p136, %p137
      %s140 = sadd.s32 %s139, 1
      %p143 = scmp.eq.s32.totalorder %s21, 1
      %p144 = scmp.ne.s32.totalorder %s139, %s141
      %p145 = scmp.eq.s32.totalorder %s21, 0
      %p146 = por %p144, %p145
      %p147 = scmp.ne.s32.totalorder %s139, %s141
      %p148 = scmp.eq.s32.totalorder %s26, 1
      %p149 = por %p147, %p148
      %p150 = scmp.ne.s32.totalorder %s141, %s142
      %p151 = scmp.eq.s32.totalorder %s26, 0
      %p152 = por %p150, %p151
      %p153 = scmp.ne.s32.totalorder %s141, %s142
      %p154 = scmp.eq.s32.totalorder %s27, 1
      %p155 = por %p153, %p154
      %p157 = scmp.ne.s32.totalorder %s142, %s156
      %p158 = scmp.eq.s32.totalorder %s27, 0
      %p159 = por %p157, %p158
      %s161 = sadd.s32 %s160, 1
      %p164 = scmp.eq.s32.totalorder %s21, 1
      %p165 = scmp.ne.s32.totalorder %s160, %s162
      %p166 = scmp.eq.s32.totalorder %s21, 0
      %p167 = por %p165, %p166
      %p168 = scmp.ne.s32.totalorder %s160, %s162
      %p169 = scmp.eq.s32.totalorder %s26, 1
      %p170 = por %p168, %p169
      %p171 = scmp.ne.s32.totalorder %s162, %s163
      %p172 = scmp.eq.s32.totalorder %s26, 0
      %p173 = por %p171, %p172
      %p174 = scmp.ne.s32.totalorder %s162, %s163
      %p175 = scmp.eq.s32.totalorder %s27, 1
      %p176 = por %p174, %p175
      %p178 = scmp.ne.s32.totalorder %s163, %s177
      %p179 = scmp.eq.s32.totalorder %s27, 0
      %p180 = por %p178, %p179
      %s182 = sadd.s32 %s181, 1
      %p185 = scmp.eq.s32.totalorder %s21, 1
      %p186 = scmp.ne.s32.totalorder %s181, %s183
      %p187 = scmp.eq.s32.totalorder %s21, 0
      %p188 = por %p186, %p187
      %p189 = scmp.ne.s32.totalorder %s181, %s183
      %p190 = scmp.eq.s32.totalorder %s26, 1
      %p191 = por %p189, %p190
      %p192 = scmp.ne.s32.totalorder %s183, %s184
      %p193 = scmp.eq.s32.totalorder %s26, 0
      %p194 = por %p192, %p193
      %p195 = scmp.ne.s32.totalorder %s183, %s184
      %p196 = scmp.eq.s32.totalorder %s27, 1
      %p197 = por %p195, %p196
      %p199 = scmp.ne.s32.totalorder %s184, %s198
      %p200 = scmp.eq.s32.totalorder %s27, 0
      %p201 = por %p199, %p200
      %s203 = sadd.s32 %s202, 1
      %p206 = scmp.eq.s32.totalorder %s21, 1
      %p207 = scmp.ne.s32.totalorder %s202, %s204
      %p208 = scmp.eq.s32.totalorder %s21, 0
      %p209 = por %p207, %p208
      %p210 = scmp.ne.s32.totalorder %s202, %s204
      %p211 = scmp.eq.s32.totalorder %s26, 1
      %p212 = por %p210, %p211
      %p213 = scmp.ne.s32.totalorder %s204, %s205
      %p214 = scmp.eq.s32.totalorder %s26, 0
      %p215 = por %p213, %p214
      %p216 = scmp.ne.s32.totalorder %s204, %s205
      %p217 = scmp.eq.s32.totalorder %s27, 1
      %p218 = por %p216, %p217
      %p220 = scmp.ne.s32.totalorder %s205, %s219
      %p221 = scmp.eq.s32.totalorder %s27, 0
      %p222 = por %p220, %p221
      %s223 = ssub.s32 %s21, %s28
      %p224 = scmp.eq.s32.totalorder %s223, 0
      %s226 = sadd.s32 %s225, 1
      %s227 = scalar_select %p224, %s225, %s226
      %p230 = pneg %p224
      %p231 = scmp.eq.s32.totalorder %s21, 1
      %p232 = por %p230, %p231
      %p233 = scmp.ne.s32.totalorder %s225, %s228
      %p234 = scmp.eq.s32.totalorder %s21, 0
      %p235 = por %p233, %p234
      %p236 = scmp.ne.s32.totalorder %s225, %s228
      %p237 = scmp.eq.s32.totalorder %s26, 1
      %p238 = por %p236, %p237
      %p239 = scmp.ne.s32.totalorder %s228, %s229
      %p240 = scmp.eq.s32.totalorder %s26, 0
      %p241 = por %p239, %p240
      %p242 = scmp.ne.s32.totalorder %s228, %s229
      %p243 = scmp.eq.s32.totalorder %s27, 1
      %p244 = por %p242, %p243
      %p246 = scmp.ne.s32.totalorder %s229, %s245
      %p247 = scmp.eq.s32.totalorder %s27, 0
      %p248 = por %p246, %p247
      %p249 = scmp.le.s32.totalorder 1, %s21
      %p250 = scmp.lt.s32.totalorder %s21, 3
      %p251 = pnand %p249, %p250
      %p252 = pneg %p251
      // Predicated region
      $region9: #{tpu_custom_call.1} parent=5 // pred_check
        _
      $region10: #{tpu_custom_call.1} parent=5 // pred_check_branch
        %254 = sbr.rel (%p251) target = $region12
      $region11: #{tpu_custom_call.1} parent=5 // pred_region
        %s255 = ssub.s32 %s21, 1
        // Predicated region
        $region13: #{tpu_custom_call.1} parent=11 // pred_check
          %p256 = pneg %p68
        $region14: #{tpu_custom_call.1} parent=11 // pred_check_branch
          %258 = sbr.rel (%p256) target = $region16
        $region15: #{tpu_custom_call.1} parent=11 // pred_region
          _
        $region16: #{tpu_custom_call.1} parent=11 // pred_fallthru
          _
        // Predicated region
        $region17: #{tpu_custom_call.1} parent=11 // pred_check
          %p259 = pneg %p89
        $region18: #{tpu_custom_call.1} parent=11 // pred_check_branch
          %261 = sbr.rel (%p259) target = $region20
        $region19: #{tpu_custom_call.1} parent=11 // pred_region
          _
        $region20: #{tpu_custom_call.1} parent=11 // pred_fallthru
          _
        // Predicated region
        $region21: #{tpu_custom_call.1} parent=11 // pred_check
          %p262 = pneg %p110
        $region22: #{tpu_custom_call.1} parent=11 // pred_check_branch
          %264 = sbr.rel (%p262) target = $region24
        $region23: #{tpu_custom_call.1} parent=11 // pred_region
          _
        $region24: #{tpu_custom_call.1} parent=11 // pred_fallthru
          _
        // Predicated region
        $region25: #{tpu_custom_call.1} parent=11 // pred_check
          %p265 = pneg %p131
        $region26: #{tpu_custom_call.1} parent=11 // pred_check_branch
          %267 = sbr.rel (%p265) target = $region28
        $region27: #{tpu_custom_call.1} parent=11 // pred_region
          _
        $region28: #{tpu_custom_call.1} parent=11 // pred_fallthru
          _
        // Predicated region
        $region29: #{tpu_custom_call.1} parent=11 // pred_check
          %p268 = pneg %p152
        $region30: #{tpu_custom_call.1} parent=11 // pred_check_branch
          %270 = sbr.rel (%p268) target = $region32
        $region31: #{tpu_custom_call.1} parent=11 // pred_region
          _
        $region32: #{tpu_custom_call.1} parent=11 // pred_fallthru
          _
        // Predicated region
        $region33: #{tpu_custom_call.1} parent=11 // pred_check
          %p271 = pneg %p173
        $region34: #{tpu_custom_call.1} parent=11 // pred_check_branch
          %273 = sbr.rel (%p271) target = $region36
        $region35: #{tpu_custom_call.1} parent=11 // pred_region
          _
        $region36: #{tpu_custom_call.1} parent=11 // pred_fallthru
          _
        // Predicated region
        $region37: #{tpu_custom_call.1} parent=11 // pred_check
          %p274 = pneg %p194
        $region38: #{tpu_custom_call.1} parent=11 // pred_check_branch
          %276 = sbr.rel (%p274) target = $region40
        $region39: #{tpu_custom_call.1} parent=11 // pred_region
          _
        $region40: #{tpu_custom_call.1} parent=11 // pred_fallthru
          _
        // Predicated region
        $region41: #{tpu_custom_call.1} parent=11 // pred_check
          %p277 = pneg %p215
        $region42: #{tpu_custom_call.1} parent=11 // pred_check_branch
          %279 = sbr.rel (%p277) target = $region44
        $region43: #{tpu_custom_call.1} parent=11 // pred_region
          _
        $region44: #{tpu_custom_call.1} parent=11 // pred_fallthru
          _
      $region12: #{tpu_custom_call.1} parent=5 // pred_fallthru
        _
      %p280 = scmp.lt.s32.totalorder %s21, 2
      // Predicated region
      $region45: #{tpu_custom_call.1} parent=5 // pred_check
        %p281 = pneg %p280
      $region46: #{tpu_custom_call.1} parent=5 // pred_check_branch
        %283 = sbr.rel (%p281) target = $region48
      $region47: #{tpu_custom_call.1} parent=5 // pred_region
        // Predicated region
        $region49: #{tpu_custom_call.1} parent=47 // pred_check
          %p284 = pneg %p41
        $region50: #{tpu_custom_call.1} parent=47 // pred_check_branch
          %286 = sbr.rel (%p284) target = $region52
        $region51: #{tpu_custom_call.1} parent=47 // pred_region
          %s287 = sand.u32 %s31, 1
          %s288 = scalar_lea.sflag [#allocation3], %s287
          %s289 = sand.u32 %s31, 1
          %s290 = smul.addr %s289, 256
          %s291 = scalar_lea.vmem [#allocation2], %s290
          %s292 = smul.u32 8, %s21
          %294 = vsyncadd %s288, 0
          %s295 = smul.addr %s292, 4
          %s296 = smul.addr %s295, 8
          %s297 = scalar_lea.hbm %s0, %s296
          %s298 = sshll.u32 %s297, 4
          %s299 = int_to_ptr.hbm [resolvable:$true] %s298
          %s300 = sshll.u32 %s291, 4
          %s301 = int_to_ptr.vmem [resolvable:$true] %s300
          %306 = dma.hbm_to_vmem [thread:$0]  %s299, 4096, %s301, %s288, 128, 128, 8
        $region52: #{tpu_custom_call.1} parent=47 // pred_fallthru
          _
      $region48: #{tpu_custom_call.1} parent=5 // pred_fallthru
        _
      %p307 = scmp.le.s32.totalorder 1, %s21
      %p308 = scmp.lt.s32.totalorder %s21, 3
      %p309 = pnand %p307, %p308
      %p310 = pneg %p309
      // Predicated region
      $region53: #{tpu_custom_call.1} parent=5 // pred_check
        _
      $region54: #{tpu_custom_call.1} parent=5 // pred_check_branch
        %312 = sbr.rel (%p309) target = $region56
      $region55: #{tpu_custom_call.1} parent=5 // pred_region
        %s313 = ssub.s32 %s21, 1
        %s314 = sand.u32 %s34, 1
        %s315 = scalar_lea.sflag [#allocation3], %s314
        %s316 = sand.u32 %s34, 1
        %s317 = smul.addr %s316, 256
        %s318 = scalar_lea.vmem [#allocation2], %s317
        // Predicated region
        $region57: #{tpu_custom_call.1} parent=55 // pred_check
          %p319 = pneg %p47
        $region58: #{tpu_custom_call.1} parent=55 // pred_check_branch
          %321 = sbr.rel (%p319) target = $region60
        $region59: #{tpu_custom_call.1} parent=55 // pred_region
          %323 = dma.done %s315, 4096
        $region60: #{tpu_custom_call.1} parent=55 // pred_fallthru
          _
        %s324 = sand.u32 %s34, 1
        %s325 = scalar_lea.sflag [#allocation3], %s324
        %s326 = sand.u32 %s34, 1
        %s327 = smul.addr %s326, 256
        %s328 = scalar_lea.vmem [#allocation2], %s327
        %p329 = pneg %p47
        %p330 = pneg %p44
        %p331 = pneg %p68
        %p332 = pneg %p65
        %p333 = pneg %p89
        %p334 = pneg %p86
        %p335 = pneg %p110
        %p336 = pneg %p107
        %p337 = pneg %p131
        %p338 = pneg %p128
        %p339 = pneg %p152
        %p340 = pneg %p149
        %p341 = pneg %p173
        %p342 = pneg %p170
        %p343 = pneg %p194
        %p344 = pneg %p191
        %p345 = pneg %p215
        %p346 = pneg %p212
        %p347 = pneg %p241
        %p348 = pneg %p238
        %s349 = sand.u32 %s228, 1
        %s350 = scalar_lea.sflag [#allocation4], %s349
        %s351 = sand.u32 %s228, 1
        %s352 = smul.addr %s351, 256
        %s353 = scalar_lea.vmem [#allocation5], %s352
        %s354 = smul.u32 8, %s26
        %s355 = smul.u32 8, %s26
        %v356 = vld [vmem:[%s318] sm:$0xff]
        %v357 = vld [vmem:[%s318 + $0x8] sm:$0xff]
        %v358 = vld [vmem:[%s318 + $0x10] sm:$0xff]
        %v359 = vld [vmem:[%s318 + $0x18] sm:$0xff]
        %v360 = vld [vmem:[%s318 + $0x20] sm:$0xff]
        %v361 = vld [vmem:[%s318 + $0x28] sm:$0xff]
        %v362 = vld [vmem:[%s318 + $0x30] sm:$0xff]
        %v363 = vld [vmem:[%s318 + $0x38] sm:$0xff]
        %v364 = vld [vmem:[%s318 + $0x40] sm:$0xff]
        %v365 = vld [vmem:[%s318 + $0x48] sm:$0xff]
        %v366 = vld [vmem:[%s318 + $0x50] sm:$0xff]
        %v367 = vld [vmem:[%s318 + $0x58] sm:$0xff]
        %v368 = vld [vmem:[%s318 + $0x60] sm:$0xff]
        %v369 = vld [vmem:[%s318 + $0x68] sm:$0xff]
        %v370 = vld [vmem:[%s318 + $0x70] sm:$0xff]
        %v371 = vld [vmem:[%s318 + $0x78] sm:$0xff]
        %v372 = vld [vmem:[%s318 + $0x80] sm:$0xff]
        %v373 = vld [vmem:[%s318 + $0x88] sm:$0xff]
        %v374 = vld [vmem:[%s318 + $0x90] sm:$0xff]
        %v375 = vld [vmem:[%s318 + $0x98] sm:$0xff]
        %v376 = vld [vmem:[%s318 + $0xa0] sm:$0xff]
        %v377 = vld [vmem:[%s318 + $0xa8] sm:$0xff]
        %v378 = vld [vmem:[%s318 + $0xb0] sm:$0xff]
        %v379 = vld [vmem:[%s318 + $0xb8] sm:$0xff]
        %v380 = vld [vmem:[%s318 + $0xc0] sm:$0xff]
        %v381 = vld [vmem:[%s318 + $0xc8] sm:$0xff]
        %v382 = vld [vmem:[%s318 + $0xd0] sm:$0xff]
        %v383 = vld [vmem:[%s318 + $0xd8] sm:$0xff]
        %v384 = vld [vmem:[%s318 + $0xe0] sm:$0xff]
        %v385 = vld [vmem:[%s318 + $0xe8] sm:$0xff]
        %v386 = vld [vmem:[%s318 + $0xf0] sm:$0xff]
        %v387 = vld [vmem:[%s318 + $0xf8] sm:$0xff]
        %vm388 = vcmask 523264
        %v389 = vsel %vm388, %v356, 0.0
        %390 = vadd.xlane.f32.xlu0 %v389
        %v391 = vpop.xlane.xlu0 %390
        %v392 = vsel %vm388, %v357, 0.0
        %393 = vadd.xlane.f32.xlu0 %v392
        %v394 = vpop.xlane.xlu0 %393
        %v395 = vsel %vm388, %v358, 0.0
        %396 = vadd.xlane.f32.xlu0 %v395
        %v397 = vpop.xlane.xlu0 %396
        %v398 = vsel %vm388, %v359, 0.0
        %399 = vadd.xlane.f32.xlu0 %v398
        %v400 = vpop.xlane.xlu0 %399
        %v401 = vsel %vm388, %v360, 0.0
        %402 = vadd.xlane.f32.xlu0 %v401
        %v403 = vpop.xlane.xlu0 %402
        %v404 = vsel %vm388, %v361, 0.0
        %405 = vadd.xlane.f32.xlu0 %v404
        %v406 = vpop.xlane.xlu0 %405
        %v407 = vsel %vm388, %v362, 0.0
        %408 = vadd.xlane.f32.xlu0 %v407
        %v409 = vpop.xlane.xlu0 %408
        %v410 = vsel %vm388, %v363, 0.0
        %411 = vadd.xlane.f32.xlu0 %v410
        %v412 = vpop.xlane.xlu0 %411
        %v413 = vsel %vm388, %v364, 0.0
        %414 = vadd.xlane.f32.xlu0 %v413
        %v415 = vpop.xlane.xlu0 %414
        %v416 = vsel %vm388, %v365, 0.0
        %417 = vadd.xlane.f32.xlu0 %v416
        %v418 = vpop.xlane.xlu0 %417
        %v419 = vsel %vm388, %v366, 0.0
        %420 = vadd.xlane.f32.xlu0 %v419
        %v421 = vpop.xlane.xlu0 %420
        %v422 = vsel %vm388, %v367, 0.0
        %423 = vadd.xlane.f32.xlu0 %v422
        %v424 = vpop.xlane.xlu0 %423
        %v425 = vsel %vm388, %v368, 0.0
        %426 = vadd.xlane.f32.xlu0 %v425
        %v427 = vpop.xlane.xlu0 %426
        %v428 = vsel %vm388, %v369, 0.0
        %429 = vadd.xlane.f32.xlu0 %v428
        %v430 = vpop.xlane.xlu0 %429
        %v431 = vsel %vm388, %v370, 0.0
        %432 = vadd.xlane.f32.xlu0 %v431
        %v433 = vpop.xlane.xlu0 %432
        %v434 = vsel %vm388, %v371, 0.0
        %435 = vadd.xlane.f32.xlu0 %v434
        %v436 = vpop.xlane.xlu0 %435
        %v437 = vsel %vm388, %v372, 0.0
        %438 = vadd.xlane.f32.xlu0 %v437
        %v439 = vpop.xlane.xlu0 %438
        %v440 = vsel %vm388, %v373, 0.0
        %441 = vadd.xlane.f32.xlu0 %v440
        %v442 = vpop.xlane.xlu0 %441
        %v443 = vsel %vm388, %v374, 0.0
        %444 = vadd.xlane.f32.xlu0 %v443
        %v445 = vpop.xlane.xlu0 %444
        %v446 = vsel %vm388, %v375, 0.0
        %447 = vadd.xlane.f32.xlu0 %v446
        %v448 = vpop.xlane.xlu0 %447
        %v449 = vsel %vm388, %v376, 0.0
        %450 = vadd.xlane.f32.xlu0 %v449
        %v451 = vpop.xlane.xlu0 %450
        %v452 = vsel %vm388, %v377, 0.0
        %453 = vadd.xlane.f32.xlu0 %v452
        %v454 = vpop.xlane.xlu0 %453
        %v455 = vsel %vm388, %v378, 0.0
        %456 = vadd.xlane.f32.xlu0 %v455
        %v457 = vpop.xlane.xlu0 %456
        %v458 = vsel %vm388, %v379, 0.0
        %459 = vadd.xlane.f32.xlu0 %v458
        %v460 = vpop.xlane.xlu0 %459
        %v461 = vsel %vm388, %v380, 0.0
        %462 = vadd.xlane.f32.xlu0 %v461
        %v463 = vpop.xlane.xlu0 %462
        %v464 = vsel %vm388, %v381, 0.0
        %465 = vadd.xlane.f32.xlu0 %v464
        %v466 = vpop.xlane.xlu0 %465
        %v467 = vsel %vm388, %v382, 0.0
        %468 = vadd.xlane.f32.xlu0 %v467
        %v469 = vpop.xlane.xlu0 %468
        %v470 = vsel %vm388, %v383, 0.0
        %471 = vadd.xlane.f32.xlu0 %v470
        %v472 = vpop.xlane.xlu0 %471
        %v473 = vsel %vm388, %v384, 0.0
        %474 = vadd.xlane.f32.xlu0 %v473
        %v475 = vpop.xlane.xlu0 %474
        %v476 = vsel %vm388, %v385, 0.0
        %477 = vadd.xlane.f32.xlu0 %v476
        %v478 = vpop.xlane.xlu0 %477
        %v479 = vsel %vm388, %v386, 0.0
        %480 = vadd.xlane.f32.xlu0 %v479
        %v481 = vpop.xlane.xlu0 %480
        %v482 = vsel %vm388, %v387, 0.0
        %483 = vadd.xlane.f32.xlu0 %v482
        %v484 = vpop.xlane.xlu0 %483
        %v485 = vrcp.pop 64.0
        %v486 = vmul.f32 64.0, %v485
        %v487 = vsub.f32 1.0, %v486
        %v488 = vmul.f32 %v485, %v487
        %v489 = vadd.f32 %v485, %v488
        %vm490 = vweird.f32 %v485
        %v491 = vsel %vm490, %v485, %v489
        %v492 = vmul.f32 %v391, %v491
        %v493 = vmul.f32 %v394, %v491
        %v494 = vmul.f32 %v397, %v491
        %v495 = vmul.f32 %v400, %v491
        %v496 = vmul.f32 %v403, %v491
        %v497 = vmul.f32 %v406, %v491
        %v498 = vmul.f32 %v409, %v491
        %v499 = vmul.f32 %v412, %v491
        %v500 = vmul.f32 %v415, %v491
        %v501 = vmul.f32 %v418, %v491
        %v502 = vmul.f32 %v421, %v491
        %v503 = vmul.f32 %v424, %v491
        %v504 = vmul.f32 %v427, %v491
        %v505 = vmul.f32 %v430, %v491
        %v506 = vmul.f32 %v433, %v491
        %v507 = vmul.f32 %v436, %v491
        %v508 = vmul.f32 %v439, %v491
        %v509 = vmul.f32 %v442, %v491
        %v510 = vmul.f32 %v445, %v491
        %v511 = vmul.f32 %v448, %v491
        %v512 = vmul.f32 %v451, %v491
        %v513 = vmul.f32 %v454, %v491
        %v514 = vmul.f32 %v457, %v491
        %v515 = vmul.f32 %v460, %v491
        %v516 = vmul.f32 %v463, %v491
        %v517 = vmul.f32 %v466, %v491
        %v518 = vmul.f32 %v469, %v491
        %v519 = vmul.f32 %v472, %v491
        %v520 = vmul.f32 %v475, %v491
        %v521 = vmul.f32 %v478, %v491
        %v522 = vmul.f32 %v481, %v491
        %v523 = vmul.f32 %v484, %v491
        %v524 = vsub.f32 %v356, %v492
        %v525 = vsub.f32 %v357, %v493
        %v526 = vsub.f32 %v358, %v494
        %v527 = vsub.f32 %v359, %v495
        %v528 = vsub.f32 %v360, %v496
        %v529 = vsub.f32 %v361, %v497
        %v530 = vsub.f32 %v362, %v498
        %v531 = vsub.f32 %v363, %v499
        %v532 = vsub.f32 %v364, %v500
        %v533 = vsub.f32 %v365, %v501
        %v534 = vsub.f32 %v366, %v502
        %v535 = vsub.f32 %v367, %v503
        %v536 = vsub.f32 %v368, %v504
        %v537 = vsub.f32 %v369, %v505
        %v538 = vsub.f32 %v370, %v506
        %v539 = vsub.f32 %v371, %v507
        %v540 = vsub.f32 %v372, %v508
        %v541 = vsub.f32 %v373, %v509
        %v542 = vsub.f32 %v374, %v510
        %v543 = vsub.f32 %v375, %v511
        %v544 = vsub.f32 %v376, %v512
        %v545 = vsub.f32 %v377, %v513
        %v546 = vsub.f32 %v378, %v514
        %v547 = vsub.f32 %v379, %v515
        %v548 = vsub.f32 %v380, %v516
        %v549 = vsub.f32 %v381, %v517
        %v550 = vsub.f32 %v382, %v518
        %v551 = vsub.f32 %v383, %v519
        %v552 = vsub.f32 %v384, %v520
        %v553 = vsub.f32 %v385, %v521
        %v554 = vsub.f32 %v386, %v522
        %v555 = vsub.f32 %v387, %v523
        %v556 = vmul.f32 %v524, %v524
        %v557 = vmul.f32 %v525, %v525
        %v558 = vmul.f32 %v526, %v526
        %v559 = vmul.f32 %v527, %v527
        %v560 = vmul.f32 %v528, %v528
        %v561 = vmul.f32 %v529, %v529
        %v562 = vmul.f32 %v530, %v530
        %v563 = vmul.f32 %v531, %v531
        %v564 = vmul.f32 %v532, %v532
        %v565 = vmul.f32 %v533, %v533
        %v566 = vmul.f32 %v534, %v534
        %v567 = vmul.f32 %v535, %v535
        %v568 = vmul.f32 %v536, %v536
        %v569 = vmul.f32 %v537, %v537
        %v570 = vmul.f32 %v538, %v538
        %v571 = vmul.f32 %v539, %v539
        %v572 = vmul.f32 %v540, %v540
        %v573 = vmul.f32 %v541, %v541
        %v574 = vmul.f32 %v542, %v542
        %v575 = vmul.f32 %v543, %v543
        %v576 = vmul.f32 %v544, %v544
        %v577 = vmul.f32 %v545, %v545
        %v578 = vmul.f32 %v546, %v546
        %v579 = vmul.f32 %v547, %v547
        %v580 = vmul.f32 %v548, %v548
        %v581 = vmul.f32 %v549, %v549
        %v582 = vmul.f32 %v550, %v550
        %v583 = vmul.f32 %v551, %v551
        %v584 = vmul.f32 %v552, %v552
        %v585 = vmul.f32 %v553, %v553
        %v586 = vmul.f32 %v554, %v554
        %v587 = vmul.f32 %v555, %v555
        %v588 = vsel %vm388, %v556, 0.0
        %589 = vadd.xlane.f32.xlu0 %v588
        %v590 = vpop.xlane.xlu0 %589
        %v591 = vsel %vm388, %v557, 0.0
        %592 = vadd.xlane.f32.xlu0 %v591
        %v593 = vpop.xlane.xlu0 %592
        %v594 = vsel %vm388, %v558, 0.0
        %595 = vadd.xlane.f32.xlu0 %v594
        %v596 = vpop.xlane.xlu0 %595
        %v597 = vsel %vm388, %v559, 0.0
        %598 = vadd.xlane.f32.xlu0 %v597
        %v599 = vpop.xlane.xlu0 %598
        %v600 = vsel %vm388, %v560, 0.0
        %601 = vadd.xlane.f32.xlu0 %v600
        %v602 = vpop.xlane.xlu0 %601
        %v603 = vsel %vm388, %v561, 0.0
        %604 = vadd.xlane.f32.xlu0 %v603
        %v605 = vpop.xlane.xlu0 %604
        %v606 = vsel %vm388, %v562, 0.0
        %607 = vadd.xlane.f32.xlu0 %v606
        %v608 = vpop.xlane.xlu0 %607
        %v609 = vsel %vm388, %v563, 0.0
        %610 = vadd.xlane.f32.xlu0 %v609
        %v611 = vpop.xlane.xlu0 %610
        %v612 = vsel %vm388, %v564, 0.0
        %613 = vadd.xlane.f32.xlu0 %v612
        %v614 = vpop.xlane.xlu0 %613
        %v615 = vsel %vm388, %v565, 0.0
        %616 = vadd.xlane.f32.xlu0 %v615
        %v617 = vpop.xlane.xlu0 %616
        %v618 = vsel %vm388, %v566, 0.0
        %619 = vadd.xlane.f32.xlu0 %v618
        %v620 = vpop.xlane.xlu0 %619
        %v621 = vsel %vm388, %v567, 0.0
        %622 = vadd.xlane.f32.xlu0 %v621
        %v623 = vpop.xlane.xlu0 %622
        %v624 = vsel %vm388, %v568, 0.0
        %625 = vadd.xlane.f32.xlu0 %v624
        %v626 = vpop.xlane.xlu0 %625
        %v627 = vsel %vm388, %v569, 0.0
        %628 = vadd.xlane.f32.xlu0 %v627
        %v629 = vpop.xlane.xlu0 %628
        %v630 = vsel %vm388, %v570, 0.0
        %631 = vadd.xlane.f32.xlu0 %v630
        %v632 = vpop.xlane.xlu0 %631
        %v633 = vsel %vm388, %v571, 0.0
        %634 = vadd.xlane.f32.xlu0 %v633
        %v635 = vpop.xlane.xlu0 %634
        %v636 = vsel %vm388, %v572, 0.0
        %637 = vadd.xlane.f32.xlu0 %v636
        %v638 = vpop.xlane.xlu0 %637
        %v639 = vsel %vm388, %v573, 0.0
        %640 = vadd.xlane.f32.xlu0 %v639
        %v641 = vpop.xlane.xlu0 %640
        %v642 = vsel %vm388, %v574, 0.0
        %643 = vadd.xlane.f32.xlu0 %v642
        %v644 = vpop.xlane.xlu0 %643
        %v645 = vsel %vm388, %v575, 0.0
        %646 = vadd.xlane.f32.xlu0 %v645
        %v647 = vpop.xlane.xlu0 %646
        %v648 = vsel %vm388, %v576, 0.0
        %649 = vadd.xlane.f32.xlu0 %v648
        %v650 = vpop.xlane.xlu0 %649
        %v651 = vsel %vm388, %v577, 0.0
        %652 = vadd.xlane.f32.xlu0 %v651
        %v653 = vpop.xlane.xlu0 %652
        %v654 = vsel %vm388, %v578, 0.0
        %655 = vadd.xlane.f32.xlu0 %v654
        %v656 = vpop.xlane.xlu0 %655
        %v657 = vsel %vm388, %v579, 0.0
        %658 = vadd.xlane.f32.xlu0 %v657
        %v659 = vpop.xlane.xlu0 %658
        %v660 = vsel %vm388, %v580, 0.0
        %661 = vadd.xlane.f32.xlu0 %v660
        %v662 = vpop.xlane.xlu0 %661
        %v663 = vsel %vm388, %v581, 0.0
        %664 = vadd.xlane.f32.xlu0 %v663
        %v665 = vpop.xlane.xlu0 %664
        %v666 = vsel %vm388, %v582, 0.0
        %667 = vadd.xlane.f32.xlu0 %v666
        %v668 = vpop.xlane.xlu0 %667
        %v669 = vsel %vm388, %v583, 0.0
        %670 = vadd.xlane.f32.xlu0 %v669
        %v671 = vpop.xlane.xlu0 %670
        %v672 = vsel %vm388, %v584, 0.0
        %673 = vadd.xlane.f32.xlu0 %v672
        %v674 = vpop.xlane.xlu0 %673
        %v675 = vsel %vm388, %v585, 0.0
        %676 = vadd.xlane.f32.xlu0 %v675
        %v677 = vpop.xlane.xlu0 %676
        %v678 = vsel %vm388, %v586, 0.0
        %679 = vadd.xlane.f32.xlu0 %v678
        %v680 = vpop.xlane.xlu0 %679
        %v681 = vsel %vm388, %v587, 0.0
        %682 = vadd.xlane.f32.xlu0 %v681
        %v683 = vpop.xlane.xlu0 %682
        %v684 = vmul.f32 %v590, %v491
        %v685 = vmul.f32 %v593, %v491
        %v686 = vmul.f32 %v596, %v491
        %v687 = vmul.f32 %v599, %v491
        %v688 = vmul.f32 %v602, %v491
        %v689 = vmul.f32 %v605, %v491
        %v690 = vmul.f32 %v608, %v491
        %v691 = vmul.f32 %v611, %v491
        %v692 = vmul.f32 %v614, %v491
        %v693 = vmul.f32 %v617, %v491
        %v694 = vmul.f32 %v620, %v491
        %v695 = vmul.f32 %v623, %v491
        %v696 = vmul.f32 %v626, %v491
        %v697 = vmul.f32 %v629, %v491
        %v698 = vmul.f32 %v632, %v491
        %v699 = vmul.f32 %v635, %v491
        %v700 = vmul.f32 %v638, %v491
        %v701 = vmul.f32 %v641, %v491
        %v702 = vmul.f32 %v644, %v491
        %v703 = vmul.f32 %v647, %v491
        %v704 = vmul.f32 %v650, %v491
        %v705 = vmul.f32 %v653, %v491
        %v706 = vmul.f32 %v656, %v491
        %v707 = vmul.f32 %v659, %v491
        %v708 = vmul.f32 %v662, %v491
        %v709 = vmul.f32 %v665, %v491
        %v710 = vmul.f32 %v668, %v491
        %v711 = vmul.f32 %v671, %v491
        %v712 = vmul.f32 %v674, %v491
        %v713 = vmul.f32 %v677, %v491
        %v714 = vmul.f32 %v680, %v491
        %v715 = vmul.f32 %v683, %v491
        %v716 = vadd.f32 %v684, 1e-05
        %v717 = vadd.f32 %v685, 1e-05
        %v718 = vadd.f32 %v686, 1e-05
        %v719 = vadd.f32 %v687, 1e-05
        %v720 = vadd.f32 %v688, 1e-05
        %v721 = vadd.f32 %v689, 1e-05
        %v722 = vadd.f32 %v690, 1e-05
        %v723 = vadd.f32 %v691, 1e-05
        %v724 = vadd.f32 %v692, 1e-05
        %v725 = vadd.f32 %v693, 1e-05
        %v726 = vadd.f32 %v694, 1e-05
        %v727 = vadd.f32 %v695, 1e-05
        %v728 = vadd.f32 %v696, 1e-05
        %v729 = vadd.f32 %v697, 1e-05
        %v730 = vadd.f32 %v698, 1e-05
        %v731 = vadd.f32 %v699, 1e-05
        %v732 = vadd.f32 %v700, 1e-05
        %v733 = vadd.f32 %v701, 1e-05
        %v734 = vadd.f32 %v702, 1e-05
        %v735 = vadd.f32 %v703, 1e-05
        %v736 = vadd.f32 %v704, 1e-05
        %v737 = vadd.f32 %v705, 1e-05
        %v738 = vadd.f32 %v706, 1e-05
        %v739 = vadd.f32 %v707, 1e-05
        %v740 = vadd.f32 %v708, 1e-05
        %v741 = vadd.f32 %v709, 1e-05
        %v742 = vadd.f32 %v710, 1e-05
        %v743 = vadd.f32 %v711, 1e-05
        %v744 = vadd.f32 %v712, 1e-05
        %v745 = vadd.f32 %v713, 1e-05
        %v746 = vadd.f32 %v714, 1e-05
        %v747 = vadd.f32 %v715, 1e-05
        %v748 = vrsqrt.pop %v716
        %v749 = vmul.f32 %v748, %v716
        %v750 = vmul.f32 %v749, %v748
        %v751 = vmul.f32 0.5, %v750
        %v752 = vsub.f32 1.5, %v751
        %v753 = vmul.f32 %v748, %v752
        %vm754 = vweird.f32 %v716
        %vm755 = vweird.f32 %v748
        %vm756 = vmor %vm754, %vm755
        %v757 = vsel %vm756, %v748, %v753
        %v758 = vrsqrt.pop %v717
        %v759 = vmul.f32 %v758, %v717
        %v760 = vmul.f32 %v759, %v758
        %v761 = vmul.f32 0.5, %v760
        %v762 = vsub.f32 1.5, %v761
        %v763 = vmul.f32 %v758, %v762
        %vm764 = vweird.f32 %v717
        %vm765 = vweird.f32 %v758
        %vm766 = vmor %vm764, %vm765
        %v767 = vsel %vm766, %v758, %v763
        %v768 = vrsqrt.pop %v718
        %v769 = vmul.f32 %v768, %v718
        %v770 = vmul.f32 %v769, %v768
        %v771 = vmul.f32 0.5, %v770
        %v772 = vsub.f32 1.5, %v771
        %v773 = vmul.f32 %v768, %v772
        %vm774 = vweird.f32 %v718
        %vm775 = vweird.f32 %v768
        %vm776 = vmor %vm774, %vm775
        %v777 = vsel %vm776, %v768, %v773
        %v778 = vrsqrt.pop %v719
        %v779 = vmul.f32 %v778, %v719
        %v780 = vmul.f32 %v779, %v778
        %v781 = vmul.f32 0.5, %v780
        %v782 = vsub.f32 1.5, %v781
        %v783 = vmul.f32 %v778, %v782
        %vm784 = vweird.f32 %v719
        %vm785 = vweird.f32 %v778
        %vm786 = vmor %vm784, %vm785
        %v787 = vsel %vm786, %v778, %v783
        %v788 = vrsqrt.pop %v720
        %v789 = vmul.f32 %v788, %v720
        %v790 = vmul.f32 %v789, %v788
        %v791 = vmul.f32 0.5, %v790
        %v792 = vsub.f32 1.5, %v791
        %v793 = vmul.f32 %v788, %v792
        %vm794 = vweird.f32 %v720
        %vm795 = vweird.f32 %v788
        %vm796 = vmor %vm794, %vm795
        %v797 = vsel %vm796, %v788, %v793
        %v798 = vrsqrt.pop %v721
        %v799 = vmul.f32 %v798, %v721
        %v800 = vmul.f32 %v799, %v798
        %v801 = vmul.f32 0.5, %v800
        %v802 = vsub.f32 1.5, %v801
        %v803 = vmul.f32 %v798, %v802
        %vm804 = vweird.f32 %v721
        %vm805 = vweird.f32 %v798
        %vm806 = vmor %vm804, %vm805
        %v807 = vsel %vm806, %v798, %v803
        %v808 = vrsqrt.pop %v722
        %v809 = vmul.f32 %v808, %v722
        %v810 = vmul.f32 %v809, %v808
        %v811 = vmul.f32 0.5, %v810
        %v812 = vsub.f32 1.5, %v811
        %v813 = vmul.f32 %v808, %v812
        %vm814 = vweird.f32 %v722
        %vm815 = vweird.f32 %v808
        %vm816 = vmor %vm814, %vm815
        %v817 = vsel %vm816, %v808, %v813
        %v818 = vrsqrt.pop %v723
        %v819 = vmul.f32 %v818, %v723
        %v820 = vmul.f32 %v819, %v818
        %v821 = vmul.f32 0.5, %v820
        %v822 = vsub.f32 1.5, %v821
        %v823 = vmul.f32 %v818, %v822
        %vm824 = vweird.f32 %v723
        %vm825 = vweird.f32 %v818
        %vm826 = vmor %vm824, %vm825
        %v827 = vsel %vm826, %v818, %v823
        %v828 = vrsqrt.pop %v724
        %v829 = vmul.f32 %v828, %v724
        %v830 = vmul.f32 %v829, %v828
        %v831 = vmul.f32 0.5, %v830
        %v832 = vsub.f32 1.5, %v831
        %v833 = vmul.f32 %v828, %v832
        %vm834 = vweird.f32 %v724
        %vm835 = vweird.f32 %v828
        %vm836 = vmor %vm834, %vm835
        %v837 = vsel %vm836, %v828, %v833
        %v838 = vrsqrt.pop %v725
        %v839 = vmul.f32 %v838, %v725
        %v840 = vmul.f32 %v839, %v838
        %v841 = vmul.f32 0.5, %v840
        %v842 = vsub.f32 1.5, %v841
        %v843 = vmul.f32 %v838, %v842
        %vm844 = vweird.f32 %v725
        %vm845 = vweird.f32 %v838
        %vm846 = vmor %vm844, %vm845
        %v847 = vsel %vm846, %v838, %v843
        %v848 = vrsqrt.pop %v726
        %v849 = vmul.f32 %v848, %v726
        %v850 = vmul.f32 %v849, %v848
        %v851 = vmul.f32 0.5, %v850
        %v852 = vsub.f32 1.5, %v851
        %v853 = vmul.f32 %v848, %v852
        %vm854 = vweird.f32 %v726
        %vm855 = vweird.f32 %v848
        %vm856 = vmor %vm854, %vm855
        %v857 = vsel %vm856, %v848, %v853
        %v858 = vrsqrt.pop %v727
        %v859 = vmul.f32 %v858, %v727
        %v860 = vmul.f32 %v859, %v858
        %v861 = vmul.f32 0.5, %v860
        %v862 = vsub.f32 1.5, %v861
        %v863 = vmul.f32 %v858, %v862
        %vm864 = vweird.f32 %v727
        %vm865 = vweird.f32 %v858
        %vm866 = vmor %vm864, %vm865
        %v867 = vsel %vm866, %v858, %v863
        %v868 = vrsqrt.pop %v728
        %v869 = vmul.f32 %v868, %v728
        %v870 = vmul.f32 %v869, %v868
        %v871 = vmul.f32 0.5, %v870
        %v872 = vsub.f32 1.5, %v871
        %v873 = vmul.f32 %v868, %v872
        %vm874 = vweird.f32 %v728
        %vm875 = vweird.f32 %v868
        %vm876 = vmor %vm874, %vm875
        %v877 = vsel %vm876, %v868, %v873
        %v878 = vrsqrt.pop %v729
        %v879 = vmul.f32 %v878, %v729
        %v880 = vmul.f32 %v879, %v878
        %v881 = vmul.f32 0.5, %v880
        %v882 = vsub.f32 1.5, %v881
        %v883 = vmul.f32 %v878, %v882
        %vm884 = vweird.f32 %v729
        %vm885 = vweird.f32 %v878
        %vm886 = vmor %vm884, %vm885
        %v887 = vsel %vm886, %v878, %v883
        %v888 = vrsqrt.pop %v730
        %v889 = vmul.f32 %v888, %v730
        %v890 = vmul.f32 %v889, %v888
        %v891 = vmul.f32 0.5, %v890
        %v892 = vsub.f32 1.5, %v891
        %v893 = vmul.f32 %v888, %v892
        %vm894 = vweird.f32 %v730
        %vm895 = vweird.f32 %v888
        %vm896 = vmor %vm894, %vm895
        %v897 = vsel %vm896, %v888, %v893
        %v898 = vrsqrt.pop %v731
        %v899 = vmul.f32 %v898, %v731
        %v900 = vmul.f32 %v899, %v898
        %v901 = vmul.f32 0.5, %v900
        %v902 = vsub.f32 1.5, %v901
        %v903 = vmul.f32 %v898, %v902
        %vm904 = vweird.f32 %v731
        %vm905 = vweird.f32 %v898
        %vm906 = vmor %vm904, %vm905
        %v907 = vsel %vm906, %v898, %v903
        %v908 = vrsqrt.pop %v732
        %v909 = vmul.f32 %v908, %v732
        %v910 = vmul.f32 %v909, %v908
        %v911 = vmul.f32 0.5, %v910
        %v912 = vsub.f32 1.5, %v911
        %v913 = vmul.f32 %v908, %v912
        %vm914 = vweird.f32 %v732
        %vm915 = vweird.f32 %v908
        %vm916 = vmor %vm914, %vm915
        %v917 = vsel %vm916, %v908, %v913
        %v918 = vrsqrt.pop %v733
        %v919 = vmul.f32 %v918, %v733
        %v920 = vmul.f32 %v919, %v918
        %v921 = vmul.f32 0.5, %v920
        %v922 = vsub.f32 1.5, %v921
        %v923 = vmul.f32 %v918, %v922
        %vm924 = vweird.f32 %v733
        %vm925 = vweird.f32 %v918
        %vm926 = vmor %vm924, %vm925
        %v927 = vsel %vm926, %v918, %v923
        %v928 = vrsqrt.pop %v734
        %v929 = vmul.f32 %v928, %v734
        %v930 = vmul.f32 %v929, %v928
        %v931 = vmul.f32 0.5, %v930
        %v932 = vsub.f32 1.5, %v931
        %v933 = vmul.f32 %v928, %v932
        %vm934 = vweird.f32 %v734
        %vm935 = vweird.f32 %v928
        %vm936 = vmor %vm934, %vm935
        %v937 = vsel %vm936, %v928, %v933
        %v938 = vrsqrt.pop %v735
        %v939 = vmul.f32 %v938, %v735
        %v940 = vmul.f32 %v939, %v938
        %v941 = vmul.f32 0.5, %v940
        %v942 = vsub.f32 1.5, %v941
        %v943 = vmul.f32 %v938, %v942
        %vm944 = vweird.f32 %v735
        %vm945 = vweird.f32 %v938
        %vm946 = vmor %vm944, %vm945
        %v947 = vsel %vm946, %v938, %v943
        %v948 = vrsqrt.pop %v736
        %v949 = vmul.f32 %v948, %v736
        %v950 = vmul.f32 %v949, %v948
        %v951 = vmul.f32 0.5, %v950
        %v952 = vsub.f32 1.5, %v951
        %v953 = vmul.f32 %v948, %v952
        %vm954 = vweird.f32 %v736
        %vm955 = vweird.f32 %v948
        %vm956 = vmor %vm954, %vm955
        %v957 = vsel %vm956, %v948, %v953
        %v958 = vrsqrt.pop %v737
        %v959 = vmul.f32 %v958, %v737
        %v960 = vmul.f32 %v959, %v958
        %v961 = vmul.f32 0.5, %v960
        %v962 = vsub.f32 1.5, %v961
        %v963 = vmul.f32 %v958, %v962
        %vm964 = vweird.f32 %v737
        %vm965 = vweird.f32 %v958
        %vm966 = vmor %vm964, %vm965
        %v967 = vsel %vm966, %v958, %v963
        %v968 = vrsqrt.pop %v738
        %v969 = vmul.f32 %v968, %v738
        %v970 = vmul.f32 %v969, %v968
        %v971 = vmul.f32 0.5, %v970
        %v972 = vsub.f32 1.5, %v971
        %v973 = vmul.f32 %v968, %v972
        %vm974 = vweird.f32 %v738
        %vm975 = vweird.f32 %v968
        %vm976 = vmor %vm974, %vm975
        %v977 = vsel %vm976, %v968, %v973
        %v978 = vrsqrt.pop %v739
        %v979 = vmul.f32 %v978, %v739
        %v980 = vmul.f32 %v979, %v978
        %v981 = vmul.f32 0.5, %v980
        %v982 = vsub.f32 1.5, %v981
        %v983 = vmul.f32 %v978, %v982
        %vm984 = vweird.f32 %v739
        %vm985 = vweird.f32 %v978
        %vm986 = vmor %vm984, %vm985
        %v987 = vsel %vm986, %v978, %v983
        %v988 = vrsqrt.pop %v740
        %v989 = vmul.f32 %v988, %v740
        %v990 = vmul.f32 %v989, %v988
        %v991 = vmul.f32 0.5, %v990
        %v992 = vsub.f32 1.5, %v991
        %v993 = vmul.f32 %v988, %v992
        %vm994 = vweird.f32 %v740
        %vm995 = vweird.f32 %v988
        %vm996 = vmor %vm994, %vm995
        %v997 = vsel %vm996, %v988, %v993
        %v998 = vrsqrt.pop %v741
        %v999 = vmul.f32 %v998, %v741
        %v1000 = vmul.f32 %v999, %v998
        %v1001 = vmul.f32 0.5, %v1000
        %v1002 = vsub.f32 1.5, %v1001
        %v1003 = vmul.f32 %v998, %v1002
        %vm1004 = vweird.f32 %v741
        %vm1005 = vweird.f32 %v998
        %vm1006 = vmor %vm1004, %vm1005
        %v1007 = vsel %vm1006, %v998, %v1003
        %v1008 = vrsqrt.pop %v742
        %v1009 = vmul.f32 %v1008, %v742
        %v1010 = vmul.f32 %v1009, %v1008
        %v1011 = vmul.f32 0.5, %v1010
        %v1012 = vsub.f32 1.5, %v1011
        %v1013 = vmul.f32 %v1008, %v1012
        %vm1014 = vweird.f32 %v742
        %vm1015 = vweird.f32 %v1008
        %vm1016 = vmor %vm1014, %vm1015
        %v1017 = vsel %vm1016, %v1008, %v1013
        %v1018 = vrsqrt.pop %v743
        %v1019 = vmul.f32 %v1018, %v743
        %v1020 = vmul.f32 %v1019, %v1018
        %v1021 = vmul.f32 0.5, %v1020
        %v1022 = vsub.f32 1.5, %v1021
        %v1023 = vmul.f32 %v1018, %v1022
        %vm1024 = vweird.f32 %v743
        %vm1025 = vweird.f32 %v1018
        %vm1026 = vmor %vm1024, %vm1025
        %v1027 = vsel %vm1026, %v1018, %v1023
        %v1028 = vrsqrt.pop %v744
        %v1029 = vmul.f32 %v1028, %v744
        %v1030 = vmul.f32 %v1029, %v1028
        %v1031 = vmul.f32 0.5, %v1030
        %v1032 = vsub.f32 1.5, %v1031
        %v1033 = vmul.f32 %v1028, %v1032
        %vm1034 = vweird.f32 %v744
        %vm1035 = vweird.f32 %v1028
        %vm1036 = vmor %vm1034, %vm1035
        %v1037 = vsel %vm1036, %v1028, %v1033
        %v1038 = vrsqrt.pop %v745
        %v1039 = vmul.f32 %v1038, %v745
        %v1040 = vmul.f32 %v1039, %v1038
        %v1041 = vmul.f32 0.5, %v1040
        %v1042 = vsub.f32 1.5, %v1041
        %v1043 = vmul.f32 %v1038, %v1042
        %vm1044 = vweird.f32 %v745
        %vm1045 = vweird.f32 %v1038
        %vm1046 = vmor %vm1044, %vm1045
        %v1047 = vsel %vm1046, %v1038, %v1043
        %v1048 = vrsqrt.pop %v746
        %v1049 = vmul.f32 %v1048, %v746
        %v1050 = vmul.f32 %v1049, %v1048
        %v1051 = vmul.f32 0.5, %v1050
        %v1052 = vsub.f32 1.5, %v1051
        %v1053 = vmul.f32 %v1048, %v1052
        %vm1054 = vweird.f32 %v746
        %vm1055 = vweird.f32 %v1048
        %vm1056 = vmor %vm1054, %vm1055
        %v1057 = vsel %vm1056, %v1048, %v1053
        %v1058 = vrsqrt.pop %v747
        %v1059 = vmul.f32 %v1058, %v747
        %v1060 = vmul.f32 %v1059, %v1058
        %v1061 = vmul.f32 0.5, %v1060
        %v1062 = vsub.f32 1.5, %v1061
        %v1063 = vmul.f32 %v1058, %v1062
        %vm1064 = vweird.f32 %v747
        %vm1065 = vweird.f32 %v1058
        %vm1066 = vmor %vm1064, %vm1065
        %v1067 = vsel %vm1066, %v1058, %v1063
        %v1068 = vmul.f32 %v524, %v757
        %v1069 = vmul.f32 %v525, %v767
        %v1070 = vmul.f32 %v526, %v777
        %v1071 = vmul.f32 %v527, %v787
        %v1072 = vmul.f32 %v528, %v797
        %v1073 = vmul.f32 %v529, %v807
        %v1074 = vmul.f32 %v530, %v817
        %v1075 = vmul.f32 %v531, %v827
        %v1076 = vmul.f32 %v532, %v837
        %v1077 = vmul.f32 %v533, %v847
        %v1078 = vmul.f32 %v534, %v857
        %v1079 = vmul.f32 %v535, %v867
        %v1080 = vmul.f32 %v536, %v877
        %v1081 = vmul.f32 %v537, %v887
        %v1082 = vmul.f32 %v538, %v897
        %v1083 = vmul.f32 %v539, %v907
        %v1084 = vmul.f32 %v540, %v917
        %v1085 = vmul.f32 %v541, %v927
        %v1086 = vmul.f32 %v542, %v937
        %v1087 = vmul.f32 %v543, %v947
        %v1088 = vmul.f32 %v544, %v957
        %v1089 = vmul.f32 %v545, %v967
        %v1090 = vmul.f32 %v546, %v977
        %v1091 = vmul.f32 %v547, %v987
        %v1092 = vmul.f32 %v548, %v997
        %v1093 = vmul.f32 %v549, %v1007
        %v1094 = vmul.f32 %v550, %v1017
        %v1095 = vmul.f32 %v551, %v1027
        %v1096 = vmul.f32 %v552, %v1037
        %v1097 = vmul.f32 %v553, %v1047
        %v1098 = vmul.f32 %v554, %v1057
        %v1099 = vmul.f32 %v555, %v1067
        %v1100 = vld [vmem:[%s1] sm:$0xff]
        %v1101 = vld [vmem:[%s1 + $0x8] sm:$0xff]
        %v1102 = vld [vmem:[%s1 + $0x10] sm:$0xff]
        %v1103 = vld [vmem:[%s1 + $0x18] sm:$0xff]
        %v1104 = vld [vmem:[%s1 + $0x20] sm:$0xff]
        %v1105 = vld [vmem:[%s1 + $0x28] sm:$0xff]
        %v1106 = vld [vmem:[%s1 + $0x30] sm:$0xff]
        %v1107 = vld [vmem:[%s1 + $0x38] sm:$0xff]
        %v1108 = vld [vmem:[%s1 + $0x40] sm:$0xff]
        %v1109 = vld [vmem:[%s1 + $0x48] sm:$0xff]
        %v1110 = vld [vmem:[%s1 + $0x50] sm:$0xff]
        %v1111 = vld [vmem:[%s1 + $0x58] sm:$0xff]
        %v1112 = vld [vmem:[%s1 + $0x60] sm:$0xff]
        %v1113 = vld [vmem:[%s1 + $0x68] sm:$0xff]
        %v1114 = vld [vmem:[%s1 + $0x70] sm:$0xff]
        %v1115 = vld [vmem:[%s1 + $0x78] sm:$0xff]
        %v1116 = vld [vmem:[%s2] sm:$0x3]
        %v1118 = vperm.slane %v1116, 0
        %v1119 = vperm.slane %v1116, 1
        %v1123 = vsel %vm388, %v1068, 0
        %v1126 = vsel %vm388, %v1069, 0
        %v1129 = vsel %vm388, %v1070, 0
        %v1132 = vsel %vm388, %v1071, 0
        %v1135 = vsel %vm388, %v1072, 0
        %v1138 = vsel %vm388, %v1073, 0
        %v1141 = vsel %vm388, %v1074, 0
        %v1144 = vsel %vm388, %v1075, 0
        %v1147 = vsel %vm388, %v1076, 0
        %v1150 = vsel %vm388, %v1077, 0
        %v1153 = vsel %vm388, %v1078, 0
        %v1156 = vsel %vm388, %v1079, 0
        %v1159 = vsel %vm388, %v1080, 0
        %v1162 = vsel %vm388, %v1081, 0
        %v1165 = vsel %vm388, %v1082, 0
        %v1168 = vsel %vm388, %v1083, 0
        %v1171 = vsel %vm388, %v1084, 0
        %v1174 = vsel %vm388, %v1085, 0
        %v1177 = vsel %vm388, %v1086, 0
        %v1180 = vsel %vm388, %v1087, 0
        %v1183 = vsel %vm388, %v1088, 0
        %v1186 = vsel %vm388, %v1089, 0
        %v1189 = vsel %vm388, %v1090, 0
        %v1192 = vsel %vm388, %v1091, 0
        %v1195 = vsel %vm388, %v1092, 0
        %v1198 = vsel %vm388, %v1093, 0
        %v1201 = vsel %vm388, %v1094, 0
        %v1204 = vsel %vm388, %v1095, 0
        %v1207 = vsel %vm388, %v1096, 0
        %v1210 = vsel %vm388, %v1097, 0
        %v1213 = vsel %vm388, %v1098, 0
        %v1216 = vsel %vm388, %v1099, 0
        %1218 = vmatpush.msra.mxu0 0.0
        %1219 = vmatpush.msra.mxu0 0.0
        %1220 = vmatpush.msra.mxu0 0.0
        %1221 = vmatpush.msra.mxu0 0.0
        %1222 = vmatpush.msra.mxu0 0.0
        %1223 = vmatpush.msra.mxu0 0.0
        %1224 = vmatpush.msra.mxu0 0.0
        %1225 = vmatpush.msra.mxu0 0.0
        %1226 = vmatpush.msra.mxu0 %v1114
        %1227 = vmatpush.msra.mxu0 %v1112
        %1228 = vmatpush.msra.mxu0 %v1110
        %1229 = vmatpush.msra.mxu0 %v1108
        %1230 = vmatpush.msra.mxu0 %v1106
        %1231 = vmatpush.msra.mxu0 %v1104
        %1232 = vmatpush.msra.mxu0 %v1102
        %1233 = vmatpush.msra.mxu0 %v1100
        %1234 = vmatmul.f32.gmra.mxu0 %v1123
        %v1235 = vpop.f32.mrf.mxu0
        %v1236 = vadd.f32 %v1118, %v1235
        %1237 = vmatmul.f32.gmra.mxu0 %v1126
        %v1238 = vpop.f32.mrf.mxu0
        %v1239 = vadd.f32 %v1118, %v1238
        %1240 = vmatmul.f32.gmra.mxu0 %v1129
        %v1241 = vpop.f32.mrf.mxu0
        %v1242 = vadd.f32 %v1118, %v1241
        %1243 = vmatmul.f32.gmra.mxu0 %v1132
        %v1244 = vpop.f32.mrf.mxu0
        %v1245 = vadd.f32 %v1118, %v1244
        %1246 = vmatmul.f32.gmra.mxu0 %v1135
        %v1247 = vpop.f32.mrf.mxu0
        %v1248 = vadd.f32 %v1118, %v1247
        %1249 = vmatmul.f32.gmra.mxu0 %v1138
        %v1250 = vpop.f32.mrf.mxu0
        %v1251 = vadd.f32 %v1118, %v1250
        %1252 = vmatmul.f32.gmra.mxu0 %v1141
        %v1253 = vpop.f32.mrf.mxu0
        %v1254 = vadd.f32 %v1118, %v1253
        %1255 = vmatmul.f32.gmra.mxu0 %v1144
        %v1256 = vpop.f32.mrf.mxu0
        %v1257 = vadd.f32 %v1118, %v1256
        %1258 = vmatmul.f32.gmra.mxu0 %v1147
        %v1259 = vpop.f32.mrf.mxu0
        %v1260 = vadd.f32 %v1118, %v1259
        %1261 = vmatmul.f32.gmra.mxu0 %v1150
        %v1262 = vpop.f32.mrf.mxu0
        %v1263 = vadd.f32 %v1118, %v1262
        %1264 = vmatmul.f32.gmra.mxu0 %v1153
        %v1265 = vpop.f32.mrf.mxu0
        %v1266 = vadd.f32 %v1118, %v1265
        %1267 = vmatmul.f32.gmra.mxu0 %v1156
        %v1268 = vpop.f32.mrf.mxu0
        %v1269 = vadd.f32 %v1118, %v1268
        %1270 = vmatmul.f32.gmra.mxu0 %v1159
        %v1271 = vpop.f32.mrf.mxu0
        %v1272 = vadd.f32 %v1118, %v1271
        %1273 = vmatmul.f32.gmra.mxu0 %v1162
        %v1274 = vpop.f32.mrf.mxu0
        %v1275 = vadd.f32 %v1118, %v1274
        %1276 = vmatmul.f32.gmra.mxu0 %v1165
        %v1277 = vpop.f32.mrf.mxu0
        %v1278 = vadd.f32 %v1118, %v1277
        %1279 = vmatmul.f32.gmra.mxu0 %v1168
        %v1280 = vpop.f32.mrf.mxu0
        %v1281 = vadd.f32 %v1118, %v1280
        %1282 = vmatmul.f32.gmra.mxu0 %v1171
        %v1283 = vpop.f32.mrf.mxu0
        %v1284 = vadd.f32 %v1118, %v1283
        %1285 = vmatmul.f32.gmra.mxu0 %v1174
        %v1286 = vpop.f32.mrf.mxu0
        %v1287 = vadd.f32 %v1118, %v1286
        %1288 = vmatmul.f32.gmra.mxu0 %v1177
        %v1289 = vpop.f32.mrf.mxu0
        %v1290 = vadd.f32 %v1118, %v1289
        %1291 = vmatmul.f32.gmra.mxu0 %v1180
        %v1292 = vpop.f32.mrf.mxu0
        %v1293 = vadd.f32 %v1118, %v1292
        %1294 = vmatmul.f32.gmra.mxu0 %v1183
        %v1295 = vpop.f32.mrf.mxu0
        %v1296 = vadd.f32 %v1118, %v1295
        %1297 = vmatmul.f32.gmra.mxu0 %v1186
        %v1298 = vpop.f32.mrf.mxu0
        %v1299 = vadd.f32 %v1118, %v1298
        %1300 = vmatmul.f32.gmra.mxu0 %v1189
        %v1301 = vpop.f32.mrf.mxu0
        %v1302 = vadd.f32 %v1118, %v1301
        %1303 = vmatmul.f32.gmra.mxu0 %v1192
        %v1304 = vpop.f32.mrf.mxu0
        %v1305 = vadd.f32 %v1118, %v1304
        %1306 = vmatmul.f32.gmra.mxu0 %v1195
        %v1307 = vpop.f32.mrf.mxu0
        %v1308 = vadd.f32 %v1118, %v1307
        %1309 = vmatmul.f32.gmra.mxu0 %v1198
        %v1310 = vpop.f32.mrf.mxu0
        %v1311 = vadd.f32 %v1118, %v1310
        %1312 = vmatmul.f32.gmra.mxu0 %v1201
        %v1313 = vpop.f32.mrf.mxu0
        %v1314 = vadd.f32 %v1118, %v1313
        %1315 = vmatmul.f32.gmra.mxu0 %v1204
        %v1316 = vpop.f32.mrf.mxu0
        %v1317 = vadd.f32 %v1118, %v1316
        %1318 = vmatmul.f32.gmra.mxu0 %v1207
        %v1319 = vpop.f32.mrf.mxu0
        %v1320 = vadd.f32 %v1118, %v1319
        %1321 = vmatmul.f32.gmra.mxu0 %v1210
        %v1322 = vpop.f32.mrf.mxu0
        %v1323 = vadd.f32 %v1118, %v1322
        %1324 = vmatmul.f32.gmra.mxu0 %v1213
        %v1325 = vpop.f32.mrf.mxu0
        %v1326 = vadd.f32 %v1118, %v1325
        %1327 = vmatmul.f32.gmra.mxu0 %v1216
        %v1328 = vpop.f32.mrf.mxu0
        %v1329 = vadd.f32 %v1118, %v1328
        %1330 = vdwg.mxu0
        %1331 = vmatpush.msra.mxu0 0.0
        %1332 = vmatpush.msra.mxu0 0.0
        %1333 = vmatpush.msra.mxu0 0.0
        %1334 = vmatpush.msra.mxu0 0.0
        %1335 = vmatpush.msra.mxu0 0.0
        %1336 = vmatpush.msra.mxu0 0.0
        %1337 = vmatpush.msra.mxu0 0.0
        %1338 = vmatpush.msra.mxu0 0.0
        %1339 = vmatpush.msra.mxu0 %v1115
        %1340 = vmatpush.msra.mxu0 %v1113
        %1341 = vmatpush.msra.mxu0 %v1111
        %1342 = vmatpush.msra.mxu0 %v1109
        %1343 = vmatpush.msra.mxu0 %v1107
        %1344 = vmatpush.msra.mxu0 %v1105
        %1345 = vmatpush.msra.mxu0 %v1103
        %1346 = vmatpush.msra.mxu0 %v1101
        %1347 = vmatmul.f32.gmra.mxu0 %v1123
        %v1348 = vpop.f32.mrf.mxu0
        %v1349 = vadd.f32 %v1119, %v1348
        %1350 = vmatmul.f32.gmra.mxu0 %v1126
        %v1351 = vpop.f32.mrf.mxu0
        %v1352 = vadd.f32 %v1119, %v1351
        %1353 = vmatmul.f32.gmra.mxu0 %v1129
        %v1354 = vpop.f32.mrf.mxu0
        %v1355 = vadd.f32 %v1119, %v1354
        %1356 = vmatmul.f32.gmra.mxu0 %v1132
        %v1357 = vpop.f32.mrf.mxu0
        %v1358 = vadd.f32 %v1119, %v1357
        %1359 = vmatmul.f32.gmra.mxu0 %v1135
        %v1360 = vpop.f32.mrf.mxu0
        %v1361 = vadd.f32 %v1119, %v1360
        %1362 = vmatmul.f32.gmra.mxu0 %v1138
        %v1363 = vpop.f32.mrf.mxu0
        %v1364 = vadd.f32 %v1119, %v1363
        %1365 = vmatmul.f32.gmra.mxu0 %v1141
        %v1366 = vpop.f32.mrf.mxu0
        %v1367 = vadd.f32 %v1119, %v1366
        %1368 = vmatmul.f32.gmra.mxu0 %v1144
        %v1369 = vpop.f32.mrf.mxu0
        %v1370 = vadd.f32 %v1119, %v1369
        %1371 = vmatmul.f32.gmra.mxu0 %v1147
        %v1372 = vpop.f32.mrf.mxu0
        %v1373 = vadd.f32 %v1119, %v1372
        %1374 = vmatmul.f32.gmra.mxu0 %v1150
        %v1375 = vpop.f32.mrf.mxu0
        %v1376 = vadd.f32 %v1119, %v1375
        %1377 = vmatmul.f32.gmra.mxu0 %v1153
        %v1378 = vpop.f32.mrf.mxu0
        %v1379 = vadd.f32 %v1119, %v1378
        %1380 = vmatmul.f32.gmra.mxu0 %v1156
        %v1381 = vpop.f32.mrf.mxu0
        %v1382 = vadd.f32 %v1119, %v1381
        %1383 = vmatmul.f32.gmra.mxu0 %v1159
        %v1384 = vpop.f32.mrf.mxu0
        %v1385 = vadd.f32 %v1119, %v1384
        %1386 = vmatmul.f32.gmra.mxu0 %v1162
        %v1387 = vpop.f32.mrf.mxu0
        %v1388 = vadd.f32 %v1119, %v1387
        %1389 = vmatmul.f32.gmra.mxu0 %v1165
        %v1390 = vpop.f32.mrf.mxu0
        %v1391 = vadd.f32 %v1119, %v1390
        %1392 = vmatmul.f32.gmra.mxu0 %v1168
        %v1393 = vpop.f32.mrf.mxu0
        %v1394 = vadd.f32 %v1119, %v1393
        %1395 = vmatmul.f32.gmra.mxu0 %v1171
        %v1396 = vpop.f32.mrf.mxu0
        %v1397 = vadd.f32 %v1119, %v1396
        %1398 = vmatmul.f32.gmra.mxu0 %v1174
        %v1399 = vpop.f32.mrf.mxu0
        %v1400 = vadd.f32 %v1119, %v1399
        %1401 = vmatmul.f32.gmra.mxu0 %v1177
        %v1402 = vpop.f32.mrf.mxu0
        %v1403 = vadd.f32 %v1119, %v1402
        %1404 = vmatmul.f32.gmra.mxu0 %v1180
        %v1405 = vpop.f32.mrf.mxu0
        %v1406 = vadd.f32 %v1119, %v1405
        %1407 = vmatmul.f32.gmra.mxu0 %v1183
        %v1408 = vpop.f32.mrf.mxu0
        %v1409 = vadd.f32 %v1119, %v1408
        %1410 = vmatmul.f32.gmra.mxu0 %v1186
        %v1411 = vpop.f32.mrf.mxu0
        %v1412 = vadd.f32 %v1119, %v1411
        %1413 = vmatmul.f32.gmra.mxu0 %v1189
        %v1414 = vpop.f32.mrf.mxu0
        %v1415 = vadd.f32 %v1119, %v1414
        %1416 = vmatmul.f32.gmra.mxu0 %v1192
        %v1417 = vpop.f32.mrf.mxu0
        %v1418 = vadd.f32 %v1119, %v1417
        %1419 = vmatmul.f32.gmra.mxu0 %v1195
        %v1420 = vpop.f32.mrf.mxu0
        %v1421 = vadd.f32 %v1119, %v1420
        %1422 = vmatmul.f32.gmra.mxu0 %v1198
        %v1423 = vpop.f32.mrf.mxu0
        %v1424 = vadd.f32 %v1119, %v1423
        %1425 = vmatmul.f32.gmra.mxu0 %v1201
        %v1426 = vpop.f32.mrf.mxu0
        %v1427 = vadd.f32 %v1119, %v1426
        %1428 = vmatmul.f32.gmra.mxu0 %v1204
        %v1429 = vpop.f32.mrf.mxu0
        %v1430 = vadd.f32 %v1119, %v1429
        %1431 = vmatmul.f32.gmra.mxu0 %v1207
        %v1432 = vpop.f32.mrf.mxu0
        %v1433 = vadd.f32 %v1119, %v1432
        %1434 = vmatmul.f32.gmra.mxu0 %v1210
        %v1435 = vpop.f32.mrf.mxu0
        %v1436 = vadd.f32 %v1119, %v1435
        %1437 = vmatmul.f32.gmra.mxu0 %v1213
        %v1438 = vpop.f32.mrf.mxu0
        %v1439 = vadd.f32 %v1119, %v1438
        %1440 = vmatmul.f32.gmra.mxu0 %v1216
        %v1441 = vpop.f32.mrf.mxu0
        %v1442 = vadd.f32 %v1119, %v1441
        %1443 = vdwg.mxu0
        %1476 = vrot.lane.b32.xlu0 %v1236, 112
        %v1477 = vpop.permute.xlu0 %1476
        %1478 = vrot.lane.b32.xlu0 %v1239, 112
        %v1479 = vpop.permute.xlu0 %1478
        %1480 = vrot.lane.b32.xlu0 %v1242, 112
        %v1481 = vpop.permute.xlu0 %1480
        %1482 = vrot.lane.b32.xlu0 %v1245, 112
        %v1483 = vpop.permute.xlu0 %1482
        %1484 = vrot.lane.b32.xlu0 %v1248, 112
        %v1485 = vpop.permute.xlu0 %1484
        %1486 = vrot.lane.b32.xlu0 %v1251, 112
        %v1487 = vpop.permute.xlu0 %1486
        %1488 = vrot.lane.b32.xlu0 %v1254, 112
        %v1489 = vpop.permute.xlu0 %1488
        %1490 = vrot.lane.b32.xlu0 %v1257, 112
        %v1491 = vpop.permute.xlu0 %1490
        %1492 = vrot.lane.b32.xlu0 %v1260, 112
        %v1493 = vpop.permute.xlu0 %1492
        %1494 = vrot.lane.b32.xlu0 %v1263, 112
        %v1495 = vpop.permute.xlu0 %1494
        %1496 = vrot.lane.b32.xlu0 %v1266, 112
        %v1497 = vpop.permute.xlu0 %1496
        %1498 = vrot.lane.b32.xlu0 %v1269, 112
        %v1499 = vpop.permute.xlu0 %1498
        %1500 = vrot.lane.b32.xlu0 %v1272, 112
        %v1501 = vpop.permute.xlu0 %1500
        %1502 = vrot.lane.b32.xlu0 %v1275, 112
        %v1503 = vpop.permute.xlu0 %1502
        %1504 = vrot.lane.b32.xlu0 %v1278, 112
        %v1505 = vpop.permute.xlu0 %1504
        %1506 = vrot.lane.b32.xlu0 %v1281, 112
        %v1507 = vpop.permute.xlu0 %1506
        %1508 = vrot.lane.b32.xlu0 %v1284, 112
        %v1509 = vpop.permute.xlu0 %1508
        %1510 = vrot.lane.b32.xlu0 %v1287, 112
        %v1511 = vpop.permute.xlu0 %1510
        %1512 = vrot.lane.b32.xlu0 %v1290, 112
        %v1513 = vpop.permute.xlu0 %1512
        %1514 = vrot.lane.b32.xlu0 %v1293, 112
        %v1515 = vpop.permute.xlu0 %1514
        %1516 = vrot.lane.b32.xlu0 %v1296, 112
        %v1517 = vpop.permute.xlu0 %1516
        %1518 = vrot.lane.b32.xlu0 %v1299, 112
        %v1519 = vpop.permute.xlu0 %1518
        %1520 = vrot.lane.b32.xlu0 %v1302, 112
        %v1521 = vpop.permute.xlu0 %1520
        %1522 = vrot.lane.b32.xlu0 %v1305, 112
        %v1523 = vpop.permute.xlu0 %1522
        %1524 = vrot.lane.b32.xlu0 %v1308, 112
        %v1525 = vpop.permute.xlu0 %1524
        %1526 = vrot.lane.b32.xlu0 %v1311, 112
        %v1527 = vpop.permute.xlu0 %1526
        %1528 = vrot.lane.b32.xlu0 %v1314, 112
        %v1529 = vpop.permute.xlu0 %1528
        %1530 = vrot.lane.b32.xlu0 %v1317, 112
        %v1531 = vpop.permute.xlu0 %1530
        %1532 = vrot.lane.b32.xlu0 %v1320, 112
        %v1533 = vpop.permute.xlu0 %1532
        %1534 = vrot.lane.b32.xlu0 %v1323, 112
        %v1535 = vpop.permute.xlu0 %1534
        %1536 = vrot.lane.b32.xlu0 %v1326, 112
        %v1537 = vpop.permute.xlu0 %1536
        %1538 = vrot.lane.b32.xlu0 %v1329, 112
        %v1539 = vpop.permute.xlu0 %1538
        %1540 = vrot.lane.b32.xlu0 %v1236, 96
        %v1541 = vpop.permute.xlu0 %1540
        %1542 = vrot.lane.b32.xlu0 %v1239, 96
        %v1543 = vpop.permute.xlu0 %1542
        %1544 = vrot.lane.b32.xlu0 %v1242, 96
        %v1545 = vpop.permute.xlu0 %1544
        %1546 = vrot.lane.b32.xlu0 %v1245, 96
        %v1547 = vpop.permute.xlu0 %1546
        %1548 = vrot.lane.b32.xlu0 %v1248, 96
        %v1549 = vpop.permute.xlu0 %1548
        %1550 = vrot.lane.b32.xlu0 %v1251, 96
        %v1551 = vpop.permute.xlu0 %1550
        %1552 = vrot.lane.b32.xlu0 %v1254, 96
        %v1553 = vpop.permute.xlu0 %1552
        %1554 = vrot.lane.b32.xlu0 %v1257, 96
        %v1555 = vpop.permute.xlu0 %1554
        %1556 = vrot.lane.b32.xlu0 %v1260, 96
        %v1557 = vpop.permute.xlu0 %1556
        %1558 = vrot.lane.b32.xlu0 %v1263, 96
        %v1559 = vpop.permute.xlu0 %1558
        %1560 = vrot.lane.b32.xlu0 %v1266, 96
        %v1561 = vpop.permute.xlu0 %1560
        %1562 = vrot.lane.b32.xlu0 %v1269, 96
        %v1563 = vpop.permute.xlu0 %1562
        %1564 = vrot.lane.b32.xlu0 %v1272, 96
        %v1565 = vpop.permute.xlu0 %1564
        %1566 = vrot.lane.b32.xlu0 %v1275, 96
        %v1567 = vpop.permute.xlu0 %1566
        %1568 = vrot.lane.b32.xlu0 %v1278, 96
        %v1569 = vpop.permute.xlu0 %1568
        %1570 = vrot.lane.b32.xlu0 %v1281, 96
        %v1571 = vpop.permute.xlu0 %1570
        %1572 = vrot.lane.b32.xlu0 %v1284, 96
        %v1573 = vpop.permute.xlu0 %1572
        %1574 = vrot.lane.b32.xlu0 %v1287, 96
        %v1575 = vpop.permute.xlu0 %1574
        %1576 = vrot.lane.b32.xlu0 %v1290, 96
        %v1577 = vpop.permute.xlu0 %1576
        %1578 = vrot.lane.b32.xlu0 %v1293, 96
        %v1579 = vpop.permute.xlu0 %1578
        %1580 = vrot.lane.b32.xlu0 %v1296, 96
        %v1581 = vpop.permute.xlu0 %1580
        %1582 = vrot.lane.b32.xlu0 %v1299, 96
        %v1583 = vpop.permute.xlu0 %1582
        %1584 = vrot.lane.b32.xlu0 %v1302, 96
        %v1585 = vpop.permute.xlu0 %1584
        %1586 = vrot.lane.b32.xlu0 %v1305, 96
        %v1587 = vpop.permute.xlu0 %1586
        %1588 = vrot.lane.b32.xlu0 %v1308, 96
        %v1589 = vpop.permute.xlu0 %1588
        %1590 = vrot.lane.b32.xlu0 %v1311, 96
        %v1591 = vpop.permute.xlu0 %1590
        %1592 = vrot.lane.b32.xlu0 %v1314, 96
        %v1593 = vpop.permute.xlu0 %1592
        %1594 = vrot.lane.b32.xlu0 %v1317, 96
        %v1595 = vpop.permute.xlu0 %1594
        %1596 = vrot.lane.b32.xlu0 %v1320, 96
        %v1597 = vpop.permute.xlu0 %1596
        %1598 = vrot.lane.b32.xlu0 %v1323, 96
        %v1599 = vpop.permute.xlu0 %1598
        %1600 = vrot.lane.b32.xlu0 %v1326, 96
        %v1601 = vpop.permute.xlu0 %1600
        %1602 = vrot.lane.b32.xlu0 %v1329, 96
        %v1603 = vpop.permute.xlu0 %1602
        %1604 = vrot.lane.b32.xlu0 %v1236, 80
        %v1605 = vpop.permute.xlu0 %1604
        %1606 = vrot.lane.b32.xlu0 %v1239, 80
        %v1607 = vpop.permute.xlu0 %1606
        %1608 = vrot.lane.b32.xlu0 %v1242, 80
        %v1609 = vpop.permute.xlu0 %1608
        %1610 = vrot.lane.b32.xlu0 %v1245, 80
        %v1611 = vpop.permute.xlu0 %1610
        %1612 = vrot.lane.b32.xlu0 %v1248, 80
        %v1613 = vpop.permute.xlu0 %1612
        %1614 = vrot.lane.b32.xlu0 %v1251, 80
        %v1615 = vpop.permute.xlu0 %1614
        %1616 = vrot.lane.b32.xlu0 %v1254, 80
        %v1617 = vpop.permute.xlu0 %1616
        %1618 = vrot.lane.b32.xlu0 %v1257, 80
        %v1619 = vpop.permute.xlu0 %1618
        %1620 = vrot.lane.b32.xlu0 %v1260, 80
        %v1621 = vpop.permute.xlu0 %1620
        %1622 = vrot.lane.b32.xlu0 %v1263, 80
        %v1623 = vpop.permute.xlu0 %1622
        %1624 = vrot.lane.b32.xlu0 %v1266, 80
        %v1625 = vpop.permute.xlu0 %1624
        %1626 = vrot.lane.b32.xlu0 %v1269, 80
        %v1627 = vpop.permute.xlu0 %1626
        %1628 = vrot.lane.b32.xlu0 %v1272, 80
        %v1629 = vpop.permute.xlu0 %1628
        %1630 = vrot.lane.b32.xlu0 %v1275, 80
        %v1631 = vpop.permute.xlu0 %1630
        %1632 = vrot.lane.b32.xlu0 %v1278, 80
        %v1633 = vpop.permute.xlu0 %1632
        %1634 = vrot.lane.b32.xlu0 %v1281, 80
        %v1635 = vpop.permute.xlu0 %1634
        %1636 = vrot.lane.b32.xlu0 %v1284, 80
        %v1637 = vpop.permute.xlu0 %1636
        %1638 = vrot.lane.b32.xlu0 %v1287, 80
        %v1639 = vpop.permute.xlu0 %1638
        %1640 = vrot.lane.b32.xlu0 %v1290, 80
        %v1641 = vpop.permute.xlu0 %1640
        %1642 = vrot.lane.b32.xlu0 %v1293, 80
        %v1643 = vpop.permute.xlu0 %1642
        %1644 = vrot.lane.b32.xlu0 %v1296, 80
        %v1645 = vpop.permute.xlu0 %1644
        %1646 = vrot.lane.b32.xlu0 %v1299, 80
        %v1647 = vpop.permute.xlu0 %1646
        %1648 = vrot.lane.b32.xlu0 %v1302, 80
        %v1649 = vpop.permute.xlu0 %1648
        %1650 = vrot.lane.b32.xlu0 %v1305, 80
        %v1651 = vpop.permute.xlu0 %1650
        %1652 = vrot.lane.b32.xlu0 %v1308, 80
        %v1653 = vpop.permute.xlu0 %1652
        %1654 = vrot.lane.b32.xlu0 %v1311, 80
        %v1655 = vpop.permute.xlu0 %1654
        %1656 = vrot.lane.b32.xlu0 %v1314, 80
        %v1657 = vpop.permute.xlu0 %1656
        %1658 = vrot.lane.b32.xlu0 %v1317, 80
        %v1659 = vpop.permute.xlu0 %1658
        %1660 = vrot.lane.b32.xlu0 %v1320, 80
        %v1661 = vpop.permute.xlu0 %1660
        %1662 = vrot.lane.b32.xlu0 %v1323, 80
        %v1663 = vpop.permute.xlu0 %1662
        %1664 = vrot.lane.b32.xlu0 %v1326, 80
        %v1665 = vpop.permute.xlu0 %1664
        %1666 = vrot.lane.b32.xlu0 %v1329, 80
        %v1667 = vpop.permute.xlu0 %1666
        %1700 = vrot.lane.b32.xlu0 %v1349, 112
        %v1701 = vpop.permute.xlu0 %1700
        %1702 = vrot.lane.b32.xlu0 %v1352, 112
        %v1703 = vpop.permute.xlu0 %1702
        %1704 = vrot.lane.b32.xlu0 %v1355, 112
        %v1705 = vpop.permute.xlu0 %1704
        %1706 = vrot.lane.b32.xlu0 %v1358, 112
        %v1707 = vpop.permute.xlu0 %1706
        %1708 = vrot.lane.b32.xlu0 %v1361, 112
        %v1709 = vpop.permute.xlu0 %1708
        %1710 = vrot.lane.b32.xlu0 %v1364, 112
        %v1711 = vpop.permute.xlu0 %1710
        %1712 = vrot.lane.b32.xlu0 %v1367, 112
        %v1713 = vpop.permute.xlu0 %1712
        %1714 = vrot.lane.b32.xlu0 %v1370, 112
        %v1715 = vpop.permute.xlu0 %1714
        %1716 = vrot.lane.b32.xlu0 %v1373, 112
        %v1717 = vpop.permute.xlu0 %1716
        %1718 = vrot.lane.b32.xlu0 %v1376, 112
        %v1719 = vpop.permute.xlu0 %1718
        %1720 = vrot.lane.b32.xlu0 %v1379, 112
        %v1721 = vpop.permute.xlu0 %1720
        %1722 = vrot.lane.b32.xlu0 %v1382, 112
        %v1723 = vpop.permute.xlu0 %1722
        %1724 = vrot.lane.b32.xlu0 %v1385, 112
        %v1725 = vpop.permute.xlu0 %1724
        %1726 = vrot.lane.b32.xlu0 %v1388, 112
        %v1727 = vpop.permute.xlu0 %1726
        %1728 = vrot.lane.b32.xlu0 %v1391, 112
        %v1729 = vpop.permute.xlu0 %1728
        %1730 = vrot.lane.b32.xlu0 %v1394, 112
        %v1731 = vpop.permute.xlu0 %1730
        %1732 = vrot.lane.b32.xlu0 %v1397, 112
        %v1733 = vpop.permute.xlu0 %1732
        %1734 = vrot.lane.b32.xlu0 %v1400, 112
        %v1735 = vpop.permute.xlu0 %1734
        %1736 = vrot.lane.b32.xlu0 %v1403, 112
        %v1737 = vpop.permute.xlu0 %1736
        %1738 = vrot.lane.b32.xlu0 %v1406, 112
        %v1739 = vpop.permute.xlu0 %1738
        %1740 = vrot.lane.b32.xlu0 %v1409, 112
        %v1741 = vpop.permute.xlu0 %1740
        %1742 = vrot.lane.b32.xlu0 %v1412, 112
        %v1743 = vpop.permute.xlu0 %1742
        %1744 = vrot.lane.b32.xlu0 %v1415, 112
        %v1745 = vpop.permute.xlu0 %1744
        %1746 = vrot.lane.b32.xlu0 %v1418, 112
        %v1747 = vpop.permute.xlu0 %1746
        %1748 = vrot.lane.b32.xlu0 %v1421, 112
        %v1749 = vpop.permute.xlu0 %1748
        %1750 = vrot.lane.b32.xlu0 %v1424, 112
        %v1751 = vpop.permute.xlu0 %1750
        %1752 = vrot.lane.b32.xlu0 %v1427, 112
        %v1753 = vpop.permute.xlu0 %1752
        %1754 = vrot.lane.b32.xlu0 %v1430, 112
        %v1755 = vpop.permute.xlu0 %1754
        %1756 = vrot.lane.b32.xlu0 %v1433, 112
        %v1757 = vpop.permute.xlu0 %1756
        %1758 = vrot.lane.b32.xlu0 %v1436, 112
        %v1759 = vpop.permute.xlu0 %1758
        %1760 = vrot.lane.b32.xlu0 %v1439, 112
        %v1761 = vpop.permute.xlu0 %1760
        %1762 = vrot.lane.b32.xlu0 %v1442, 112
        %v1763 = vpop.permute.xlu0 %1762
        %1796 = vrot.lane.b32.xlu0 %v1349, 96
        %v1797 = vpop.permute.xlu0 %1796
        %1798 = vrot.lane.b32.xlu0 %v1352, 96
        %v1799 = vpop.permute.xlu0 %1798
        %1800 = vrot.lane.b32.xlu0 %v1355, 96
        %v1801 = vpop.permute.xlu0 %1800
        %1802 = vrot.lane.b32.xlu0 %v1358, 96
        %v1803 = vpop.permute.xlu0 %1802
        %1804 = vrot.lane.b32.xlu0 %v1361, 96
        %v1805 = vpop.permute.xlu0 %1804
        %1806 = vrot.lane.b32.xlu0 %v1364, 96
        %v1807 = vpop.permute.xlu0 %1806
        %1808 = vrot.lane.b32.xlu0 %v1367, 96
        %v1809 = vpop.permute.xlu0 %1808
        %1810 = vrot.lane.b32.xlu0 %v1370, 96
        %v1811 = vpop.permute.xlu0 %1810
        %1812 = vrot.lane.b32.xlu0 %v1373, 96
        %v1813 = vpop.permute.xlu0 %1812
        %1814 = vrot.lane.b32.xlu0 %v1376, 96
        %v1815 = vpop.permute.xlu0 %1814
        %1816 = vrot.lane.b32.xlu0 %v1379, 96
        %v1817 = vpop.permute.xlu0 %1816
        %1818 = vrot.lane.b32.xlu0 %v1382, 96
        %v1819 = vpop.permute.xlu0 %1818
        %1820 = vrot.lane.b32.xlu0 %v1385, 96
        %v1821 = vpop.permute.xlu0 %1820
        %1822 = vrot.lane.b32.xlu0 %v1388, 96
        %v1823 = vpop.permute.xlu0 %1822
        %1824 = vrot.lane.b32.xlu0 %v1391, 96
        %v1825 = vpop.permute.xlu0 %1824
        %1826 = vrot.lane.b32.xlu0 %v1394, 96
        %v1827 = vpop.permute.xlu0 %1826
        %1828 = vrot.lane.b32.xlu0 %v1397, 96
        %v1829 = vpop.permute.xlu0 %1828
        %1830 = vrot.lane.b32.xlu0 %v1400, 96
        %v1831 = vpop.permute.xlu0 %1830
        %1832 = vrot.lane.b32.xlu0 %v1403, 96
        %v1833 = vpop.permute.xlu0 %1832
        %1834 = vrot.lane.b32.xlu0 %v1406, 96
        %v1835 = vpop.permute.xlu0 %1834
        %1836 = vrot.lane.b32.xlu0 %v1409, 96
        %v1837 = vpop.permute.xlu0 %1836
        %1838 = vrot.lane.b32.xlu0 %v1412, 96
        %v1839 = vpop.permute.xlu0 %1838
        %1840 = vrot.lane.b32.xlu0 %v1415, 96
        %v1841 = vpop.permute.xlu0 %1840
        %1842 = vrot.lane.b32.xlu0 %v1418, 96
        %v1843 = vpop.permute.xlu0 %1842
        %1844 = vrot.lane.b32.xlu0 %v1421, 96
        %v1845 = vpop.permute.xlu0 %1844
        %1846 = vrot.lane.b32.xlu0 %v1424, 96
        %v1847 = vpop.permute.xlu0 %1846
        %1848 = vrot.lane.b32.xlu0 %v1427, 96
        %v1849 = vpop.permute.xlu0 %1848
        %1850 = vrot.lane.b32.xlu0 %v1430, 96
        %v1851 = vpop.permute.xlu0 %1850
        %1852 = vrot.lane.b32.xlu0 %v1433, 96
        %v1853 = vpop.permute.xlu0 %1852
        %1854 = vrot.lane.b32.xlu0 %v1436, 96
        %v1855 = vpop.permute.xlu0 %1854
        %1856 = vrot.lane.b32.xlu0 %v1439, 96
        %v1857 = vpop.permute.xlu0 %1856
        %1858 = vrot.lane.b32.xlu0 %v1442, 96
        %v1859 = vpop.permute.xlu0 %1858
        %1892 = vrot.lane.b32.xlu0 %v1349, 80
        %v1893 = vpop.permute.xlu0 %1892
        %1894 = vrot.lane.b32.xlu0 %v1352, 80
        %v1895 = vpop.permute.xlu0 %1894
        %1896 = vrot.lane.b32.xlu0 %v1355, 80
        %v1897 = vpop.permute.xlu0 %1896
        %1898 = vrot.lane.b32.xlu0 %v1358, 80
        %v1899 = vpop.permute.xlu0 %1898
        %1900 = vrot.lane.b32.xlu0 %v1361, 80
        %v1901 = vpop.permute.xlu0 %1900
        %1902 = vrot.lane.b32.xlu0 %v1364, 80
        %v1903 = vpop.permute.xlu0 %1902
        %1904 = vrot.lane.b32.xlu0 %v1367, 80
        %v1905 = vpop.permute.xlu0 %1904
        %1906 = vrot.lane.b32.xlu0 %v1370, 80
        %v1907 = vpop.permute.xlu0 %1906
        %1908 = vrot.lane.b32.xlu0 %v1373, 80
        %v1909 = vpop.permute.xlu0 %1908
        %1910 = vrot.lane.b32.xlu0 %v1376, 80
        %v1911 = vpop.permute.xlu0 %1910
        %1912 = vrot.lane.b32.xlu0 %v1379, 80
        %v1913 = vpop.permute.xlu0 %1912
        %1914 = vrot.lane.b32.xlu0 %v1382, 80
        %v1915 = vpop.permute.xlu0 %1914
        %1916 = vrot.lane.b32.xlu0 %v1385, 80
        %v1917 = vpop.permute.xlu0 %1916
        %1918 = vrot.lane.b32.xlu0 %v1388, 80
        %v1919 = vpop.permute.xlu0 %1918
        %1920 = vrot.lane.b32.xlu0 %v1391, 80
        %v1921 = vpop.permute.xlu0 %1920
        %1922 = vrot.lane.b32.xlu0 %v1394, 80
        %v1923 = vpop.permute.xlu0 %1922
        %1924 = vrot.lane.b32.xlu0 %v1397, 80
        %v1925 = vpop.permute.xlu0 %1924
        %1926 = vrot.lane.b32.xlu0 %v1400, 80
        %v1927 = vpop.permute.xlu0 %1926
        %1928 = vrot.lane.b32.xlu0 %v1403, 80
        %v1929 = vpop.permute.xlu0 %1928
        %1930 = vrot.lane.b32.xlu0 %v1406, 80
        %v1931 = vpop.permute.xlu0 %1930
        %1932 = vrot.lane.b32.xlu0 %v1409, 80
        %v1933 = vpop.permute.xlu0 %1932
        %1934 = vrot.lane.b32.xlu0 %v1412, 80
        %v1935 = vpop.permute.xlu0 %1934
        %1936 = vrot.lane.b32.xlu0 %v1415, 80
        %v1937 = vpop.permute.xlu0 %1936
        %1938 = vrot.lane.b32.xlu0 %v1418, 80
        %v1939 = vpop.permute.xlu0 %1938
        %1940 = vrot.lane.b32.xlu0 %v1421, 80
        %v1941 = vpop.permute.xlu0 %1940
        %1942 = vrot.lane.b32.xlu0 %v1424, 80
        %v1943 = vpop.permute.xlu0 %1942
        %1944 = vrot.lane.b32.xlu0 %v1427, 80
        %v1945 = vpop.permute.xlu0 %1944
        %1946 = vrot.lane.b32.xlu0 %v1430, 80
        %v1947 = vpop.permute.xlu0 %1946
        %1948 = vrot.lane.b32.xlu0 %v1433, 80
        %v1949 = vpop.permute.xlu0 %1948
        %1950 = vrot.lane.b32.xlu0 %v1436, 80
        %v1951 = vpop.permute.xlu0 %1950
        %1952 = vrot.lane.b32.xlu0 %v1439, 80
        %v1953 = vpop.permute.xlu0 %1952
        %1954 = vrot.lane.b32.xlu0 %v1442, 80
        %v1955 = vpop.permute.xlu0 %1954
        %v1988 = vlaneseq
        %v1989 = vshrl.u32 %v1988, 7
        %v1990 = vadd.s32 %v1989, 8
        %v1991 = vadd.s32 %v1989, 16
        %v1992 = vadd.s32 %v1989, 24
        %v1993 = vlaneseq
        %v1994 = vand.u32 %v1993, 127
        %vm1995 = vcmp.ge.s32.totalorder %v1989, %v1994
        %vm1996 = vcmp.ge.s32.totalorder %v1990, %v1994
        %vm1997 = vcmp.ge.s32.totalorder %v1991, %v1994
        %vm1998 = vcmp.ge.s32.totalorder %v1992, %v1994
        %1999 = vrot.lane.b32.xlu0 %v1236, 64
        %v2000 = vpop.permute.xlu0 %1999
        %2001 = vrot.lane.b32.xlu0 %v1239, 64
        %v2002 = vpop.permute.xlu0 %2001
        %2003 = vrot.lane.b32.xlu0 %v1242, 64
        %v2004 = vpop.permute.xlu0 %2003
        %2005 = vrot.lane.b32.xlu0 %v1245, 64
        %v2006 = vpop.permute.xlu0 %2005
        %vm2007 = vcmask 130048
        %v2008 = vsel %vm2007, %v1236, 0
        %v2010 = vsel %vm2007, %v1239, 0
        %v2012 = vsel %vm2007, %v1242, 0
        %v2014 = vsel %vm2007, %v1245, 0
        %v2016 = vsel %vm2007, %v2000, 0
        %v2018 = vsel %vm2007, %v2002, 0
        %v2020 = vsel %vm2007, %v2004, 0
        %v2022 = vsel %vm2007, %v2006, 0
        %2024 = vmatpush.xpose.msra.mxu0 0.0
        %2025 = vmatpush.xpose.msra.mxu0 0.0
        %2026 = vmatpush.xpose.msra.mxu0 0.0
        %2027 = vmatpush.xpose.msra.mxu0 0.0
        %2028 = vmatpush.xpose.msra.mxu0 0.0
        %2029 = vmatpush.xpose.msra.mxu0 0.0
        %2030 = vmatpush.xpose.msra.mxu0 0.0
        %2031 = vmatpush.xpose.msra.mxu0 0.0
        %2032 = vmatpush.xpose.msra.mxu0 0.0
        %2033 = vmatpush.xpose.msra.mxu0 0.0
        %2034 = vmatpush.xpose.msra.mxu0 0.0
        %2035 = vmatpush.xpose.msra.mxu0 0.0
        %2036 = vmatpush.xpose.msra.mxu0 %v2022
        %2037 = vmatpush.xpose.msra.mxu0 %v2020
        %2038 = vmatpush.xpose.msra.mxu0 %v2018
        %2039 = vmatpush.xpose.msra.mxu0 %v2016
        %2040 = vmatmul.f32.gmra.mxu0 %v2008
        %v2041 = vpop.f32.mrf.mxu0
        %v2042 = vadd.f32 0.0, %v2041
        %2043 = vmatmul.f32.gmra.mxu0 %v2010
        %v2044 = vpop.f32.mrf.mxu0
        %v2045 = vadd.f32 0.0, %v2044
        %2046 = vmatmul.f32.gmra.mxu0 %v2012
        %v2047 = vpop.f32.mrf.mxu0
        %v2048 = vadd.f32 0.0, %v2047
        %2049 = vmatmul.f32.gmra.mxu0 %v2014
        %v2050 = vpop.f32.mrf.mxu0
        %v2051 = vadd.f32 0.0, %v2050
        %2052 = vdwg.mxu0
        %2053 = vrot.lane.b32.xlu0 %v1248, 64
        %v2054 = vpop.permute.xlu0 %2053
        %2055 = vrot.lane.b32.xlu0 %v1251, 64
        %v2056 = vpop.permute.xlu0 %2055
        %2057 = vrot.lane.b32.xlu0 %v1254, 64
        %v2058 = vpop.permute.xlu0 %2057
        %2059 = vrot.lane.b32.xlu0 %v1257, 64
        %v2060 = vpop.permute.xlu0 %2059
        %v2061 = vsel %vm2007, %v1248, 0
        %v2063 = vsel %vm2007, %v1251, 0
        %v2065 = vsel %vm2007, %v1254, 0
        %v2067 = vsel %vm2007, %v1257, 0
        %v2069 = vsel %vm2007, %v2054, 0
        %v2071 = vsel %vm2007, %v2056, 0
        %v2073 = vsel %vm2007, %v2058, 0
        %v2075 = vsel %vm2007, %v2060, 0
        %2077 = vmatpush.xpose.msra.mxu0 0.0
        %2078 = vmatpush.xpose.msra.mxu0 0.0
        %2079 = vmatpush.xpose.msra.mxu0 0.0
        %2080 = vmatpush.xpose.msra.mxu0 0.0
        %2081 = vmatpush.xpose.msra.mxu0 0.0
        %2082 = vmatpush.xpose.msra.mxu0 0.0
        %2083 = vmatpush.xpose.msra.mxu0 0.0
        %2084 = vmatpush.xpose.msra.mxu0 0.0
        %2085 = vmatpush.xpose.msra.mxu0 0.0
        %2086 = vmatpush.xpose.msra.mxu0 0.0
        %2087 = vmatpush.xpose.msra.mxu0 0.0
        %2088 = vmatpush.xpose.msra.mxu0 0.0
        %2089 = vmatpush.xpose.msra.mxu0 %v2075
        %2090 = vmatpush.xpose.msra.mxu0 %v2073
        %2091 = vmatpush.xpose.msra.mxu0 %v2071
        %2092 = vmatpush.xpose.msra.mxu0 %v2069
        %2093 = vmatmul.f32.gmra.mxu0 %v2061
        %v2094 = vpop.f32.mrf.mxu0
        %v2095 = vadd.f32 0.0, %v2094
        %2096 = vmatmul.f32.gmra.mxu0 %v2063
        %v2097 = vpop.f32.mrf.mxu0
        %v2098 = vadd.f32 0.0, %v2097
        %2099 = vmatmul.f32.gmra.mxu0 %v2065
        %v2100 = vpop.f32.mrf.mxu0
        %v2101 = vadd.f32 0.0, %v2100
        %2102 = vmatmul.f32.gmra.mxu0 %v2067
        %v2103 = vpop.f32.mrf.mxu0
        %v2104 = vadd.f32 0.0, %v2103
        %2105 = vdwg.mxu0
        %2106 = vrot.lane.b32.xlu0 %v1260, 64
        %v2107 = vpop.permute.xlu0 %2106
        %2108 = vrot.lane.b32.xlu0 %v1263, 64
        %v2109 = vpop.permute.xlu0 %2108
        %2110 = vrot.lane.b32.xlu0 %v1266, 64
        %v2111 = vpop.permute.xlu0 %2110
        %2112 = vrot.lane.b32.xlu0 %v1269, 64
        %v2113 = vpop.permute.xlu0 %2112
        %v2114 = vsel %vm2007, %v1260, 0
        %v2116 = vsel %vm2007, %v1263, 0
        %v2118 = vsel %vm2007, %v1266, 0
        %v2120 = vsel %vm2007, %v1269, 0
        %v2122 = vsel %vm2007, %v2107, 0
        %v2124 = vsel %vm2007, %v2109, 0
        %v2126 = vsel %vm2007, %v2111, 0
        %v2128 = vsel %vm2007, %v2113, 0
        %2130 = vmatpush.xpose.msra.mxu0 0.0
        %2131 = vmatpush.xpose.msra.mxu0 0.0
        %2132 = vmatpush.xpose.msra.mxu0 0.0
        %2133 = vmatpush.xpose.msra.mxu0 0.0
        %2134 = vmatpush.xpose.msra.mxu0 0.0
        %2135 = vmatpush.xpose.msra.mxu0 0.0
        %2136 = vmatpush.xpose.msra.mxu0 0.0
        %2137 = vmatpush.xpose.msra.mxu0 0.0
        %2138 = vmatpush.xpose.msra.mxu0 0.0
        %2139 = vmatpush.xpose.msra.mxu0 0.0
        %2140 = vmatpush.xpose.msra.mxu0 0.0
        %2141 = vmatpush.xpose.msra.mxu0 0.0
        %2142 = vmatpush.xpose.msra.mxu0 %v2128
        %2143 = vmatpush.xpose.msra.mxu0 %v2126
        %2144 = vmatpush.xpose.msra.mxu0 %v2124
        %2145 = vmatpush.xpose.msra.mxu0 %v2122
        %2146 = vmatmul.f32.gmra.mxu0 %v2114
        %v2147 = vpop.f32.mrf.mxu0
        %v2148 = vadd.f32 0.0, %v2147
        %2149 = vmatmul.f32.gmra.mxu0 %v2116
        %v2150 = vpop.f32.mrf.mxu0
        %v2151 = vadd.f32 0.0, %v2150
        %2152 = vmatmul.f32.gmra.mxu0 %v2118
        %v2153 = vpop.f32.mrf.mxu0
        %v2154 = vadd.f32 0.0, %v2153
        %2155 = vmatmul.f32.gmra.mxu0 %v2120
        %v2156 = vpop.f32.mrf.mxu0
        %v2157 = vadd.f32 0.0, %v2156
        %2158 = vdwg.mxu0
        %2159 = vrot.lane.b32.xlu0 %v1272, 64
        %v2160 = vpop.permute.xlu0 %2159
        %2161 = vrot.lane.b32.xlu0 %v1275, 64
        %v2162 = vpop.permute.xlu0 %2161
        %2163 = vrot.lane.b32.xlu0 %v1278, 64
        %v2164 = vpop.permute.xlu0 %2163
        %2165 = vrot.lane.b32.xlu0 %v1281, 64
        %v2166 = vpop.permute.xlu0 %2165
        %v2167 = vsel %vm2007, %v1272, 0
        %v2169 = vsel %vm2007, %v1275, 0
        %v2171 = vsel %vm2007, %v1278, 0
        %v2173 = vsel %vm2007, %v1281, 0
        %v2175 = vsel %vm2007, %v2160, 0
        %v2177 = vsel %vm2007, %v2162, 0
        %v2179 = vsel %vm2007, %v2164, 0
        %v2181 = vsel %vm2007, %v2166, 0
        %2183 = vmatpush.xpose.msra.mxu0 0.0
        %2184 = vmatpush.xpose.msra.mxu0 0.0
        %2185 = vmatpush.xpose.msra.mxu0 0.0
        %2186 = vmatpush.xpose.msra.mxu0 0.0
        %2187 = vmatpush.xpose.msra.mxu0 0.0
        %2188 = vmatpush.xpose.msra.mxu0 0.0
        %2189 = vmatpush.xpose.msra.mxu0 0.0
        %2190 = vmatpush.xpose.msra.mxu0 0.0
        %2191 = vmatpush.xpose.msra.mxu0 0.0
        %2192 = vmatpush.xpose.msra.mxu0 0.0
        %2193 = vmatpush.xpose.msra.mxu0 0.0
        %2194 = vmatpush.xpose.msra.mxu0 0.0
        %2195 = vmatpush.xpose.msra.mxu0 %v2181
        %2196 = vmatpush.xpose.msra.mxu0 %v2179
        %2197 = vmatpush.xpose.msra.mxu0 %v2177
        %2198 = vmatpush.xpose.msra.mxu0 %v2175
        %2199 = vmatmul.f32.gmra.mxu0 %v2167
        %v2200 = vpop.f32.mrf.mxu0
        %v2201 = vadd.f32 0.0, %v2200
        %2202 = vmatmul.f32.gmra.mxu0 %v2169
        %v2203 = vpop.f32.mrf.mxu0
        %v2204 = vadd.f32 0.0, %v2203
        %2205 = vmatmul.f32.gmra.mxu0 %v2171
        %v2206 = vpop.f32.mrf.mxu0
        %v2207 = vadd.f32 0.0, %v2206
        %2208 = vmatmul.f32.gmra.mxu0 %v2173
        %v2209 = vpop.f32.mrf.mxu0
        %v2210 = vadd.f32 0.0, %v2209
        %2211 = vdwg.mxu0
        %2212 = vrot.lane.b32.xlu0 %v1284, 64
        %v2213 = vpop.permute.xlu0 %2212
        %2214 = vrot.lane.b32.xlu0 %v1287, 64
        %v2215 = vpop.permute.xlu0 %2214
        %2216 = vrot.lane.b32.xlu0 %v1290, 64
        %v2217 = vpop.permute.xlu0 %2216
        %2218 = vrot.lane.b32.xlu0 %v1293, 64
        %v2219 = vpop.permute.xlu0 %2218
        %v2220 = vsel %vm2007, %v1284, 0
        %v2222 = vsel %vm2007, %v1287, 0
        %v2224 = vsel %vm2007, %v1290, 0
        %v2226 = vsel %vm2007, %v1293, 0
        %v2228 = vsel %vm2007, %v2213, 0
        %v2230 = vsel %vm2007, %v2215, 0
        %v2232 = vsel %vm2007, %v2217, 0
        %v2234 = vsel %vm2007, %v2219, 0
        %2236 = vmatpush.xpose.msra.mxu0 0.0
        %2237 = vmatpush.xpose.msra.mxu0 0.0
        %2238 = vmatpush.xpose.msra.mxu0 0.0
        %2239 = vmatpush.xpose.msra.mxu0 0.0
        %2240 = vmatpush.xpose.msra.mxu0 0.0
        %2241 = vmatpush.xpose.msra.mxu0 0.0
        %2242 = vmatpush.xpose.msra.mxu0 0.0
        %2243 = vmatpush.xpose.msra.mxu0 0.0
        %2244 = vmatpush.xpose.msra.mxu0 0.0
        %2245 = vmatpush.xpose.msra.mxu0 0.0
        %2246 = vmatpush.xpose.msra.mxu0 0.0
        %2247 = vmatpush.xpose.msra.mxu0 0.0
        %2248 = vmatpush.xpose.msra.mxu0 %v2234
        %2249 = vmatpush.xpose.msra.mxu0 %v2232
        %2250 = vmatpush.xpose.msra.mxu0 %v2230
        %2251 = vmatpush.xpose.msra.mxu0 %v2228
        %2252 = vmatmul.f32.gmra.mxu0 %v2220
        %v2253 = vpop.f32.mrf.mxu0
        %v2254 = vadd.f32 0.0, %v2253
        %2255 = vmatmul.f32.gmra.mxu0 %v2222
        %v2256 = vpop.f32.mrf.mxu0
        %v2257 = vadd.f32 0.0, %v2256
        %2258 = vmatmul.f32.gmra.mxu0 %v2224
        %v2259 = vpop.f32.mrf.mxu0
        %v2260 = vadd.f32 0.0, %v2259
        %2261 = vmatmul.f32.gmra.mxu0 %v2226
        %v2262 = vpop.f32.mrf.mxu0
        %v2263 = vadd.f32 0.0, %v2262
        %2264 = vdwg.mxu0
        %2265 = vrot.lane.b32.xlu0 %v1296, 64
        %v2266 = vpop.permute.xlu0 %2265
        %2267 = vrot.lane.b32.xlu0 %v1299, 64
        %v2268 = vpop.permute.xlu0 %2267
        %2269 = vrot.lane.b32.xlu0 %v1302, 64
        %v2270 = vpop.permute.xlu0 %2269
        %2271 = vrot.lane.b32.xlu0 %v1305, 64
        %v2272 = vpop.permute.xlu0 %2271
        %v2273 = vsel %vm2007, %v1296, 0
        %v2275 = vsel %vm2007, %v1299, 0
        %v2277 = vsel %vm2007, %v1302, 0
        %v2279 = vsel %vm2007, %v1305, 0
        %v2281 = vsel %vm2007, %v2266, 0
        %v2283 = vsel %vm2007, %v2268, 0
        %v2285 = vsel %vm2007, %v2270, 0
        %v2287 = vsel %vm2007, %v2272, 0
        %2289 = vmatpush.xpose.msra.mxu0 0.0
        %2290 = vmatpush.xpose.msra.mxu0 0.0
        %2291 = vmatpush.xpose.msra.mxu0 0.0
        %2292 = vmatpush.xpose.msra.mxu0 0.0
        %2293 = vmatpush.xpose.msra.mxu0 0.0
        %2294 = vmatpush.xpose.msra.mxu0 0.0
        %2295 = vmatpush.xpose.msra.mxu0 0.0
        %2296 = vmatpush.xpose.msra.mxu0 0.0
        %2297 = vmatpush.xpose.msra.mxu0 0.0
        %2298 = vmatpush.xpose.msra.mxu0 0.0
        %2299 = vmatpush.xpose.msra.mxu0 0.0
        %2300 = vmatpush.xpose.msra.mxu0 0.0
        %2301 = vmatpush.xpose.msra.mxu0 %v2287
        %2302 = vmatpush.xpose.msra.mxu0 %v2285
        %2303 = vmatpush.xpose.msra.mxu0 %v2283
        %2304 = vmatpush.xpose.msra.mxu0 %v2281
        %2305 = vmatmul.f32.gmra.mxu0 %v2273
        %v2306 = vpop.f32.mrf.mxu0
        %v2307 = vadd.f32 0.0, %v2306
        %2308 = vmatmul.f32.gmra.mxu0 %v2275
        %v2309 = vpop.f32.mrf.mxu0
        %v2310 = vadd.f32 0.0, %v2309
        %2311 = vmatmul.f32.gmra.mxu0 %v2277
        %v2312 = vpop.f32.mrf.mxu0
        %v2313 = vadd.f32 0.0, %v2312
        %2314 = vmatmul.f32.gmra.mxu0 %v2279
        %v2315 = vpop.f32.mrf.mxu0
        %v2316 = vadd.f32 0.0, %v2315
        %2317 = vdwg.mxu0
        %2318 = vrot.lane.b32.xlu0 %v1308, 64
        %v2319 = vpop.permute.xlu0 %2318
        %2320 = vrot.lane.b32.xlu0 %v1311, 64
        %v2321 = vpop.permute.xlu0 %2320
        %2322 = vrot.lane.b32.xlu0 %v1314, 64
        %v2323 = vpop.permute.xlu0 %2322
        %2324 = vrot.lane.b32.xlu0 %v1317, 64
        %v2325 = vpop.permute.xlu0 %2324
        %v2326 = vsel %vm2007, %v1308, 0
        %v2328 = vsel %vm2007, %v1311, 0
        %v2330 = vsel %vm2007, %v1314, 0
        %v2332 = vsel %vm2007, %v1317, 0
        %v2334 = vsel %vm2007, %v2319, 0
        %v2336 = vsel %vm2007, %v2321, 0
        %v2338 = vsel %vm2007, %v2323, 0
        %v2340 = vsel %vm2007, %v2325, 0
        %2342 = vmatpush.xpose.msra.mxu0 0.0
        %2343 = vmatpush.xpose.msra.mxu0 0.0
        %2344 = vmatpush.xpose.msra.mxu0 0.0
        %2345 = vmatpush.xpose.msra.mxu0 0.0
        %2346 = vmatpush.xpose.msra.mxu0 0.0
        %2347 = vmatpush.xpose.msra.mxu0 0.0
        %2348 = vmatpush.xpose.msra.mxu0 0.0
        %2349 = vmatpush.xpose.msra.mxu0 0.0
        %2350 = vmatpush.xpose.msra.mxu0 0.0
        %2351 = vmatpush.xpose.msra.mxu0 0.0
        %2352 = vmatpush.xpose.msra.mxu0 0.0
        %2353 = vmatpush.xpose.msra.mxu0 0.0
        %2354 = vmatpush.xpose.msra.mxu0 %v2340
        %2355 = vmatpush.xpose.msra.mxu0 %v2338
        %2356 = vmatpush.xpose.msra.mxu0 %v2336
        %2357 = vmatpush.xpose.msra.mxu0 %v2334
        %2358 = vmatmul.f32.gmra.mxu0 %v2326
        %v2359 = vpop.f32.mrf.mxu0
        %v2360 = vadd.f32 0.0, %v2359
        %2361 = vmatmul.f32.gmra.mxu0 %v2328
        %v2362 = vpop.f32.mrf.mxu0
        %v2363 = vadd.f32 0.0, %v2362
        %2364 = vmatmul.f32.gmra.mxu0 %v2330
        %v2365 = vpop.f32.mrf.mxu0
        %v2366 = vadd.f32 0.0, %v2365
        %2367 = vmatmul.f32.gmra.mxu0 %v2332
        %v2368 = vpop.f32.mrf.mxu0
        %v2369 = vadd.f32 0.0, %v2368
        %2370 = vdwg.mxu0
        %2371 = vrot.lane.b32.xlu0 %v1320, 64
        %v2372 = vpop.permute.xlu0 %2371
        %2373 = vrot.lane.b32.xlu0 %v1323, 64
        %v2374 = vpop.permute.xlu0 %2373
        %2375 = vrot.lane.b32.xlu0 %v1326, 64
        %v2376 = vpop.permute.xlu0 %2375
        %2377 = vrot.lane.b32.xlu0 %v1329, 64
        %v2378 = vpop.permute.xlu0 %2377
        %v2379 = vsel %vm2007, %v1320, 0
        %v2381 = vsel %vm2007, %v1323, 0
        %v2383 = vsel %vm2007, %v1326, 0
        %v2385 = vsel %vm2007, %v1329, 0
        %v2387 = vsel %vm2007, %v2372, 0
        %v2389 = vsel %vm2007, %v2374, 0
        %v2391 = vsel %vm2007, %v2376, 0
        %v2393 = vsel %vm2007, %v2378, 0
        %2395 = vmatpush.xpose.msra.mxu0 0.0
        %2396 = vmatpush.xpose.msra.mxu0 0.0
        %2397 = vmatpush.xpose.msra.mxu0 0.0
        %2398 = vmatpush.xpose.msra.mxu0 0.0
        %2399 = vmatpush.xpose.msra.mxu0 0.0
        %2400 = vmatpush.xpose.msra.mxu0 0.0
        %2401 = vmatpush.xpose.msra.mxu0 0.0
        %2402 = vmatpush.xpose.msra.mxu0 0.0
        %2403 = vmatpush.xpose.msra.mxu0 0.0
        %2404 = vmatpush.xpose.msra.mxu0 0.0
        %2405 = vmatpush.xpose.msra.mxu0 0.0
        %2406 = vmatpush.xpose.msra.mxu0 0.0
        %2407 = vmatpush.xpose.msra.mxu0 %v2393
        %2408 = vmatpush.xpose.msra.mxu0 %v2391
        %2409 = vmatpush.xpose.msra.mxu0 %v2389
        %2410 = vmatpush.xpose.msra.mxu0 %v2387
        %2411 = vmatmul.f32.gmra.mxu0 %v2379
        %v2412 = vpop.f32.mrf.mxu0
        %v2413 = vadd.f32 0.0, %v2412
        %2414 = vmatmul.f32.gmra.mxu0 %v2381
        %v2415 = vpop.f32.mrf.mxu0
        %v2416 = vadd.f32 0.0, %v2415
        %2417 = vmatmul.f32.gmra.mxu0 %v2383
        %v2418 = vpop.f32.mrf.mxu0
        %v2419 = vadd.f32 0.0, %v2418
        %2420 = vmatmul.f32.gmra.mxu0 %v2385
        %v2421 = vpop.f32.mrf.mxu0
        %v2422 = vadd.f32 0.0, %v2421
        %2423 = vdwg.mxu0
        %2424 = vrot.lane.b32.xlu0 %v1477, 64
        %v2425 = vpop.permute.xlu0 %2424
        %2426 = vrot.lane.b32.xlu0 %v1479, 64
        %v2427 = vpop.permute.xlu0 %2426
        %2428 = vrot.lane.b32.xlu0 %v1481, 64
        %v2429 = vpop.permute.xlu0 %2428
        %2430 = vrot.lane.b32.xlu0 %v1483, 64
        %v2431 = vpop.permute.xlu0 %2430
        %v2432 = vsel %vm2007, %v1477, 0
        %v2434 = vsel %vm2007, %v1479, 0
        %v2436 = vsel %vm2007, %v1481, 0
        %v2438 = vsel %vm2007, %v1483, 0
        %v2440 = vsel %vm2007, %v2425, 0
        %v2442 = vsel %vm2007, %v2427, 0
        %v2444 = vsel %vm2007, %v2429, 0
        %v2446 = vsel %vm2007, %v2431, 0
        %2448 = vmatpush.xpose.msra.mxu0 0.0
        %2449 = vmatpush.xpose.msra.mxu0 0.0
        %2450 = vmatpush.xpose.msra.mxu0 0.0
        %2451 = vmatpush.xpose.msra.mxu0 0.0
        %2452 = vmatpush.xpose.msra.mxu0 0.0
        %2453 = vmatpush.xpose.msra.mxu0 0.0
        %2454 = vmatpush.xpose.msra.mxu0 0.0
        %2455 = vmatpush.xpose.msra.mxu0 0.0
        %2456 = vmatpush.xpose.msra.mxu0 0.0
        %2457 = vmatpush.xpose.msra.mxu0 0.0
        %2458 = vmatpush.xpose.msra.mxu0 0.0
        %2459 = vmatpush.xpose.msra.mxu0 0.0
        %2460 = vmatpush.xpose.msra.mxu0 %v2446
        %2461 = vmatpush.xpose.msra.mxu0 %v2444
        %2462 = vmatpush.xpose.msra.mxu0 %v2442
        %2463 = vmatpush.xpose.msra.mxu0 %v2440
        %2464 = vmatmul.f32.gmra.mxu0 %v2432
        %v2465 = vpop.f32.mrf.mxu0
        %v2466 = vadd.f32 0.0, %v2465
        %2467 = vmatmul.f32.gmra.mxu0 %v2434
        %v2468 = vpop.f32.mrf.mxu0
        %v2469 = vadd.f32 0.0, %v2468
        %2470 = vmatmul.f32.gmra.mxu0 %v2436
        %v2471 = vpop.f32.mrf.mxu0
        %v2472 = vadd.f32 0.0, %v2471
        %2473 = vmatmul.f32.gmra.mxu0 %v2438
        %v2474 = vpop.f32.mrf.mxu0
        %v2475 = vadd.f32 0.0, %v2474
        %2476 = vdwg.mxu0
        %2477 = vrot.lane.b32.xlu0 %v1485, 64
        %v2478 = vpop.permute.xlu0 %2477
        %2479 = vrot.lane.b32.xlu0 %v1487, 64
        %v2480 = vpop.permute.xlu0 %2479
        %2481 = vrot.lane.b32.xlu0 %v1489, 64
        %v2482 = vpop.permute.xlu0 %2481
        %2483 = vrot.lane.b32.xlu0 %v1491, 64
        %v2484 = vpop.permute.xlu0 %2483
        %v2485 = vsel %vm2007, %v1485, 0
        %v2487 = vsel %vm2007, %v1487, 0
        %v2489 = vsel %vm2007, %v1489, 0
        %v2491 = vsel %vm2007, %v1491, 0
        %v2493 = vsel %vm2007, %v2478, 0
        %v2495 = vsel %vm2007, %v2480, 0
        %v2497 = vsel %vm2007, %v2482, 0
        %v2499 = vsel %vm2007, %v2484, 0
        %2501 = vmatpush.xpose.msra.mxu0 0.0
        %2502 = vmatpush.xpose.msra.mxu0 0.0
        %2503 = vmatpush.xpose.msra.mxu0 0.0
        %2504 = vmatpush.xpose.msra.mxu0 0.0
        %2505 = vmatpush.xpose.msra.mxu0 0.0
        %2506 = vmatpush.xpose.msra.mxu0 0.0
        %2507 = vmatpush.xpose.msra.mxu0 0.0
        %2508 = vmatpush.xpose.msra.mxu0 0.0
        %2509 = vmatpush.xpose.msra.mxu0 0.0
        %2510 = vmatpush.xpose.msra.mxu0 0.0
        %2511 = vmatpush.xpose.msra.mxu0 0.0
        %2512 = vmatpush.xpose.msra.mxu0 0.0
        %2513 = vmatpush.xpose.msra.mxu0 %v2499
        %2514 = vmatpush.xpose.msra.mxu0 %v2497
        %2515 = vmatpush.xpose.msra.mxu0 %v2495
        %2516 = vmatpush.xpose.msra.mxu0 %v2493
        %2517 = vmatmul.f32.gmra.mxu0 %v2485
        %v2518 = vpop.f32.mrf.mxu0
        %v2519 = vadd.f32 0.0, %v2518
        %2520 = vmatmul.f32.gmra.mxu0 %v2487
        %v2521 = vpop.f32.mrf.mxu0
        %v2522 = vadd.f32 0.0, %v2521
        %2523 = vmatmul.f32.gmra.mxu0 %v2489
        %v2524 = vpop.f32.mrf.mxu0
        %v2525 = vadd.f32 0.0, %v2524
        %2526 = vmatmul.f32.gmra.mxu0 %v2491
        %v2527 = vpop.f32.mrf.mxu0
        %v2528 = vadd.f32 0.0, %v2527
        %2529 = vdwg.mxu0
        %2530 = vrot.lane.b32.xlu0 %v1493, 64
        %v2531 = vpop.permute.xlu0 %2530
        %2532 = vrot.lane.b32.xlu0 %v1495, 64
        %v2533 = vpop.permute.xlu0 %2532
        %2534 = vrot.lane.b32.xlu0 %v1497, 64
        %v2535 = vpop.permute.xlu0 %2534
        %2536 = vrot.lane.b32.xlu0 %v1499, 64
        %v2537 = vpop.permute.xlu0 %2536
        %v2538 = vsel %vm2007, %v1493, 0
        %v2540 = vsel %vm2007, %v1495, 0
        %v2542 = vsel %vm2007, %v1497, 0
        %v2544 = vsel %vm2007, %v1499, 0
        %v2546 = vsel %vm2007, %v2531, 0
        %v2548 = vsel %vm2007, %v2533, 0
        %v2550 = vsel %vm2007, %v2535, 0
        %v2552 = vsel %vm2007, %v2537, 0
        %2554 = vmatpush.xpose.msra.mxu0 0.0
        %2555 = vmatpush.xpose.msra.mxu0 0.0
        %2556 = vmatpush.xpose.msra.mxu0 0.0
        %2557 = vmatpush.xpose.msra.mxu0 0.0
        %2558 = vmatpush.xpose.msra.mxu0 0.0
        %2559 = vmatpush.xpose.msra.mxu0 0.0
        %2560 = vmatpush.xpose.msra.mxu0 0.0
        %2561 = vmatpush.xpose.msra.mxu0 0.0
        %2562 = vmatpush.xpose.msra.mxu0 0.0
        %2563 = vmatpush.xpose.msra.mxu0 0.0
        %2564 = vmatpush.xpose.msra.mxu0 0.0
        %2565 = vmatpush.xpose.msra.mxu0 0.0
        %2566 = vmatpush.xpose.msra.mxu0 %v2552
        %2567 = vmatpush.xpose.msra.mxu0 %v2550
        %2568 = vmatpush.xpose.msra.mxu0 %v2548
        %2569 = vmatpush.xpose.msra.mxu0 %v2546
        %2570 = vmatmul.f32.gmra.mxu0 %v2538
        %v2571 = vpop.f32.mrf.mxu0
        %v2572 = vadd.f32 0.0, %v2571
        %2573 = vmatmul.f32.gmra.mxu0 %v2540
        %v2574 = vpop.f32.mrf.mxu0
        %v2575 = vadd.f32 0.0, %v2574
        %2576 = vmatmul.f32.gmra.mxu0 %v2542
        %v2577 = vpop.f32.mrf.mxu0
        %v2578 = vadd.f32 0.0, %v2577
        %2579 = vmatmul.f32.gmra.mxu0 %v2544
        %v2580 = vpop.f32.mrf.mxu0
        %v2581 = vadd.f32 0.0, %v2580
        %2582 = vdwg.mxu0
        %2583 = vrot.lane.b32.xlu0 %v1501, 64
        %v2584 = vpop.permute.xlu0 %2583
        %2585 = vrot.lane.b32.xlu0 %v1503, 64
        %v2586 = vpop.permute.xlu0 %2585
        %2587 = vrot.lane.b32.xlu0 %v1505, 64
        %v2588 = vpop.permute.xlu0 %2587
        %2589 = vrot.lane.b32.xlu0 %v1507, 64
        %v2590 = vpop.permute.xlu0 %2589
        %v2591 = vsel %vm2007, %v1501, 0
        %v2593 = vsel %vm2007, %v1503, 0
        %v2595 = vsel %vm2007, %v1505, 0
        %v2597 = vsel %vm2007, %v1507, 0
        %v2599 = vsel %vm2007, %v2584, 0
        %v2601 = vsel %vm2007, %v2586, 0
        %v2603 = vsel %vm2007, %v2588, 0
        %v2605 = vsel %vm2007, %v2590, 0
        %2607 = vmatpush.xpose.msra.mxu0 0.0
        %2608 = vmatpush.xpose.msra.mxu0 0.0
        %2609 = vmatpush.xpose.msra.mxu0 0.0
        %2610 = vmatpush.xpose.msra.mxu0 0.0
        %2611 = vmatpush.xpose.msra.mxu0 0.0
        %2612 = vmatpush.xpose.msra.mxu0 0.0
        %2613 = vmatpush.xpose.msra.mxu0 0.0
        %2614 = vmatpush.xpose.msra.mxu0 0.0
        %2615 = vmatpush.xpose.msra.mxu0 0.0
        %2616 = vmatpush.xpose.msra.mxu0 0.0
        %2617 = vmatpush.xpose.msra.mxu0 0.0
        %2618 = vmatpush.xpose.msra.mxu0 0.0
        %2619 = vmatpush.xpose.msra.mxu0 %v2605
        %2620 = vmatpush.xpose.msra.mxu0 %v2603
        %2621 = vmatpush.xpose.msra.mxu0 %v2601
        %2622 = vmatpush.xpose.msra.mxu0 %v2599
        %2623 = vmatmul.f32.gmra.mxu0 %v2591
        %v2624 = vpop.f32.mrf.mxu0
        %v2625 = vadd.f32 0.0, %v2624
        %2626 = vmatmul.f32.gmra.mxu0 %v2593
        %v2627 = vpop.f32.mrf.mxu0
        %v2628 = vadd.f32 0.0, %v2627
        %2629 = vmatmul.f32.gmra.mxu0 %v2595
        %v2630 = vpop.f32.mrf.mxu0
        %v2631 = vadd.f32 0.0, %v2630
        %2632 = vmatmul.f32.gmra.mxu0 %v2597
        %v2633 = vpop.f32.mrf.mxu0
        %v2634 = vadd.f32 0.0, %v2633
        %2635 = vdwg.mxu0
        %2636 = vrot.lane.b32.xlu0 %v1509, 64
        %v2637 = vpop.permute.xlu0 %2636
        %2638 = vrot.lane.b32.xlu0 %v1511, 64
        %v2639 = vpop.permute.xlu0 %2638
        %2640 = vrot.lane.b32.xlu0 %v1513, 64
        %v2641 = vpop.permute.xlu0 %2640
        %2642 = vrot.lane.b32.xlu0 %v1515, 64
        %v2643 = vpop.permute.xlu0 %2642
        %v2644 = vsel %vm2007, %v1509, 0
        %v2646 = vsel %vm2007, %v1511, 0
        %v2648 = vsel %vm2007, %v1513, 0
        %v2650 = vsel %vm2007, %v1515, 0
        %v2652 = vsel %vm2007, %v2637, 0
        %v2654 = vsel %vm2007, %v2639, 0
        %v2656 = vsel %vm2007, %v2641, 0
        %v2658 = vsel %vm2007, %v2643, 0
        %2660 = vmatpush.xpose.msra.mxu0 0.0
        %2661 = vmatpush.xpose.msra.mxu0 0.0
        %2662 = vmatpush.xpose.msra.mxu0 0.0
        %2663 = vmatpush.xpose.msra.mxu0 0.0
        %2664 = vmatpush.xpose.msra.mxu0 0.0
        %2665 = vmatpush.xpose.msra.mxu0 0.0
        %2666 = vmatpush.xpose.msra.mxu0 0.0
        %2667 = vmatpush.xpose.msra.mxu0 0.0
        %2668 = vmatpush.xpose.msra.mxu0 0.0
        %2669 = vmatpush.xpose.msra.mxu0 0.0
        %2670 = vmatpush.xpose.msra.mxu0 0.0
        %2671 = vmatpush.xpose.msra.mxu0 0.0
        %2672 = vmatpush.xpose.msra.mxu0 %v2658
        %2673 = vmatpush.xpose.msra.mxu0 %v2656
        %2674 = vmatpush.xpose.msra.mxu0 %v2654
        %2675 = vmatpush.xpose.msra.mxu0 %v2652
        %2676 = vmatmul.f32.gmra.mxu0 %v2644
        %v2677 = vpop.f32.mrf.mxu0
        %v2678 = vadd.f32 0.0, %v2677
        %2679 = vmatmul.f32.gmra.mxu0 %v2646
        %v2680 = vpop.f32.mrf.mxu0
        %v2681 = vadd.f32 0.0, %v2680
        %2682 = vmatmul.f32.gmra.mxu0 %v2648
        %v2683 = vpop.f32.mrf.mxu0
        %v2684 = vadd.f32 0.0, %v2683
        %2685 = vmatmul.f32.gmra.mxu0 %v2650
        %v2686 = vpop.f32.mrf.mxu0
        %v2687 = vadd.f32 0.0, %v2686
        %2688 = vdwg.mxu0
        %2689 = vrot.lane.b32.xlu0 %v1517, 64
        %v2690 = vpop.permute.xlu0 %2689
        %2691 = vrot.lane.b32.xlu0 %v1519, 64
        %v2692 = vpop.permute.xlu0 %2691
        %2693 = vrot.lane.b32.xlu0 %v1521, 64
        %v2694 = vpop.permute.xlu0 %2693
        %2695 = vrot.lane.b32.xlu0 %v1523, 64
        %v2696 = vpop.permute.xlu0 %2695
        %v2697 = vsel %vm2007, %v1517, 0
        %v2699 = vsel %vm2007, %v1519, 0
        %v2701 = vsel %vm2007, %v1521, 0
        %v2703 = vsel %vm2007, %v1523, 0
        %v2705 = vsel %vm2007, %v2690, 0
        %v2707 = vsel %vm2007, %v2692, 0
        %v2709 = vsel %vm2007, %v2694, 0
        %v2711 = vsel %vm2007, %v2696, 0
        %2713 = vmatpush.xpose.msra.mxu0 0.0
        %2714 = vmatpush.xpose.msra.mxu0 0.0
        %2715 = vmatpush.xpose.msra.mxu0 0.0
        %2716 = vmatpush.xpose.msra.mxu0 0.0
        %2717 = vmatpush.xpose.msra.mxu0 0.0
        %2718 = vmatpush.xpose.msra.mxu0 0.0
        %2719 = vmatpush.xpose.msra.mxu0 0.0
        %2720 = vmatpush.xpose.msra.mxu0 0.0
        %2721 = vmatpush.xpose.msra.mxu0 0.0
        %2722 = vmatpush.xpose.msra.mxu0 0.0
        %2723 = vmatpush.xpose.msra.mxu0 0.0
        %2724 = vmatpush.xpose.msra.mxu0 0.0
        %2725 = vmatpush.xpose.msra.mxu0 %v2711
        %2726 = vmatpush.xpose.msra.mxu0 %v2709
        %2727 = vmatpush.xpose.msra.mxu0 %v2707
        %2728 = vmatpush.xpose.msra.mxu0 %v2705
        %2729 = vmatmul.f32.gmra.mxu0 %v2697
        %v2730 = vpop.f32.mrf.mxu0
        %v2731 = vadd.f32 0.0, %v2730
        %2732 = vmatmul.f32.gmra.mxu0 %v2699
        %v2733 = vpop.f32.mrf.mxu0
        %v2734 = vadd.f32 0.0, %v2733
        %2735 = vmatmul.f32.gmra.mxu0 %v2701
        %v2736 = vpop.f32.mrf.mxu0
        %v2737 = vadd.f32 0.0, %v2736
        %2738 = vmatmul.f32.gmra.mxu0 %v2703
        %v2739 = vpop.f32.mrf.mxu0
        %v2740 = vadd.f32 0.0, %v2739
        %2741 = vdwg.mxu0
        %2742 = vrot.lane.b32.xlu0 %v1525, 64
        %v2743 = vpop.permute.xlu0 %2742
        %2744 = vrot.lane.b32.xlu0 %v1527, 64
        %v2745 = vpop.permute.xlu0 %2744
        %2746 = vrot.lane.b32.xlu0 %v1529, 64
        %v2747 = vpop.permute.xlu0 %2746
        %2748 = vrot.lane.b32.xlu0 %v1531, 64
        %v2749 = vpop.permute.xlu0 %2748
        %v2750 = vsel %vm2007, %v1525, 0
        %v2752 = vsel %vm2007, %v1527, 0
        %v2754 = vsel %vm2007, %v1529, 0
        %v2756 = vsel %vm2007, %v1531, 0
        %v2758 = vsel %vm2007, %v2743, 0
        %v2760 = vsel %vm2007, %v2745, 0
        %v2762 = vsel %vm2007, %v2747, 0
        %v2764 = vsel %vm2007, %v2749, 0
        %2766 = vmatpush.xpose.msra.mxu0 0.0
        %2767 = vmatpush.xpose.msra.mxu0 0.0
        %2768 = vmatpush.xpose.msra.mxu0 0.0
        %2769 = vmatpush.xpose.msra.mxu0 0.0
        %2770 = vmatpush.xpose.msra.mxu0 0.0
        %2771 = vmatpush.xpose.msra.mxu0 0.0
        %2772 = vmatpush.xpose.msra.mxu0 0.0
        %2773 = vmatpush.xpose.msra.mxu0 0.0
        %2774 = vmatpush.xpose.msra.mxu0 0.0
        %2775 = vmatpush.xpose.msra.mxu0 0.0
        %2776 = vmatpush.xpose.msra.mxu0 0.0
        %2777 = vmatpush.xpose.msra.mxu0 0.0
        %2778 = vmatpush.xpose.msra.mxu0 %v2764
        %2779 = vmatpush.xpose.msra.mxu0 %v2762
        %2780 = vmatpush.xpose.msra.mxu0 %v2760
        %2781 = vmatpush.xpose.msra.mxu0 %v2758
        %2782 = vmatmul.f32.gmra.mxu0 %v2750
        %v2783 = vpop.f32.mrf.mxu0
        %v2784 = vadd.f32 0.0, %v2783
        %2785 = vmatmul.f32.gmra.mxu0 %v2752
        %v2786 = vpop.f32.mrf.mxu0
        %v2787 = vadd.f32 0.0, %v2786
        %2788 = vmatmul.f32.gmra.mxu0 %v2754
        %v2789 = vpop.f32.mrf.mxu0
        %v2790 = vadd.f32 0.0, %v2789
        %2791 = vmatmul.f32.gmra.mxu0 %v2756
        %v2792 = vpop.f32.mrf.mxu0
        %v2793 = vadd.f32 0.0, %v2792
        %2794 = vdwg.mxu0
        %2795 = vrot.lane.b32.xlu0 %v1533, 64
        %v2796 = vpop.permute.xlu0 %2795
        %2797 = vrot.lane.b32.xlu0 %v1535, 64
        %v2798 = vpop.permute.xlu0 %2797
        %2799 = vrot.lane.b32.xlu0 %v1537, 64
        %v2800 = vpop.permute.xlu0 %2799
        %2801 = vrot.lane.b32.xlu0 %v1539, 64
        %v2802 = vpop.permute.xlu0 %2801
        %v2803 = vsel %vm2007, %v1533, 0
        %v2805 = vsel %vm2007, %v1535, 0
        %v2807 = vsel %vm2007, %v1537, 0
        %v2809 = vsel %vm2007, %v1539, 0
        %v2811 = vsel %vm2007, %v2796, 0
        %v2813 = vsel %vm2007, %v2798, 0
        %v2815 = vsel %vm2007, %v2800, 0
        %v2817 = vsel %vm2007, %v2802, 0
        %2819 = vmatpush.xpose.msra.mxu0 0.0
        %2820 = vmatpush.xpose.msra.mxu0 0.0
        %2821 = vmatpush.xpose.msra.mxu0 0.0
        %2822 = vmatpush.xpose.msra.mxu0 0.0
        %2823 = vmatpush.xpose.msra.mxu0 0.0
        %2824 = vmatpush.xpose.msra.mxu0 0.0
        %2825 = vmatpush.xpose.msra.mxu0 0.0
        %2826 = vmatpush.xpose.msra.mxu0 0.0
        %2827 = vmatpush.xpose.msra.mxu0 0.0
        %2828 = vmatpush.xpose.msra.mxu0 0.0
        %2829 = vmatpush.xpose.msra.mxu0 0.0
        %2830 = vmatpush.xpose.msra.mxu0 0.0
        %2831 = vmatpush.xpose.msra.mxu0 %v2817
        %2832 = vmatpush.xpose.msra.mxu0 %v2815
        %2833 = vmatpush.xpose.msra.mxu0 %v2813
        %2834 = vmatpush.xpose.msra.mxu0 %v2811
        %2835 = vmatmul.f32.gmra.mxu0 %v2803
        %v2836 = vpop.f32.mrf.mxu0
        %v2837 = vadd.f32 0.0, %v2836
        %2838 = vmatmul.f32.gmra.mxu0 %v2805
        %v2839 = vpop.f32.mrf.mxu0
        %v2840 = vadd.f32 0.0, %v2839
        %2841 = vmatmul.f32.gmra.mxu0 %v2807
        %v2842 = vpop.f32.mrf.mxu0
        %v2843 = vadd.f32 0.0, %v2842
        %2844 = vmatmul.f32.gmra.mxu0 %v2809
        %v2845 = vpop.f32.mrf.mxu0
        %v2846 = vadd.f32 0.0, %v2845
        %2847 = vdwg.mxu0
        %2848 = vrot.lane.b32.xlu0 %v1541, 64
        %v2849 = vpop.permute.xlu0 %2848
        %2850 = vrot.lane.b32.xlu0 %v1543, 64
        %v2851 = vpop.permute.xlu0 %2850
        %2852 = vrot.lane.b32.xlu0 %v1545, 64
        %v2853 = vpop.permute.xlu0 %2852
        %2854 = vrot.lane.b32.xlu0 %v1547, 64
        %v2855 = vpop.permute.xlu0 %2854
        %v2856 = vsel %vm2007, %v1541, 0
        %v2858 = vsel %vm2007, %v1543, 0
        %v2860 = vsel %vm2007, %v1545, 0
        %v2862 = vsel %vm2007, %v1547, 0
        %v2864 = vsel %vm2007, %v2849, 0
        %v2866 = vsel %vm2007, %v2851, 0
        %v2868 = vsel %vm2007, %v2853, 0
        %v2870 = vsel %vm2007, %v2855, 0
        %2872 = vmatpush.xpose.msra.mxu0 0.0
        %2873 = vmatpush.xpose.msra.mxu0 0.0
        %2874 = vmatpush.xpose.msra.mxu0 0.0
        %2875 = vmatpush.xpose.msra.mxu0 0.0
        %2876 = vmatpush.xpose.msra.mxu0 0.0
        %2877 = vmatpush.xpose.msra.mxu0 0.0
        %2878 = vmatpush.xpose.msra.mxu0 0.0
        %2879 = vmatpush.xpose.msra.mxu0 0.0
        %2880 = vmatpush.xpose.msra.mxu0 0.0
        %2881 = vmatpush.xpose.msra.mxu0 0.0
        %2882 = vmatpush.xpose.msra.mxu0 0.0
        %2883 = vmatpush.xpose.msra.mxu0 0.0
        %2884 = vmatpush.xpose.msra.mxu0 %v2870
        %2885 = vmatpush.xpose.msra.mxu0 %v2868
        %2886 = vmatpush.xpose.msra.mxu0 %v2866
        %2887 = vmatpush.xpose.msra.mxu0 %v2864
        %2888 = vmatmul.f32.gmra.mxu0 %v2856
        %v2889 = vpop.f32.mrf.mxu0
        %v2890 = vadd.f32 0.0, %v2889
        %2891 = vmatmul.f32.gmra.mxu0 %v2858
        %v2892 = vpop.f32.mrf.mxu0
        %v2893 = vadd.f32 0.0, %v2892
        %2894 = vmatmul.f32.gmra.mxu0 %v2860
        %v2895 = vpop.f32.mrf.mxu0
        %v2896 = vadd.f32 0.0, %v2895
        %2897 = vmatmul.f32.gmra.mxu0 %v2862
        %v2898 = vpop.f32.mrf.mxu0
        %v2899 = vadd.f32 0.0, %v2898
        %2900 = vdwg.mxu0
        %2901 = vrot.lane.b32.xlu0 %v1549, 64
        %v2902 = vpop.permute.xlu0 %2901
        %2903 = vrot.lane.b32.xlu0 %v1551, 64
        %v2904 = vpop.permute.xlu0 %2903
        %2905 = vrot.lane.b32.xlu0 %v1553, 64
        %v2906 = vpop.permute.xlu0 %2905
        %2907 = vrot.lane.b32.xlu0 %v1555, 64
        %v2908 = vpop.permute.xlu0 %2907
        %v2909 = vsel %vm2007, %v1549, 0
        %v2911 = vsel %vm2007, %v1551, 0
        %v2913 = vsel %vm2007, %v1553, 0
        %v2915 = vsel %vm2007, %v1555, 0
        %v2917 = vsel %vm2007, %v2902, 0
        %v2919 = vsel %vm2007, %v2904, 0
        %v2921 = vsel %vm2007, %v2906, 0
        %v2923 = vsel %vm2007, %v2908, 0
        %2925 = vmatpush.xpose.msra.mxu0 0.0
        %2926 = vmatpush.xpose.msra.mxu0 0.0
        %2927 = vmatpush.xpose.msra.mxu0 0.0
        %2928 = vmatpush.xpose.msra.mxu0 0.0
        %2929 = vmatpush.xpose.msra.mxu0 0.0
        %2930 = vmatpush.xpose.msra.mxu0 0.0
        %2931 = vmatpush.xpose.msra.mxu0 0.0
        %2932 = vmatpush.xpose.msra.mxu0 0.0
        %2933 = vmatpush.xpose.msra.mxu0 0.0
        %2934 = vmatpush.xpose.msra.mxu0 0.0
        %2935 = vmatpush.xpose.msra.mxu0 0.0
        %2936 = vmatpush.xpose.msra.mxu0 0.0
        %2937 = vmatpush.xpose.msra.mxu0 %v2923
        %2938 = vmatpush.xpose.msra.mxu0 %v2921
        %2939 = vmatpush.xpose.msra.mxu0 %v2919
        %2940 = vmatpush.xpose.msra.mxu0 %v2917
        %2941 = vmatmul.f32.gmra.mxu0 %v2909
        %v2942 = vpop.f32.mrf.mxu0
        %v2943 = vadd.f32 0.0, %v2942
        %2944 = vmatmul.f32.gmra.mxu0 %v2911
        %v2945 = vpop.f32.mrf.mxu0
        %v2946 = vadd.f32 0.0, %v2945
        %2947 = vmatmul.f32.gmra.mxu0 %v2913
        %v2948 = vpop.f32.mrf.mxu0
        %v2949 = vadd.f32 0.0, %v2948
        %2950 = vmatmul.f32.gmra.mxu0 %v2915
        %v2951 = vpop.f32.mrf.mxu0
        %v2952 = vadd.f32 0.0, %v2951
        %2953 = vdwg.mxu0
        %2954 = vrot.lane.b32.xlu0 %v1557, 64
        %v2955 = vpop.permute.xlu0 %2954
        %2956 = vrot.lane.b32.xlu0 %v1559, 64
        %v2957 = vpop.permute.xlu0 %2956
        %2958 = vrot.lane.b32.xlu0 %v1561, 64
        %v2959 = vpop.permute.xlu0 %2958
        %2960 = vrot.lane.b32.xlu0 %v1563, 64
        %v2961 = vpop.permute.xlu0 %2960
        %v2962 = vsel %vm2007, %v1557, 0
        %v2964 = vsel %vm2007, %v1559, 0
        %v2966 = vsel %vm2007, %v1561, 0
        %v2968 = vsel %vm2007, %v1563, 0
        %v2970 = vsel %vm2007, %v2955, 0
        %v2972 = vsel %vm2007, %v2957, 0
        %v2974 = vsel %vm2007, %v2959, 0
        %v2976 = vsel %vm2007, %v2961, 0
        %2978 = vmatpush.xpose.msra.mxu0 0.0
        %2979 = vmatpush.xpose.msra.mxu0 0.0
        %2980 = vmatpush.xpose.msra.mxu0 0.0
        %2981 = vmatpush.xpose.msra.mxu0 0.0
        %2982 = vmatpush.xpose.msra.mxu0 0.0
        %2983 = vmatpush.xpose.msra.mxu0 0.0
        %2984 = vmatpush.xpose.msra.mxu0 0.0
        %2985 = vmatpush.xpose.msra.mxu0 0.0
        %2986 = vmatpush.xpose.msra.mxu0 0.0
        %2987 = vmatpush.xpose.msra.mxu0 0.0
        %2988 = vmatpush.xpose.msra.mxu0 0.0
        %2989 = vmatpush.xpose.msra.mxu0 0.0
        %2990 = vmatpush.xpose.msra.mxu0 %v2976
        %2991 = vmatpush.xpose.msra.mxu0 %v2974
        %2992 = vmatpush.xpose.msra.mxu0 %v2972
        %2993 = vmatpush.xpose.msra.mxu0 %v2970
        %2994 = vmatmul.f32.gmra.mxu0 %v2962
        %v2995 = vpop.f32.mrf.mxu0
        %v2996 = vadd.f32 0.0, %v2995
        %2997 = vmatmul.f32.gmra.mxu0 %v2964
        %v2998 = vpop.f32.mrf.mxu0
        %v2999 = vadd.f32 0.0, %v2998
        %3000 = vmatmul.f32.gmra.mxu0 %v2966
        %v3001 = vpop.f32.mrf.mxu0
        %v3002 = vadd.f32 0.0, %v3001
        %3003 = vmatmul.f32.gmra.mxu0 %v2968
        %v3004 = vpop.f32.mrf.mxu0
        %v3005 = vadd.f32 0.0, %v3004
        %3006 = vdwg.mxu0
        %3007 = vrot.lane.b32.xlu0 %v1565, 64
        %v3008 = vpop.permute.xlu0 %3007
        %3009 = vrot.lane.b32.xlu0 %v1567, 64
        %v3010 = vpop.permute.xlu0 %3009
        %3011 = vrot.lane.b32.xlu0 %v1569, 64
        %v3012 = vpop.permute.xlu0 %3011
        %3013 = vrot.lane.b32.xlu0 %v1571, 64
        %v3014 = vpop.permute.xlu0 %3013
        %v3015 = vsel %vm2007, %v1565, 0
        %v3017 = vsel %vm2007, %v1567, 0
        %v3019 = vsel %vm2007, %v1569, 0
        %v3021 = vsel %vm2007, %v1571, 0
        %v3023 = vsel %vm2007, %v3008, 0
        %v3025 = vsel %vm2007, %v3010, 0
        %v3027 = vsel %vm2007, %v3012, 0
        %v3029 = vsel %vm2007, %v3014, 0
        %3031 = vmatpush.xpose.msra.mxu0 0.0
        %3032 = vmatpush.xpose.msra.mxu0 0.0
        %3033 = vmatpush.xpose.msra.mxu0 0.0
        %3034 = vmatpush.xpose.msra.mxu0 0.0
        %3035 = vmatpush.xpose.msra.mxu0 0.0
        %3036 = vmatpush.xpose.msra.mxu0 0.0
        %3037 = vmatpush.xpose.msra.mxu0 0.0
        %3038 = vmatpush.xpose.msra.mxu0 0.0
        %3039 = vmatpush.xpose.msra.mxu0 0.0
        %3040 = vmatpush.xpose.msra.mxu0 0.0
        %3041 = vmatpush.xpose.msra.mxu0 0.0
        %3042 = vmatpush.xpose.msra.mxu0 0.0
        %3043 = vmatpush.xpose.msra.mxu0 %v3029
        %3044 = vmatpush.xpose.msra.mxu0 %v3027
        %3045 = vmatpush.xpose.msra.mxu0 %v3025
        %3046 = vmatpush.xpose.msra.mxu0 %v3023
        %3047 = vmatmul.f32.gmra.mxu0 %v3015
        %v3048 = vpop.f32.mrf.mxu0
        %v3049 = vadd.f32 0.0, %v3048
        %3050 = vmatmul.f32.gmra.mxu0 %v3017
        %v3051 = vpop.f32.mrf.mxu0
        %v3052 = vadd.f32 0.0, %v3051
        %3053 = vmatmul.f32.gmra.mxu0 %v3019
        %v3054 = vpop.f32.mrf.mxu0
        %v3055 = vadd.f32 0.0, %v3054
        %3056 = vmatmul.f32.gmra.mxu0 %v3021
        %v3057 = vpop.f32.mrf.mxu0
        %v3058 = vadd.f32 0.0, %v3057
        %3059 = vdwg.mxu0
        %3060 = vrot.lane.b32.xlu0 %v1573, 64
        %v3061 = vpop.permute.xlu0 %3060
        %3062 = vrot.lane.b32.xlu0 %v1575, 64
        %v3063 = vpop.permute.xlu0 %3062
        %3064 = vrot.lane.b32.xlu0 %v1577, 64
        %v3065 = vpop.permute.xlu0 %3064
        %3066 = vrot.lane.b32.xlu0 %v1579, 64
        %v3067 = vpop.permute.xlu0 %3066
        %v3068 = vsel %vm2007, %v1573, 0
        %v3070 = vsel %vm2007, %v1575, 0
        %v3072 = vsel %vm2007, %v1577, 0
        %v3074 = vsel %vm2007, %v1579, 0
        %v3076 = vsel %vm2007, %v3061, 0
        %v3078 = vsel %vm2007, %v3063, 0
        %v3080 = vsel %vm2007, %v3065, 0
        %v3082 = vsel %vm2007, %v3067, 0
        %3084 = vmatpush.xpose.msra.mxu0 0.0
        %3085 = vmatpush.xpose.msra.mxu0 0.0
        %3086 = vmatpush.xpose.msra.mxu0 0.0
        %3087 = vmatpush.xpose.msra.mxu0 0.0
        %3088 = vmatpush.xpose.msra.mxu0 0.0
        %3089 = vmatpush.xpose.msra.mxu0 0.0
        %3090 = vmatpush.xpose.msra.mxu0 0.0
        %3091 = vmatpush.xpose.msra.mxu0 0.0
        %3092 = vmatpush.xpose.msra.mxu0 0.0
        %3093 = vmatpush.xpose.msra.mxu0 0.0
        %3094 = vmatpush.xpose.msra.mxu0 0.0
        %3095 = vmatpush.xpose.msra.mxu0 0.0
        %3096 = vmatpush.xpose.msra.mxu0 %v3082
        %3097 = vmatpush.xpose.msra.mxu0 %v3080
        %3098 = vmatpush.xpose.msra.mxu0 %v3078
        %3099 = vmatpush.xpose.msra.mxu0 %v3076
        %3100 = vmatmul.f32.gmra.mxu0 %v3068
        %v3101 = vpop.f32.mrf.mxu0
        %v3102 = vadd.f32 0.0, %v3101
        %3103 = vmatmul.f32.gmra.mxu0 %v3070
        %v3104 = vpop.f32.mrf.mxu0
        %v3105 = vadd.f32 0.0, %v3104
        %3106 = vmatmul.f32.gmra.mxu0 %v3072
        %v3107 = vpop.f32.mrf.mxu0
        %v3108 = vadd.f32 0.0, %v3107
        %3109 = vmatmul.f32.gmra.mxu0 %v3074
        %v3110 = vpop.f32.mrf.mxu0
        %v3111 = vadd.f32 0.0, %v3110
        %3112 = vdwg.mxu0
        %3113 = vrot.lane.b32.xlu0 %v1581, 64
        %v3114 = vpop.permute.xlu0 %3113
        %3115 = vrot.lane.b32.xlu0 %v1583, 64
        %v3116 = vpop.permute.xlu0 %3115
        %3117 = vrot.lane.b32.xlu0 %v1585, 64
        %v3118 = vpop.permute.xlu0 %3117
        %3119 = vrot.lane.b32.xlu0 %v1587, 64
        %v3120 = vpop.permute.xlu0 %3119
        %v3121 = vsel %vm2007, %v1581, 0
        %v3123 = vsel %vm2007, %v1583, 0
        %v3125 = vsel %vm2007, %v1585, 0
        %v3127 = vsel %vm2007, %v1587, 0
        %v3129 = vsel %vm2007, %v3114, 0
        %v3131 = vsel %vm2007, %v3116, 0
        %v3133 = vsel %vm2007, %v3118, 0
        %v3135 = vsel %vm2007, %v3120, 0
        %3137 = vmatpush.xpose.msra.mxu0 0.0
        %3138 = vmatpush.xpose.msra.mxu0 0.0
        %3139 = vmatpush.xpose.msra.mxu0 0.0
        %3140 = vmatpush.xpose.msra.mxu0 0.0
        %3141 = vmatpush.xpose.msra.mxu0 0.0
        %3142 = vmatpush.xpose.msra.mxu0 0.0
        %3143 = vmatpush.xpose.msra.mxu0 0.0
        %3144 = vmatpush.xpose.msra.mxu0 0.0
        %3145 = vmatpush.xpose.msra.mxu0 0.0
        %3146 = vmatpush.xpose.msra.mxu0 0.0
        %3147 = vmatpush.xpose.msra.mxu0 0.0
        %3148 = vmatpush.xpose.msra.mxu0 0.0
        %3149 = vmatpush.xpose.msra.mxu0 %v3135
        %3150 = vmatpush.xpose.msra.mxu0 %v3133
        %3151 = vmatpush.xpose.msra.mxu0 %v3131
        %3152 = vmatpush.xpose.msra.mxu0 %v3129
        %3153 = vmatmul.f32.gmra.mxu0 %v3121
        %v3154 = vpop.f32.mrf.mxu0
        %v3155 = vadd.f32 0.0, %v3154
        %3156 = vmatmul.f32.gmra.mxu0 %v3123
        %v3157 = vpop.f32.mrf.mxu0
        %v3158 = vadd.f32 0.0, %v3157
        %3159 = vmatmul.f32.gmra.mxu0 %v3125
        %v3160 = vpop.f32.mrf.mxu0
        %v3161 = vadd.f32 0.0, %v3160
        %3162 = vmatmul.f32.gmra.mxu0 %v3127
        %v3163 = vpop.f32.mrf.mxu0
        %v3164 = vadd.f32 0.0, %v3163
        %3165 = vdwg.mxu0
        %3166 = vrot.lane.b32.xlu0 %v1589, 64
        %v3167 = vpop.permute.xlu0 %3166
        %3168 = vrot.lane.b32.xlu0 %v1591, 64
        %v3169 = vpop.permute.xlu0 %3168
        %3170 = vrot.lane.b32.xlu0 %v1593, 64
        %v3171 = vpop.permute.xlu0 %3170
        %3172 = vrot.lane.b32.xlu0 %v1595, 64
        %v3173 = vpop.permute.xlu0 %3172
        %v3174 = vsel %vm2007, %v1589, 0
        %v3176 = vsel %vm2007, %v1591, 0
        %v3178 = vsel %vm2007, %v1593, 0
        %v3180 = vsel %vm2007, %v1595, 0
        %v3182 = vsel %vm2007, %v3167, 0
        %v3184 = vsel %vm2007, %v3169, 0
        %v3186 = vsel %vm2007, %v3171, 0
        %v3188 = vsel %vm2007, %v3173, 0
        %3190 = vmatpush.xpose.msra.mxu0 0.0
        %3191 = vmatpush.xpose.msra.mxu0 0.0
        %3192 = vmatpush.xpose.msra.mxu0 0.0
        %3193 = vmatpush.xpose.msra.mxu0 0.0
        %3194 = vmatpush.xpose.msra.mxu0 0.0
        %3195 = vmatpush.xpose.msra.mxu0 0.0
        %3196 = vmatpush.xpose.msra.mxu0 0.0
        %3197 = vmatpush.xpose.msra.mxu0 0.0
        %3198 = vmatpush.xpose.msra.mxu0 0.0
        %3199 = vmatpush.xpose.msra.mxu0 0.0
        %3200 = vmatpush.xpose.msra.mxu0 0.0
        %3201 = vmatpush.xpose.msra.mxu0 0.0
        %3202 = vmatpush.xpose.msra.mxu0 %v3188
        %3203 = vmatpush.xpose.msra.mxu0 %v3186
        %3204 = vmatpush.xpose.msra.mxu0 %v3184
        %3205 = vmatpush.xpose.msra.mxu0 %v3182
        %3206 = vmatmul.f32.gmra.mxu0 %v3174
        %v3207 = vpop.f32.mrf.mxu0
        %v3208 = vadd.f32 0.0, %v3207
        %3209 = vmatmul.f32.gmra.mxu0 %v3176
        %v3210 = vpop.f32.mrf.mxu0
        %v3211 = vadd.f32 0.0, %v3210
        %3212 = vmatmul.f32.gmra.mxu0 %v3178
        %v3213 = vpop.f32.mrf.mxu0
        %v3214 = vadd.f32 0.0, %v3213
        %3215 = vmatmul.f32.gmra.mxu0 %v3180
        %v3216 = vpop.f32.mrf.mxu0
        %v3217 = vadd.f32 0.0, %v3216
        %3218 = vdwg.mxu0
        %3219 = vrot.lane.b32.xlu0 %v1597, 64
        %v3220 = vpop.permute.xlu0 %3219
        %3221 = vrot.lane.b32.xlu0 %v1599, 64
        %v3222 = vpop.permute.xlu0 %3221
        %3223 = vrot.lane.b32.xlu0 %v1601, 64
        %v3224 = vpop.permute.xlu0 %3223
        %3225 = vrot.lane.b32.xlu0 %v1603, 64
        %v3226 = vpop.permute.xlu0 %3225
        %v3227 = vsel %vm2007, %v1597, 0
        %v3229 = vsel %vm2007, %v1599, 0
        %v3231 = vsel %vm2007, %v1601, 0
        %v3233 = vsel %vm2007, %v1603, 0
        %v3235 = vsel %vm2007, %v3220, 0
        %v3237 = vsel %vm2007, %v3222, 0
        %v3239 = vsel %vm2007, %v3224, 0
        %v3241 = vsel %vm2007, %v3226, 0
        %3243 = vmatpush.xpose.msra.mxu0 0.0
        %3244 = vmatpush.xpose.msra.mxu0 0.0
        %3245 = vmatpush.xpose.msra.mxu0 0.0
        %3246 = vmatpush.xpose.msra.mxu0 0.0
        %3247 = vmatpush.xpose.msra.mxu0 0.0
        %3248 = vmatpush.xpose.msra.mxu0 0.0
        %3249 = vmatpush.xpose.msra.mxu0 0.0
        %3250 = vmatpush.xpose.msra.mxu0 0.0
        %3251 = vmatpush.xpose.msra.mxu0 0.0
        %3252 = vmatpush.xpose.msra.mxu0 0.0
        %3253 = vmatpush.xpose.msra.mxu0 0.0
        %3254 = vmatpush.xpose.msra.mxu0 0.0
        %3255 = vmatpush.xpose.msra.mxu0 %v3241
        %3256 = vmatpush.xpose.msra.mxu0 %v3239
        %3257 = vmatpush.xpose.msra.mxu0 %v3237
        %3258 = vmatpush.xpose.msra.mxu0 %v3235
        %3259 = vmatmul.f32.gmra.mxu0 %v3227
        %v3260 = vpop.f32.mrf.mxu0
        %v3261 = vadd.f32 0.0, %v3260
        %3262 = vmatmul.f32.gmra.mxu0 %v3229
        %v3263 = vpop.f32.mrf.mxu0
        %v3264 = vadd.f32 0.0, %v3263
        %3265 = vmatmul.f32.gmra.mxu0 %v3231
        %v3266 = vpop.f32.mrf.mxu0
        %v3267 = vadd.f32 0.0, %v3266
        %3268 = vmatmul.f32.gmra.mxu0 %v3233
        %v3269 = vpop.f32.mrf.mxu0
        %v3270 = vadd.f32 0.0, %v3269
        %3271 = vdwg.mxu0
        %3272 = vrot.lane.b32.xlu0 %v1605, 64
        %v3273 = vpop.permute.xlu0 %3272
        %3274 = vrot.lane.b32.xlu0 %v1607, 64
        %v3275 = vpop.permute.xlu0 %3274
        %3276 = vrot.lane.b32.xlu0 %v1609, 64
        %v3277 = vpop.permute.xlu0 %3276
        %3278 = vrot.lane.b32.xlu0 %v1611, 64
        %v3279 = vpop.permute.xlu0 %3278
        %v3280 = vsel %vm2007, %v1605, 0
        %v3282 = vsel %vm2007, %v1607, 0
        %v3284 = vsel %vm2007, %v1609, 0
        %v3286 = vsel %vm2007, %v1611, 0
        %v3288 = vsel %vm2007, %v3273, 0
        %v3290 = vsel %vm2007, %v3275, 0
        %v3292 = vsel %vm2007, %v3277, 0
        %v3294 = vsel %vm2007, %v3279, 0
        %3296 = vmatpush.xpose.msra.mxu0 0.0
        %3297 = vmatpush.xpose.msra.mxu0 0.0
        %3298 = vmatpush.xpose.msra.mxu0 0.0
        %3299 = vmatpush.xpose.msra.mxu0 0.0
        %3300 = vmatpush.xpose.msra.mxu0 0.0
        %3301 = vmatpush.xpose.msra.mxu0 0.0
        %3302 = vmatpush.xpose.msra.mxu0 0.0
        %3303 = vmatpush.xpose.msra.mxu0 0.0
        %3304 = vmatpush.xpose.msra.mxu0 0.0
        %3305 = vmatpush.xpose.msra.mxu0 0.0
        %3306 = vmatpush.xpose.msra.mxu0 0.0
        %3307 = vmatpush.xpose.msra.mxu0 0.0
        %3308 = vmatpush.xpose.msra.mxu0 %v3294
        %3309 = vmatpush.xpose.msra.mxu0 %v3292
        %3310 = vmatpush.xpose.msra.mxu0 %v3290
        %3311 = vmatpush.xpose.msra.mxu0 %v3288
        %3312 = vmatmul.f32.gmra.mxu0 %v3280
        %v3313 = vpop.f32.mrf.mxu0
        %v3314 = vadd.f32 0.0, %v3313
        %3315 = vmatmul.f32.gmra.mxu0 %v3282
        %v3316 = vpop.f32.mrf.mxu0
        %v3317 = vadd.f32 0.0, %v3316
        %3318 = vmatmul.f32.gmra.mxu0 %v3284
        %v3319 = vpop.f32.mrf.mxu0
        %v3320 = vadd.f32 0.0, %v3319
        %3321 = vmatmul.f32.gmra.mxu0 %v3286
        %v3322 = vpop.f32.mrf.mxu0
        %v3323 = vadd.f32 0.0, %v3322
        %3324 = vdwg.mxu0
        %3325 = vrot.lane.b32.xlu0 %v1613, 64
        %v3326 = vpop.permute.xlu0 %3325
        %3327 = vrot.lane.b32.xlu0 %v1615, 64
        %v3328 = vpop.permute.xlu0 %3327
        %3329 = vrot.lane.b32.xlu0 %v1617, 64
        %v3330 = vpop.permute.xlu0 %3329
        %3331 = vrot.lane.b32.xlu0 %v1619, 64
        %v3332 = vpop.permute.xlu0 %3331
        %v3333 = vsel %vm2007, %v1613, 0
        %v3335 = vsel %vm2007, %v1615, 0
        %v3337 = vsel %vm2007, %v1617, 0
        %v3339 = vsel %vm2007, %v1619, 0
        %v3341 = vsel %vm2007, %v3326, 0
        %v3343 = vsel %vm2007, %v3328, 0
        %v3345 = vsel %vm2007, %v3330, 0
        %v3347 = vsel %vm2007, %v3332, 0
        %3349 = vmatpush.xpose.msra.mxu0 0.0
        %3350 = vmatpush.xpose.msra.mxu0 0.0
        %3351 = vmatpush.xpose.msra.mxu0 0.0
        %3352 = vmatpush.xpose.msra.mxu0 0.0
        %3353 = vmatpush.xpose.msra.mxu0 0.0
        %3354 = vmatpush.xpose.msra.mxu0 0.0
        %3355 = vmatpush.xpose.msra.mxu0 0.0
        %3356 = vmatpush.xpose.msra.mxu0 0.0
        %3357 = vmatpush.xpose.msra.mxu0 0.0
        %3358 = vmatpush.xpose.msra.mxu0 0.0
        %3359 = vmatpush.xpose.msra.mxu0 0.0
        %3360 = vmatpush.xpose.msra.mxu0 0.0
        %3361 = vmatpush.xpose.msra.mxu0 %v3347
        %3362 = vmatpush.xpose.msra.mxu0 %v3345
        %3363 = vmatpush.xpose.msra.mxu0 %v3343
        %3364 = vmatpush.xpose.msra.mxu0 %v3341
        %3365 = vmatmul.f32.gmra.mxu0 %v3333
        %v3366 = vpop.f32.mrf.mxu0
        %v3367 = vadd.f32 0.0, %v3366
        %3368 = vmatmul.f32.gmra.mxu0 %v3335
        %v3369 = vpop.f32.mrf.mxu0
        %v3370 = vadd.f32 0.0, %v3369
        %3371 = vmatmul.f32.gmra.mxu0 %v3337
        %v3372 = vpop.f32.mrf.mxu0
        %v3373 = vadd.f32 0.0, %v3372
        %3374 = vmatmul.f32.gmra.mxu0 %v3339
        %v3375 = vpop.f32.mrf.mxu0
        %v3376 = vadd.f32 0.0, %v3375
        %3377 = vdwg.mxu0
        %3378 = vrot.lane.b32.xlu0 %v1621, 64
        %v3379 = vpop.permute.xlu0 %3378
        %3380 = vrot.lane.b32.xlu0 %v1623, 64
        %v3381 = vpop.permute.xlu0 %3380
        %3382 = vrot.lane.b32.xlu0 %v1625, 64
        %v3383 = vpop.permute.xlu0 %3382
        %3384 = vrot.lane.b32.xlu0 %v1627, 64
        %v3385 = vpop.permute.xlu0 %3384
        %v3386 = vsel %vm2007, %v1621, 0
        %v3388 = vsel %vm2007, %v1623, 0
        %v3390 = vsel %vm2007, %v1625, 0
        %v3392 = vsel %vm2007, %v1627, 0
        %v3394 = vsel %vm2007, %v3379, 0
        %v3396 = vsel %vm2007, %v3381, 0
        %v3398 = vsel %vm2007, %v3383, 0
        %v3400 = vsel %vm2007, %v3385, 0
        %3402 = vmatpush.xpose.msra.mxu0 0.0
        %3403 = vmatpush.xpose.msra.mxu0 0.0
        %3404 = vmatpush.xpose.msra.mxu0 0.0
        %3405 = vmatpush.xpose.msra.mxu0 0.0
        %3406 = vmatpush.xpose.msra.mxu0 0.0
        %3407 = vmatpush.xpose.msra.mxu0 0.0
        %3408 = vmatpush.xpose.msra.mxu0 0.0
        %3409 = vmatpush.xpose.msra.mxu0 0.0
        %3410 = vmatpush.xpose.msra.mxu0 0.0
        %3411 = vmatpush.xpose.msra.mxu0 0.0
        %3412 = vmatpush.xpose.msra.mxu0 0.0
        %3413 = vmatpush.xpose.msra.mxu0 0.0
        %3414 = vmatpush.xpose.msra.mxu0 %v3400
        %3415 = vmatpush.xpose.msra.mxu0 %v3398
        %3416 = vmatpush.xpose.msra.mxu0 %v3396
        %3417 = vmatpush.xpose.msra.mxu0 %v3394
        %3418 = vmatmul.f32.gmra.mxu0 %v3386
        %v3419 = vpop.f32.mrf.mxu0
        %v3420 = vadd.f32 0.0, %v3419
        %3421 = vmatmul.f32.gmra.mxu0 %v3388
        %v3422 = vpop.f32.mrf.mxu0
        %v3423 = vadd.f32 0.0, %v3422
        %3424 = vmatmul.f32.gmra.mxu0 %v3390
        %v3425 = vpop.f32.mrf.mxu0
        %v3426 = vadd.f32 0.0, %v3425
        %3427 = vmatmul.f32.gmra.mxu0 %v3392
        %v3428 = vpop.f32.mrf.mxu0
        %v3429 = vadd.f32 0.0, %v3428
        %3430 = vdwg.mxu0
        %3431 = vrot.lane.b32.xlu0 %v1629, 64
        %v3432 = vpop.permute.xlu0 %3431
        %3433 = vrot.lane.b32.xlu0 %v1631, 64
        %v3434 = vpop.permute.xlu0 %3433
        %3435 = vrot.lane.b32.xlu0 %v1633, 64
        %v3436 = vpop.permute.xlu0 %3435
        %3437 = vrot.lane.b32.xlu0 %v1635, 64
        %v3438 = vpop.permute.xlu0 %3437
        %v3439 = vsel %vm2007, %v1629, 0
        %v3441 = vsel %vm2007, %v1631, 0
        %v3443 = vsel %vm2007, %v1633, 0
        %v3445 = vsel %vm2007, %v1635, 0
        %v3447 = vsel %vm2007, %v3432, 0
        %v3449 = vsel %vm2007, %v3434, 0
        %v3451 = vsel %vm2007, %v3436, 0
        %v3453 = vsel %vm2007, %v3438, 0
        %3455 = vmatpush.xpose.msra.mxu0 0.0
        %3456 = vmatpush.xpose.msra.mxu0 0.0
        %3457 = vmatpush.xpose.msra.mxu0 0.0
        %3458 = vmatpush.xpose.msra.mxu0 0.0
        %3459 = vmatpush.xpose.msra.mxu0 0.0
        %3460 = vmatpush.xpose.msra.mxu0 0.0
        %3461 = vmatpush.xpose.msra.mxu0 0.0
        %3462 = vmatpush.xpose.msra.mxu0 0.0
        %3463 = vmatpush.xpose.msra.mxu0 0.0
        %3464 = vmatpush.xpose.msra.mxu0 0.0
        %3465 = vmatpush.xpose.msra.mxu0 0.0
        %3466 = vmatpush.xpose.msra.mxu0 0.0
        %3467 = vmatpush.xpose.msra.mxu0 %v3453
        %3468 = vmatpush.xpose.msra.mxu0 %v3451
        %3469 = vmatpush.xpose.msra.mxu0 %v3449
        %3470 = vmatpush.xpose.msra.mxu0 %v3447
        %3471 = vmatmul.f32.gmra.mxu0 %v3439
        %v3472 = vpop.f32.mrf.mxu0
        %v3473 = vadd.f32 0.0, %v3472
        %3474 = vmatmul.f32.gmra.mxu0 %v3441
        %v3475 = vpop.f32.mrf.mxu0
        %v3476 = vadd.f32 0.0, %v3475
        %3477 = vmatmul.f32.gmra.mxu0 %v3443
        %v3478 = vpop.f32.mrf.mxu0
        %v3479 = vadd.f32 0.0, %v3478
        %3480 = vmatmul.f32.gmra.mxu0 %v3445
        %v3481 = vpop.f32.mrf.mxu0
        %v3482 = vadd.f32 0.0, %v3481
        %3483 = vdwg.mxu0
        %3484 = vrot.lane.b32.xlu0 %v1637, 64
        %v3485 = vpop.permute.xlu0 %3484
        %3486 = vrot.lane.b32.xlu0 %v1639, 64
        %v3487 = vpop.permute.xlu0 %3486
        %3488 = vrot.lane.b32.xlu0 %v1641, 64
        %v3489 = vpop.permute.xlu0 %3488
        %3490 = vrot.lane.b32.xlu0 %v1643, 64
        %v3491 = vpop.permute.xlu0 %3490
        %v3492 = vsel %vm2007, %v1637, 0
        %v3494 = vsel %vm2007, %v1639, 0
        %v3496 = vsel %vm2007, %v1641, 0
        %v3498 = vsel %vm2007, %v1643, 0
        %v3500 = vsel %vm2007, %v3485, 0
        %v3502 = vsel %vm2007, %v3487, 0
        %v3504 = vsel %vm2007, %v3489, 0
        %v3506 = vsel %vm2007, %v3491, 0
        %3508 = vmatpush.xpose.msra.mxu0 0.0
        %3509 = vmatpush.xpose.msra.mxu0 0.0
        %3510 = vmatpush.xpose.msra.mxu0 0.0
        %3511 = vmatpush.xpose.msra.mxu0 0.0
        %3512 = vmatpush.xpose.msra.mxu0 0.0
        %3513 = vmatpush.xpose.msra.mxu0 0.0
        %3514 = vmatpush.xpose.msra.mxu0 0.0
        %3515 = vmatpush.xpose.msra.mxu0 0.0
        %3516 = vmatpush.xpose.msra.mxu0 0.0
        %3517 = vmatpush.xpose.msra.mxu0 0.0
        %3518 = vmatpush.xpose.msra.mxu0 0.0
        %3519 = vmatpush.xpose.msra.mxu0 0.0
        %3520 = vmatpush.xpose.msra.mxu0 %v3506
        %3521 = vmatpush.xpose.msra.mxu0 %v3504
        %3522 = vmatpush.xpose.msra.mxu0 %v3502
        %3523 = vmatpush.xpose.msra.mxu0 %v3500
        %3524 = vmatmul.f32.gmra.mxu0 %v3492
        %v3525 = vpop.f32.mrf.mxu0
        %v3526 = vadd.f32 0.0, %v3525
        %3527 = vmatmul.f32.gmra.mxu0 %v3494
        %v3528 = vpop.f32.mrf.mxu0
        %v3529 = vadd.f32 0.0, %v3528
        %3530 = vmatmul.f32.gmra.mxu0 %v3496
        %v3531 = vpop.f32.mrf.mxu0
        %v3532 = vadd.f32 0.0, %v3531
        %3533 = vmatmul.f32.gmra.mxu0 %v3498
        %v3534 = vpop.f32.mrf.mxu0
        %v3535 = vadd.f32 0.0, %v3534
        %3536 = vdwg.mxu0
        %3537 = vrot.lane.b32.xlu0 %v1645, 64
        %v3538 = vpop.permute.xlu0 %3537
        %3539 = vrot.lane.b32.xlu0 %v1647, 64
        %v3540 = vpop.permute.xlu0 %3539
        %3541 = vrot.lane.b32.xlu0 %v1649, 64
        %v3542 = vpop.permute.xlu0 %3541
        %3543 = vrot.lane.b32.xlu0 %v1651, 64
        %v3544 = vpop.permute.xlu0 %3543
        %v3545 = vsel %vm2007, %v1645, 0
        %v3547 = vsel %vm2007, %v1647, 0
        %v3549 = vsel %vm2007, %v1649, 0
        %v3551 = vsel %vm2007, %v1651, 0
        %v3553 = vsel %vm2007, %v3538, 0
        %v3555 = vsel %vm2007, %v3540, 0
        %v3557 = vsel %vm2007, %v3542, 0
        %v3559 = vsel %vm2007, %v3544, 0
        %3561 = vmatpush.xpose.msra.mxu0 0.0
        %3562 = vmatpush.xpose.msra.mxu0 0.0
        %3563 = vmatpush.xpose.msra.mxu0 0.0
        %3564 = vmatpush.xpose.msra.mxu0 0.0
        %3565 = vmatpush.xpose.msra.mxu0 0.0
        %3566 = vmatpush.xpose.msra.mxu0 0.0
        %3567 = vmatpush.xpose.msra.mxu0 0.0
        %3568 = vmatpush.xpose.msra.mxu0 0.0
        %3569 = vmatpush.xpose.msra.mxu0 0.0
        %3570 = vmatpush.xpose.msra.mxu0 0.0
        %3571 = vmatpush.xpose.msra.mxu0 0.0
        %3572 = vmatpush.xpose.msra.mxu0 0.0
        %3573 = vmatpush.xpose.msra.mxu0 %v3559
        %3574 = vmatpush.xpose.msra.mxu0 %v3557
        %3575 = vmatpush.xpose.msra.mxu0 %v3555
        %3576 = vmatpush.xpose.msra.mxu0 %v3553
        %3577 = vmatmul.f32.gmra.mxu0 %v3545
        %v3578 = vpop.f32.mrf.mxu0
        %v3579 = vadd.f32 0.0, %v3578
        %3580 = vmatmul.f32.gmra.mxu0 %v3547
        %v3581 = vpop.f32.mrf.mxu0
        %v3582 = vadd.f32 0.0, %v3581
        %3583 = vmatmul.f32.gmra.mxu0 %v3549
        %v3584 = vpop.f32.mrf.mxu0
        %v3585 = vadd.f32 0.0, %v3584
        %3586 = vmatmul.f32.gmra.mxu0 %v3551
        %v3587 = vpop.f32.mrf.mxu0
        %v3588 = vadd.f32 0.0, %v3587
        %3589 = vdwg.mxu0
        %3590 = vrot.lane.b32.xlu0 %v1653, 64
        %v3591 = vpop.permute.xlu0 %3590
        %3592 = vrot.lane.b32.xlu0 %v1655, 64
        %v3593 = vpop.permute.xlu0 %3592
        %3594 = vrot.lane.b32.xlu0 %v1657, 64
        %v3595 = vpop.permute.xlu0 %3594
        %3596 = vrot.lane.b32.xlu0 %v1659, 64
        %v3597 = vpop.permute.xlu0 %3596
        %v3598 = vsel %vm2007, %v1653, 0
        %v3600 = vsel %vm2007, %v1655, 0
        %v3602 = vsel %vm2007, %v1657, 0
        %v3604 = vsel %vm2007, %v1659, 0
        %v3606 = vsel %vm2007, %v3591, 0
        %v3608 = vsel %vm2007, %v3593, 0
        %v3610 = vsel %vm2007, %v3595, 0
        %v3612 = vsel %vm2007, %v3597, 0
        %3614 = vmatpush.xpose.msra.mxu0 0.0
        %3615 = vmatpush.xpose.msra.mxu0 0.0
        %3616 = vmatpush.xpose.msra.mxu0 0.0
        %3617 = vmatpush.xpose.msra.mxu0 0.0
        %3618 = vmatpush.xpose.msra.mxu0 0.0
        %3619 = vmatpush.xpose.msra.mxu0 0.0
        %3620 = vmatpush.xpose.msra.mxu0 0.0
        %3621 = vmatpush.xpose.msra.mxu0 0.0
        %3622 = vmatpush.xpose.msra.mxu0 0.0
        %3623 = vmatpush.xpose.msra.mxu0 0.0
        %3624 = vmatpush.xpose.msra.mxu0 0.0
        %3625 = vmatpush.xpose.msra.mxu0 0.0
        %3626 = vmatpush.xpose.msra.mxu0 %v3612
        %3627 = vmatpush.xpose.msra.mxu0 %v3610
        %3628 = vmatpush.xpose.msra.mxu0 %v3608
        %3629 = vmatpush.xpose.msra.mxu0 %v3606
        %3630 = vmatmul.f32.gmra.mxu0 %v3598
        %v3631 = vpop.f32.mrf.mxu0
        %v3632 = vadd.f32 0.0, %v3631
        %3633 = vmatmul.f32.gmra.mxu0 %v3600
        %v3634 = vpop.f32.mrf.mxu0
        %v3635 = vadd.f32 0.0, %v3634
        %3636 = vmatmul.f32.gmra.mxu0 %v3602
        %v3637 = vpop.f32.mrf.mxu0
        %v3638 = vadd.f32 0.0, %v3637
        %3639 = vmatmul.f32.gmra.mxu0 %v3604
        %v3640 = vpop.f32.mrf.mxu0
        %v3641 = vadd.f32 0.0, %v3640
        %3642 = vdwg.mxu0
        %3643 = vrot.lane.b32.xlu0 %v1661, 64
        %v3644 = vpop.permute.xlu0 %3643
        %3645 = vrot.lane.b32.xlu0 %v1663, 64
        %v3646 = vpop.permute.xlu0 %3645
        %3647 = vrot.lane.b32.xlu0 %v1665, 64
        %v3648 = vpop.permute.xlu0 %3647
        %3649 = vrot.lane.b32.xlu0 %v1667, 64
        %v3650 = vpop.permute.xlu0 %3649
        %v3651 = vsel %vm2007, %v1661, 0
        %v3653 = vsel %vm2007, %v1663, 0
        %v3655 = vsel %vm2007, %v1665, 0
        %v3657 = vsel %vm2007, %v1667, 0
        %v3659 = vsel %vm2007, %v3644, 0
        %v3661 = vsel %vm2007, %v3646, 0
        %v3663 = vsel %vm2007, %v3648, 0
        %v3665 = vsel %vm2007, %v3650, 0
        %3667 = vmatpush.xpose.msra.mxu0 0.0
        %3668 = vmatpush.xpose.msra.mxu0 0.0
        %3669 = vmatpush.xpose.msra.mxu0 0.0
        %3670 = vmatpush.xpose.msra.mxu0 0.0
        %3671 = vmatpush.xpose.msra.mxu0 0.0
        %3672 = vmatpush.xpose.msra.mxu0 0.0
        %3673 = vmatpush.xpose.msra.mxu0 0.0
        %3674 = vmatpush.xpose.msra.mxu0 0.0
        %3675 = vmatpush.xpose.msra.mxu0 0.0
        %3676 = vmatpush.xpose.msra.mxu0 0.0
        %3677 = vmatpush.xpose.msra.mxu0 0.0
        %3678 = vmatpush.xpose.msra.mxu0 0.0
        %3679 = vmatpush.xpose.msra.mxu0 %v3665
        %3680 = vmatpush.xpose.msra.mxu0 %v3663
        %3681 = vmatpush.xpose.msra.mxu0 %v3661
        %3682 = vmatpush.xpose.msra.mxu0 %v3659
        %3683 = vmatmul.f32.gmra.mxu0 %v3651
        %v3684 = vpop.f32.mrf.mxu0
        %v3685 = vadd.f32 0.0, %v3684
        %3686 = vmatmul.f32.gmra.mxu0 %v3653
        %v3687 = vpop.f32.mrf.mxu0
        %v3688 = vadd.f32 0.0, %v3687
        %3689 = vmatmul.f32.gmra.mxu0 %v3655
        %v3690 = vpop.f32.mrf.mxu0
        %v3691 = vadd.f32 0.0, %v3690
        %3692 = vmatmul.f32.gmra.mxu0 %v3657
        %v3693 = vpop.f32.mrf.mxu0
        %v3694 = vadd.f32 0.0, %v3693
        %3695 = vdwg.mxu0
        %v3696 = vsel %vm1995, 1, 0
        %v3697 = vsel %vm1996, 1, 0
        %v3698 = vsel %vm1997, 1, 0
        %v3699 = vsel %vm1998, 1, 0
        %vm3700 = vcmp.eq.s32.totalorder %v3696, 1
        %vm3701 = vcmp.eq.s32.totalorder %v3697, 1
        %vm3702 = vcmp.eq.s32.totalorder %v3698, 1
        %vm3703 = vcmp.eq.s32.totalorder %v3699, 1
        %v3704 = vsel %vm3700, %v2042, -inf
        %v3705 = vsel %vm3701, %v2045, -inf
        %v3706 = vsel %vm3702, %v2048, -inf
        %v3707 = vsel %vm3703, %v2051, -inf
        %v3708 = vsel %vm3700, %v2095, -inf
        %v3709 = vsel %vm3701, %v2098, -inf
        %v3710 = vsel %vm3702, %v2101, -inf
        %v3711 = vsel %vm3703, %v2104, -inf
        %v3712 = vsel %vm3700, %v2148, -inf
        %v3713 = vsel %vm3701, %v2151, -inf
        %v3714 = vsel %vm3702, %v2154, -inf
        %v3715 = vsel %vm3703, %v2157, -inf
        %v3716 = vsel %vm3700, %v2201, -inf
        %v3717 = vsel %vm3701, %v2204, -inf
        %v3718 = vsel %vm3702, %v2207, -inf
        %v3719 = vsel %vm3703, %v2210, -inf
        %v3720 = vsel %vm3700, %v2254, -inf
        %v3721 = vsel %vm3701, %v2257, -inf
        %v3722 = vsel %vm3702, %v2260, -inf
        %v3723 = vsel %vm3703, %v2263, -inf
        %v3724 = vsel %vm3700, %v2307, -inf
        %v3725 = vsel %vm3701, %v2310, -inf
        %v3726 = vsel %vm3702, %v2313, -inf
        %v3727 = vsel %vm3703, %v2316, -inf
        %v3728 = vsel %vm3700, %v2360, -inf
        %v3729 = vsel %vm3701, %v2363, -inf
        %v3730 = vsel %vm3702, %v2366, -inf
        %v3731 = vsel %vm3703, %v2369, -inf
        %v3732 = vsel %vm3700, %v2413, -inf
        %v3733 = vsel %vm3701, %v2416, -inf
        %v3734 = vsel %vm3702, %v2419, -inf
        %v3735 = vsel %vm3703, %v2422, -inf
        %v3736 = vsel %vm3700, %v2466, -inf
        %v3737 = vsel %vm3701, %v2469, -inf
        %v3738 = vsel %vm3702, %v2472, -inf
        %v3739 = vsel %vm3703, %v2475, -inf
        %v3740 = vsel %vm3700, %v2519, -inf
        %v3741 = vsel %vm3701, %v2522, -inf
        %v3742 = vsel %vm3702, %v2525, -inf
        %v3743 = vsel %vm3703, %v2528, -inf
        %v3744 = vsel %vm3700, %v2572, -inf
        %v3745 = vsel %vm3701, %v2575, -inf
        %v3746 = vsel %vm3702, %v2578, -inf
        %v3747 = vsel %vm3703, %v2581, -inf
        %v3748 = vsel %vm3700, %v2625, -inf
        %v3749 = vsel %vm3701, %v2628, -inf
        %v3750 = vsel %vm3702, %v2631, -inf
        %v3751 = vsel %vm3703, %v2634, -inf
        %v3752 = vsel %vm3700, %v2678, -inf
        %v3753 = vsel %vm3701, %v2681, -inf
        %v3754 = vsel %vm3702, %v2684, -inf
        %v3755 = vsel %vm3703, %v2687, -inf
        %v3756 = vsel %vm3700, %v2731, -inf
        %v3757 = vsel %vm3701, %v2734, -inf
        %v3758 = vsel %vm3702, %v2737, -inf
        %v3759 = vsel %vm3703, %v2740, -inf
        %v3760 = vsel %vm3700, %v2784, -inf
        %v3761 = vsel %vm3701, %v2787, -inf
        %v3762 = vsel %vm3702, %v2790, -inf
        %v3763 = vsel %vm3703, %v2793, -inf
        %v3764 = vsel %vm3700, %v2837, -inf
        %v3765 = vsel %vm3701, %v2840, -inf
        %v3766 = vsel %vm3702, %v2843, -inf
        %v3767 = vsel %vm3703, %v2846, -inf
        %v3768 = vsel %vm3700, %v2890, -inf
        %v3769 = vsel %vm3701, %v2893, -inf
        %v3770 = vsel %vm3702, %v2896, -inf
        %v3771 = vsel %vm3703, %v2899, -inf
        %v3772 = vsel %vm3700, %v2943, -inf
        %v3773 = vsel %vm3701, %v2946, -inf
        %v3774 = vsel %vm3702, %v2949, -inf
        %v3775 = vsel %vm3703, %v2952, -inf
        %v3776 = vsel %vm3700, %v2996, -inf
        %v3777 = vsel %vm3701, %v2999, -inf
        %v3778 = vsel %vm3702, %v3002, -inf
        %v3779 = vsel %vm3703, %v3005, -inf
        %v3780 = vsel %vm3700, %v3049, -inf
        %v3781 = vsel %vm3701, %v3052, -inf
        %v3782 = vsel %vm3702, %v3055, -inf
        %v3783 = vsel %vm3703, %v3058, -inf
        %v3784 = vsel %vm3700, %v3102, -inf
        %v3785 = vsel %vm3701, %v3105, -inf
        %v3786 = vsel %vm3702, %v3108, -inf
        %v3787 = vsel %vm3703, %v3111, -inf
        %v3788 = vsel %vm3700, %v3155, -inf
        %v3789 = vsel %vm3701, %v3158, -inf
        %v3790 = vsel %vm3702, %v3161, -inf
        %v3791 = vsel %vm3703, %v3164, -inf
        %v3792 = vsel %vm3700, %v3208, -inf
        %v3793 = vsel %vm3701, %v3211, -inf
        %v3794 = vsel %vm3702, %v3214, -inf
        %v3795 = vsel %vm3703, %v3217, -inf
        %v3796 = vsel %vm3700, %v3261, -inf
        %v3797 = vsel %vm3701, %v3264, -inf
        %v3798 = vsel %vm3702, %v3267, -inf
        %v3799 = vsel %vm3703, %v3270, -inf
        %v3800 = vsel %vm3700, %v3314, -inf
        %v3801 = vsel %vm3701, %v3317, -inf
        %v3802 = vsel %vm3702, %v3320, -inf
        %v3803 = vsel %vm3703, %v3323, -inf
        %v3804 = vsel %vm3700, %v3367, -inf
        %v3805 = vsel %vm3701, %v3370, -inf
        %v3806 = vsel %vm3702, %v3373, -inf
        %v3807 = vsel %vm3703, %v3376, -inf
        %v3808 = vsel %vm3700, %v3420, -inf
        %v3809 = vsel %vm3701, %v3423, -inf
        %v3810 = vsel %vm3702, %v3426, -inf
        %v3811 = vsel %vm3703, %v3429, -inf
        %v3812 = vsel %vm3700, %v3473, -inf
        %v3813 = vsel %vm3701, %v3476, -inf
        %v3814 = vsel %vm3702, %v3479, -inf
        %v3815 = vsel %vm3703, %v3482, -inf
        %v3816 = vsel %vm3700, %v3526, -inf
        %v3817 = vsel %vm3701, %v3529, -inf
        %v3818 = vsel %vm3702, %v3532, -inf
        %v3819 = vsel %vm3703, %v3535, -inf
        %v3820 = vsel %vm3700, %v3579, -inf
        %v3821 = vsel %vm3701, %v3582, -inf
        %v3822 = vsel %vm3702, %v3585, -inf
        %v3823 = vsel %vm3703, %v3588, -inf
        %v3824 = vsel %vm3700, %v3632, -inf
        %v3825 = vsel %vm3701, %v3635, -inf
        %v3826 = vsel %vm3702, %v3638, -inf
        %v3827 = vsel %vm3703, %v3641, -inf
        %v3828 = vsel %vm3700, %v3685, -inf
        %v3829 = vsel %vm3701, %v3688, -inf
        %v3830 = vsel %vm3702, %v3691, -inf
        %v3831 = vsel %vm3703, %v3694, -inf
        %vm3832 = vcmask 261120
        %v3833 = vsel %vm3832, %v3704, -inf
        %3834 = vmax.xlane.f32.xlu0 %v3833
        %v3835 = vpop.xlane.xlu0 %3834
        %v3836 = vsel %vm3832, %v3705, -inf
        %3837 = vmax.xlane.f32.xlu0 %v3836
        %v3838 = vpop.xlane.xlu0 %3837
        %v3839 = vsel %vm3832, %v3706, -inf
        %3840 = vmax.xlane.f32.xlu0 %v3839
        %v3841 = vpop.xlane.xlu0 %3840
        %v3842 = vsel %vm3832, %v3707, -inf
        %3843 = vmax.xlane.f32.xlu0 %v3842
        %v3844 = vpop.xlane.xlu0 %3843
        %v3845 = vsel %vm3832, %v3708, -inf
        %3846 = vmax.xlane.f32.xlu0 %v3845
        %v3847 = vpop.xlane.xlu0 %3846
        %v3848 = vsel %vm3832, %v3709, -inf
        %3849 = vmax.xlane.f32.xlu0 %v3848
        %v3850 = vpop.xlane.xlu0 %3849
        %v3851 = vsel %vm3832, %v3710, -inf
        %3852 = vmax.xlane.f32.xlu0 %v3851
        %v3853 = vpop.xlane.xlu0 %3852
        %v3854 = vsel %vm3832, %v3711, -inf
        %3855 = vmax.xlane.f32.xlu0 %v3854
        %v3856 = vpop.xlane.xlu0 %3855
        %v3857 = vsel %vm3832, %v3712, -inf
        %3858 = vmax.xlane.f32.xlu0 %v3857
        %v3859 = vpop.xlane.xlu0 %3858
        %v3860 = vsel %vm3832, %v3713, -inf
        %3861 = vmax.xlane.f32.xlu0 %v3860
        %v3862 = vpop.xlane.xlu0 %3861
        %v3863 = vsel %vm3832, %v3714, -inf
        %3864 = vmax.xlane.f32.xlu0 %v3863
        %v3865 = vpop.xlane.xlu0 %3864
        %v3866 = vsel %vm3832, %v3715, -inf
        %3867 = vmax.xlane.f32.xlu0 %v3866
        %v3868 = vpop.xlane.xlu0 %3867
        %v3869 = vsel %vm3832, %v3716, -inf
        %3870 = vmax.xlane.f32.xlu0 %v3869
        %v3871 = vpop.xlane.xlu0 %3870
        %v3872 = vsel %vm3832, %v3717, -inf
        %3873 = vmax.xlane.f32.xlu0 %v3872
        %v3874 = vpop.xlane.xlu0 %3873
        %v3875 = vsel %vm3832, %v3718, -inf
        %3876 = vmax.xlane.f32.xlu0 %v3875
        %v3877 = vpop.xlane.xlu0 %3876
        %v3878 = vsel %vm3832, %v3719, -inf
        %3879 = vmax.xlane.f32.xlu0 %v3878
        %v3880 = vpop.xlane.xlu0 %3879
        %v3881 = vsel %vm3832, %v3720, -inf
        %3882 = vmax.xlane.f32.xlu0 %v3881
        %v3883 = vpop.xlane.xlu0 %3882
        %v3884 = vsel %vm3832, %v3721, -inf
        %3885 = vmax.xlane.f32.xlu0 %v3884
        %v3886 = vpop.xlane.xlu0 %3885
        %v3887 = vsel %vm3832, %v3722, -inf
        %3888 = vmax.xlane.f32.xlu0 %v3887
        %v3889 = vpop.xlane.xlu0 %3888
        %v3890 = vsel %vm3832, %v3723, -inf
        %3891 = vmax.xlane.f32.xlu0 %v3890
        %v3892 = vpop.xlane.xlu0 %3891
        %v3893 = vsel %vm3832, %v3724, -inf
        %3894 = vmax.xlane.f32.xlu0 %v3893
        %v3895 = vpop.xlane.xlu0 %3894
        %v3896 = vsel %vm3832, %v3725, -inf
        %3897 = vmax.xlane.f32.xlu0 %v3896
        %v3898 = vpop.xlane.xlu0 %3897
        %v3899 = vsel %vm3832, %v3726, -inf
        %3900 = vmax.xlane.f32.xlu0 %v3899
        %v3901 = vpop.xlane.xlu0 %3900
        %v3902 = vsel %vm3832, %v3727, -inf
        %3903 = vmax.xlane.f32.xlu0 %v3902
        %v3904 = vpop.xlane.xlu0 %3903
        %v3905 = vsel %vm3832, %v3728, -inf
        %3906 = vmax.xlane.f32.xlu0 %v3905
        %v3907 = vpop.xlane.xlu0 %3906
        %v3908 = vsel %vm3832, %v3729, -inf
        %3909 = vmax.xlane.f32.xlu0 %v3908
        %v3910 = vpop.xlane.xlu0 %3909
        %v3911 = vsel %vm3832, %v3730, -inf
        %3912 = vmax.xlane.f32.xlu0 %v3911
        %v3913 = vpop.xlane.xlu0 %3912
        %v3914 = vsel %vm3832, %v3731, -inf
        %3915 = vmax.xlane.f32.xlu0 %v3914
        %v3916 = vpop.xlane.xlu0 %3915
        %v3917 = vsel %vm3832, %v3732, -inf
        %3918 = vmax.xlane.f32.xlu0 %v3917
        %v3919 = vpop.xlane.xlu0 %3918
        %v3920 = vsel %vm3832, %v3733, -inf
        %3921 = vmax.xlane.f32.xlu0 %v3920
        %v3922 = vpop.xlane.xlu0 %3921
        %v3923 = vsel %vm3832, %v3734, -inf
        %3924 = vmax.xlane.f32.xlu0 %v3923
        %v3925 = vpop.xlane.xlu0 %3924
        %v3926 = vsel %vm3832, %v3735, -inf
        %3927 = vmax.xlane.f32.xlu0 %v3926
        %v3928 = vpop.xlane.xlu0 %3927
        %v3929 = vsel %vm3832, %v3736, -inf
        %3930 = vmax.xlane.f32.xlu0 %v3929
        %v3931 = vpop.xlane.xlu0 %3930
        %v3932 = vsel %vm3832, %v3737, -inf
        %3933 = vmax.xlane.f32.xlu0 %v3932
        %v3934 = vpop.xlane.xlu0 %3933
        %v3935 = vsel %vm3832, %v3738, -inf
        %3936 = vmax.xlane.f32.xlu0 %v3935
        %v3937 = vpop.xlane.xlu0 %3936
        %v3938 = vsel %vm3832, %v3739, -inf
        %3939 = vmax.xlane.f32.xlu0 %v3938
        %v3940 = vpop.xlane.xlu0 %3939
        %v3941 = vsel %vm3832, %v3740, -inf
        %3942 = vmax.xlane.f32.xlu0 %v3941
        %v3943 = vpop.xlane.xlu0 %3942
        %v3944 = vsel %vm3832, %v3741, -inf
        %3945 = vmax.xlane.f32.xlu0 %v3944
        %v3946 = vpop.xlane.xlu0 %3945
        %v3947 = vsel %vm3832, %v3742, -inf
        %3948 = vmax.xlane.f32.xlu0 %v3947
        %v3949 = vpop.xlane.xlu0 %3948
        %v3950 = vsel %vm3832, %v3743, -inf
        %3951 = vmax.xlane.f32.xlu0 %v3950
        %v3952 = vpop.xlane.xlu0 %3951
        %v3953 = vsel %vm3832, %v3744, -inf
        %3954 = vmax.xlane.f32.xlu0 %v3953
        %v3955 = vpop.xlane.xlu0 %3954
        %v3956 = vsel %vm3832, %v3745, -inf
        %3957 = vmax.xlane.f32.xlu0 %v3956
        %v3958 = vpop.xlane.xlu0 %3957
        %v3959 = vsel %vm3832, %v3746, -inf
        %3960 = vmax.xlane.f32.xlu0 %v3959
        %v3961 = vpop.xlane.xlu0 %3960
        %v3962 = vsel %vm3832, %v3747, -inf
        %3963 = vmax.xlane.f32.xlu0 %v3962
        %v3964 = vpop.xlane.xlu0 %3963
        %v3965 = vsel %vm3832, %v3748, -inf
        %3966 = vmax.xlane.f32.xlu0 %v3965
        %v3967 = vpop.xlane.xlu0 %3966
        %v3968 = vsel %vm3832, %v3749, -inf
        %3969 = vmax.xlane.f32.xlu0 %v3968
        %v3970 = vpop.xlane.xlu0 %3969
        %v3971 = vsel %vm3832, %v3750, -inf
        %3972 = vmax.xlane.f32.xlu0 %v3971
        %v3973 = vpop.xlane.xlu0 %3972
        %v3974 = vsel %vm3832, %v3751, -inf
        %3975 = vmax.xlane.f32.xlu0 %v3974
        %v3976 = vpop.xlane.xlu0 %3975
        %v3977 = vsel %vm3832, %v3752, -inf
        %3978 = vmax.xlane.f32.xlu0 %v3977
        %v3979 = vpop.xlane.xlu0 %3978
        %v3980 = vsel %vm3832, %v3753, -inf
        %3981 = vmax.xlane.f32.xlu0 %v3980
        %v3982 = vpop.xlane.xlu0 %3981
        %v3983 = vsel %vm3832, %v3754, -inf
        %3984 = vmax.xlane.f32.xlu0 %v3983
        %v3985 = vpop.xlane.xlu0 %3984
        %v3986 = vsel %vm3832, %v3755, -inf
        %3987 = vmax.xlane.f32.xlu0 %v3986
        %v3988 = vpop.xlane.xlu0 %3987
        %v3989 = vsel %vm3832, %v3756, -inf
        %3990 = vmax.xlane.f32.xlu0 %v3989
        %v3991 = vpop.xlane.xlu0 %3990
        %v3992 = vsel %vm3832, %v3757, -inf
        %3993 = vmax.xlane.f32.xlu0 %v3992
        %v3994 = vpop.xlane.xlu0 %3993
        %v3995 = vsel %vm3832, %v3758, -inf
        %3996 = vmax.xlane.f32.xlu0 %v3995
        %v3997 = vpop.xlane.xlu0 %3996
        %v3998 = vsel %vm3832, %v3759, -inf
        %3999 = vmax.xlane.f32.xlu0 %v3998
        %v4000 = vpop.xlane.xlu0 %3999
        %v4001 = vsel %vm3832, %v3760, -inf
        %4002 = vmax.xlane.f32.xlu0 %v4001
        %v4003 = vpop.xlane.xlu0 %4002
        %v4004 = vsel %vm3832, %v3761, -inf
        %4005 = vmax.xlane.f32.xlu0 %v4004
        %v4006 = vpop.xlane.xlu0 %4005
        %v4007 = vsel %vm3832, %v3762, -inf
        %4008 = vmax.xlane.f32.xlu0 %v4007
        %v4009 = vpop.xlane.xlu0 %4008
        %v4010 = vsel %vm3832, %v3763, -inf
        %4011 = vmax.xlane.f32.xlu0 %v4010
        %v4012 = vpop.xlane.xlu0 %4011
        %v4013 = vsel %vm3832, %v3764, -inf
        %4014 = vmax.xlane.f32.xlu0 %v4013
        %v4015 = vpop.xlane.xlu0 %4014
        %v4016 = vsel %vm3832, %v3765, -inf
        %4017 = vmax.xlane.f32.xlu0 %v4016
        %v4018 = vpop.xlane.xlu0 %4017
        %v4019 = vsel %vm3832, %v3766, -inf
        %4020 = vmax.xlane.f32.xlu0 %v4019
        %v4021 = vpop.xlane.xlu0 %4020
        %v4022 = vsel %vm3832, %v3767, -inf
        %4023 = vmax.xlane.f32.xlu0 %v4022
        %v4024 = vpop.xlane.xlu0 %4023
        %v4025 = vsel %vm3832, %v3768, -inf
        %4026 = vmax.xlane.f32.xlu0 %v4025
        %v4027 = vpop.xlane.xlu0 %4026
        %v4028 = vsel %vm3832, %v3769, -inf
        %4029 = vmax.xlane.f32.xlu0 %v4028
        %v4030 = vpop.xlane.xlu0 %4029
        %v4031 = vsel %vm3832, %v3770, -inf
        %4032 = vmax.xlane.f32.xlu0 %v4031
        %v4033 = vpop.xlane.xlu0 %4032
        %v4034 = vsel %vm3832, %v3771, -inf
        %4035 = vmax.xlane.f32.xlu0 %v4034
        %v4036 = vpop.xlane.xlu0 %4035
        %v4037 = vsel %vm3832, %v3772, -inf
        %4038 = vmax.xlane.f32.xlu0 %v4037
        %v4039 = vpop.xlane.xlu0 %4038
        %v4040 = vsel %vm3832, %v3773, -inf
        %4041 = vmax.xlane.f32.xlu0 %v4040
        %v4042 = vpop.xlane.xlu0 %4041
        %v4043 = vsel %vm3832, %v3774, -inf
        %4044 = vmax.xlane.f32.xlu0 %v4043
        %v4045 = vpop.xlane.xlu0 %4044
        %v4046 = vsel %vm3832, %v3775, -inf
        %4047 = vmax.xlane.f32.xlu0 %v4046
        %v4048 = vpop.xlane.xlu0 %4047
        %v4049 = vsel %vm3832, %v3776, -inf
        %4050 = vmax.xlane.f32.xlu0 %v4049
        %v4051 = vpop.xlane.xlu0 %4050
        %v4052 = vsel %vm3832, %v3777, -inf
        %4053 = vmax.xlane.f32.xlu0 %v4052
        %v4054 = vpop.xlane.xlu0 %4053
        %v4055 = vsel %vm3832, %v3778, -inf
        %4056 = vmax.xlane.f32.xlu0 %v4055
        %v4057 = vpop.xlane.xlu0 %4056
        %v4058 = vsel %vm3832, %v3779, -inf
        %4059 = vmax.xlane.f32.xlu0 %v4058
        %v4060 = vpop.xlane.xlu0 %4059
        %v4061 = vsel %vm3832, %v3780, -inf
        %4062 = vmax.xlane.f32.xlu0 %v4061
        %v4063 = vpop.xlane.xlu0 %4062
        %v4064 = vsel %vm3832, %v3781, -inf
        %4065 = vmax.xlane.f32.xlu0 %v4064
        %v4066 = vpop.xlane.xlu0 %4065
        %v4067 = vsel %vm3832, %v3782, -inf
        %4068 = vmax.xlane.f32.xlu0 %v4067
        %v4069 = vpop.xlane.xlu0 %4068
        %v4070 = vsel %vm3832, %v3783, -inf
        %4071 = vmax.xlane.f32.xlu0 %v4070
        %v4072 = vpop.xlane.xlu0 %4071
        %v4073 = vsel %vm3832, %v3784, -inf
        %4074 = vmax.xlane.f32.xlu0 %v4073
        %v4075 = vpop.xlane.xlu0 %4074
        %v4076 = vsel %vm3832, %v3785, -inf
        %4077 = vmax.xlane.f32.xlu0 %v4076
        %v4078 = vpop.xlane.xlu0 %4077
        %v4079 = vsel %vm3832, %v3786, -inf
        %4080 = vmax.xlane.f32.xlu0 %v4079
        %v4081 = vpop.xlane.xlu0 %4080
        %v4082 = vsel %vm3832, %v3787, -inf
        %4083 = vmax.xlane.f32.xlu0 %v4082
        %v4084 = vpop.xlane.xlu0 %4083
        %v4085 = vsel %vm3832, %v3788, -inf
        %4086 = vmax.xlane.f32.xlu0 %v4085
        %v4087 = vpop.xlane.xlu0 %4086
        %v4088 = vsel %vm3832, %v3789, -inf
        %4089 = vmax.xlane.f32.xlu0 %v4088
        %v4090 = vpop.xlane.xlu0 %4089
        %v4091 = vsel %vm3832, %v3790, -inf
        %4092 = vmax.xlane.f32.xlu0 %v4091
        %v4093 = vpop.xlane.xlu0 %4092
        %v4094 = vsel %vm3832, %v3791, -inf
        %4095 = vmax.xlane.f32.xlu0 %v4094
        %v4096 = vpop.xlane.xlu0 %4095
        %v4097 = vsel %vm3832, %v3792, -inf
        %4098 = vmax.xlane.f32.xlu0 %v4097
        %v4099 = vpop.xlane.xlu0 %4098
        %v4100 = vsel %vm3832, %v3793, -inf
        %4101 = vmax.xlane.f32.xlu0 %v4100
        %v4102 = vpop.xlane.xlu0 %4101
        %v4103 = vsel %vm3832, %v3794, -inf
        %4104 = vmax.xlane.f32.xlu0 %v4103
        %v4105 = vpop.xlane.xlu0 %4104
        %v4106 = vsel %vm3832, %v3795, -inf
        %4107 = vmax.xlane.f32.xlu0 %v4106
        %v4108 = vpop.xlane.xlu0 %4107
        %v4109 = vsel %vm3832, %v3796, -inf
        %4110 = vmax.xlane.f32.xlu0 %v4109
        %v4111 = vpop.xlane.xlu0 %4110
        %v4112 = vsel %vm3832, %v3797, -inf
        %4113 = vmax.xlane.f32.xlu0 %v4112
        %v4114 = vpop.xlane.xlu0 %4113
        %v4115 = vsel %vm3832, %v3798, -inf
        %4116 = vmax.xlane.f32.xlu0 %v4115
        %v4117 = vpop.xlane.xlu0 %4116
        %v4118 = vsel %vm3832, %v3799, -inf
        %4119 = vmax.xlane.f32.xlu0 %v4118
        %v4120 = vpop.xlane.xlu0 %4119
        %v4121 = vsel %vm3832, %v3800, -inf
        %4122 = vmax.xlane.f32.xlu0 %v4121
        %v4123 = vpop.xlane.xlu0 %4122
        %v4124 = vsel %vm3832, %v3801, -inf
        %4125 = vmax.xlane.f32.xlu0 %v4124
        %v4126 = vpop.xlane.xlu0 %4125
        %v4127 = vsel %vm3832, %v3802, -inf
        %4128 = vmax.xlane.f32.xlu0 %v4127
        %v4129 = vpop.xlane.xlu0 %4128
        %v4130 = vsel %vm3832, %v3803, -inf
        %4131 = vmax.xlane.f32.xlu0 %v4130
        %v4132 = vpop.xlane.xlu0 %4131
        %v4133 = vsel %vm3832, %v3804, -inf
        %4134 = vmax.xlane.f32.xlu0 %v4133
        %v4135 = vpop.xlane.xlu0 %4134
        %v4136 = vsel %vm3832, %v3805, -inf
        %4137 = vmax.xlane.f32.xlu0 %v4136
        %v4138 = vpop.xlane.xlu0 %4137
        %v4139 = vsel %vm3832, %v3806, -inf
        %4140 = vmax.xlane.f32.xlu0 %v4139
        %v4141 = vpop.xlane.xlu0 %4140
        %v4142 = vsel %vm3832, %v3807, -inf
        %4143 = vmax.xlane.f32.xlu0 %v4142
        %v4144 = vpop.xlane.xlu0 %4143
        %v4145 = vsel %vm3832, %v3808, -inf
        %4146 = vmax.xlane.f32.xlu0 %v4145
        %v4147 = vpop.xlane.xlu0 %4146
        %v4148 = vsel %vm3832, %v3809, -inf
        %4149 = vmax.xlane.f32.xlu0 %v4148
        %v4150 = vpop.xlane.xlu0 %4149
        %v4151 = vsel %vm3832, %v3810, -inf
        %4152 = vmax.xlane.f32.xlu0 %v4151
        %v4153 = vpop.xlane.xlu0 %4152
        %v4154 = vsel %vm3832, %v3811, -inf
        %4155 = vmax.xlane.f32.xlu0 %v4154
        %v4156 = vpop.xlane.xlu0 %4155
        %v4157 = vsel %vm3832, %v3812, -inf
        %4158 = vmax.xlane.f32.xlu0 %v4157
        %v4159 = vpop.xlane.xlu0 %4158
        %v4160 = vsel %vm3832, %v3813, -inf
        %4161 = vmax.xlane.f32.xlu0 %v4160
        %v4162 = vpop.xlane.xlu0 %4161
        %v4163 = vsel %vm3832, %v3814, -inf
        %4164 = vmax.xlane.f32.xlu0 %v4163
        %v4165 = vpop.xlane.xlu0 %4164
        %v4166 = vsel %vm3832, %v3815, -inf
        %4167 = vmax.xlane.f32.xlu0 %v4166
        %v4168 = vpop.xlane.xlu0 %4167
        %v4169 = vsel %vm3832, %v3816, -inf
        %4170 = vmax.xlane.f32.xlu0 %v4169
        %v4171 = vpop.xlane.xlu0 %4170
        %v4172 = vsel %vm3832, %v3817, -inf
        %4173 = vmax.xlane.f32.xlu0 %v4172
        %v4174 = vpop.xlane.xlu0 %4173
        %v4175 = vsel %vm3832, %v3818, -inf
        %4176 = vmax.xlane.f32.xlu0 %v4175
        %v4177 = vpop.xlane.xlu0 %4176
        %v4178 = vsel %vm3832, %v3819, -inf
        %4179 = vmax.xlane.f32.xlu0 %v4178
        %v4180 = vpop.xlane.xlu0 %4179
        %v4181 = vsel %vm3832, %v3820, -inf
        %4182 = vmax.xlane.f32.xlu0 %v4181
        %v4183 = vpop.xlane.xlu0 %4182
        %v4184 = vsel %vm3832, %v3821, -inf
        %4185 = vmax.xlane.f32.xlu0 %v4184
        %v4186 = vpop.xlane.xlu0 %4185
        %v4187 = vsel %vm3832, %v3822, -inf
        %4188 = vmax.xlane.f32.xlu0 %v4187
        %v4189 = vpop.xlane.xlu0 %4188
        %v4190 = vsel %vm3832, %v3823, -inf
        %4191 = vmax.xlane.f32.xlu0 %v4190
        %v4192 = vpop.xlane.xlu0 %4191
        %v4193 = vsel %vm3832, %v3824, -inf
        %4194 = vmax.xlane.f32.xlu0 %v4193
        %v4195 = vpop.xlane.xlu0 %4194
        %v4196 = vsel %vm3832, %v3825, -inf
        %4197 = vmax.xlane.f32.xlu0 %v4196
        %v4198 = vpop.xlane.xlu0 %4197
        %v4199 = vsel %vm3832, %v3826, -inf
        %4200 = vmax.xlane.f32.xlu0 %v4199
        %v4201 = vpop.xlane.xlu0 %4200
        %v4202 = vsel %vm3832, %v3827, -inf
        %4203 = vmax.xlane.f32.xlu0 %v4202
        %v4204 = vpop.xlane.xlu0 %4203
        %v4205 = vsel %vm3832, %v3828, -inf
        %4206 = vmax.xlane.f32.xlu0 %v4205
        %v4207 = vpop.xlane.xlu0 %4206
        %v4208 = vsel %vm3832, %v3829, -inf
        %4209 = vmax.xlane.f32.xlu0 %v4208
        %v4210 = vpop.xlane.xlu0 %4209
        %v4211 = vsel %vm3832, %v3830, -inf
        %4212 = vmax.xlane.f32.xlu0 %v4211
        %v4213 = vpop.xlane.xlu0 %4212
        %v4214 = vsel %vm3832, %v3831, -inf
        %4215 = vmax.xlane.f32.xlu0 %v4214
        %v4216 = vpop.xlane.xlu0 %4215
        %v4217 = vsub.f32 %v3704, %v3835
        %v4218 = vsub.f32 %v3705, %v3838
        %v4219 = vsub.f32 %v3706, %v3841
        %v4220 = vsub.f32 %v3707, %v3844
        %v4221 = vsub.f32 %v3708, %v3847
        %v4222 = vsub.f32 %v3709, %v3850
        %v4223 = vsub.f32 %v3710, %v3853
        %v4224 = vsub.f32 %v3711, %v3856
        %v4225 = vsub.f32 %v3712, %v3859
        %v4226 = vsub.f32 %v3713, %v3862
        %v4227 = vsub.f32 %v3714, %v3865
        %v4228 = vsub.f32 %v3715, %v3868
        %v4229 = vsub.f32 %v3716, %v3871
        %v4230 = vsub.f32 %v3717, %v3874
        %v4231 = vsub.f32 %v3718, %v3877
        %v4232 = vsub.f32 %v3719, %v3880
        %v4233 = vsub.f32 %v3720, %v3883
        %v4234 = vsub.f32 %v3721, %v3886
        %v4235 = vsub.f32 %v3722, %v3889
        %v4236 = vsub.f32 %v3723, %v3892
        %v4237 = vsub.f32 %v3724, %v3895
        %v4238 = vsub.f32 %v3725, %v3898
        %v4239 = vsub.f32 %v3726, %v3901
        %v4240 = vsub.f32 %v3727, %v3904
        %v4241 = vsub.f32 %v3728, %v3907
        %v4242 = vsub.f32 %v3729, %v3910
        %v4243 = vsub.f32 %v3730, %v3913
        %v4244 = vsub.f32 %v3731, %v3916
        %v4245 = vsub.f32 %v3732, %v3919
        %v4246 = vsub.f32 %v3733, %v3922
        %v4247 = vsub.f32 %v3734, %v3925
        %v4248 = vsub.f32 %v3735, %v3928
        %v4249 = vsub.f32 %v3736, %v3931
        %v4250 = vsub.f32 %v3737, %v3934
        %v4251 = vsub.f32 %v3738, %v3937
        %v4252 = vsub.f32 %v3739, %v3940
        %v4253 = vsub.f32 %v3740, %v3943
        %v4254 = vsub.f32 %v3741, %v3946
        %v4255 = vsub.f32 %v3742, %v3949
        %v4256 = vsub.f32 %v3743, %v3952
        %v4257 = vsub.f32 %v3744, %v3955
        %v4258 = vsub.f32 %v3745, %v3958
        %v4259 = vsub.f32 %v3746, %v3961
        %v4260 = vsub.f32 %v3747, %v3964
        %v4261 = vsub.f32 %v3748, %v3967
        %v4262 = vsub.f32 %v3749, %v3970
        %v4263 = vsub.f32 %v3750, %v3973
        %v4264 = vsub.f32 %v3751, %v3976
        %v4265 = vsub.f32 %v3752, %v3979
        %v4266 = vsub.f32 %v3753, %v3982
        %v4267 = vsub.f32 %v3754, %v3985
        %v4268 = vsub.f32 %v3755, %v3988
        %v4269 = vsub.f32 %v3756, %v3991
        %v4270 = vsub.f32 %v3757, %v3994
        %v4271 = vsub.f32 %v3758, %v3997
        %v4272 = vsub.f32 %v3759, %v4000
        %v4273 = vsub.f32 %v3760, %v4003
        %v4274 = vsub.f32 %v3761, %v4006
        %v4275 = vsub.f32 %v3762, %v4009
        %v4276 = vsub.f32 %v3763, %v4012
        %v4277 = vsub.f32 %v3764, %v4015
        %v4278 = vsub.f32 %v3765, %v4018
        %v4279 = vsub.f32 %v3766, %v4021
        %v4280 = vsub.f32 %v3767, %v4024
        %v4281 = vsub.f32 %v3768, %v4027
        %v4282 = vsub.f32 %v3769, %v4030
        %v4283 = vsub.f32 %v3770, %v4033
        %v4284 = vsub.f32 %v3771, %v4036
        %v4285 = vsub.f32 %v3772, %v4039
        %v4286 = vsub.f32 %v3773, %v4042
        %v4287 = vsub.f32 %v3774, %v4045
        %v4288 = vsub.f32 %v3775, %v4048
        %v4289 = vsub.f32 %v3776, %v4051
        %v4290 = vsub.f32 %v3777, %v4054
        %v4291 = vsub.f32 %v3778, %v4057
        %v4292 = vsub.f32 %v3779, %v4060
        %v4293 = vsub.f32 %v3780, %v4063
        %v4294 = vsub.f32 %v3781, %v4066
        %v4295 = vsub.f32 %v3782, %v4069
        %v4296 = vsub.f32 %v3783, %v4072
        %v4297 = vsub.f32 %v3784, %v4075
        %v4298 = vsub.f32 %v3785, %v4078
        %v4299 = vsub.f32 %v3786, %v4081
        %v4300 = vsub.f32 %v3787, %v4084
        %v4301 = vsub.f32 %v3788, %v4087
        %v4302 = vsub.f32 %v3789, %v4090
        %v4303 = vsub.f32 %v3790, %v4093
        %v4304 = vsub.f32 %v3791, %v4096
        %v4305 = vsub.f32 %v3792, %v4099
        %v4306 = vsub.f32 %v3793, %v4102
        %v4307 = vsub.f32 %v3794, %v4105
        %v4308 = vsub.f32 %v3795, %v4108
        %v4309 = vsub.f32 %v3796, %v4111
        %v4310 = vsub.f32 %v3797, %v4114
        %v4311 = vsub.f32 %v3798, %v4117
        %v4312 = vsub.f32 %v3799, %v4120
        %v4313 = vsub.f32 %v3800, %v4123
        %v4314 = vsub.f32 %v3801, %v4126
        %v4315 = vsub.f32 %v3802, %v4129
        %v4316 = vsub.f32 %v3803, %v4132
        %v4317 = vsub.f32 %v3804, %v4135
        %v4318 = vsub.f32 %v3805, %v4138
        %v4319 = vsub.f32 %v3806, %v4141
        %v4320 = vsub.f32 %v3807, %v4144
        %v4321 = vsub.f32 %v3808, %v4147
        %v4322 = vsub.f32 %v3809, %v4150
        %v4323 = vsub.f32 %v3810, %v4153
        %v4324 = vsub.f32 %v3811, %v4156
        %v4325 = vsub.f32 %v3812, %v4159
        %v4326 = vsub.f32 %v3813, %v4162
        %v4327 = vsub.f32 %v3814, %v4165
        %v4328 = vsub.f32 %v3815, %v4168
        %v4329 = vsub.f32 %v3816, %v4171
        %v4330 = vsub.f32 %v3817, %v4174
        %v4331 = vsub.f32 %v3818, %v4177
        %v4332 = vsub.f32 %v3819, %v4180
        %v4333 = vsub.f32 %v3820, %v4183
        %v4334 = vsub.f32 %v3821, %v4186
        %v4335 = vsub.f32 %v3822, %v4189
        %v4336 = vsub.f32 %v3823, %v4192
        %v4337 = vsub.f32 %v3824, %v4195
        %v4338 = vsub.f32 %v3825, %v4198
        %v4339 = vsub.f32 %v3826, %v4201
        %v4340 = vsub.f32 %v3827, %v4204
        %v4341 = vsub.f32 %v3828, %v4207
        %v4342 = vsub.f32 %v3829, %v4210
        %v4343 = vsub.f32 %v3830, %v4213
        %v4344 = vsub.f32 %v3831, %v4216
        %v4345 = vmul.f32 %v4217, 1.442695
        %v4346 = vpow.pop %v4345
        %v4347 = vmul.f32 %v4218, 1.442695
        %v4348 = vpow.pop %v4347
        %v4349 = vmul.f32 %v4219, 1.442695
        %v4350 = vpow.pop %v4349
        %v4351 = vmul.f32 %v4220, 1.442695
        %v4352 = vpow.pop %v4351
        %v4353 = vmul.f32 %v4221, 1.442695
        %v4354 = vpow.pop %v4353
        %v4355 = vmul.f32 %v4222, 1.442695
        %v4356 = vpow.pop %v4355
        %v4357 = vmul.f32 %v4223, 1.442695
        %v4358 = vpow.pop %v4357
        %v4359 = vmul.f32 %v4224, 1.442695
        %v4360 = vpow.pop %v4359
        %v4361 = vmul.f32 %v4225, 1.442695
        %v4362 = vpow.pop %v4361
        %v4363 = vmul.f32 %v4226, 1.442695
        %v4364 = vpow.pop %v4363
        %v4365 = vmul.f32 %v4227, 1.442695
        %v4366 = vpow.pop %v4365
        %v4367 = vmul.f32 %v4228, 1.442695
        %v4368 = vpow.pop %v4367
        %v4369 = vmul.f32 %v4229, 1.442695
        %v4370 = vpow.pop %v4369
        %v4371 = vmul.f32 %v4230, 1.442695
        %v4372 = vpow.pop %v4371
        %v4373 = vmul.f32 %v4231, 1.442695
        %v4374 = vpow.pop %v4373
        %v4375 = vmul.f32 %v4232, 1.442695
        %v4376 = vpow.pop %v4375
        %v4377 = vmul.f32 %v4233, 1.442695
        %v4378 = vpow.pop %v4377
        %v4379 = vmul.f32 %v4234, 1.442695
        %v4380 = vpow.pop %v4379
        %v4381 = vmul.f32 %v4235, 1.442695
        %v4382 = vpow.pop %v4381
        %v4383 = vmul.f32 %v4236, 1.442695
        %v4384 = vpow.pop %v4383
        %v4385 = vmul.f32 %v4237, 1.442695
        %v4386 = vpow.pop %v4385
        %v4387 = vmul.f32 %v4238, 1.442695
        %v4388 = vpow.pop %v4387
        %v4389 = vmul.f32 %v4239, 1.442695
        %v4390 = vpow.pop %v4389
        %v4391 = vmul.f32 %v4240, 1.442695
        %v4392 = vpow.pop %v4391
        %v4393 = vmul.f32 %v4241, 1.442695
        %v4394 = vpow.pop %v4393
        %v4395 = vmul.f32 %v4242, 1.442695
        %v4396 = vpow.pop %v4395
        %v4397 = vmul.f32 %v4243, 1.442695
        %v4398 = vpow.pop %v4397
        %v4399 = vmul.f32 %v4244, 1.442695
        %v4400 = vpow.pop %v4399
        %v4401 = vmul.f32 %v4245, 1.442695
        %v4402 = vpow.pop %v4401
        %v4403 = vmul.f32 %v4246, 1.442695
        %v4404 = vpow.pop %v4403
        %v4405 = vmul.f32 %v4247, 1.442695
        %v4406 = vpow.pop %v4405
        %v4407 = vmul.f32 %v4248, 1.442695
        %v4408 = vpow.pop %v4407
        %v4409 = vmul.f32 %v4249, 1.442695
        %v4410 = vpow.pop %v4409
        %v4411 = vmul.f32 %v4250, 1.442695
        %v4412 = vpow.pop %v4411
        %v4413 = vmul.f32 %v4251, 1.442695
        %v4414 = vpow.pop %v4413
        %v4415 = vmul.f32 %v4252, 1.442695
        %v4416 = vpow.pop %v4415
        %v4417 = vmul.f32 %v4253, 1.442695
        %v4418 = vpow.pop %v4417
        %v4419 = vmul.f32 %v4254, 1.442695
        %v4420 = vpow.pop %v4419
        %v4421 = vmul.f32 %v4255, 1.442695
        %v4422 = vpow.pop %v4421
        %v4423 = vmul.f32 %v4256, 1.442695
        %v4424 = vpow.pop %v4423
        %v4425 = vmul.f32 %v4257, 1.442695
        %v4426 = vpow.pop %v4425
        %v4427 = vmul.f32 %v4258, 1.442695
        %v4428 = vpow.pop %v4427
        %v4429 = vmul.f32 %v4259, 1.442695
        %v4430 = vpow.pop %v4429
        %v4431 = vmul.f32 %v4260, 1.442695
        %v4432 = vpow.pop %v4431
        %v4433 = vmul.f32 %v4261, 1.442695
        %v4434 = vpow.pop %v4433
        %v4435 = vmul.f32 %v4262, 1.442695
        %v4436 = vpow.pop %v4435
        %v4437 = vmul.f32 %v4263, 1.442695
        %v4438 = vpow.pop %v4437
        %v4439 = vmul.f32 %v4264, 1.442695
        %v4440 = vpow.pop %v4439
        %v4441 = vmul.f32 %v4265, 1.442695
        %v4442 = vpow.pop %v4441
        %v4443 = vmul.f32 %v4266, 1.442695
        %v4444 = vpow.pop %v4443
        %v4445 = vmul.f32 %v4267, 1.442695
        %v4446 = vpow.pop %v4445
        %v4447 = vmul.f32 %v4268, 1.442695
        %v4448 = vpow.pop %v4447
        %v4449 = vmul.f32 %v4269, 1.442695
        %v4450 = vpow.pop %v4449
        %v4451 = vmul.f32 %v4270, 1.442695
        %v4452 = vpow.pop %v4451
        %v4453 = vmul.f32 %v4271, 1.442695
        %v4454 = vpow.pop %v4453
        %v4455 = vmul.f32 %v4272, 1.442695
        %v4456 = vpow.pop %v4455
        %v4457 = vmul.f32 %v4273, 1.442695
        %v4458 = vpow.pop %v4457
        %v4459 = vmul.f32 %v4274, 1.442695
        %v4460 = vpow.pop %v4459
        %v4461 = vmul.f32 %v4275, 1.442695
        %v4462 = vpow.pop %v4461
        %v4463 = vmul.f32 %v4276, 1.442695
        %v4464 = vpow.pop %v4463
        %v4465 = vmul.f32 %v4277, 1.442695
        %v4466 = vpow.pop %v4465
        %v4467 = vmul.f32 %v4278, 1.442695
        %v4468 = vpow.pop %v4467
        %v4469 = vmul.f32 %v4279, 1.442695
        %v4470 = vpow.pop %v4469
        %v4471 = vmul.f32 %v4280, 1.442695
        %v4472 = vpow.pop %v4471
        %v4473 = vmul.f32 %v4281, 1.442695
        %v4474 = vpow.pop %v4473
        %v4475 = vmul.f32 %v4282, 1.442695
        %v4476 = vpow.pop %v4475
        %v4477 = vmul.f32 %v4283, 1.442695
        %v4478 = vpow.pop %v4477
        %v4479 = vmul.f32 %v4284, 1.442695
        %v4480 = vpow.pop %v4479
        %v4481 = vmul.f32 %v4285, 1.442695
        %v4482 = vpow.pop %v4481
        %v4483 = vmul.f32 %v4286, 1.442695
        %v4484 = vpow.pop %v4483
        %v4485 = vmul.f32 %v4287, 1.442695
        %v4486 = vpow.pop %v4485
        %v4487 = vmul.f32 %v4288, 1.442695
        %v4488 = vpow.pop %v4487
        %v4489 = vmul.f32 %v4289, 1.442695
        %v4490 = vpow.pop %v4489
        %v4491 = vmul.f32 %v4290, 1.442695
        %v4492 = vpow.pop %v4491
        %v4493 = vmul.f32 %v4291, 1.442695
        %v4494 = vpow.pop %v4493
        %v4495 = vmul.f32 %v4292, 1.442695
        %v4496 = vpow.pop %v4495
        %v4497 = vmul.f32 %v4293, 1.442695
        %v4498 = vpow.pop %v4497
        %v4499 = vmul.f32 %v4294, 1.442695
        %v4500 = vpow.pop %v4499
        %v4501 = vmul.f32 %v4295, 1.442695
        %v4502 = vpow.pop %v4501
        %v4503 = vmul.f32 %v4296, 1.442695
        %v4504 = vpow.pop %v4503
        %v4505 = vmul.f32 %v4297, 1.442695
        %v4506 = vpow.pop %v4505
        %v4507 = vmul.f32 %v4298, 1.442695
        %v4508 = vpow.pop %v4507
        %v4509 = vmul.f32 %v4299, 1.442695
        %v4510 = vpow.pop %v4509
        %v4511 = vmul.f32 %v4300, 1.442695
        %v4512 = vpow.pop %v4511
        %v4513 = vmul.f32 %v4301, 1.442695
        %v4514 = vpow.pop %v4513
        %v4515 = vmul.f32 %v4302, 1.442695
        %v4516 = vpow.pop %v4515
        %v4517 = vmul.f32 %v4303, 1.442695
        %v4518 = vpow.pop %v4517
        %v4519 = vmul.f32 %v4304, 1.442695
        %v4520 = vpow.pop %v4519
        %v4521 = vmul.f32 %v4305, 1.442695
        %v4522 = vpow.pop %v4521
        %v4523 = vmul.f32 %v4306, 1.442695
        %v4524 = vpow.pop %v4523
        %v4525 = vmul.f32 %v4307, 1.442695
        %v4526 = vpow.pop %v4525
        %v4527 = vmul.f32 %v4308, 1.442695
        %v4528 = vpow.pop %v4527
        %v4529 = vmul.f32 %v4309, 1.442695
        %v4530 = vpow.pop %v4529
        %v4531 = vmul.f32 %v4310, 1.442695
        %v4532 = vpow.pop %v4531
        %v4533 = vmul.f32 %v4311, 1.442695
        %v4534 = vpow.pop %v4533
        %v4535 = vmul.f32 %v4312, 1.442695
        %v4536 = vpow.pop %v4535
        %v4537 = vmul.f32 %v4313, 1.442695
        %v4538 = vpow.pop %v4537
        %v4539 = vmul.f32 %v4314, 1.442695
        %v4540 = vpow.pop %v4539
        %v4541 = vmul.f32 %v4315, 1.442695
        %v4542 = vpow.pop %v4541
        %v4543 = vmul.f32 %v4316, 1.442695
        %v4544 = vpow.pop %v4543
        %v4545 = vmul.f32 %v4317, 1.442695
        %v4546 = vpow.pop %v4545
        %v4547 = vmul.f32 %v4318, 1.442695
        %v4548 = vpow.pop %v4547
        %v4549 = vmul.f32 %v4319, 1.442695
        %v4550 = vpow.pop %v4549
        %v4551 = vmul.f32 %v4320, 1.442695
        %v4552 = vpow.pop %v4551
        %v4553 = vmul.f32 %v4321, 1.442695
        %v4554 = vpow.pop %v4553
        %v4555 = vmul.f32 %v4322, 1.442695
        %v4556 = vpow.pop %v4555
        %v4557 = vmul.f32 %v4323, 1.442695
        %v4558 = vpow.pop %v4557
        %v4559 = vmul.f32 %v4324, 1.442695
        %v4560 = vpow.pop %v4559
        %v4561 = vmul.f32 %v4325, 1.442695
        %v4562 = vpow.pop %v4561
        %v4563 = vmul.f32 %v4326, 1.442695
        %v4564 = vpow.pop %v4563
        %v4565 = vmul.f32 %v4327, 1.442695
        %v4566 = vpow.pop %v4565
        %v4567 = vmul.f32 %v4328, 1.442695
        %v4568 = vpow.pop %v4567
        %v4569 = vmul.f32 %v4329, 1.442695
        %v4570 = vpow.pop %v4569
        %v4571 = vmul.f32 %v4330, 1.442695
        %v4572 = vpow.pop %v4571
        %v4573 = vmul.f32 %v4331, 1.442695
        %v4574 = vpow.pop %v4573
        %v4575 = vmul.f32 %v4332, 1.442695
        %v4576 = vpow.pop %v4575
        %v4577 = vmul.f32 %v4333, 1.442695
        %v4578 = vpow.pop %v4577
        %v4579 = vmul.f32 %v4334, 1.442695
        %v4580 = vpow.pop %v4579
        %v4581 = vmul.f32 %v4335, 1.442695
        %v4582 = vpow.pop %v4581
        %v4583 = vmul.f32 %v4336, 1.442695
        %v4584 = vpow.pop %v4583
        %v4585 = vmul.f32 %v4337, 1.442695
        %v4586 = vpow.pop %v4585
        %v4587 = vmul.f32 %v4338, 1.442695
        %v4588 = vpow.pop %v4587
        %v4589 = vmul.f32 %v4339, 1.442695
        %v4590 = vpow.pop %v4589
        %v4591 = vmul.f32 %v4340, 1.442695
        %v4592 = vpow.pop %v4591
        %v4593 = vmul.f32 %v4341, 1.442695
        %v4594 = vpow.pop %v4593
        %v4595 = vmul.f32 %v4342, 1.442695
        %v4596 = vpow.pop %v4595
        %v4597 = vmul.f32 %v4343, 1.442695
        %v4598 = vpow.pop %v4597
        %v4599 = vmul.f32 %v4344, 1.442695
        %v4600 = vpow.pop %v4599
        %v4601 = vsel %vm3832, %v4346, 0.0
        %4602 = vadd.xlane.f32.xlu0 %v4601
        %v4603 = vpop.xlane.xlu0 %4602
        %v4604 = vsel %vm3832, %v4348, 0.0
        %4605 = vadd.xlane.f32.xlu0 %v4604
        %v4606 = vpop.xlane.xlu0 %4605
        %v4607 = vsel %vm3832, %v4350, 0.0
        %4608 = vadd.xlane.f32.xlu0 %v4607
        %v4609 = vpop.xlane.xlu0 %4608
        %v4610 = vsel %vm3832, %v4352, 0.0
        %4611 = vadd.xlane.f32.xlu0 %v4610
        %v4612 = vpop.xlane.xlu0 %4611
        %v4613 = vsel %vm3832, %v4354, 0.0
        %4614 = vadd.xlane.f32.xlu0 %v4613
        %v4615 = vpop.xlane.xlu0 %4614
        %v4616 = vsel %vm3832, %v4356, 0.0
        %4617 = vadd.xlane.f32.xlu0 %v4616
        %v4618 = vpop.xlane.xlu0 %4617
        %v4619 = vsel %vm3832, %v4358, 0.0
        %4620 = vadd.xlane.f32.xlu0 %v4619
        %v4621 = vpop.xlane.xlu0 %4620
        %v4622 = vsel %vm3832, %v4360, 0.0
        %4623 = vadd.xlane.f32.xlu0 %v4622
        %v4624 = vpop.xlane.xlu0 %4623
        %v4625 = vsel %vm3832, %v4362, 0.0
        %4626 = vadd.xlane.f32.xlu0 %v4625
        %v4627 = vpop.xlane.xlu0 %4626
        %v4628 = vsel %vm3832, %v4364, 0.0
        %4629 = vadd.xlane.f32.xlu0 %v4628
        %v4630 = vpop.xlane.xlu0 %4629
        %v4631 = vsel %vm3832, %v4366, 0.0
        %4632 = vadd.xlane.f32.xlu0 %v4631
        %v4633 = vpop.xlane.xlu0 %4632
        %v4634 = vsel %vm3832, %v4368, 0.0
        %4635 = vadd.xlane.f32.xlu0 %v4634
        %v4636 = vpop.xlane.xlu0 %4635
        %v4637 = vsel %vm3832, %v4370, 0.0
        %4638 = vadd.xlane.f32.xlu0 %v4637
        %v4639 = vpop.xlane.xlu0 %4638
        %v4640 = vsel %vm3832, %v4372, 0.0
        %4641 = vadd.xlane.f32.xlu0 %v4640
        %v4642 = vpop.xlane.xlu0 %4641
        %v4643 = vsel %vm3832, %v4374, 0.0
        %4644 = vadd.xlane.f32.xlu0 %v4643
        %v4645 = vpop.xlane.xlu0 %4644
        %v4646 = vsel %vm3832, %v4376, 0.0
        %4647 = vadd.xlane.f32.xlu0 %v4646
        %v4648 = vpop.xlane.xlu0 %4647
        %v4649 = vsel %vm3832, %v4378, 0.0
        %4650 = vadd.xlane.f32.xlu0 %v4649
        %v4651 = vpop.xlane.xlu0 %4650
        %v4652 = vsel %vm3832, %v4380, 0.0
        %4653 = vadd.xlane.f32.xlu0 %v4652
        %v4654 = vpop.xlane.xlu0 %4653
        %v4655 = vsel %vm3832, %v4382, 0.0
        %4656 = vadd.xlane.f32.xlu0 %v4655
        %v4657 = vpop.xlane.xlu0 %4656
        %v4658 = vsel %vm3832, %v4384, 0.0
        %4659 = vadd.xlane.f32.xlu0 %v4658
        %v4660 = vpop.xlane.xlu0 %4659
        %v4661 = vsel %vm3832, %v4386, 0.0
        %4662 = vadd.xlane.f32.xlu0 %v4661
        %v4663 = vpop.xlane.xlu0 %4662
        %v4664 = vsel %vm3832, %v4388, 0.0
        %4665 = vadd.xlane.f32.xlu0 %v4664
        %v4666 = vpop.xlane.xlu0 %4665
        %v4667 = vsel %vm3832, %v4390, 0.0
        %4668 = vadd.xlane.f32.xlu0 %v4667
        %v4669 = vpop.xlane.xlu0 %4668
        %v4670 = vsel %vm3832, %v4392, 0.0
        %4671 = vadd.xlane.f32.xlu0 %v4670
        %v4672 = vpop.xlane.xlu0 %4671
        %v4673 = vsel %vm3832, %v4394, 0.0
        %4674 = vadd.xlane.f32.xlu0 %v4673
        %v4675 = vpop.xlane.xlu0 %4674
        %v4676 = vsel %vm3832, %v4396, 0.0
        %4677 = vadd.xlane.f32.xlu0 %v4676
        %v4678 = vpop.xlane.xlu0 %4677
        %v4679 = vsel %vm3832, %v4398, 0.0
        %4680 = vadd.xlane.f32.xlu0 %v4679
        %v4681 = vpop.xlane.xlu0 %4680
        %v4682 = vsel %vm3832, %v4400, 0.0
        %4683 = vadd.xlane.f32.xlu0 %v4682
        %v4684 = vpop.xlane.xlu0 %4683
        %v4685 = vsel %vm3832, %v4402, 0.0
        %4686 = vadd.xlane.f32.xlu0 %v4685
        %v4687 = vpop.xlane.xlu0 %4686
        %v4688 = vsel %vm3832, %v4404, 0.0
        %4689 = vadd.xlane.f32.xlu0 %v4688
        %v4690 = vpop.xlane.xlu0 %4689
        %v4691 = vsel %vm3832, %v4406, 0.0
        %4692 = vadd.xlane.f32.xlu0 %v4691
        %v4693 = vpop.xlane.xlu0 %4692
        %v4694 = vsel %vm3832, %v4408, 0.0
        %4695 = vadd.xlane.f32.xlu0 %v4694
        %v4696 = vpop.xlane.xlu0 %4695
        %v4697 = vsel %vm3832, %v4410, 0.0
        %4698 = vadd.xlane.f32.xlu0 %v4697
        %v4699 = vpop.xlane.xlu0 %4698
        %v4700 = vsel %vm3832, %v4412, 0.0
        %4701 = vadd.xlane.f32.xlu0 %v4700
        %v4702 = vpop.xlane.xlu0 %4701
        %v4703 = vsel %vm3832, %v4414, 0.0
        %4704 = vadd.xlane.f32.xlu0 %v4703
        %v4705 = vpop.xlane.xlu0 %4704
        %v4706 = vsel %vm3832, %v4416, 0.0
        %4707 = vadd.xlane.f32.xlu0 %v4706
        %v4708 = vpop.xlane.xlu0 %4707
        %v4709 = vsel %vm3832, %v4418, 0.0
        %4710 = vadd.xlane.f32.xlu0 %v4709
        %v4711 = vpop.xlane.xlu0 %4710
        %v4712 = vsel %vm3832, %v4420, 0.0
        %4713 = vadd.xlane.f32.xlu0 %v4712
        %v4714 = vpop.xlane.xlu0 %4713
        %v4715 = vsel %vm3832, %v4422, 0.0
        %4716 = vadd.xlane.f32.xlu0 %v4715
        %v4717 = vpop.xlane.xlu0 %4716
        %v4718 = vsel %vm3832, %v4424, 0.0
        %4719 = vadd.xlane.f32.xlu0 %v4718
        %v4720 = vpop.xlane.xlu0 %4719
        %v4721 = vsel %vm3832, %v4426, 0.0
        %4722 = vadd.xlane.f32.xlu0 %v4721
        %v4723 = vpop.xlane.xlu0 %4722
        %v4724 = vsel %vm3832, %v4428, 0.0
        %4725 = vadd.xlane.f32.xlu0 %v4724
        %v4726 = vpop.xlane.xlu0 %4725
        %v4727 = vsel %vm3832, %v4430, 0.0
        %4728 = vadd.xlane.f32.xlu0 %v4727
        %v4729 = vpop.xlane.xlu0 %4728
        %v4730 = vsel %vm3832, %v4432, 0.0
        %4731 = vadd.xlane.f32.xlu0 %v4730
        %v4732 = vpop.xlane.xlu0 %4731
        %v4733 = vsel %vm3832, %v4434, 0.0
        %4734 = vadd.xlane.f32.xlu0 %v4733
        %v4735 = vpop.xlane.xlu0 %4734
        %v4736 = vsel %vm3832, %v4436, 0.0
        %4737 = vadd.xlane.f32.xlu0 %v4736
        %v4738 = vpop.xlane.xlu0 %4737
        %v4739 = vsel %vm3832, %v4438, 0.0
        %4740 = vadd.xlane.f32.xlu0 %v4739
        %v4741 = vpop.xlane.xlu0 %4740
        %v4742 = vsel %vm3832, %v4440, 0.0
        %4743 = vadd.xlane.f32.xlu0 %v4742
        %v4744 = vpop.xlane.xlu0 %4743
        %v4745 = vsel %vm3832, %v4442, 0.0
        %4746 = vadd.xlane.f32.xlu0 %v4745
        %v4747 = vpop.xlane.xlu0 %4746
        %v4748 = vsel %vm3832, %v4444, 0.0
        %4749 = vadd.xlane.f32.xlu0 %v4748
        %v4750 = vpop.xlane.xlu0 %4749
        %v4751 = vsel %vm3832, %v4446, 0.0
        %4752 = vadd.xlane.f32.xlu0 %v4751
        %v4753 = vpop.xlane.xlu0 %4752
        %v4754 = vsel %vm3832, %v4448, 0.0
        %4755 = vadd.xlane.f32.xlu0 %v4754
        %v4756 = vpop.xlane.xlu0 %4755
        %v4757 = vsel %vm3832, %v4450, 0.0
        %4758 = vadd.xlane.f32.xlu0 %v4757
        %v4759 = vpop.xlane.xlu0 %4758
        %v4760 = vsel %vm3832, %v4452, 0.0
        %4761 = vadd.xlane.f32.xlu0 %v4760
        %v4762 = vpop.xlane.xlu0 %4761
        %v4763 = vsel %vm3832, %v4454, 0.0
        %4764 = vadd.xlane.f32.xlu0 %v4763
        %v4765 = vpop.xlane.xlu0 %4764
        %v4766 = vsel %vm3832, %v4456, 0.0
        %4767 = vadd.xlane.f32.xlu0 %v4766
        %v4768 = vpop.xlane.xlu0 %4767
        %v4769 = vsel %vm3832, %v4458, 0.0
        %4770 = vadd.xlane.f32.xlu0 %v4769
        %v4771 = vpop.xlane.xlu0 %4770
        %v4772 = vsel %vm3832, %v4460, 0.0
        %4773 = vadd.xlane.f32.xlu0 %v4772
        %v4774 = vpop.xlane.xlu0 %4773
        %v4775 = vsel %vm3832, %v4462, 0.0
        %4776 = vadd.xlane.f32.xlu0 %v4775
        %v4777 = vpop.xlane.xlu0 %4776
        %v4778 = vsel %vm3832, %v4464, 0.0
        %4779 = vadd.xlane.f32.xlu0 %v4778
        %v4780 = vpop.xlane.xlu0 %4779
        %v4781 = vsel %vm3832, %v4466, 0.0
        %4782 = vadd.xlane.f32.xlu0 %v4781
        %v4783 = vpop.xlane.xlu0 %4782
        %v4784 = vsel %vm3832, %v4468, 0.0
        %4785 = vadd.xlane.f32.xlu0 %v4784
        %v4786 = vpop.xlane.xlu0 %4785
        %v4787 = vsel %vm3832, %v4470, 0.0
        %4788 = vadd.xlane.f32.xlu0 %v4787
        %v4789 = vpop.xlane.xlu0 %4788
        %v4790 = vsel %vm3832, %v4472, 0.0
        %4791 = vadd.xlane.f32.xlu0 %v4790
        %v4792 = vpop.xlane.xlu0 %4791
        %v4793 = vsel %vm3832, %v4474, 0.0
        %4794 = vadd.xlane.f32.xlu0 %v4793
        %v4795 = vpop.xlane.xlu0 %4794
        %v4796 = vsel %vm3832, %v4476, 0.0
        %4797 = vadd.xlane.f32.xlu0 %v4796
        %v4798 = vpop.xlane.xlu0 %4797
        %v4799 = vsel %vm3832, %v4478, 0.0
        %4800 = vadd.xlane.f32.xlu0 %v4799
        %v4801 = vpop.xlane.xlu0 %4800
        %v4802 = vsel %vm3832, %v4480, 0.0
        %4803 = vadd.xlane.f32.xlu0 %v4802
        %v4804 = vpop.xlane.xlu0 %4803
        %v4805 = vsel %vm3832, %v4482, 0.0
        %4806 = vadd.xlane.f32.xlu0 %v4805
        %v4807 = vpop.xlane.xlu0 %4806
        %v4808 = vsel %vm3832, %v4484, 0.0
        %4809 = vadd.xlane.f32.xlu0 %v4808
        %v4810 = vpop.xlane.xlu0 %4809
        %v4811 = vsel %vm3832, %v4486, 0.0
        %4812 = vadd.xlane.f32.xlu0 %v4811
        %v4813 = vpop.xlane.xlu0 %4812
        %v4814 = vsel %vm3832, %v4488, 0.0
        %4815 = vadd.xlane.f32.xlu0 %v4814
        %v4816 = vpop.xlane.xlu0 %4815
        %v4817 = vsel %vm3832, %v4490, 0.0
        %4818 = vadd.xlane.f32.xlu0 %v4817
        %v4819 = vpop.xlane.xlu0 %4818
        %v4820 = vsel %vm3832, %v4492, 0.0
        %4821 = vadd.xlane.f32.xlu0 %v4820
        %v4822 = vpop.xlane.xlu0 %4821
        %v4823 = vsel %vm3832, %v4494, 0.0
        %4824 = vadd.xlane.f32.xlu0 %v4823
        %v4825 = vpop.xlane.xlu0 %4824
        %v4826 = vsel %vm3832, %v4496, 0.0
        %4827 = vadd.xlane.f32.xlu0 %v4826
        %v4828 = vpop.xlane.xlu0 %4827
        %v4829 = vsel %vm3832, %v4498, 0.0
        %4830 = vadd.xlane.f32.xlu0 %v4829
        %v4831 = vpop.xlane.xlu0 %4830
        %v4832 = vsel %vm3832, %v4500, 0.0
        %4833 = vadd.xlane.f32.xlu0 %v4832
        %v4834 = vpop.xlane.xlu0 %4833
        %v4835 = vsel %vm3832, %v4502, 0.0
        %4836 = vadd.xlane.f32.xlu0 %v4835
        %v4837 = vpop.xlane.xlu0 %4836
        %v4838 = vsel %vm3832, %v4504, 0.0
        %4839 = vadd.xlane.f32.xlu0 %v4838
        %v4840 = vpop.xlane.xlu0 %4839
        %v4841 = vsel %vm3832, %v4506, 0.0
        %4842 = vadd.xlane.f32.xlu0 %v4841
        %v4843 = vpop.xlane.xlu0 %4842
        %v4844 = vsel %vm3832, %v4508, 0.0
        %4845 = vadd.xlane.f32.xlu0 %v4844
        %v4846 = vpop.xlane.xlu0 %4845
        %v4847 = vsel %vm3832, %v4510, 0.0
        %4848 = vadd.xlane.f32.xlu0 %v4847
        %v4849 = vpop.xlane.xlu0 %4848
        %v4850 = vsel %vm3832, %v4512, 0.0
        %4851 = vadd.xlane.f32.xlu0 %v4850
        %v4852 = vpop.xlane.xlu0 %4851
        %v4853 = vsel %vm3832, %v4514, 0.0
        %4854 = vadd.xlane.f32.xlu0 %v4853
        %v4855 = vpop.xlane.xlu0 %4854
        %v4856 = vsel %vm3832, %v4516, 0.0
        %4857 = vadd.xlane.f32.xlu0 %v4856
        %v4858 = vpop.xlane.xlu0 %4857
        %v4859 = vsel %vm3832, %v4518, 0.0
        %4860 = vadd.xlane.f32.xlu0 %v4859
        %v4861 = vpop.xlane.xlu0 %4860
        %v4862 = vsel %vm3832, %v4520, 0.0
        %4863 = vadd.xlane.f32.xlu0 %v4862
        %v4864 = vpop.xlane.xlu0 %4863
        %v4865 = vsel %vm3832, %v4522, 0.0
        %4866 = vadd.xlane.f32.xlu0 %v4865
        %v4867 = vpop.xlane.xlu0 %4866
        %v4868 = vsel %vm3832, %v4524, 0.0
        %4869 = vadd.xlane.f32.xlu0 %v4868
        %v4870 = vpop.xlane.xlu0 %4869
        %v4871 = vsel %vm3832, %v4526, 0.0
        %4872 = vadd.xlane.f32.xlu0 %v4871
        %v4873 = vpop.xlane.xlu0 %4872
        %v4874 = vsel %vm3832, %v4528, 0.0
        %4875 = vadd.xlane.f32.xlu0 %v4874
        %v4876 = vpop.xlane.xlu0 %4875
        %v4877 = vsel %vm3832, %v4530, 0.0
        %4878 = vadd.xlane.f32.xlu0 %v4877
        %v4879 = vpop.xlane.xlu0 %4878
        %v4880 = vsel %vm3832, %v4532, 0.0
        %4881 = vadd.xlane.f32.xlu0 %v4880
        %v4882 = vpop.xlane.xlu0 %4881
        %v4883 = vsel %vm3832, %v4534, 0.0
        %4884 = vadd.xlane.f32.xlu0 %v4883
        %v4885 = vpop.xlane.xlu0 %4884
        %v4886 = vsel %vm3832, %v4536, 0.0
        %4887 = vadd.xlane.f32.xlu0 %v4886
        %v4888 = vpop.xlane.xlu0 %4887
        %v4889 = vsel %vm3832, %v4538, 0.0
        %4890 = vadd.xlane.f32.xlu0 %v4889
        %v4891 = vpop.xlane.xlu0 %4890
        %v4892 = vsel %vm3832, %v4540, 0.0
        %4893 = vadd.xlane.f32.xlu0 %v4892
        %v4894 = vpop.xlane.xlu0 %4893
        %v4895 = vsel %vm3832, %v4542, 0.0
        %4896 = vadd.xlane.f32.xlu0 %v4895
        %v4897 = vpop.xlane.xlu0 %4896
        %v4898 = vsel %vm3832, %v4544, 0.0
        %4899 = vadd.xlane.f32.xlu0 %v4898
        %v4900 = vpop.xlane.xlu0 %4899
        %v4901 = vsel %vm3832, %v4546, 0.0
        %4902 = vadd.xlane.f32.xlu0 %v4901
        %v4903 = vpop.xlane.xlu0 %4902
        %v4904 = vsel %vm3832, %v4548, 0.0
        %4905 = vadd.xlane.f32.xlu0 %v4904
        %v4906 = vpop.xlane.xlu0 %4905
        %v4907 = vsel %vm3832, %v4550, 0.0
        %4908 = vadd.xlane.f32.xlu0 %v4907
        %v4909 = vpop.xlane.xlu0 %4908
        %v4910 = vsel %vm3832, %v4552, 0.0
        %4911 = vadd.xlane.f32.xlu0 %v4910
        %v4912 = vpop.xlane.xlu0 %4911
        %v4913 = vsel %vm3832, %v4554, 0.0
        %4914 = vadd.xlane.f32.xlu0 %v4913
        %v4915 = vpop.xlane.xlu0 %4914
        %v4916 = vsel %vm3832, %v4556, 0.0
        %4917 = vadd.xlane.f32.xlu0 %v4916
        %v4918 = vpop.xlane.xlu0 %4917
        %v4919 = vsel %vm3832, %v4558, 0.0
        %4920 = vadd.xlane.f32.xlu0 %v4919
        %v4921 = vpop.xlane.xlu0 %4920
        %v4922 = vsel %vm3832, %v4560, 0.0
        %4923 = vadd.xlane.f32.xlu0 %v4922
        %v4924 = vpop.xlane.xlu0 %4923
        %v4925 = vsel %vm3832, %v4562, 0.0
        %4926 = vadd.xlane.f32.xlu0 %v4925
        %v4927 = vpop.xlane.xlu0 %4926
        %v4928 = vsel %vm3832, %v4564, 0.0
        %4929 = vadd.xlane.f32.xlu0 %v4928
        %v4930 = vpop.xlane.xlu0 %4929
        %v4931 = vsel %vm3832, %v4566, 0.0
        %4932 = vadd.xlane.f32.xlu0 %v4931
        %v4933 = vpop.xlane.xlu0 %4932
        %v4934 = vsel %vm3832, %v4568, 0.0
        %4935 = vadd.xlane.f32.xlu0 %v4934
        %v4936 = vpop.xlane.xlu0 %4935
        %v4937 = vsel %vm3832, %v4570, 0.0
        %4938 = vadd.xlane.f32.xlu0 %v4937
        %v4939 = vpop.xlane.xlu0 %4938
        %v4940 = vsel %vm3832, %v4572, 0.0
        %4941 = vadd.xlane.f32.xlu0 %v4940
        %v4942 = vpop.xlane.xlu0 %4941
        %v4943 = vsel %vm3832, %v4574, 0.0
        %4944 = vadd.xlane.f32.xlu0 %v4943
        %v4945 = vpop.xlane.xlu0 %4944
        %v4946 = vsel %vm3832, %v4576, 0.0
        %4947 = vadd.xlane.f32.xlu0 %v4946
        %v4948 = vpop.xlane.xlu0 %4947
        %v4949 = vsel %vm3832, %v4578, 0.0
        %4950 = vadd.xlane.f32.xlu0 %v4949
        %v4951 = vpop.xlane.xlu0 %4950
        %v4952 = vsel %vm3832, %v4580, 0.0
        %4953 = vadd.xlane.f32.xlu0 %v4952
        %v4954 = vpop.xlane.xlu0 %4953
        %v4955 = vsel %vm3832, %v4582, 0.0
        %4956 = vadd.xlane.f32.xlu0 %v4955
        %v4957 = vpop.xlane.xlu0 %4956
        %v4958 = vsel %vm3832, %v4584, 0.0
        %4959 = vadd.xlane.f32.xlu0 %v4958
        %v4960 = vpop.xlane.xlu0 %4959
        %v4961 = vsel %vm3832, %v4586, 0.0
        %4962 = vadd.xlane.f32.xlu0 %v4961
        %v4963 = vpop.xlane.xlu0 %4962
        %v4964 = vsel %vm3832, %v4588, 0.0
        %4965 = vadd.xlane.f32.xlu0 %v4964
        %v4966 = vpop.xlane.xlu0 %4965
        %v4967 = vsel %vm3832, %v4590, 0.0
        %4968 = vadd.xlane.f32.xlu0 %v4967
        %v4969 = vpop.xlane.xlu0 %4968
        %v4970 = vsel %vm3832, %v4592, 0.0
        %4971 = vadd.xlane.f32.xlu0 %v4970
        %v4972 = vpop.xlane.xlu0 %4971
        %v4973 = vsel %vm3832, %v4594, 0.0
        %4974 = vadd.xlane.f32.xlu0 %v4973
        %v4975 = vpop.xlane.xlu0 %4974
        %v4976 = vsel %vm3832, %v4596, 0.0
        %4977 = vadd.xlane.f32.xlu0 %v4976
        %v4978 = vpop.xlane.xlu0 %4977
        %v4979 = vsel %vm3832, %v4598, 0.0
        %4980 = vadd.xlane.f32.xlu0 %v4979
        %v4981 = vpop.xlane.xlu0 %4980
        %v4982 = vsel %vm3832, %v4600, 0.0
        %4983 = vadd.xlane.f32.xlu0 %v4982
        %v4984 = vpop.xlane.xlu0 %4983
        %v4985 = vrcp.pop %v4603
        %v4986 = vmul.f32 %v4603, %v4985
        %v4987 = vsub.f32 1.0, %v4986
        %v4988 = vmul.f32 %v4985, %v4987
        %v4989 = vadd.f32 %v4985, %v4988
        %vm4990 = vweird.f32 %v4603
        %vm4991 = vweird.f32 %v4985
        %vm4992 = vmor %vm4990, %vm4991
        %v4993 = vsel %vm4992, %v4985, %v4989
        %v4994 = vand.u32 2147483647, %v4603
        %vm4995 = vcmp.eq.f32.partialorder %v4994, 8.507059e+37
        %v4996 = vand.u32 %v4603, 2147483648
        %v4997 = vor.u32 1.1754944e-38, %v4996
        %v4998 = vsel %vm4995, %v4997, %v4993
        %v4999 = vmul.f32 %v4346, %v4998
        %v5000 = vrcp.pop %v4606
        %v5001 = vmul.f32 %v4606, %v5000
        %v5002 = vsub.f32 1.0, %v5001
        %v5003 = vmul.f32 %v5000, %v5002
        %v5004 = vadd.f32 %v5000, %v5003
        %vm5005 = vweird.f32 %v4606
        %vm5006 = vweird.f32 %v5000
        %vm5007 = vmor %vm5005, %vm5006
        %v5008 = vsel %vm5007, %v5000, %v5004
        %v5009 = vand.u32 2147483647, %v4606
        %vm5010 = vcmp.eq.f32.partialorder %v5009, 8.507059e+37
        %v5011 = vand.u32 %v4606, 2147483648
        %v5012 = vor.u32 1.1754944e-38, %v5011
        %v5013 = vsel %vm5010, %v5012, %v5008
        %v5014 = vmul.f32 %v4348, %v5013
        %v5015 = vrcp.pop %v4609
        %v5016 = vmul.f32 %v4609, %v5015
        %v5017 = vsub.f32 1.0, %v5016
        %v5018 = vmul.f32 %v5015, %v5017
        %v5019 = vadd.f32 %v5015, %v5018
        %vm5020 = vweird.f32 %v4609
        %vm5021 = vweird.f32 %v5015
        %vm5022 = vmor %vm5020, %vm5021
        %v5023 = vsel %vm5022, %v5015, %v5019
        %v5024 = vand.u32 2147483647, %v4609
        %vm5025 = vcmp.eq.f32.partialorder %v5024, 8.507059e+37
        %v5026 = vand.u32 %v4609, 2147483648
        %v5027 = vor.u32 1.1754944e-38, %v5026
        %v5028 = vsel %vm5025, %v5027, %v5023
        %v5029 = vmul.f32 %v4350, %v5028
        %v5030 = vrcp.pop %v4612
        %v5031 = vmul.f32 %v4612, %v5030
        %v5032 = vsub.f32 1.0, %v5031
        %v5033 = vmul.f32 %v5030, %v5032
        %v5034 = vadd.f32 %v5030, %v5033
        %vm5035 = vweird.f32 %v4612
        %vm5036 = vweird.f32 %v5030
        %vm5037 = vmor %vm5035, %vm5036
        %v5038 = vsel %vm5037, %v5030, %v5034
        %v5039 = vand.u32 2147483647, %v4612
        %vm5040 = vcmp.eq.f32.partialorder %v5039, 8.507059e+37
        %v5041 = vand.u32 %v4612, 2147483648
        %v5042 = vor.u32 1.1754944e-38, %v5041
        %v5043 = vsel %vm5040, %v5042, %v5038
        %v5044 = vmul.f32 %v4352, %v5043
        %v5045 = vrcp.pop %v4615
        %v5046 = vmul.f32 %v4615, %v5045
        %v5047 = vsub.f32 1.0, %v5046
        %v5048 = vmul.f32 %v5045, %v5047
        %v5049 = vadd.f32 %v5045, %v5048
        %vm5050 = vweird.f32 %v4615
        %vm5051 = vweird.f32 %v5045
        %vm5052 = vmor %vm5050, %vm5051
        %v5053 = vsel %vm5052, %v5045, %v5049
        %v5054 = vand.u32 2147483647, %v4615
        %vm5055 = vcmp.eq.f32.partialorder %v5054, 8.507059e+37
        %v5056 = vand.u32 %v4615, 2147483648
        %v5057 = vor.u32 1.1754944e-38, %v5056
        %v5058 = vsel %vm5055, %v5057, %v5053
        %v5059 = vmul.f32 %v4354, %v5058
        %v5060 = vrcp.pop %v4618
        %v5061 = vmul.f32 %v4618, %v5060
        %v5062 = vsub.f32 1.0, %v5061
        %v5063 = vmul.f32 %v5060, %v5062
        %v5064 = vadd.f32 %v5060, %v5063
        %vm5065 = vweird.f32 %v4618
        %vm5066 = vweird.f32 %v5060
        %vm5067 = vmor %vm5065, %vm5066
        %v5068 = vsel %vm5067, %v5060, %v5064
        %v5069 = vand.u32 2147483647, %v4618
        %vm5070 = vcmp.eq.f32.partialorder %v5069, 8.507059e+37
        %v5071 = vand.u32 %v4618, 2147483648
        %v5072 = vor.u32 1.1754944e-38, %v5071
        %v5073 = vsel %vm5070, %v5072, %v5068
        %v5074 = vmul.f32 %v4356, %v5073
        %v5075 = vrcp.pop %v4621
        %v5076 = vmul.f32 %v4621, %v5075
        %v5077 = vsub.f32 1.0, %v5076
        %v5078 = vmul.f32 %v5075, %v5077
        %v5079 = vadd.f32 %v5075, %v5078
        %vm5080 = vweird.f32 %v4621
        %vm5081 = vweird.f32 %v5075
        %vm5082 = vmor %vm5080, %vm5081
        %v5083 = vsel %vm5082, %v5075, %v5079
        %v5084 = vand.u32 2147483647, %v4621
        %vm5085 = vcmp.eq.f32.partialorder %v5084, 8.507059e+37
        %v5086 = vand.u32 %v4621, 2147483648
        %v5087 = vor.u32 1.1754944e-38, %v5086
        %v5088 = vsel %vm5085, %v5087, %v5083
        %v5089 = vmul.f32 %v4358, %v5088
        %v5090 = vrcp.pop %v4624
        %v5091 = vmul.f32 %v4624, %v5090
        %v5092 = vsub.f32 1.0, %v5091
        %v5093 = vmul.f32 %v5090, %v5092
        %v5094 = vadd.f32 %v5090, %v5093
        %vm5095 = vweird.f32 %v4624
        %vm5096 = vweird.f32 %v5090
        %vm5097 = vmor %vm5095, %vm5096
        %v5098 = vsel %vm5097, %v5090, %v5094
        %v5099 = vand.u32 2147483647, %v4624
        %vm5100 = vcmp.eq.f32.partialorder %v5099, 8.507059e+37
        %v5101 = vand.u32 %v4624, 2147483648
        %v5102 = vor.u32 1.1754944e-38, %v5101
        %v5103 = vsel %vm5100, %v5102, %v5098
        %v5104 = vmul.f32 %v4360, %v5103
        %v5105 = vrcp.pop %v4627
        %v5106 = vmul.f32 %v4627, %v5105
        %v5107 = vsub.f32 1.0, %v5106
        %v5108 = vmul.f32 %v5105, %v5107
        %v5109 = vadd.f32 %v5105, %v5108
        %vm5110 = vweird.f32 %v4627
        %vm5111 = vweird.f32 %v5105
        %vm5112 = vmor %vm5110, %vm5111
        %v5113 = vsel %vm5112, %v5105, %v5109
        %v5114 = vand.u32 2147483647, %v4627
        %vm5115 = vcmp.eq.f32.partialorder %v5114, 8.507059e+37
        %v5116 = vand.u32 %v4627, 2147483648
        %v5117 = vor.u32 1.1754944e-38, %v5116
        %v5118 = vsel %vm5115, %v5117, %v5113
        %v5119 = vmul.f32 %v4362, %v5118
        %v5120 = vrcp.pop %v4630
        %v5121 = vmul.f32 %v4630, %v5120
        %v5122 = vsub.f32 1.0, %v5121
        %v5123 = vmul.f32 %v5120, %v5122
        %v5124 = vadd.f32 %v5120, %v5123
        %vm5125 = vweird.f32 %v4630
        %vm5126 = vweird.f32 %v5120
        %vm5127 = vmor %vm5125, %vm5126
        %v5128 = vsel %vm5127, %v5120, %v5124
        %v5129 = vand.u32 2147483647, %v4630
        %vm5130 = vcmp.eq.f32.partialorder %v5129, 8.507059e+37
        %v5131 = vand.u32 %v4630, 2147483648
        %v5132 = vor.u32 1.1754944e-38, %v5131
        %v5133 = vsel %vm5130, %v5132, %v5128
        %v5134 = vmul.f32 %v4364, %v5133
        %v5135 = vrcp.pop %v4633
        %v5136 = vmul.f32 %v4633, %v5135
        %v5137 = vsub.f32 1.0, %v5136
        %v5138 = vmul.f32 %v5135, %v5137
        %v5139 = vadd.f32 %v5135, %v5138
        %vm5140 = vweird.f32 %v4633
        %vm5141 = vweird.f32 %v5135
        %vm5142 = vmor %vm5140, %vm5141
        %v5143 = vsel %vm5142, %v5135, %v5139
        %v5144 = vand.u32 2147483647, %v4633
        %vm5145 = vcmp.eq.f32.partialorder %v5144, 8.507059e+37
        %v5146 = vand.u32 %v4633, 2147483648
        %v5147 = vor.u32 1.1754944e-38, %v5146
        %v5148 = vsel %vm5145, %v5147, %v5143
        %v5149 = vmul.f32 %v4366, %v5148
        %v5150 = vrcp.pop %v4636
        %v5151 = vmul.f32 %v4636, %v5150
        %v5152 = vsub.f32 1.0, %v5151
        %v5153 = vmul.f32 %v5150, %v5152
        %v5154 = vadd.f32 %v5150, %v5153
        %vm5155 = vweird.f32 %v4636
        %vm5156 = vweird.f32 %v5150
        %vm5157 = vmor %vm5155, %vm5156
        %v5158 = vsel %vm5157, %v5150, %v5154
        %v5159 = vand.u32 2147483647, %v4636
        %vm5160 = vcmp.eq.f32.partialorder %v5159, 8.507059e+37
        %v5161 = vand.u32 %v4636, 2147483648
        %v5162 = vor.u32 1.1754944e-38, %v5161
        %v5163 = vsel %vm5160, %v5162, %v5158
        %v5164 = vmul.f32 %v4368, %v5163
        %v5165 = vrcp.pop %v4639
        %v5166 = vmul.f32 %v4639, %v5165
        %v5167 = vsub.f32 1.0, %v5166
        %v5168 = vmul.f32 %v5165, %v5167
        %v5169 = vadd.f32 %v5165, %v5168
        %vm5170 = vweird.f32 %v4639
        %vm5171 = vweird.f32 %v5165
        %vm5172 = vmor %vm5170, %vm5171
        %v5173 = vsel %vm5172, %v5165, %v5169
        %v5174 = vand.u32 2147483647, %v4639
        %vm5175 = vcmp.eq.f32.partialorder %v5174, 8.507059e+37
        %v5176 = vand.u32 %v4639, 2147483648
        %v5177 = vor.u32 1.1754944e-38, %v5176
        %v5178 = vsel %vm5175, %v5177, %v5173
        %v5179 = vmul.f32 %v4370, %v5178
        %v5180 = vrcp.pop %v4642
        %v5181 = vmul.f32 %v4642, %v5180
        %v5182 = vsub.f32 1.0, %v5181
        %v5183 = vmul.f32 %v5180, %v5182
        %v5184 = vadd.f32 %v5180, %v5183
        %vm5185 = vweird.f32 %v4642
        %vm5186 = vweird.f32 %v5180
        %vm5187 = vmor %vm5185, %vm5186
        %v5188 = vsel %vm5187, %v5180, %v5184
        %v5189 = vand.u32 2147483647, %v4642
        %vm5190 = vcmp.eq.f32.partialorder %v5189, 8.507059e+37
        %v5191 = vand.u32 %v4642, 2147483648
        %v5192 = vor.u32 1.1754944e-38, %v5191
        %v5193 = vsel %vm5190, %v5192, %v5188
        %v5194 = vmul.f32 %v4372, %v5193
        %v5195 = vrcp.pop %v4645
        %v5196 = vmul.f32 %v4645, %v5195
        %v5197 = vsub.f32 1.0, %v5196
        %v5198 = vmul.f32 %v5195, %v5197
        %v5199 = vadd.f32 %v5195, %v5198
        %vm5200 = vweird.f32 %v4645
        %vm5201 = vweird.f32 %v5195
        %vm5202 = vmor %vm5200, %vm5201
        %v5203 = vsel %vm5202, %v5195, %v5199
        %v5204 = vand.u32 2147483647, %v4645
        %vm5205 = vcmp.eq.f32.partialorder %v5204, 8.507059e+37
        %v5206 = vand.u32 %v4645, 2147483648
        %v5207 = vor.u32 1.1754944e-38, %v5206
        %v5208 = vsel %vm5205, %v5207, %v5203
        %v5209 = vmul.f32 %v4374, %v5208
        %v5210 = vrcp.pop %v4648
        %v5211 = vmul.f32 %v4648, %v5210
        %v5212 = vsub.f32 1.0, %v5211
        %v5213 = vmul.f32 %v5210, %v5212
        %v5214 = vadd.f32 %v5210, %v5213
        %vm5215 = vweird.f32 %v4648
        %vm5216 = vweird.f32 %v5210
        %vm5217 = vmor %vm5215, %vm5216
        %v5218 = vsel %vm5217, %v5210, %v5214
        %v5219 = vand.u32 2147483647, %v4648
        %vm5220 = vcmp.eq.f32.partialorder %v5219, 8.507059e+37
        %v5221 = vand.u32 %v4648, 2147483648
        %v5222 = vor.u32 1.1754944e-38, %v5221
        %v5223 = vsel %vm5220, %v5222, %v5218
        %v5224 = vmul.f32 %v4376, %v5223
        %v5225 = vrcp.pop %v4651
        %v5226 = vmul.f32 %v4651, %v5225
        %v5227 = vsub.f32 1.0, %v5226
        %v5228 = vmul.f32 %v5225, %v5227
        %v5229 = vadd.f32 %v5225, %v5228
        %vm5230 = vweird.f32 %v4651
        %vm5231 = vweird.f32 %v5225
        %vm5232 = vmor %vm5230, %vm5231
        %v5233 = vsel %vm5232, %v5225, %v5229
        %v5234 = vand.u32 2147483647, %v4651
        %vm5235 = vcmp.eq.f32.partialorder %v5234, 8.507059e+37
        %v5236 = vand.u32 %v4651, 2147483648
        %v5237 = vor.u32 1.1754944e-38, %v5236
        %v5238 = vsel %vm5235, %v5237, %v5233
        %v5239 = vmul.f32 %v4378, %v5238
        %v5240 = vrcp.pop %v4654
        %v5241 = vmul.f32 %v4654, %v5240
        %v5242 = vsub.f32 1.0, %v5241
        %v5243 = vmul.f32 %v5240, %v5242
        %v5244 = vadd.f32 %v5240, %v5243
        %vm5245 = vweird.f32 %v4654
        %vm5246 = vweird.f32 %v5240
        %vm5247 = vmor %vm5245, %vm5246
        %v5248 = vsel %vm5247, %v5240, %v5244
        %v5249 = vand.u32 2147483647, %v4654
        %vm5250 = vcmp.eq.f32.partialorder %v5249, 8.507059e+37
        %v5251 = vand.u32 %v4654, 2147483648
        %v5252 = vor.u32 1.1754944e-38, %v5251
        %v5253 = vsel %vm5250, %v5252, %v5248
        %v5254 = vmul.f32 %v4380, %v5253
        %v5255 = vrcp.pop %v4657
        %v5256 = vmul.f32 %v4657, %v5255
        %v5257 = vsub.f32 1.0, %v5256
        %v5258 = vmul.f32 %v5255, %v5257
        %v5259 = vadd.f32 %v5255, %v5258
        %vm5260 = vweird.f32 %v4657
        %vm5261 = vweird.f32 %v5255
        %vm5262 = vmor %vm5260, %vm5261
        %v5263 = vsel %vm5262, %v5255, %v5259
        %v5264 = vand.u32 2147483647, %v4657
        %vm5265 = vcmp.eq.f32.partialorder %v5264, 8.507059e+37
        %v5266 = vand.u32 %v4657, 2147483648
        %v5267 = vor.u32 1.1754944e-38, %v5266
        %v5268 = vsel %vm5265, %v5267, %v5263
        %v5269 = vmul.f32 %v4382, %v5268
        %v5270 = vrcp.pop %v4660
        %v5271 = vmul.f32 %v4660, %v5270
        %v5272 = vsub.f32 1.0, %v5271
        %v5273 = vmul.f32 %v5270, %v5272
        %v5274 = vadd.f32 %v5270, %v5273
        %vm5275 = vweird.f32 %v4660
        %vm5276 = vweird.f32 %v5270
        %vm5277 = vmor %vm5275, %vm5276
        %v5278 = vsel %vm5277, %v5270, %v5274
        %v5279 = vand.u32 2147483647, %v4660
        %vm5280 = vcmp.eq.f32.partialorder %v5279, 8.507059e+37
        %v5281 = vand.u32 %v4660, 2147483648
        %v5282 = vor.u32 1.1754944e-38, %v5281
        %v5283 = vsel %vm5280, %v5282, %v5278
        %v5284 = vmul.f32 %v4384, %v5283
        %v5285 = vrcp.pop %v4663
        %v5286 = vmul.f32 %v4663, %v5285
        %v5287 = vsub.f32 1.0, %v5286
        %v5288 = vmul.f32 %v5285, %v5287
        %v5289 = vadd.f32 %v5285, %v5288
        %vm5290 = vweird.f32 %v4663
        %vm5291 = vweird.f32 %v5285
        %vm5292 = vmor %vm5290, %vm5291
        %v5293 = vsel %vm5292, %v5285, %v5289
        %v5294 = vand.u32 2147483647, %v4663
        %vm5295 = vcmp.eq.f32.partialorder %v5294, 8.507059e+37
        %v5296 = vand.u32 %v4663, 2147483648
        %v5297 = vor.u32 1.1754944e-38, %v5296
        %v5298 = vsel %vm5295, %v5297, %v5293
        %v5299 = vmul.f32 %v4386, %v5298
        %v5300 = vrcp.pop %v4666
        %v5301 = vmul.f32 %v4666, %v5300
        %v5302 = vsub.f32 1.0, %v5301
        %v5303 = vmul.f32 %v5300, %v5302
        %v5304 = vadd.f32 %v5300, %v5303
        %vm5305 = vweird.f32 %v4666
        %vm5306 = vweird.f32 %v5300
        %vm5307 = vmor %vm5305, %vm5306
        %v5308 = vsel %vm5307, %v5300, %v5304
        %v5309 = vand.u32 2147483647, %v4666
        %vm5310 = vcmp.eq.f32.partialorder %v5309, 8.507059e+37
        %v5311 = vand.u32 %v4666, 2147483648
        %v5312 = vor.u32 1.1754944e-38, %v5311
        %v5313 = vsel %vm5310, %v5312, %v5308
        %v5314 = vmul.f32 %v4388, %v5313
        %v5315 = vrcp.pop %v4669
        %v5316 = vmul.f32 %v4669, %v5315
        %v5317 = vsub.f32 1.0, %v5316
        %v5318 = vmul.f32 %v5315, %v5317
        %v5319 = vadd.f32 %v5315, %v5318
        %vm5320 = vweird.f32 %v4669
        %vm5321 = vweird.f32 %v5315
        %vm5322 = vmor %vm5320, %vm5321
        %v5323 = vsel %vm5322, %v5315, %v5319
        %v5324 = vand.u32 2147483647, %v4669
        %vm5325 = vcmp.eq.f32.partialorder %v5324, 8.507059e+37
        %v5326 = vand.u32 %v4669, 2147483648
        %v5327 = vor.u32 1.1754944e-38, %v5326
        %v5328 = vsel %vm5325, %v5327, %v5323
        %v5329 = vmul.f32 %v4390, %v5328
        %v5330 = vrcp.pop %v4672
        %v5331 = vmul.f32 %v4672, %v5330
        %v5332 = vsub.f32 1.0, %v5331
        %v5333 = vmul.f32 %v5330, %v5332
        %v5334 = vadd.f32 %v5330, %v5333
        %vm5335 = vweird.f32 %v4672
        %vm5336 = vweird.f32 %v5330
        %vm5337 = vmor %vm5335, %vm5336
        %v5338 = vsel %vm5337, %v5330, %v5334
        %v5339 = vand.u32 2147483647, %v4672
        %vm5340 = vcmp.eq.f32.partialorder %v5339, 8.507059e+37
        %v5341 = vand.u32 %v4672, 2147483648
        %v5342 = vor.u32 1.1754944e-38, %v5341
        %v5343 = vsel %vm5340, %v5342, %v5338
        %v5344 = vmul.f32 %v4392, %v5343
        %v5345 = vrcp.pop %v4675
        %v5346 = vmul.f32 %v4675, %v5345
        %v5347 = vsub.f32 1.0, %v5346
        %v5348 = vmul.f32 %v5345, %v5347
        %v5349 = vadd.f32 %v5345, %v5348
        %vm5350 = vweird.f32 %v4675
        %vm5351 = vweird.f32 %v5345
        %vm5352 = vmor %vm5350, %vm5351
        %v5353 = vsel %vm5352, %v5345, %v5349
        %v5354 = vand.u32 2147483647, %v4675
        %vm5355 = vcmp.eq.f32.partialorder %v5354, 8.507059e+37
        %v5356 = vand.u32 %v4675, 2147483648
        %v5357 = vor.u32 1.1754944e-38, %v5356
        %v5358 = vsel %vm5355, %v5357, %v5353
        %v5359 = vmul.f32 %v4394, %v5358
        %v5360 = vrcp.pop %v4678
        %v5361 = vmul.f32 %v4678, %v5360
        %v5362 = vsub.f32 1.0, %v5361
        %v5363 = vmul.f32 %v5360, %v5362
        %v5364 = vadd.f32 %v5360, %v5363
        %vm5365 = vweird.f32 %v4678
        %vm5366 = vweird.f32 %v5360
        %vm5367 = vmor %vm5365, %vm5366
        %v5368 = vsel %vm5367, %v5360, %v5364
        %v5369 = vand.u32 2147483647, %v4678
        %vm5370 = vcmp.eq.f32.partialorder %v5369, 8.507059e+37
        %v5371 = vand.u32 %v4678, 2147483648
        %v5372 = vor.u32 1.1754944e-38, %v5371
        %v5373 = vsel %vm5370, %v5372, %v5368
        %v5374 = vmul.f32 %v4396, %v5373
        %v5375 = vrcp.pop %v4681
        %v5376 = vmul.f32 %v4681, %v5375
        %v5377 = vsub.f32 1.0, %v5376
        %v5378 = vmul.f32 %v5375, %v5377
        %v5379 = vadd.f32 %v5375, %v5378
        %vm5380 = vweird.f32 %v4681
        %vm5381 = vweird.f32 %v5375
        %vm5382 = vmor %vm5380, %vm5381
        %v5383 = vsel %vm5382, %v5375, %v5379
        %v5384 = vand.u32 2147483647, %v4681
        %vm5385 = vcmp.eq.f32.partialorder %v5384, 8.507059e+37
        %v5386 = vand.u32 %v4681, 2147483648
        %v5387 = vor.u32 1.1754944e-38, %v5386
        %v5388 = vsel %vm5385, %v5387, %v5383
        %v5389 = vmul.f32 %v4398, %v5388
        %v5390 = vrcp.pop %v4684
        %v5391 = vmul.f32 %v4684, %v5390
        %v5392 = vsub.f32 1.0, %v5391
        %v5393 = vmul.f32 %v5390, %v5392
        %v5394 = vadd.f32 %v5390, %v5393
        %vm5395 = vweird.f32 %v4684
        %vm5396 = vweird.f32 %v5390
        %vm5397 = vmor %vm5395, %vm5396
        %v5398 = vsel %vm5397, %v5390, %v5394
        %v5399 = vand.u32 2147483647, %v4684
        %vm5400 = vcmp.eq.f32.partialorder %v5399, 8.507059e+37
        %v5401 = vand.u32 %v4684, 2147483648
        %v5402 = vor.u32 1.1754944e-38, %v5401
        %v5403 = vsel %vm5400, %v5402, %v5398
        %v5404 = vmul.f32 %v4400, %v5403
        %v5405 = vrcp.pop %v4687
        %v5406 = vmul.f32 %v4687, %v5405
        %v5407 = vsub.f32 1.0, %v5406
        %v5408 = vmul.f32 %v5405, %v5407
        %v5409 = vadd.f32 %v5405, %v5408
        %vm5410 = vweird.f32 %v4687
        %vm5411 = vweird.f32 %v5405
        %vm5412 = vmor %vm5410, %vm5411
        %v5413 = vsel %vm5412, %v5405, %v5409
        %v5414 = vand.u32 2147483647, %v4687
        %vm5415 = vcmp.eq.f32.partialorder %v5414, 8.507059e+37
        %v5416 = vand.u32 %v4687, 2147483648
        %v5417 = vor.u32 1.1754944e-38, %v5416
        %v5418 = vsel %vm5415, %v5417, %v5413
        %v5419 = vmul.f32 %v4402, %v5418
        %v5420 = vrcp.pop %v4690
        %v5421 = vmul.f32 %v4690, %v5420
        %v5422 = vsub.f32 1.0, %v5421
        %v5423 = vmul.f32 %v5420, %v5422
        %v5424 = vadd.f32 %v5420, %v5423
        %vm5425 = vweird.f32 %v4690
        %vm5426 = vweird.f32 %v5420
        %vm5427 = vmor %vm5425, %vm5426
        %v5428 = vsel %vm5427, %v5420, %v5424
        %v5429 = vand.u32 2147483647, %v4690
        %vm5430 = vcmp.eq.f32.partialorder %v5429, 8.507059e+37
        %v5431 = vand.u32 %v4690, 2147483648
        %v5432 = vor.u32 1.1754944e-38, %v5431
        %v5433 = vsel %vm5430, %v5432, %v5428
        %v5434 = vmul.f32 %v4404, %v5433
        %v5435 = vrcp.pop %v4693
        %v5436 = vmul.f32 %v4693, %v5435
        %v5437 = vsub.f32 1.0, %v5436
        %v5438 = vmul.f32 %v5435, %v5437
        %v5439 = vadd.f32 %v5435, %v5438
        %vm5440 = vweird.f32 %v4693
        %vm5441 = vweird.f32 %v5435
        %vm5442 = vmor %vm5440, %vm5441
        %v5443 = vsel %vm5442, %v5435, %v5439
        %v5444 = vand.u32 2147483647, %v4693
        %vm5445 = vcmp.eq.f32.partialorder %v5444, 8.507059e+37
        %v5446 = vand.u32 %v4693, 2147483648
        %v5447 = vor.u32 1.1754944e-38, %v5446
        %v5448 = vsel %vm5445, %v5447, %v5443
        %v5449 = vmul.f32 %v4406, %v5448
        %v5450 = vrcp.pop %v4696
        %v5451 = vmul.f32 %v4696, %v5450
        %v5452 = vsub.f32 1.0, %v5451
        %v5453 = vmul.f32 %v5450, %v5452
        %v5454 = vadd.f32 %v5450, %v5453
        %vm5455 = vweird.f32 %v4696
        %vm5456 = vweird.f32 %v5450
        %vm5457 = vmor %vm5455, %vm5456
        %v5458 = vsel %vm5457, %v5450, %v5454
        %v5459 = vand.u32 2147483647, %v4696
        %vm5460 = vcmp.eq.f32.partialorder %v5459, 8.507059e+37
        %v5461 = vand.u32 %v4696, 2147483648
        %v5462 = vor.u32 1.1754944e-38, %v5461
        %v5463 = vsel %vm5460, %v5462, %v5458
        %v5464 = vmul.f32 %v4408, %v5463
        %v5465 = vrcp.pop %v4699
        %v5466 = vmul.f32 %v4699, %v5465
        %v5467 = vsub.f32 1.0, %v5466
        %v5468 = vmul.f32 %v5465, %v5467
        %v5469 = vadd.f32 %v5465, %v5468
        %vm5470 = vweird.f32 %v4699
        %vm5471 = vweird.f32 %v5465
        %vm5472 = vmor %vm5470, %vm5471
        %v5473 = vsel %vm5472, %v5465, %v5469
        %v5474 = vand.u32 2147483647, %v4699
        %vm5475 = vcmp.eq.f32.partialorder %v5474, 8.507059e+37
        %v5476 = vand.u32 %v4699, 2147483648
        %v5477 = vor.u32 1.1754944e-38, %v5476
        %v5478 = vsel %vm5475, %v5477, %v5473
        %v5479 = vmul.f32 %v4410, %v5478
        %v5480 = vrcp.pop %v4702
        %v5481 = vmul.f32 %v4702, %v5480
        %v5482 = vsub.f32 1.0, %v5481
        %v5483 = vmul.f32 %v5480, %v5482
        %v5484 = vadd.f32 %v5480, %v5483
        %vm5485 = vweird.f32 %v4702
        %vm5486 = vweird.f32 %v5480
        %vm5487 = vmor %vm5485, %vm5486
        %v5488 = vsel %vm5487, %v5480, %v5484
        %v5489 = vand.u32 2147483647, %v4702
        %vm5490 = vcmp.eq.f32.partialorder %v5489, 8.507059e+37
        %v5491 = vand.u32 %v4702, 2147483648
        %v5492 = vor.u32 1.1754944e-38, %v5491
        %v5493 = vsel %vm5490, %v5492, %v5488
        %v5494 = vmul.f32 %v4412, %v5493
        %v5495 = vrcp.pop %v4705
        %v5496 = vmul.f32 %v4705, %v5495
        %v5497 = vsub.f32 1.0, %v5496
        %v5498 = vmul.f32 %v5495, %v5497
        %v5499 = vadd.f32 %v5495, %v5498
        %vm5500 = vweird.f32 %v4705
        %vm5501 = vweird.f32 %v5495
        %vm5502 = vmor %vm5500, %vm5501
        %v5503 = vsel %vm5502, %v5495, %v5499
        %v5504 = vand.u32 2147483647, %v4705
        %vm5505 = vcmp.eq.f32.partialorder %v5504, 8.507059e+37
        %v5506 = vand.u32 %v4705, 2147483648
        %v5507 = vor.u32 1.1754944e-38, %v5506
        %v5508 = vsel %vm5505, %v5507, %v5503
        %v5509 = vmul.f32 %v4414, %v5508
        %v5510 = vrcp.pop %v4708
        %v5511 = vmul.f32 %v4708, %v5510
        %v5512 = vsub.f32 1.0, %v5511
        %v5513 = vmul.f32 %v5510, %v5512
        %v5514 = vadd.f32 %v5510, %v5513
        %vm5515 = vweird.f32 %v4708
        %vm5516 = vweird.f32 %v5510
        %vm5517 = vmor %vm5515, %vm5516
        %v5518 = vsel %vm5517, %v5510, %v5514
        %v5519 = vand.u32 2147483647, %v4708
        %vm5520 = vcmp.eq.f32.partialorder %v5519, 8.507059e+37
        %v5521 = vand.u32 %v4708, 2147483648
        %v5522 = vor.u32 1.1754944e-38, %v5521
        %v5523 = vsel %vm5520, %v5522, %v5518
        %v5524 = vmul.f32 %v4416, %v5523
        %v5525 = vrcp.pop %v4711
        %v5526 = vmul.f32 %v4711, %v5525
        %v5527 = vsub.f32 1.0, %v5526
        %v5528 = vmul.f32 %v5525, %v5527
        %v5529 = vadd.f32 %v5525, %v5528
        %vm5530 = vweird.f32 %v4711
        %vm5531 = vweird.f32 %v5525
        %vm5532 = vmor %vm5530, %vm5531
        %v5533 = vsel %vm5532, %v5525, %v5529
        %v5534 = vand.u32 2147483647, %v4711
        %vm5535 = vcmp.eq.f32.partialorder %v5534, 8.507059e+37
        %v5536 = vand.u32 %v4711, 2147483648
        %v5537 = vor.u32 1.1754944e-38, %v5536
        %v5538 = vsel %vm5535, %v5537, %v5533
        %v5539 = vmul.f32 %v4418, %v5538
        %v5540 = vrcp.pop %v4714
        %v5541 = vmul.f32 %v4714, %v5540
        %v5542 = vsub.f32 1.0, %v5541
        %v5543 = vmul.f32 %v5540, %v5542
        %v5544 = vadd.f32 %v5540, %v5543
        %vm5545 = vweird.f32 %v4714
        %vm5546 = vweird.f32 %v5540
        %vm5547 = vmor %vm5545, %vm5546
        %v5548 = vsel %vm5547, %v5540, %v5544
        %v5549 = vand.u32 2147483647, %v4714
        %vm5550 = vcmp.eq.f32.partialorder %v5549, 8.507059e+37
        %v5551 = vand.u32 %v4714, 2147483648
        %v5552 = vor.u32 1.1754944e-38, %v5551
        %v5553 = vsel %vm5550, %v5552, %v5548
        %v5554 = vmul.f32 %v4420, %v5553
        %v5555 = vrcp.pop %v4717
        %v5556 = vmul.f32 %v4717, %v5555
        %v5557 = vsub.f32 1.0, %v5556
        %v5558 = vmul.f32 %v5555, %v5557
        %v5559 = vadd.f32 %v5555, %v5558
        %vm5560 = vweird.f32 %v4717
        %vm5561 = vweird.f32 %v5555
        %vm5562 = vmor %vm5560, %vm5561
        %v5563 = vsel %vm5562, %v5555, %v5559
        %v5564 = vand.u32 2147483647, %v4717
        %vm5565 = vcmp.eq.f32.partialorder %v5564, 8.507059e+37
        %v5566 = vand.u32 %v4717, 2147483648
        %v5567 = vor.u32 1.1754944e-38, %v5566
        %v5568 = vsel %vm5565, %v5567, %v5563
        %v5569 = vmul.f32 %v4422, %v5568
        %v5570 = vrcp.pop %v4720
        %v5571 = vmul.f32 %v4720, %v5570
        %v5572 = vsub.f32 1.0, %v5571
        %v5573 = vmul.f32 %v5570, %v5572
        %v5574 = vadd.f32 %v5570, %v5573
        %vm5575 = vweird.f32 %v4720
        %vm5576 = vweird.f32 %v5570
        %vm5577 = vmor %vm5575, %vm5576
        %v5578 = vsel %vm5577, %v5570, %v5574
        %v5579 = vand.u32 2147483647, %v4720
        %vm5580 = vcmp.eq.f32.partialorder %v5579, 8.507059e+37
        %v5581 = vand.u32 %v4720, 2147483648
        %v5582 = vor.u32 1.1754944e-38, %v5581
        %v5583 = vsel %vm5580, %v5582, %v5578
        %v5584 = vmul.f32 %v4424, %v5583
        %v5585 = vrcp.pop %v4723
        %v5586 = vmul.f32 %v4723, %v5585
        %v5587 = vsub.f32 1.0, %v5586
        %v5588 = vmul.f32 %v5585, %v5587
        %v5589 = vadd.f32 %v5585, %v5588
        %vm5590 = vweird.f32 %v4723
        %vm5591 = vweird.f32 %v5585
        %vm5592 = vmor %vm5590, %vm5591
        %v5593 = vsel %vm5592, %v5585, %v5589
        %v5594 = vand.u32 2147483647, %v4723
        %vm5595 = vcmp.eq.f32.partialorder %v5594, 8.507059e+37
        %v5596 = vand.u32 %v4723, 2147483648
        %v5597 = vor.u32 1.1754944e-38, %v5596
        %v5598 = vsel %vm5595, %v5597, %v5593
        %v5599 = vmul.f32 %v4426, %v5598
        %v5600 = vrcp.pop %v4726
        %v5601 = vmul.f32 %v4726, %v5600
        %v5602 = vsub.f32 1.0, %v5601
        %v5603 = vmul.f32 %v5600, %v5602
        %v5604 = vadd.f32 %v5600, %v5603
        %vm5605 = vweird.f32 %v4726
        %vm5606 = vweird.f32 %v5600
        %vm5607 = vmor %vm5605, %vm5606
        %v5608 = vsel %vm5607, %v5600, %v5604
        %v5609 = vand.u32 2147483647, %v4726
        %vm5610 = vcmp.eq.f32.partialorder %v5609, 8.507059e+37
        %v5611 = vand.u32 %v4726, 2147483648
        %v5612 = vor.u32 1.1754944e-38, %v5611
        %v5613 = vsel %vm5610, %v5612, %v5608
        %v5614 = vmul.f32 %v4428, %v5613
        %v5615 = vrcp.pop %v4729
        %v5616 = vmul.f32 %v4729, %v5615
        %v5617 = vsub.f32 1.0, %v5616
        %v5618 = vmul.f32 %v5615, %v5617
        %v5619 = vadd.f32 %v5615, %v5618
        %vm5620 = vweird.f32 %v4729
        %vm5621 = vweird.f32 %v5615
        %vm5622 = vmor %vm5620, %vm5621
        %v5623 = vsel %vm5622, %v5615, %v5619
        %v5624 = vand.u32 2147483647, %v4729
        %vm5625 = vcmp.eq.f32.partialorder %v5624, 8.507059e+37
        %v5626 = vand.u32 %v4729, 2147483648
        %v5627 = vor.u32 1.1754944e-38, %v5626
        %v5628 = vsel %vm5625, %v5627, %v5623
        %v5629 = vmul.f32 %v4430, %v5628
        %v5630 = vrcp.pop %v4732
        %v5631 = vmul.f32 %v4732, %v5630
        %v5632 = vsub.f32 1.0, %v5631
        %v5633 = vmul.f32 %v5630, %v5632
        %v5634 = vadd.f32 %v5630, %v5633
        %vm5635 = vweird.f32 %v4732
        %vm5636 = vweird.f32 %v5630
        %vm5637 = vmor %vm5635, %vm5636
        %v5638 = vsel %vm5637, %v5630, %v5634
        %v5639 = vand.u32 2147483647, %v4732
        %vm5640 = vcmp.eq.f32.partialorder %v5639, 8.507059e+37
        %v5641 = vand.u32 %v4732, 2147483648
        %v5642 = vor.u32 1.1754944e-38, %v5641
        %v5643 = vsel %vm5640, %v5642, %v5638
        %v5644 = vmul.f32 %v4432, %v5643
        %v5645 = vrcp.pop %v4735
        %v5646 = vmul.f32 %v4735, %v5645
        %v5647 = vsub.f32 1.0, %v5646
        %v5648 = vmul.f32 %v5645, %v5647
        %v5649 = vadd.f32 %v5645, %v5648
        %vm5650 = vweird.f32 %v4735
        %vm5651 = vweird.f32 %v5645
        %vm5652 = vmor %vm5650, %vm5651
        %v5653 = vsel %vm5652, %v5645, %v5649
        %v5654 = vand.u32 2147483647, %v4735
        %vm5655 = vcmp.eq.f32.partialorder %v5654, 8.507059e+37
        %v5656 = vand.u32 %v4735, 2147483648
        %v5657 = vor.u32 1.1754944e-38, %v5656
        %v5658 = vsel %vm5655, %v5657, %v5653
        %v5659 = vmul.f32 %v4434, %v5658
        %v5660 = vrcp.pop %v4738
        %v5661 = vmul.f32 %v4738, %v5660
        %v5662 = vsub.f32 1.0, %v5661
        %v5663 = vmul.f32 %v5660, %v5662
        %v5664 = vadd.f32 %v5660, %v5663
        %vm5665 = vweird.f32 %v4738
        %vm5666 = vweird.f32 %v5660
        %vm5667 = vmor %vm5665, %vm5666
        %v5668 = vsel %vm5667, %v5660, %v5664
        %v5669 = vand.u32 2147483647, %v4738
        %vm5670 = vcmp.eq.f32.partialorder %v5669, 8.507059e+37
        %v5671 = vand.u32 %v4738, 2147483648
        %v5672 = vor.u32 1.1754944e-38, %v5671
        %v5673 = vsel %vm5670, %v5672, %v5668
        %v5674 = vmul.f32 %v4436, %v5673
        %v5675 = vrcp.pop %v4741
        %v5676 = vmul.f32 %v4741, %v5675
        %v5677 = vsub.f32 1.0, %v5676
        %v5678 = vmul.f32 %v5675, %v5677
        %v5679 = vadd.f32 %v5675, %v5678
        %vm5680 = vweird.f32 %v4741
        %vm5681 = vweird.f32 %v5675
        %vm5682 = vmor %vm5680, %vm5681
        %v5683 = vsel %vm5682, %v5675, %v5679
        %v5684 = vand.u32 2147483647, %v4741
        %vm5685 = vcmp.eq.f32.partialorder %v5684, 8.507059e+37
        %v5686 = vand.u32 %v4741, 2147483648
        %v5687 = vor.u32 1.1754944e-38, %v5686
        %v5688 = vsel %vm5685, %v5687, %v5683
        %v5689 = vmul.f32 %v4438, %v5688
        %v5690 = vrcp.pop %v4744
        %v5691 = vmul.f32 %v4744, %v5690
        %v5692 = vsub.f32 1.0, %v5691
        %v5693 = vmul.f32 %v5690, %v5692
        %v5694 = vadd.f32 %v5690, %v5693
        %vm5695 = vweird.f32 %v4744
        %vm5696 = vweird.f32 %v5690
        %vm5697 = vmor %vm5695, %vm5696
        %v5698 = vsel %vm5697, %v5690, %v5694
        %v5699 = vand.u32 2147483647, %v4744
        %vm5700 = vcmp.eq.f32.partialorder %v5699, 8.507059e+37
        %v5701 = vand.u32 %v4744, 2147483648
        %v5702 = vor.u32 1.1754944e-38, %v5701
        %v5703 = vsel %vm5700, %v5702, %v5698
        %v5704 = vmul.f32 %v4440, %v5703
        %v5705 = vrcp.pop %v4747
        %v5706 = vmul.f32 %v4747, %v5705
        %v5707 = vsub.f32 1.0, %v5706
        %v5708 = vmul.f32 %v5705, %v5707
        %v5709 = vadd.f32 %v5705, %v5708
        %vm5710 = vweird.f32 %v4747
        %vm5711 = vweird.f32 %v5705
        %vm5712 = vmor %vm5710, %vm5711
        %v5713 = vsel %vm5712, %v5705, %v5709
        %v5714 = vand.u32 2147483647, %v4747
        %vm5715 = vcmp.eq.f32.partialorder %v5714, 8.507059e+37
        %v5716 = vand.u32 %v4747, 2147483648
        %v5717 = vor.u32 1.1754944e-38, %v5716
        %v5718 = vsel %vm5715, %v5717, %v5713
        %v5719 = vmul.f32 %v4442, %v5718
        %v5720 = vrcp.pop %v4750
        %v5721 = vmul.f32 %v4750, %v5720
        %v5722 = vsub.f32 1.0, %v5721
        %v5723 = vmul.f32 %v5720, %v5722
        %v5724 = vadd.f32 %v5720, %v5723
        %vm5725 = vweird.f32 %v4750
        %vm5726 = vweird.f32 %v5720
        %vm5727 = vmor %vm5725, %vm5726
        %v5728 = vsel %vm5727, %v5720, %v5724
        %v5729 = vand.u32 2147483647, %v4750
        %vm5730 = vcmp.eq.f32.partialorder %v5729, 8.507059e+37
        %v5731 = vand.u32 %v4750, 2147483648
        %v5732 = vor.u32 1.1754944e-38, %v5731
        %v5733 = vsel %vm5730, %v5732, %v5728
        %v5734 = vmul.f32 %v4444, %v5733
        %v5735 = vrcp.pop %v4753
        %v5736 = vmul.f32 %v4753, %v5735
        %v5737 = vsub.f32 1.0, %v5736
        %v5738 = vmul.f32 %v5735, %v5737
        %v5739 = vadd.f32 %v5735, %v5738
        %vm5740 = vweird.f32 %v4753
        %vm5741 = vweird.f32 %v5735
        %vm5742 = vmor %vm5740, %vm5741
        %v5743 = vsel %vm5742, %v5735, %v5739
        %v5744 = vand.u32 2147483647, %v4753
        %vm5745 = vcmp.eq.f32.partialorder %v5744, 8.507059e+37
        %v5746 = vand.u32 %v4753, 2147483648
        %v5747 = vor.u32 1.1754944e-38, %v5746
        %v5748 = vsel %vm5745, %v5747, %v5743
        %v5749 = vmul.f32 %v4446, %v5748
        %v5750 = vrcp.pop %v4756
        %v5751 = vmul.f32 %v4756, %v5750
        %v5752 = vsub.f32 1.0, %v5751
        %v5753 = vmul.f32 %v5750, %v5752
        %v5754 = vadd.f32 %v5750, %v5753
        %vm5755 = vweird.f32 %v4756
        %vm5756 = vweird.f32 %v5750
        %vm5757 = vmor %vm5755, %vm5756
        %v5758 = vsel %vm5757, %v5750, %v5754
        %v5759 = vand.u32 2147483647, %v4756
        %vm5760 = vcmp.eq.f32.partialorder %v5759, 8.507059e+37
        %v5761 = vand.u32 %v4756, 2147483648
        %v5762 = vor.u32 1.1754944e-38, %v5761
        %v5763 = vsel %vm5760, %v5762, %v5758
        %v5764 = vmul.f32 %v4448, %v5763
        %v5765 = vrcp.pop %v4759
        %v5766 = vmul.f32 %v4759, %v5765
        %v5767 = vsub.f32 1.0, %v5766
        %v5768 = vmul.f32 %v5765, %v5767
        %v5769 = vadd.f32 %v5765, %v5768
        %vm5770 = vweird.f32 %v4759
        %vm5771 = vweird.f32 %v5765
        %vm5772 = vmor %vm5770, %vm5771
        %v5773 = vsel %vm5772, %v5765, %v5769
        %v5774 = vand.u32 2147483647, %v4759
        %vm5775 = vcmp.eq.f32.partialorder %v5774, 8.507059e+37
        %v5776 = vand.u32 %v4759, 2147483648
        %v5777 = vor.u32 1.1754944e-38, %v5776
        %v5778 = vsel %vm5775, %v5777, %v5773
        %v5779 = vmul.f32 %v4450, %v5778
        %v5780 = vrcp.pop %v4762
        %v5781 = vmul.f32 %v4762, %v5780
        %v5782 = vsub.f32 1.0, %v5781
        %v5783 = vmul.f32 %v5780, %v5782
        %v5784 = vadd.f32 %v5780, %v5783
        %vm5785 = vweird.f32 %v4762
        %vm5786 = vweird.f32 %v5780
        %vm5787 = vmor %vm5785, %vm5786
        %v5788 = vsel %vm5787, %v5780, %v5784
        %v5789 = vand.u32 2147483647, %v4762
        %vm5790 = vcmp.eq.f32.partialorder %v5789, 8.507059e+37
        %v5791 = vand.u32 %v4762, 2147483648
        %v5792 = vor.u32 1.1754944e-38, %v5791
        %v5793 = vsel %vm5790, %v5792, %v5788
        %v5794 = vmul.f32 %v4452, %v5793
        %v5795 = vrcp.pop %v4765
        %v5796 = vmul.f32 %v4765, %v5795
        %v5797 = vsub.f32 1.0, %v5796
        %v5798 = vmul.f32 %v5795, %v5797
        %v5799 = vadd.f32 %v5795, %v5798
        %vm5800 = vweird.f32 %v4765
        %vm5801 = vweird.f32 %v5795
        %vm5802 = vmor %vm5800, %vm5801
        %v5803 = vsel %vm5802, %v5795, %v5799
        %v5804 = vand.u32 2147483647, %v4765
        %vm5805 = vcmp.eq.f32.partialorder %v5804, 8.507059e+37
        %v5806 = vand.u32 %v4765, 2147483648
        %v5807 = vor.u32 1.1754944e-38, %v5806
        %v5808 = vsel %vm5805, %v5807, %v5803
        %v5809 = vmul.f32 %v4454, %v5808
        %v5810 = vrcp.pop %v4768
        %v5811 = vmul.f32 %v4768, %v5810
        %v5812 = vsub.f32 1.0, %v5811
        %v5813 = vmul.f32 %v5810, %v5812
        %v5814 = vadd.f32 %v5810, %v5813
        %vm5815 = vweird.f32 %v4768
        %vm5816 = vweird.f32 %v5810
        %vm5817 = vmor %vm5815, %vm5816
        %v5818 = vsel %vm5817, %v5810, %v5814
        %v5819 = vand.u32 2147483647, %v4768
        %vm5820 = vcmp.eq.f32.partialorder %v5819, 8.507059e+37
        %v5821 = vand.u32 %v4768, 2147483648
        %v5822 = vor.u32 1.1754944e-38, %v5821
        %v5823 = vsel %vm5820, %v5822, %v5818
        %v5824 = vmul.f32 %v4456, %v5823
        %v5825 = vrcp.pop %v4771
        %v5826 = vmul.f32 %v4771, %v5825
        %v5827 = vsub.f32 1.0, %v5826
        %v5828 = vmul.f32 %v5825, %v5827
        %v5829 = vadd.f32 %v5825, %v5828
        %vm5830 = vweird.f32 %v4771
        %vm5831 = vweird.f32 %v5825
        %vm5832 = vmor %vm5830, %vm5831
        %v5833 = vsel %vm5832, %v5825, %v5829
        %v5834 = vand.u32 2147483647, %v4771
        %vm5835 = vcmp.eq.f32.partialorder %v5834, 8.507059e+37
        %v5836 = vand.u32 %v4771, 2147483648
        %v5837 = vor.u32 1.1754944e-38, %v5836
        %v5838 = vsel %vm5835, %v5837, %v5833
        %v5839 = vmul.f32 %v4458, %v5838
        %v5840 = vrcp.pop %v4774
        %v5841 = vmul.f32 %v4774, %v5840
        %v5842 = vsub.f32 1.0, %v5841
        %v5843 = vmul.f32 %v5840, %v5842
        %v5844 = vadd.f32 %v5840, %v5843
        %vm5845 = vweird.f32 %v4774
        %vm5846 = vweird.f32 %v5840
        %vm5847 = vmor %vm5845, %vm5846
        %v5848 = vsel %vm5847, %v5840, %v5844
        %v5849 = vand.u32 2147483647, %v4774
        %vm5850 = vcmp.eq.f32.partialorder %v5849, 8.507059e+37
        %v5851 = vand.u32 %v4774, 2147483648
        %v5852 = vor.u32 1.1754944e-38, %v5851
        %v5853 = vsel %vm5850, %v5852, %v5848
        %v5854 = vmul.f32 %v4460, %v5853
        %v5855 = vrcp.pop %v4777
        %v5856 = vmul.f32 %v4777, %v5855
        %v5857 = vsub.f32 1.0, %v5856
        %v5858 = vmul.f32 %v5855, %v5857
        %v5859 = vadd.f32 %v5855, %v5858
        %vm5860 = vweird.f32 %v4777
        %vm5861 = vweird.f32 %v5855
        %vm5862 = vmor %vm5860, %vm5861
        %v5863 = vsel %vm5862, %v5855, %v5859
        %v5864 = vand.u32 2147483647, %v4777
        %vm5865 = vcmp.eq.f32.partialorder %v5864, 8.507059e+37
        %v5866 = vand.u32 %v4777, 2147483648
        %v5867 = vor.u32 1.1754944e-38, %v5866
        %v5868 = vsel %vm5865, %v5867, %v5863
        %v5869 = vmul.f32 %v4462, %v5868
        %v5870 = vrcp.pop %v4780
        %v5871 = vmul.f32 %v4780, %v5870
        %v5872 = vsub.f32 1.0, %v5871
        %v5873 = vmul.f32 %v5870, %v5872
        %v5874 = vadd.f32 %v5870, %v5873
        %vm5875 = vweird.f32 %v4780
        %vm5876 = vweird.f32 %v5870
        %vm5877 = vmor %vm5875, %vm5876
        %v5878 = vsel %vm5877, %v5870, %v5874
        %v5879 = vand.u32 2147483647, %v4780
        %vm5880 = vcmp.eq.f32.partialorder %v5879, 8.507059e+37
        %v5881 = vand.u32 %v4780, 2147483648
        %v5882 = vor.u32 1.1754944e-38, %v5881
        %v5883 = vsel %vm5880, %v5882, %v5878
        %v5884 = vmul.f32 %v4464, %v5883
        %v5885 = vrcp.pop %v4783
        %v5886 = vmul.f32 %v4783, %v5885
        %v5887 = vsub.f32 1.0, %v5886
        %v5888 = vmul.f32 %v5885, %v5887
        %v5889 = vadd.f32 %v5885, %v5888
        %vm5890 = vweird.f32 %v4783
        %vm5891 = vweird.f32 %v5885
        %vm5892 = vmor %vm5890, %vm5891
        %v5893 = vsel %vm5892, %v5885, %v5889
        %v5894 = vand.u32 2147483647, %v4783
        %vm5895 = vcmp.eq.f32.partialorder %v5894, 8.507059e+37
        %v5896 = vand.u32 %v4783, 2147483648
        %v5897 = vor.u32 1.1754944e-38, %v5896
        %v5898 = vsel %vm5895, %v5897, %v5893
        %v5899 = vmul.f32 %v4466, %v5898
        %v5900 = vrcp.pop %v4786
        %v5901 = vmul.f32 %v4786, %v5900
        %v5902 = vsub.f32 1.0, %v5901
        %v5903 = vmul.f32 %v5900, %v5902
        %v5904 = vadd.f32 %v5900, %v5903
        %vm5905 = vweird.f32 %v4786
        %vm5906 = vweird.f32 %v5900
        %vm5907 = vmor %vm5905, %vm5906
        %v5908 = vsel %vm5907, %v5900, %v5904
        %v5909 = vand.u32 2147483647, %v4786
        %vm5910 = vcmp.eq.f32.partialorder %v5909, 8.507059e+37
        %v5911 = vand.u32 %v4786, 2147483648
        %v5912 = vor.u32 1.1754944e-38, %v5911
        %v5913 = vsel %vm5910, %v5912, %v5908
        %v5914 = vmul.f32 %v4468, %v5913
        %v5915 = vrcp.pop %v4789
        %v5916 = vmul.f32 %v4789, %v5915
        %v5917 = vsub.f32 1.0, %v5916
        %v5918 = vmul.f32 %v5915, %v5917
        %v5919 = vadd.f32 %v5915, %v5918
        %vm5920 = vweird.f32 %v4789
        %vm5921 = vweird.f32 %v5915
        %vm5922 = vmor %vm5920, %vm5921
        %v5923 = vsel %vm5922, %v5915, %v5919
        %v5924 = vand.u32 2147483647, %v4789
        %vm5925 = vcmp.eq.f32.partialorder %v5924, 8.507059e+37
        %v5926 = vand.u32 %v4789, 2147483648
        %v5927 = vor.u32 1.1754944e-38, %v5926
        %v5928 = vsel %vm5925, %v5927, %v5923
        %v5929 = vmul.f32 %v4470, %v5928
        %v5930 = vrcp.pop %v4792
        %v5931 = vmul.f32 %v4792, %v5930
        %v5932 = vsub.f32 1.0, %v5931
        %v5933 = vmul.f32 %v5930, %v5932
        %v5934 = vadd.f32 %v5930, %v5933
        %vm5935 = vweird.f32 %v4792
        %vm5936 = vweird.f32 %v5930
        %vm5937 = vmor %vm5935, %vm5936
        %v5938 = vsel %vm5937, %v5930, %v5934
        %v5939 = vand.u32 2147483647, %v4792
        %vm5940 = vcmp.eq.f32.partialorder %v5939, 8.507059e+37
        %v5941 = vand.u32 %v4792, 2147483648
        %v5942 = vor.u32 1.1754944e-38, %v5941
        %v5943 = vsel %vm5940, %v5942, %v5938
        %v5944 = vmul.f32 %v4472, %v5943
        %v5945 = vrcp.pop %v4795
        %v5946 = vmul.f32 %v4795, %v5945
        %v5947 = vsub.f32 1.0, %v5946
        %v5948 = vmul.f32 %v5945, %v5947
        %v5949 = vadd.f32 %v5945, %v5948
        %vm5950 = vweird.f32 %v4795
        %vm5951 = vweird.f32 %v5945
        %vm5952 = vmor %vm5950, %vm5951
        %v5953 = vsel %vm5952, %v5945, %v5949
        %v5954 = vand.u32 2147483647, %v4795
        %vm5955 = vcmp.eq.f32.partialorder %v5954, 8.507059e+37
        %v5956 = vand.u32 %v4795, 2147483648
        %v5957 = vor.u32 1.1754944e-38, %v5956
        %v5958 = vsel %vm5955, %v5957, %v5953
        %v5959 = vmul.f32 %v4474, %v5958
        %v5960 = vrcp.pop %v4798
        %v5961 = vmul.f32 %v4798, %v5960
        %v5962 = vsub.f32 1.0, %v5961
        %v5963 = vmul.f32 %v5960, %v5962
        %v5964 = vadd.f32 %v5960, %v5963
        %vm5965 = vweird.f32 %v4798
        %vm5966 = vweird.f32 %v5960
        %vm5967 = vmor %vm5965, %vm5966
        %v5968 = vsel %vm5967, %v5960, %v5964
        %v5969 = vand.u32 2147483647, %v4798
        %vm5970 = vcmp.eq.f32.partialorder %v5969, 8.507059e+37
        %v5971 = vand.u32 %v4798, 2147483648
        %v5972 = vor.u32 1.1754944e-38, %v5971
        %v5973 = vsel %vm5970, %v5972, %v5968
        %v5974 = vmul.f32 %v4476, %v5973
        %v5975 = vrcp.pop %v4801
        %v5976 = vmul.f32 %v4801, %v5975
        %v5977 = vsub.f32 1.0, %v5976
        %v5978 = vmul.f32 %v5975, %v5977
        %v5979 = vadd.f32 %v5975, %v5978
        %vm5980 = vweird.f32 %v4801
        %vm5981 = vweird.f32 %v5975
        %vm5982 = vmor %vm5980, %vm5981
        %v5983 = vsel %vm5982, %v5975, %v5979
        %v5984 = vand.u32 2147483647, %v4801
        %vm5985 = vcmp.eq.f32.partialorder %v5984, 8.507059e+37
        %v5986 = vand.u32 %v4801, 2147483648
        %v5987 = vor.u32 1.1754944e-38, %v5986
        %v5988 = vsel %vm5985, %v5987, %v5983
        %v5989 = vmul.f32 %v4478, %v5988
        %v5990 = vrcp.pop %v4804
        %v5991 = vmul.f32 %v4804, %v5990
        %v5992 = vsub.f32 1.0, %v5991
        %v5993 = vmul.f32 %v5990, %v5992
        %v5994 = vadd.f32 %v5990, %v5993
        %vm5995 = vweird.f32 %v4804
        %vm5996 = vweird.f32 %v5990
        %vm5997 = vmor %vm5995, %vm5996
        %v5998 = vsel %vm5997, %v5990, %v5994
        %v5999 = vand.u32 2147483647, %v4804
        %vm6000 = vcmp.eq.f32.partialorder %v5999, 8.507059e+37
        %v6001 = vand.u32 %v4804, 2147483648
        %v6002 = vor.u32 1.1754944e-38, %v6001
        %v6003 = vsel %vm6000, %v6002, %v5998
        %v6004 = vmul.f32 %v4480, %v6003
        %v6005 = vrcp.pop %v4807
        %v6006 = vmul.f32 %v4807, %v6005
        %v6007 = vsub.f32 1.0, %v6006
        %v6008 = vmul.f32 %v6005, %v6007
        %v6009 = vadd.f32 %v6005, %v6008
        %vm6010 = vweird.f32 %v4807
        %vm6011 = vweird.f32 %v6005
        %vm6012 = vmor %vm6010, %vm6011
        %v6013 = vsel %vm6012, %v6005, %v6009
        %v6014 = vand.u32 2147483647, %v4807
        %vm6015 = vcmp.eq.f32.partialorder %v6014, 8.507059e+37
        %v6016 = vand.u32 %v4807, 2147483648
        %v6017 = vor.u32 1.1754944e-38, %v6016
        %v6018 = vsel %vm6015, %v6017, %v6013
        %v6019 = vmul.f32 %v4482, %v6018
        %v6020 = vrcp.pop %v4810
        %v6021 = vmul.f32 %v4810, %v6020
        %v6022 = vsub.f32 1.0, %v6021
        %v6023 = vmul.f32 %v6020, %v6022
        %v6024 = vadd.f32 %v6020, %v6023
        %vm6025 = vweird.f32 %v4810
        %vm6026 = vweird.f32 %v6020
        %vm6027 = vmor %vm6025, %vm6026
        %v6028 = vsel %vm6027, %v6020, %v6024
        %v6029 = vand.u32 2147483647, %v4810
        %vm6030 = vcmp.eq.f32.partialorder %v6029, 8.507059e+37
        %v6031 = vand.u32 %v4810, 2147483648
        %v6032 = vor.u32 1.1754944e-38, %v6031
        %v6033 = vsel %vm6030, %v6032, %v6028
        %v6034 = vmul.f32 %v4484, %v6033
        %v6035 = vrcp.pop %v4813
        %v6036 = vmul.f32 %v4813, %v6035
        %v6037 = vsub.f32 1.0, %v6036
        %v6038 = vmul.f32 %v6035, %v6037
        %v6039 = vadd.f32 %v6035, %v6038
        %vm6040 = vweird.f32 %v4813
        %vm6041 = vweird.f32 %v6035
        %vm6042 = vmor %vm6040, %vm6041
        %v6043 = vsel %vm6042, %v6035, %v6039
        %v6044 = vand.u32 2147483647, %v4813
        %vm6045 = vcmp.eq.f32.partialorder %v6044, 8.507059e+37
        %v6046 = vand.u32 %v4813, 2147483648
        %v6047 = vor.u32 1.1754944e-38, %v6046
        %v6048 = vsel %vm6045, %v6047, %v6043
        %v6049 = vmul.f32 %v4486, %v6048
        %v6050 = vrcp.pop %v4816
        %v6051 = vmul.f32 %v4816, %v6050
        %v6052 = vsub.f32 1.0, %v6051
        %v6053 = vmul.f32 %v6050, %v6052
        %v6054 = vadd.f32 %v6050, %v6053
        %vm6055 = vweird.f32 %v4816
        %vm6056 = vweird.f32 %v6050
        %vm6057 = vmor %vm6055, %vm6056
        %v6058 = vsel %vm6057, %v6050, %v6054
        %v6059 = vand.u32 2147483647, %v4816
        %vm6060 = vcmp.eq.f32.partialorder %v6059, 8.507059e+37
        %v6061 = vand.u32 %v4816, 2147483648
        %v6062 = vor.u32 1.1754944e-38, %v6061
        %v6063 = vsel %vm6060, %v6062, %v6058
        %v6064 = vmul.f32 %v4488, %v6063
        %v6065 = vrcp.pop %v4819
        %v6066 = vmul.f32 %v4819, %v6065
        %v6067 = vsub.f32 1.0, %v6066
        %v6068 = vmul.f32 %v6065, %v6067
        %v6069 = vadd.f32 %v6065, %v6068
        %vm6070 = vweird.f32 %v4819
        %vm6071 = vweird.f32 %v6065
        %vm6072 = vmor %vm6070, %vm6071
        %v6073 = vsel %vm6072, %v6065, %v6069
        %v6074 = vand.u32 2147483647, %v4819
        %vm6075 = vcmp.eq.f32.partialorder %v6074, 8.507059e+37
        %v6076 = vand.u32 %v4819, 2147483648
        %v6077 = vor.u32 1.1754944e-38, %v6076
        %v6078 = vsel %vm6075, %v6077, %v6073
        %v6079 = vmul.f32 %v4490, %v6078
        %v6080 = vrcp.pop %v4822
        %v6081 = vmul.f32 %v4822, %v6080
        %v6082 = vsub.f32 1.0, %v6081
        %v6083 = vmul.f32 %v6080, %v6082
        %v6084 = vadd.f32 %v6080, %v6083
        %vm6085 = vweird.f32 %v4822
        %vm6086 = vweird.f32 %v6080
        %vm6087 = vmor %vm6085, %vm6086
        %v6088 = vsel %vm6087, %v6080, %v6084
        %v6089 = vand.u32 2147483647, %v4822
        %vm6090 = vcmp.eq.f32.partialorder %v6089, 8.507059e+37
        %v6091 = vand.u32 %v4822, 2147483648
        %v6092 = vor.u32 1.1754944e-38, %v6091
        %v6093 = vsel %vm6090, %v6092, %v6088
        %v6094 = vmul.f32 %v4492, %v6093
        %v6095 = vrcp.pop %v4825
        %v6096 = vmul.f32 %v4825, %v6095
        %v6097 = vsub.f32 1.0, %v6096
        %v6098 = vmul.f32 %v6095, %v6097
        %v6099 = vadd.f32 %v6095, %v6098
        %vm6100 = vweird.f32 %v4825
        %vm6101 = vweird.f32 %v6095
        %vm6102 = vmor %vm6100, %vm6101
        %v6103 = vsel %vm6102, %v6095, %v6099
        %v6104 = vand.u32 2147483647, %v4825
        %vm6105 = vcmp.eq.f32.partialorder %v6104, 8.507059e+37
        %v6106 = vand.u32 %v4825, 2147483648
        %v6107 = vor.u32 1.1754944e-38, %v6106
        %v6108 = vsel %vm6105, %v6107, %v6103
        %v6109 = vmul.f32 %v4494, %v6108
        %v6110 = vrcp.pop %v4828
        %v6111 = vmul.f32 %v4828, %v6110
        %v6112 = vsub.f32 1.0, %v6111
        %v6113 = vmul.f32 %v6110, %v6112
        %v6114 = vadd.f32 %v6110, %v6113
        %vm6115 = vweird.f32 %v4828
        %vm6116 = vweird.f32 %v6110
        %vm6117 = vmor %vm6115, %vm6116
        %v6118 = vsel %vm6117, %v6110, %v6114
        %v6119 = vand.u32 2147483647, %v4828
        %vm6120 = vcmp.eq.f32.partialorder %v6119, 8.507059e+37
        %v6121 = vand.u32 %v4828, 2147483648
        %v6122 = vor.u32 1.1754944e-38, %v6121
        %v6123 = vsel %vm6120, %v6122, %v6118
        %v6124 = vmul.f32 %v4496, %v6123
        %v6125 = vrcp.pop %v4831
        %v6126 = vmul.f32 %v4831, %v6125
        %v6127 = vsub.f32 1.0, %v6126
        %v6128 = vmul.f32 %v6125, %v6127
        %v6129 = vadd.f32 %v6125, %v6128
        %vm6130 = vweird.f32 %v4831
        %vm6131 = vweird.f32 %v6125
        %vm6132 = vmor %vm6130, %vm6131
        %v6133 = vsel %vm6132, %v6125, %v6129
        %v6134 = vand.u32 2147483647, %v4831
        %vm6135 = vcmp.eq.f32.partialorder %v6134, 8.507059e+37
        %v6136 = vand.u32 %v4831, 2147483648
        %v6137 = vor.u32 1.1754944e-38, %v6136
        %v6138 = vsel %vm6135, %v6137, %v6133
        %v6139 = vmul.f32 %v4498, %v6138
        %v6140 = vrcp.pop %v4834
        %v6141 = vmul.f32 %v4834, %v6140
        %v6142 = vsub.f32 1.0, %v6141
        %v6143 = vmul.f32 %v6140, %v6142
        %v6144 = vadd.f32 %v6140, %v6143
        %vm6145 = vweird.f32 %v4834
        %vm6146 = vweird.f32 %v6140
        %vm6147 = vmor %vm6145, %vm6146
        %v6148 = vsel %vm6147, %v6140, %v6144
        %v6149 = vand.u32 2147483647, %v4834
        %vm6150 = vcmp.eq.f32.partialorder %v6149, 8.507059e+37
        %v6151 = vand.u32 %v4834, 2147483648
        %v6152 = vor.u32 1.1754944e-38, %v6151
        %v6153 = vsel %vm6150, %v6152, %v6148
        %v6154 = vmul.f32 %v4500, %v6153
        %v6155 = vrcp.pop %v4837
        %v6156 = vmul.f32 %v4837, %v6155
        %v6157 = vsub.f32 1.0, %v6156
        %v6158 = vmul.f32 %v6155, %v6157
        %v6159 = vadd.f32 %v6155, %v6158
        %vm6160 = vweird.f32 %v4837
        %vm6161 = vweird.f32 %v6155
        %vm6162 = vmor %vm6160, %vm6161
        %v6163 = vsel %vm6162, %v6155, %v6159
        %v6164 = vand.u32 2147483647, %v4837
        %vm6165 = vcmp.eq.f32.partialorder %v6164, 8.507059e+37
        %v6166 = vand.u32 %v4837, 2147483648
        %v6167 = vor.u32 1.1754944e-38, %v6166
        %v6168 = vsel %vm6165, %v6167, %v6163
        %v6169 = vmul.f32 %v4502, %v6168
        %v6170 = vrcp.pop %v4840
        %v6171 = vmul.f32 %v4840, %v6170
        %v6172 = vsub.f32 1.0, %v6171
        %v6173 = vmul.f32 %v6170, %v6172
        %v6174 = vadd.f32 %v6170, %v6173
        %vm6175 = vweird.f32 %v4840
        %vm6176 = vweird.f32 %v6170
        %vm6177 = vmor %vm6175, %vm6176
        %v6178 = vsel %vm6177, %v6170, %v6174
        %v6179 = vand.u32 2147483647, %v4840
        %vm6180 = vcmp.eq.f32.partialorder %v6179, 8.507059e+37
        %v6181 = vand.u32 %v4840, 2147483648
        %v6182 = vor.u32 1.1754944e-38, %v6181
        %v6183 = vsel %vm6180, %v6182, %v6178
        %v6184 = vmul.f32 %v4504, %v6183
        %v6185 = vrcp.pop %v4843
        %v6186 = vmul.f32 %v4843, %v6185
        %v6187 = vsub.f32 1.0, %v6186
        %v6188 = vmul.f32 %v6185, %v6187
        %v6189 = vadd.f32 %v6185, %v6188
        %vm6190 = vweird.f32 %v4843
        %vm6191 = vweird.f32 %v6185
        %vm6192 = vmor %vm6190, %vm6191
        %v6193 = vsel %vm6192, %v6185, %v6189
        %v6194 = vand.u32 2147483647, %v4843
        %vm6195 = vcmp.eq.f32.partialorder %v6194, 8.507059e+37
        %v6196 = vand.u32 %v4843, 2147483648
        %v6197 = vor.u32 1.1754944e-38, %v6196
        %v6198 = vsel %vm6195, %v6197, %v6193
        %v6199 = vmul.f32 %v4506, %v6198
        %v6200 = vrcp.pop %v4846
        %v6201 = vmul.f32 %v4846, %v6200
        %v6202 = vsub.f32 1.0, %v6201
        %v6203 = vmul.f32 %v6200, %v6202
        %v6204 = vadd.f32 %v6200, %v6203
        %vm6205 = vweird.f32 %v4846
        %vm6206 = vweird.f32 %v6200
        %vm6207 = vmor %vm6205, %vm6206
        %v6208 = vsel %vm6207, %v6200, %v6204
        %v6209 = vand.u32 2147483647, %v4846
        %vm6210 = vcmp.eq.f32.partialorder %v6209, 8.507059e+37
        %v6211 = vand.u32 %v4846, 2147483648
        %v6212 = vor.u32 1.1754944e-38, %v6211
        %v6213 = vsel %vm6210, %v6212, %v6208
        %v6214 = vmul.f32 %v4508, %v6213
        %v6215 = vrcp.pop %v4849
        %v6216 = vmul.f32 %v4849, %v6215
        %v6217 = vsub.f32 1.0, %v6216
        %v6218 = vmul.f32 %v6215, %v6217
        %v6219 = vadd.f32 %v6215, %v6218
        %vm6220 = vweird.f32 %v4849
        %vm6221 = vweird.f32 %v6215
        %vm6222 = vmor %vm6220, %vm6221
        %v6223 = vsel %vm6222, %v6215, %v6219
        %v6224 = vand.u32 2147483647, %v4849
        %vm6225 = vcmp.eq.f32.partialorder %v6224, 8.507059e+37
        %v6226 = vand.u32 %v4849, 2147483648
        %v6227 = vor.u32 1.1754944e-38, %v6226
        %v6228 = vsel %vm6225, %v6227, %v6223
        %v6229 = vmul.f32 %v4510, %v6228
        %v6230 = vrcp.pop %v4852
        %v6231 = vmul.f32 %v4852, %v6230
        %v6232 = vsub.f32 1.0, %v6231
        %v6233 = vmul.f32 %v6230, %v6232
        %v6234 = vadd.f32 %v6230, %v6233
        %vm6235 = vweird.f32 %v4852
        %vm6236 = vweird.f32 %v6230
        %vm6237 = vmor %vm6235, %vm6236
        %v6238 = vsel %vm6237, %v6230, %v6234
        %v6239 = vand.u32 2147483647, %v4852
        %vm6240 = vcmp.eq.f32.partialorder %v6239, 8.507059e+37
        %v6241 = vand.u32 %v4852, 2147483648
        %v6242 = vor.u32 1.1754944e-38, %v6241
        %v6243 = vsel %vm6240, %v6242, %v6238
        %v6244 = vmul.f32 %v4512, %v6243
        %v6245 = vrcp.pop %v4855
        %v6246 = vmul.f32 %v4855, %v6245
        %v6247 = vsub.f32 1.0, %v6246
        %v6248 = vmul.f32 %v6245, %v6247
        %v6249 = vadd.f32 %v6245, %v6248
        %vm6250 = vweird.f32 %v4855
        %vm6251 = vweird.f32 %v6245
        %vm6252 = vmor %vm6250, %vm6251
        %v6253 = vsel %vm6252, %v6245, %v6249
        %v6254 = vand.u32 2147483647, %v4855
        %vm6255 = vcmp.eq.f32.partialorder %v6254, 8.507059e+37
        %v6256 = vand.u32 %v4855, 2147483648
        %v6257 = vor.u32 1.1754944e-38, %v6256
        %v6258 = vsel %vm6255, %v6257, %v6253
        %v6259 = vmul.f32 %v4514, %v6258
        %v6260 = vrcp.pop %v4858
        %v6261 = vmul.f32 %v4858, %v6260
        %v6262 = vsub.f32 1.0, %v6261
        %v6263 = vmul.f32 %v6260, %v6262
        %v6264 = vadd.f32 %v6260, %v6263
        %vm6265 = vweird.f32 %v4858
        %vm6266 = vweird.f32 %v6260
        %vm6267 = vmor %vm6265, %vm6266
        %v6268 = vsel %vm6267, %v6260, %v6264
        %v6269 = vand.u32 2147483647, %v4858
        %vm6270 = vcmp.eq.f32.partialorder %v6269, 8.507059e+37
        %v6271 = vand.u32 %v4858, 2147483648
        %v6272 = vor.u32 1.1754944e-38, %v6271
        %v6273 = vsel %vm6270, %v6272, %v6268
        %v6274 = vmul.f32 %v4516, %v6273
        %v6275 = vrcp.pop %v4861
        %v6276 = vmul.f32 %v4861, %v6275
        %v6277 = vsub.f32 1.0, %v6276
        %v6278 = vmul.f32 %v6275, %v6277
        %v6279 = vadd.f32 %v6275, %v6278
        %vm6280 = vweird.f32 %v4861
        %vm6281 = vweird.f32 %v6275
        %vm6282 = vmor %vm6280, %vm6281
        %v6283 = vsel %vm6282, %v6275, %v6279
        %v6284 = vand.u32 2147483647, %v4861
        %vm6285 = vcmp.eq.f32.partialorder %v6284, 8.507059e+37
        %v6286 = vand.u32 %v4861, 2147483648
        %v6287 = vor.u32 1.1754944e-38, %v6286
        %v6288 = vsel %vm6285, %v6287, %v6283
        %v6289 = vmul.f32 %v4518, %v6288
        %v6290 = vrcp.pop %v4864
        %v6291 = vmul.f32 %v4864, %v6290
        %v6292 = vsub.f32 1.0, %v6291
        %v6293 = vmul.f32 %v6290, %v6292
        %v6294 = vadd.f32 %v6290, %v6293
        %vm6295 = vweird.f32 %v4864
        %vm6296 = vweird.f32 %v6290
        %vm6297 = vmor %vm6295, %vm6296
        %v6298 = vsel %vm6297, %v6290, %v6294
        %v6299 = vand.u32 2147483647, %v4864
        %vm6300 = vcmp.eq.f32.partialorder %v6299, 8.507059e+37
        %v6301 = vand.u32 %v4864, 2147483648
        %v6302 = vor.u32 1.1754944e-38, %v6301
        %v6303 = vsel %vm6300, %v6302, %v6298
        %v6304 = vmul.f32 %v4520, %v6303
        %v6305 = vrcp.pop %v4867
        %v6306 = vmul.f32 %v4867, %v6305
        %v6307 = vsub.f32 1.0, %v6306
        %v6308 = vmul.f32 %v6305, %v6307
        %v6309 = vadd.f32 %v6305, %v6308
        %vm6310 = vweird.f32 %v4867
        %vm6311 = vweird.f32 %v6305
        %vm6312 = vmor %vm6310, %vm6311
        %v6313 = vsel %vm6312, %v6305, %v6309
        %v6314 = vand.u32 2147483647, %v4867
        %vm6315 = vcmp.eq.f32.partialorder %v6314, 8.507059e+37
        %v6316 = vand.u32 %v4867, 2147483648
        %v6317 = vor.u32 1.1754944e-38, %v6316
        %v6318 = vsel %vm6315, %v6317, %v6313
        %v6319 = vmul.f32 %v4522, %v6318
        %v6320 = vrcp.pop %v4870
        %v6321 = vmul.f32 %v4870, %v6320
        %v6322 = vsub.f32 1.0, %v6321
        %v6323 = vmul.f32 %v6320, %v6322
        %v6324 = vadd.f32 %v6320, %v6323
        %vm6325 = vweird.f32 %v4870
        %vm6326 = vweird.f32 %v6320
        %vm6327 = vmor %vm6325, %vm6326
        %v6328 = vsel %vm6327, %v6320, %v6324
        %v6329 = vand.u32 2147483647, %v4870
        %vm6330 = vcmp.eq.f32.partialorder %v6329, 8.507059e+37
        %v6331 = vand.u32 %v4870, 2147483648
        %v6332 = vor.u32 1.1754944e-38, %v6331
        %v6333 = vsel %vm6330, %v6332, %v6328
        %v6334 = vmul.f32 %v4524, %v6333
        %v6335 = vrcp.pop %v4873
        %v6336 = vmul.f32 %v4873, %v6335
        %v6337 = vsub.f32 1.0, %v6336
        %v6338 = vmul.f32 %v6335, %v6337
        %v6339 = vadd.f32 %v6335, %v6338
        %vm6340 = vweird.f32 %v4873
        %vm6341 = vweird.f32 %v6335
        %vm6342 = vmor %vm6340, %vm6341
        %v6343 = vsel %vm6342, %v6335, %v6339
        %v6344 = vand.u32 2147483647, %v4873
        %vm6345 = vcmp.eq.f32.partialorder %v6344, 8.507059e+37
        %v6346 = vand.u32 %v4873, 2147483648
        %v6347 = vor.u32 1.1754944e-38, %v6346
        %v6348 = vsel %vm6345, %v6347, %v6343
        %v6349 = vmul.f32 %v4526, %v6348
        %v6350 = vrcp.pop %v4876
        %v6351 = vmul.f32 %v4876, %v6350
        %v6352 = vsub.f32 1.0, %v6351
        %v6353 = vmul.f32 %v6350, %v6352
        %v6354 = vadd.f32 %v6350, %v6353
        %vm6355 = vweird.f32 %v4876
        %vm6356 = vweird.f32 %v6350
        %vm6357 = vmor %vm6355, %vm6356
        %v6358 = vsel %vm6357, %v6350, %v6354
        %v6359 = vand.u32 2147483647, %v4876
        %vm6360 = vcmp.eq.f32.partialorder %v6359, 8.507059e+37
        %v6361 = vand.u32 %v4876, 2147483648
        %v6362 = vor.u32 1.1754944e-38, %v6361
        %v6363 = vsel %vm6360, %v6362, %v6358
        %v6364 = vmul.f32 %v4528, %v6363
        %v6365 = vrcp.pop %v4879
        %v6366 = vmul.f32 %v4879, %v6365
        %v6367 = vsub.f32 1.0, %v6366
        %v6368 = vmul.f32 %v6365, %v6367
        %v6369 = vadd.f32 %v6365, %v6368
        %vm6370 = vweird.f32 %v4879
        %vm6371 = vweird.f32 %v6365
        %vm6372 = vmor %vm6370, %vm6371
        %v6373 = vsel %vm6372, %v6365, %v6369
        %v6374 = vand.u32 2147483647, %v4879
        %vm6375 = vcmp.eq.f32.partialorder %v6374, 8.507059e+37
        %v6376 = vand.u32 %v4879, 2147483648
        %v6377 = vor.u32 1.1754944e-38, %v6376
        %v6378 = vsel %vm6375, %v6377, %v6373
        %v6379 = vmul.f32 %v4530, %v6378
        %v6380 = vrcp.pop %v4882
        %v6381 = vmul.f32 %v4882, %v6380
        %v6382 = vsub.f32 1.0, %v6381
        %v6383 = vmul.f32 %v6380, %v6382
        %v6384 = vadd.f32 %v6380, %v6383
        %vm6385 = vweird.f32 %v4882
        %vm6386 = vweird.f32 %v6380
        %vm6387 = vmor %vm6385, %vm6386
        %v6388 = vsel %vm6387, %v6380, %v6384
        %v6389 = vand.u32 2147483647, %v4882
        %vm6390 = vcmp.eq.f32.partialorder %v6389, 8.507059e+37
        %v6391 = vand.u32 %v4882, 2147483648
        %v6392 = vor.u32 1.1754944e-38, %v6391
        %v6393 = vsel %vm6390, %v6392, %v6388
        %v6394 = vmul.f32 %v4532, %v6393
        %v6395 = vrcp.pop %v4885
        %v6396 = vmul.f32 %v4885, %v6395
        %v6397 = vsub.f32 1.0, %v6396
        %v6398 = vmul.f32 %v6395, %v6397
        %v6399 = vadd.f32 %v6395, %v6398
        %vm6400 = vweird.f32 %v4885
        %vm6401 = vweird.f32 %v6395
        %vm6402 = vmor %vm6400, %vm6401
        %v6403 = vsel %vm6402, %v6395, %v6399
        %v6404 = vand.u32 2147483647, %v4885
        %vm6405 = vcmp.eq.f32.partialorder %v6404, 8.507059e+37
        %v6406 = vand.u32 %v4885, 2147483648
        %v6407 = vor.u32 1.1754944e-38, %v6406
        %v6408 = vsel %vm6405, %v6407, %v6403
        %v6409 = vmul.f32 %v4534, %v6408
        %v6410 = vrcp.pop %v4888
        %v6411 = vmul.f32 %v4888, %v6410
        %v6412 = vsub.f32 1.0, %v6411
        %v6413 = vmul.f32 %v6410, %v6412
        %v6414 = vadd.f32 %v6410, %v6413
        %vm6415 = vweird.f32 %v4888
        %vm6416 = vweird.f32 %v6410
        %vm6417 = vmor %vm6415, %vm6416
        %v6418 = vsel %vm6417, %v6410, %v6414
        %v6419 = vand.u32 2147483647, %v4888
        %vm6420 = vcmp.eq.f32.partialorder %v6419, 8.507059e+37
        %v6421 = vand.u32 %v4888, 2147483648
        %v6422 = vor.u32 1.1754944e-38, %v6421
        %v6423 = vsel %vm6420, %v6422, %v6418
        %v6424 = vmul.f32 %v4536, %v6423
        %v6425 = vrcp.pop %v4891
        %v6426 = vmul.f32 %v4891, %v6425
        %v6427 = vsub.f32 1.0, %v6426
        %v6428 = vmul.f32 %v6425, %v6427
        %v6429 = vadd.f32 %v6425, %v6428
        %vm6430 = vweird.f32 %v4891
        %vm6431 = vweird.f32 %v6425
        %vm6432 = vmor %vm6430, %vm6431
        %v6433 = vsel %vm6432, %v6425, %v6429
        %v6434 = vand.u32 2147483647, %v4891
        %vm6435 = vcmp.eq.f32.partialorder %v6434, 8.507059e+37
        %v6436 = vand.u32 %v4891, 2147483648
        %v6437 = vor.u32 1.1754944e-38, %v6436
        %v6438 = vsel %vm6435, %v6437, %v6433
        %v6439 = vmul.f32 %v4538, %v6438
        %v6440 = vrcp.pop %v4894
        %v6441 = vmul.f32 %v4894, %v6440
        %v6442 = vsub.f32 1.0, %v6441
        %v6443 = vmul.f32 %v6440, %v6442
        %v6444 = vadd.f32 %v6440, %v6443
        %vm6445 = vweird.f32 %v4894
        %vm6446 = vweird.f32 %v6440
        %vm6447 = vmor %vm6445, %vm6446
        %v6448 = vsel %vm6447, %v6440, %v6444
        %v6449 = vand.u32 2147483647, %v4894
        %vm6450 = vcmp.eq.f32.partialorder %v6449, 8.507059e+37
        %v6451 = vand.u32 %v4894, 2147483648
        %v6452 = vor.u32 1.1754944e-38, %v6451
        %v6453 = vsel %vm6450, %v6452, %v6448
        %v6454 = vmul.f32 %v4540, %v6453
        %v6455 = vrcp.pop %v4897
        %v6456 = vmul.f32 %v4897, %v6455
        %v6457 = vsub.f32 1.0, %v6456
        %v6458 = vmul.f32 %v6455, %v6457
        %v6459 = vadd.f32 %v6455, %v6458
        %vm6460 = vweird.f32 %v4897
        %vm6461 = vweird.f32 %v6455
        %vm6462 = vmor %vm6460, %vm6461
        %v6463 = vsel %vm6462, %v6455, %v6459
        %v6464 = vand.u32 2147483647, %v4897
        %vm6465 = vcmp.eq.f32.partialorder %v6464, 8.507059e+37
        %v6466 = vand.u32 %v4897, 2147483648
        %v6467 = vor.u32 1.1754944e-38, %v6466
        %v6468 = vsel %vm6465, %v6467, %v6463
        %v6469 = vmul.f32 %v4542, %v6468
        %v6470 = vrcp.pop %v4900
        %v6471 = vmul.f32 %v4900, %v6470
        %v6472 = vsub.f32 1.0, %v6471
        %v6473 = vmul.f32 %v6470, %v6472
        %v6474 = vadd.f32 %v6470, %v6473
        %vm6475 = vweird.f32 %v4900
        %vm6476 = vweird.f32 %v6470
        %vm6477 = vmor %vm6475, %vm6476
        %v6478 = vsel %vm6477, %v6470, %v6474
        %v6479 = vand.u32 2147483647, %v4900
        %vm6480 = vcmp.eq.f32.partialorder %v6479, 8.507059e+37
        %v6481 = vand.u32 %v4900, 2147483648
        %v6482 = vor.u32 1.1754944e-38, %v6481
        %v6483 = vsel %vm6480, %v6482, %v6478
        %v6484 = vmul.f32 %v4544, %v6483
        %v6485 = vrcp.pop %v4903
        %v6486 = vmul.f32 %v4903, %v6485
        %v6487 = vsub.f32 1.0, %v6486
        %v6488 = vmul.f32 %v6485, %v6487
        %v6489 = vadd.f32 %v6485, %v6488
        %vm6490 = vweird.f32 %v4903
        %vm6491 = vweird.f32 %v6485
        %vm6492 = vmor %vm6490, %vm6491
        %v6493 = vsel %vm6492, %v6485, %v6489
        %v6494 = vand.u32 2147483647, %v4903
        %vm6495 = vcmp.eq.f32.partialorder %v6494, 8.507059e+37
        %v6496 = vand.u32 %v4903, 2147483648
        %v6497 = vor.u32 1.1754944e-38, %v6496
        %v6498 = vsel %vm6495, %v6497, %v6493
        %v6499 = vmul.f32 %v4546, %v6498
        %v6500 = vrcp.pop %v4906
        %v6501 = vmul.f32 %v4906, %v6500
        %v6502 = vsub.f32 1.0, %v6501
        %v6503 = vmul.f32 %v6500, %v6502
        %v6504 = vadd.f32 %v6500, %v6503
        %vm6505 = vweird.f32 %v4906
        %vm6506 = vweird.f32 %v6500
        %vm6507 = vmor %vm6505, %vm6506
        %v6508 = vsel %vm6507, %v6500, %v6504
        %v6509 = vand.u32 2147483647, %v4906
        %vm6510 = vcmp.eq.f32.partialorder %v6509, 8.507059e+37
        %v6511 = vand.u32 %v4906, 2147483648
        %v6512 = vor.u32 1.1754944e-38, %v6511
        %v6513 = vsel %vm6510, %v6512, %v6508
        %v6514 = vmul.f32 %v4548, %v6513
        %v6515 = vrcp.pop %v4909
        %v6516 = vmul.f32 %v4909, %v6515
        %v6517 = vsub.f32 1.0, %v6516
        %v6518 = vmul.f32 %v6515, %v6517
        %v6519 = vadd.f32 %v6515, %v6518
        %vm6520 = vweird.f32 %v4909
        %vm6521 = vweird.f32 %v6515
        %vm6522 = vmor %vm6520, %vm6521
        %v6523 = vsel %vm6522, %v6515, %v6519
        %v6524 = vand.u32 2147483647, %v4909
        %vm6525 = vcmp.eq.f32.partialorder %v6524, 8.507059e+37
        %v6526 = vand.u32 %v4909, 2147483648
        %v6527 = vor.u32 1.1754944e-38, %v6526
        %v6528 = vsel %vm6525, %v6527, %v6523
        %v6529 = vmul.f32 %v4550, %v6528
        %v6530 = vrcp.pop %v4912
        %v6531 = vmul.f32 %v4912, %v6530
        %v6532 = vsub.f32 1.0, %v6531
        %v6533 = vmul.f32 %v6530, %v6532
        %v6534 = vadd.f32 %v6530, %v6533
        %vm6535 = vweird.f32 %v4912
        %vm6536 = vweird.f32 %v6530
        %vm6537 = vmor %vm6535, %vm6536
        %v6538 = vsel %vm6537, %v6530, %v6534
        %v6539 = vand.u32 2147483647, %v4912
        %vm6540 = vcmp.eq.f32.partialorder %v6539, 8.507059e+37
        %v6541 = vand.u32 %v4912, 2147483648
        %v6542 = vor.u32 1.1754944e-38, %v6541
        %v6543 = vsel %vm6540, %v6542, %v6538
        %v6544 = vmul.f32 %v4552, %v6543
        %v6545 = vrcp.pop %v4915
        %v6546 = vmul.f32 %v4915, %v6545
        %v6547 = vsub.f32 1.0, %v6546
        %v6548 = vmul.f32 %v6545, %v6547
        %v6549 = vadd.f32 %v6545, %v6548
        %vm6550 = vweird.f32 %v4915
        %vm6551 = vweird.f32 %v6545
        %vm6552 = vmor %vm6550, %vm6551
        %v6553 = vsel %vm6552, %v6545, %v6549
        %v6554 = vand.u32 2147483647, %v4915
        %vm6555 = vcmp.eq.f32.partialorder %v6554, 8.507059e+37
        %v6556 = vand.u32 %v4915, 2147483648
        %v6557 = vor.u32 1.1754944e-38, %v6556
        %v6558 = vsel %vm6555, %v6557, %v6553
        %v6559 = vmul.f32 %v4554, %v6558
        %v6560 = vrcp.pop %v4918
        %v6561 = vmul.f32 %v4918, %v6560
        %v6562 = vsub.f32 1.0, %v6561
        %v6563 = vmul.f32 %v6560, %v6562
        %v6564 = vadd.f32 %v6560, %v6563
        %vm6565 = vweird.f32 %v4918
        %vm6566 = vweird.f32 %v6560
        %vm6567 = vmor %vm6565, %vm6566
        %v6568 = vsel %vm6567, %v6560, %v6564
        %v6569 = vand.u32 2147483647, %v4918
        %vm6570 = vcmp.eq.f32.partialorder %v6569, 8.507059e+37
        %v6571 = vand.u32 %v4918, 2147483648
        %v6572 = vor.u32 1.1754944e-38, %v6571
        %v6573 = vsel %vm6570, %v6572, %v6568
        %v6574 = vmul.f32 %v4556, %v6573
        %v6575 = vrcp.pop %v4921
        %v6576 = vmul.f32 %v4921, %v6575
        %v6577 = vsub.f32 1.0, %v6576
        %v6578 = vmul.f32 %v6575, %v6577
        %v6579 = vadd.f32 %v6575, %v6578
        %vm6580 = vweird.f32 %v4921
        %vm6581 = vweird.f32 %v6575
        %vm6582 = vmor %vm6580, %vm6581
        %v6583 = vsel %vm6582, %v6575, %v6579
        %v6584 = vand.u32 2147483647, %v4921
        %vm6585 = vcmp.eq.f32.partialorder %v6584, 8.507059e+37
        %v6586 = vand.u32 %v4921, 2147483648
        %v6587 = vor.u32 1.1754944e-38, %v6586
        %v6588 = vsel %vm6585, %v6587, %v6583
        %v6589 = vmul.f32 %v4558, %v6588
        %v6590 = vrcp.pop %v4924
        %v6591 = vmul.f32 %v4924, %v6590
        %v6592 = vsub.f32 1.0, %v6591
        %v6593 = vmul.f32 %v6590, %v6592
        %v6594 = vadd.f32 %v6590, %v6593
        %vm6595 = vweird.f32 %v4924
        %vm6596 = vweird.f32 %v6590
        %vm6597 = vmor %vm6595, %vm6596
        %v6598 = vsel %vm6597, %v6590, %v6594
        %v6599 = vand.u32 2147483647, %v4924
        %vm6600 = vcmp.eq.f32.partialorder %v6599, 8.507059e+37
        %v6601 = vand.u32 %v4924, 2147483648
        %v6602 = vor.u32 1.1754944e-38, %v6601
        %v6603 = vsel %vm6600, %v6602, %v6598
        %v6604 = vmul.f32 %v4560, %v6603
        %v6605 = vrcp.pop %v4927
        %v6606 = vmul.f32 %v4927, %v6605
        %v6607 = vsub.f32 1.0, %v6606
        %v6608 = vmul.f32 %v6605, %v6607
        %v6609 = vadd.f32 %v6605, %v6608
        %vm6610 = vweird.f32 %v4927
        %vm6611 = vweird.f32 %v6605
        %vm6612 = vmor %vm6610, %vm6611
        %v6613 = vsel %vm6612, %v6605, %v6609
        %v6614 = vand.u32 2147483647, %v4927
        %vm6615 = vcmp.eq.f32.partialorder %v6614, 8.507059e+37
        %v6616 = vand.u32 %v4927, 2147483648
        %v6617 = vor.u32 1.1754944e-38, %v6616
        %v6618 = vsel %vm6615, %v6617, %v6613
        %v6619 = vmul.f32 %v4562, %v6618
        %v6620 = vrcp.pop %v4930
        %v6621 = vmul.f32 %v4930, %v6620
        %v6622 = vsub.f32 1.0, %v6621
        %v6623 = vmul.f32 %v6620, %v6622
        %v6624 = vadd.f32 %v6620, %v6623
        %vm6625 = vweird.f32 %v4930
        %vm6626 = vweird.f32 %v6620
        %vm6627 = vmor %vm6625, %vm6626
        %v6628 = vsel %vm6627, %v6620, %v6624
        %v6629 = vand.u32 2147483647, %v4930
        %vm6630 = vcmp.eq.f32.partialorder %v6629, 8.507059e+37
        %v6631 = vand.u32 %v4930, 2147483648
        %v6632 = vor.u32 1.1754944e-38, %v6631
        %v6633 = vsel %vm6630, %v6632, %v6628
        %v6634 = vmul.f32 %v4564, %v6633
        %v6635 = vrcp.pop %v4933
        %v6636 = vmul.f32 %v4933, %v6635
        %v6637 = vsub.f32 1.0, %v6636
        %v6638 = vmul.f32 %v6635, %v6637
        %v6639 = vadd.f32 %v6635, %v6638
        %vm6640 = vweird.f32 %v4933
        %vm6641 = vweird.f32 %v6635
        %vm6642 = vmor %vm6640, %vm6641
        %v6643 = vsel %vm6642, %v6635, %v6639
        %v6644 = vand.u32 2147483647, %v4933
        %vm6645 = vcmp.eq.f32.partialorder %v6644, 8.507059e+37
        %v6646 = vand.u32 %v4933, 2147483648
        %v6647 = vor.u32 1.1754944e-38, %v6646
        %v6648 = vsel %vm6645, %v6647, %v6643
        %v6649 = vmul.f32 %v4566, %v6648
        %v6650 = vrcp.pop %v4936
        %v6651 = vmul.f32 %v4936, %v6650
        %v6652 = vsub.f32 1.0, %v6651
        %v6653 = vmul.f32 %v6650, %v6652
        %v6654 = vadd.f32 %v6650, %v6653
        %vm6655 = vweird.f32 %v4936
        %vm6656 = vweird.f32 %v6650
        %vm6657 = vmor %vm6655, %vm6656
        %v6658 = vsel %vm6657, %v6650, %v6654
        %v6659 = vand.u32 2147483647, %v4936
        %vm6660 = vcmp.eq.f32.partialorder %v6659, 8.507059e+37
        %v6661 = vand.u32 %v4936, 2147483648
        %v6662 = vor.u32 1.1754944e-38, %v6661
        %v6663 = vsel %vm6660, %v6662, %v6658
        %v6664 = vmul.f32 %v4568, %v6663
        %v6665 = vrcp.pop %v4939
        %v6666 = vmul.f32 %v4939, %v6665
        %v6667 = vsub.f32 1.0, %v6666
        %v6668 = vmul.f32 %v6665, %v6667
        %v6669 = vadd.f32 %v6665, %v6668
        %vm6670 = vweird.f32 %v4939
        %vm6671 = vweird.f32 %v6665
        %vm6672 = vmor %vm6670, %vm6671
        %v6673 = vsel %vm6672, %v6665, %v6669
        %v6674 = vand.u32 2147483647, %v4939
        %vm6675 = vcmp.eq.f32.partialorder %v6674, 8.507059e+37
        %v6676 = vand.u32 %v4939, 2147483648
        %v6677 = vor.u32 1.1754944e-38, %v6676
        %v6678 = vsel %vm6675, %v6677, %v6673
        %v6679 = vmul.f32 %v4570, %v6678
        %v6680 = vrcp.pop %v4942
        %v6681 = vmul.f32 %v4942, %v6680
        %v6682 = vsub.f32 1.0, %v6681
        %v6683 = vmul.f32 %v6680, %v6682
        %v6684 = vadd.f32 %v6680, %v6683
        %vm6685 = vweird.f32 %v4942
        %vm6686 = vweird.f32 %v6680
        %vm6687 = vmor %vm6685, %vm6686
        %v6688 = vsel %vm6687, %v6680, %v6684
        %v6689 = vand.u32 2147483647, %v4942
        %vm6690 = vcmp.eq.f32.partialorder %v6689, 8.507059e+37
        %v6691 = vand.u32 %v4942, 2147483648
        %v6692 = vor.u32 1.1754944e-38, %v6691
        %v6693 = vsel %vm6690, %v6692, %v6688
        %v6694 = vmul.f32 %v4572, %v6693
        %v6695 = vrcp.pop %v4945
        %v6696 = vmul.f32 %v4945, %v6695
        %v6697 = vsub.f32 1.0, %v6696
        %v6698 = vmul.f32 %v6695, %v6697
        %v6699 = vadd.f32 %v6695, %v6698
        %vm6700 = vweird.f32 %v4945
        %vm6701 = vweird.f32 %v6695
        %vm6702 = vmor %vm6700, %vm6701
        %v6703 = vsel %vm6702, %v6695, %v6699
        %v6704 = vand.u32 2147483647, %v4945
        %vm6705 = vcmp.eq.f32.partialorder %v6704, 8.507059e+37
        %v6706 = vand.u32 %v4945, 2147483648
        %v6707 = vor.u32 1.1754944e-38, %v6706
        %v6708 = vsel %vm6705, %v6707, %v6703
        %v6709 = vmul.f32 %v4574, %v6708
        %v6710 = vrcp.pop %v4948
        %v6711 = vmul.f32 %v4948, %v6710
        %v6712 = vsub.f32 1.0, %v6711
        %v6713 = vmul.f32 %v6710, %v6712
        %v6714 = vadd.f32 %v6710, %v6713
        %vm6715 = vweird.f32 %v4948
        %vm6716 = vweird.f32 %v6710
        %vm6717 = vmor %vm6715, %vm6716
        %v6718 = vsel %vm6717, %v6710, %v6714
        %v6719 = vand.u32 2147483647, %v4948
        %vm6720 = vcmp.eq.f32.partialorder %v6719, 8.507059e+37
        %v6721 = vand.u32 %v4948, 2147483648
        %v6722 = vor.u32 1.1754944e-38, %v6721
        %v6723 = vsel %vm6720, %v6722, %v6718
        %v6724 = vmul.f32 %v4576, %v6723
        %v6725 = vrcp.pop %v4951
        %v6726 = vmul.f32 %v4951, %v6725
        %v6727 = vsub.f32 1.0, %v6726
        %v6728 = vmul.f32 %v6725, %v6727
        %v6729 = vadd.f32 %v6725, %v6728
        %vm6730 = vweird.f32 %v4951
        %vm6731 = vweird.f32 %v6725
        %vm6732 = vmor %vm6730, %vm6731
        %v6733 = vsel %vm6732, %v6725, %v6729
        %v6734 = vand.u32 2147483647, %v4951
        %vm6735 = vcmp.eq.f32.partialorder %v6734, 8.507059e+37
        %v6736 = vand.u32 %v4951, 2147483648
        %v6737 = vor.u32 1.1754944e-38, %v6736
        %v6738 = vsel %vm6735, %v6737, %v6733
        %v6739 = vmul.f32 %v4578, %v6738
        %v6740 = vrcp.pop %v4954
        %v6741 = vmul.f32 %v4954, %v6740
        %v6742 = vsub.f32 1.0, %v6741
        %v6743 = vmul.f32 %v6740, %v6742
        %v6744 = vadd.f32 %v6740, %v6743
        %vm6745 = vweird.f32 %v4954
        %vm6746 = vweird.f32 %v6740
        %vm6747 = vmor %vm6745, %vm6746
        %v6748 = vsel %vm6747, %v6740, %v6744
        %v6749 = vand.u32 2147483647, %v4954
        %vm6750 = vcmp.eq.f32.partialorder %v6749, 8.507059e+37
        %v6751 = vand.u32 %v4954, 2147483648
        %v6752 = vor.u32 1.1754944e-38, %v6751
        %v6753 = vsel %vm6750, %v6752, %v6748
        %v6754 = vmul.f32 %v4580, %v6753
        %v6755 = vrcp.pop %v4957
        %v6756 = vmul.f32 %v4957, %v6755
        %v6757 = vsub.f32 1.0, %v6756
        %v6758 = vmul.f32 %v6755, %v6757
        %v6759 = vadd.f32 %v6755, %v6758
        %vm6760 = vweird.f32 %v4957
        %vm6761 = vweird.f32 %v6755
        %vm6762 = vmor %vm6760, %vm6761
        %v6763 = vsel %vm6762, %v6755, %v6759
        %v6764 = vand.u32 2147483647, %v4957
        %vm6765 = vcmp.eq.f32.partialorder %v6764, 8.507059e+37
        %v6766 = vand.u32 %v4957, 2147483648
        %v6767 = vor.u32 1.1754944e-38, %v6766
        %v6768 = vsel %vm6765, %v6767, %v6763
        %v6769 = vmul.f32 %v4582, %v6768
        %v6770 = vrcp.pop %v4960
        %v6771 = vmul.f32 %v4960, %v6770
        %v6772 = vsub.f32 1.0, %v6771
        %v6773 = vmul.f32 %v6770, %v6772
        %v6774 = vadd.f32 %v6770, %v6773
        %vm6775 = vweird.f32 %v4960
        %vm6776 = vweird.f32 %v6770
        %vm6777 = vmor %vm6775, %vm6776
        %v6778 = vsel %vm6777, %v6770, %v6774
        %v6779 = vand.u32 2147483647, %v4960
        %vm6780 = vcmp.eq.f32.partialorder %v6779, 8.507059e+37
        %v6781 = vand.u32 %v4960, 2147483648
        %v6782 = vor.u32 1.1754944e-38, %v6781
        %v6783 = vsel %vm6780, %v6782, %v6778
        %v6784 = vmul.f32 %v4584, %v6783
        %v6785 = vrcp.pop %v4963
        %v6786 = vmul.f32 %v4963, %v6785
        %v6787 = vsub.f32 1.0, %v6786
        %v6788 = vmul.f32 %v6785, %v6787
        %v6789 = vadd.f32 %v6785, %v6788
        %vm6790 = vweird.f32 %v4963
        %vm6791 = vweird.f32 %v6785
        %vm6792 = vmor %vm6790, %vm6791
        %v6793 = vsel %vm6792, %v6785, %v6789
        %v6794 = vand.u32 2147483647, %v4963
        %vm6795 = vcmp.eq.f32.partialorder %v6794, 8.507059e+37
        %v6796 = vand.u32 %v4963, 2147483648
        %v6797 = vor.u32 1.1754944e-38, %v6796
        %v6798 = vsel %vm6795, %v6797, %v6793
        %v6799 = vmul.f32 %v4586, %v6798
        %v6800 = vrcp.pop %v4966
        %v6801 = vmul.f32 %v4966, %v6800
        %v6802 = vsub.f32 1.0, %v6801
        %v6803 = vmul.f32 %v6800, %v6802
        %v6804 = vadd.f32 %v6800, %v6803
        %vm6805 = vweird.f32 %v4966
        %vm6806 = vweird.f32 %v6800
        %vm6807 = vmor %vm6805, %vm6806
        %v6808 = vsel %vm6807, %v6800, %v6804
        %v6809 = vand.u32 2147483647, %v4966
        %vm6810 = vcmp.eq.f32.partialorder %v6809, 8.507059e+37
        %v6811 = vand.u32 %v4966, 2147483648
        %v6812 = vor.u32 1.1754944e-38, %v6811
        %v6813 = vsel %vm6810, %v6812, %v6808
        %v6814 = vmul.f32 %v4588, %v6813
        %v6815 = vrcp.pop %v4969
        %v6816 = vmul.f32 %v4969, %v6815
        %v6817 = vsub.f32 1.0, %v6816
        %v6818 = vmul.f32 %v6815, %v6817
        %v6819 = vadd.f32 %v6815, %v6818
        %vm6820 = vweird.f32 %v4969
        %vm6821 = vweird.f32 %v6815
        %vm6822 = vmor %vm6820, %vm6821
        %v6823 = vsel %vm6822, %v6815, %v6819
        %v6824 = vand.u32 2147483647, %v4969
        %vm6825 = vcmp.eq.f32.partialorder %v6824, 8.507059e+37
        %v6826 = vand.u32 %v4969, 2147483648
        %v6827 = vor.u32 1.1754944e-38, %v6826
        %v6828 = vsel %vm6825, %v6827, %v6823
        %v6829 = vmul.f32 %v4590, %v6828
        %v6830 = vrcp.pop %v4972
        %v6831 = vmul.f32 %v4972, %v6830
        %v6832 = vsub.f32 1.0, %v6831
        %v6833 = vmul.f32 %v6830, %v6832
        %v6834 = vadd.f32 %v6830, %v6833
        %vm6835 = vweird.f32 %v4972
        %vm6836 = vweird.f32 %v6830
        %vm6837 = vmor %vm6835, %vm6836
        %v6838 = vsel %vm6837, %v6830, %v6834
        %v6839 = vand.u32 2147483647, %v4972
        %vm6840 = vcmp.eq.f32.partialorder %v6839, 8.507059e+37
        %v6841 = vand.u32 %v4972, 2147483648
        %v6842 = vor.u32 1.1754944e-38, %v6841
        %v6843 = vsel %vm6840, %v6842, %v6838
        %v6844 = vmul.f32 %v4592, %v6843
        %v6845 = vrcp.pop %v4975
        %v6846 = vmul.f32 %v4975, %v6845
        %v6847 = vsub.f32 1.0, %v6846
        %v6848 = vmul.f32 %v6845, %v6847
        %v6849 = vadd.f32 %v6845, %v6848
        %vm6850 = vweird.f32 %v4975
        %vm6851 = vweird.f32 %v6845
        %vm6852 = vmor %vm6850, %vm6851
        %v6853 = vsel %vm6852, %v6845, %v6849
        %v6854 = vand.u32 2147483647, %v4975
        %vm6855 = vcmp.eq.f32.partialorder %v6854, 8.507059e+37
        %v6856 = vand.u32 %v4975, 2147483648
        %v6857 = vor.u32 1.1754944e-38, %v6856
        %v6858 = vsel %vm6855, %v6857, %v6853
        %v6859 = vmul.f32 %v4594, %v6858
        %v6860 = vrcp.pop %v4978
        %v6861 = vmul.f32 %v4978, %v6860
        %v6862 = vsub.f32 1.0, %v6861
        %v6863 = vmul.f32 %v6860, %v6862
        %v6864 = vadd.f32 %v6860, %v6863
        %vm6865 = vweird.f32 %v4978
        %vm6866 = vweird.f32 %v6860
        %vm6867 = vmor %vm6865, %vm6866
        %v6868 = vsel %vm6867, %v6860, %v6864
        %v6869 = vand.u32 2147483647, %v4978
        %vm6870 = vcmp.eq.f32.partialorder %v6869, 8.507059e+37
        %v6871 = vand.u32 %v4978, 2147483648
        %v6872 = vor.u32 1.1754944e-38, %v6871
        %v6873 = vsel %vm6870, %v6872, %v6868
        %v6874 = vmul.f32 %v4596, %v6873
        %v6875 = vrcp.pop %v4981
        %v6876 = vmul.f32 %v4981, %v6875
        %v6877 = vsub.f32 1.0, %v6876
        %v6878 = vmul.f32 %v6875, %v6877
        %v6879 = vadd.f32 %v6875, %v6878
        %vm6880 = vweird.f32 %v4981
        %vm6881 = vweird.f32 %v6875
        %vm6882 = vmor %vm6880, %vm6881
        %v6883 = vsel %vm6882, %v6875, %v6879
        %v6884 = vand.u32 2147483647, %v4981
        %vm6885 = vcmp.eq.f32.partialorder %v6884, 8.507059e+37
        %v6886 = vand.u32 %v4981, 2147483648
        %v6887 = vor.u32 1.1754944e-38, %v6886
        %v6888 = vsel %vm6885, %v6887, %v6883
        %v6889 = vmul.f32 %v4598, %v6888
        %v6890 = vrcp.pop %v4984
        %v6891 = vmul.f32 %v4984, %v6890
        %v6892 = vsub.f32 1.0, %v6891
        %v6893 = vmul.f32 %v6890, %v6892
        %v6894 = vadd.f32 %v6890, %v6893
        %vm6895 = vweird.f32 %v4984
        %vm6896 = vweird.f32 %v6890
        %vm6897 = vmor %vm6895, %vm6896
        %v6898 = vsel %vm6897, %v6890, %v6894
        %v6899 = vand.u32 2147483647, %v4984
        %vm6900 = vcmp.eq.f32.partialorder %v6899, 8.507059e+37
        %v6901 = vand.u32 %v4984, 2147483648
        %v6902 = vor.u32 1.1754944e-38, %v6901
        %v6903 = vsel %vm6900, %v6902, %v6898
        %v6904 = vmul.f32 %v4600, %v6903
        %v6906 = vsel %vm3832, %v4999, 0
        %v6909 = vsel %vm3832, %v5014, 0
        %v6912 = vsel %vm3832, %v5029, 0
        %v6915 = vsel %vm3832, %v5044, 0
        %6917 = vmatpush.msra.mxu0 0.0
        %6918 = vmatpush.msra.mxu0 0.0
        %6919 = vmatpush.msra.mxu0 0.0
        %6920 = vmatpush.msra.mxu0 0.0
        %6921 = vmatpush.msra.mxu0 0.0
        %6922 = vmatpush.msra.mxu0 0.0
        %6923 = vmatpush.msra.mxu0 0.0
        %6924 = vmatpush.msra.mxu0 0.0
        %6925 = vmatpush.msra.mxu0 0.0
        %6926 = vmatpush.msra.mxu0 0.0
        %6927 = vmatpush.msra.mxu0 0.0
        %6928 = vmatpush.msra.mxu0 0.0
        %6929 = vmatpush.msra.mxu0 %v1358
        %6930 = vmatpush.msra.mxu0 %v1355
        %6931 = vmatpush.msra.mxu0 %v1352
        %6932 = vmatpush.msra.mxu0 %v1349
        %6933 = vmatmul.f32.gmra.mxu0 %v6906
        %v6934 = vpop.f32.mrf.mxu0
        %v6935 = vadd.f32 0.0, %v6934
        %6936 = vmatmul.f32.gmra.mxu0 %v6909
        %v6937 = vpop.f32.mrf.mxu0
        %v6938 = vadd.f32 0.0, %v6937
        %6939 = vmatmul.f32.gmra.mxu0 %v6912
        %v6940 = vpop.f32.mrf.mxu0
        %v6941 = vadd.f32 0.0, %v6940
        %6942 = vmatmul.f32.gmra.mxu0 %v6915
        %v6943 = vpop.f32.mrf.mxu0
        %v6944 = vadd.f32 0.0, %v6943
        %6945 = vdwg.mxu0
        %v6947 = vsel %vm3832, %v5059, 0
        %v6950 = vsel %vm3832, %v5074, 0
        %v6953 = vsel %vm3832, %v5089, 0
        %v6956 = vsel %vm3832, %v5104, 0
        %6958 = vmatpush.msra.mxu0 0.0
        %6959 = vmatpush.msra.mxu0 0.0
        %6960 = vmatpush.msra.mxu0 0.0
        %6961 = vmatpush.msra.mxu0 0.0
        %6962 = vmatpush.msra.mxu0 0.0
        %6963 = vmatpush.msra.mxu0 0.0
        %6964 = vmatpush.msra.mxu0 0.0
        %6965 = vmatpush.msra.mxu0 0.0
        %6966 = vmatpush.msra.mxu0 0.0
        %6967 = vmatpush.msra.mxu0 0.0
        %6968 = vmatpush.msra.mxu0 0.0
        %6969 = vmatpush.msra.mxu0 0.0
        %6970 = vmatpush.msra.mxu0 %v1370
        %6971 = vmatpush.msra.mxu0 %v1367
        %6972 = vmatpush.msra.mxu0 %v1364
        %6973 = vmatpush.msra.mxu0 %v1361
        %6974 = vmatmul.f32.gmra.mxu0 %v6947
        %v6975 = vpop.f32.mrf.mxu0
        %v6976 = vadd.f32 0.0, %v6975
        %6977 = vmatmul.f32.gmra.mxu0 %v6950
        %v6978 = vpop.f32.mrf.mxu0
        %v6979 = vadd.f32 0.0, %v6978
        %6980 = vmatmul.f32.gmra.mxu0 %v6953
        %v6981 = vpop.f32.mrf.mxu0
        %v6982 = vadd.f32 0.0, %v6981
        %6983 = vmatmul.f32.gmra.mxu0 %v6956
        %v6984 = vpop.f32.mrf.mxu0
        %v6985 = vadd.f32 0.0, %v6984
        %6986 = vdwg.mxu0
        %v6988 = vsel %vm3832, %v5119, 0
        %v6991 = vsel %vm3832, %v5134, 0
        %v6994 = vsel %vm3832, %v5149, 0
        %v6997 = vsel %vm3832, %v5164, 0
        %6999 = vmatpush.msra.mxu0 0.0
        %7000 = vmatpush.msra.mxu0 0.0
        %7001 = vmatpush.msra.mxu0 0.0
        %7002 = vmatpush.msra.mxu0 0.0
        %7003 = vmatpush.msra.mxu0 0.0
        %7004 = vmatpush.msra.mxu0 0.0
        %7005 = vmatpush.msra.mxu0 0.0
        %7006 = vmatpush.msra.mxu0 0.0
        %7007 = vmatpush.msra.mxu0 0.0
        %7008 = vmatpush.msra.mxu0 0.0
        %7009 = vmatpush.msra.mxu0 0.0
        %7010 = vmatpush.msra.mxu0 0.0
        %7011 = vmatpush.msra.mxu0 %v1382
        %7012 = vmatpush.msra.mxu0 %v1379
        %7013 = vmatpush.msra.mxu0 %v1376
        %7014 = vmatpush.msra.mxu0 %v1373
        %7015 = vmatmul.f32.gmra.mxu0 %v6988
        %v7016 = vpop.f32.mrf.mxu0
        %v7017 = vadd.f32 0.0, %v7016
        %7018 = vmatmul.f32.gmra.mxu0 %v6991
        %v7019 = vpop.f32.mrf.mxu0
        %v7020 = vadd.f32 0.0, %v7019
        %7021 = vmatmul.f32.gmra.mxu0 %v6994
        %v7022 = vpop.f32.mrf.mxu0
        %v7023 = vadd.f32 0.0, %v7022
        %7024 = vmatmul.f32.gmra.mxu0 %v6997
        %v7025 = vpop.f32.mrf.mxu0
        %v7026 = vadd.f32 0.0, %v7025
        %7027 = vdwg.mxu0
        %v7029 = vsel %vm3832, %v5179, 0
        %v7032 = vsel %vm3832, %v5194, 0
        %v7035 = vsel %vm3832, %v5209, 0
        %v7038 = vsel %vm3832, %v5224, 0
        %7040 = vmatpush.msra.mxu0 0.0
        %7041 = vmatpush.msra.mxu0 0.0
        %7042 = vmatpush.msra.mxu0 0.0
        %7043 = vmatpush.msra.mxu0 0.0
        %7044 = vmatpush.msra.mxu0 0.0
        %7045 = vmatpush.msra.mxu0 0.0
        %7046 = vmatpush.msra.mxu0 0.0
        %7047 = vmatpush.msra.mxu0 0.0
        %7048 = vmatpush.msra.mxu0 0.0
        %7049 = vmatpush.msra.mxu0 0.0
        %7050 = vmatpush.msra.mxu0 0.0
        %7051 = vmatpush.msra.mxu0 0.0
        %7052 = vmatpush.msra.mxu0 %v1394
        %7053 = vmatpush.msra.mxu0 %v1391
        %7054 = vmatpush.msra.mxu0 %v1388
        %7055 = vmatpush.msra.mxu0 %v1385
        %7056 = vmatmul.f32.gmra.mxu0 %v7029
        %v7057 = vpop.f32.mrf.mxu0
        %v7058 = vadd.f32 0.0, %v7057
        %7059 = vmatmul.f32.gmra.mxu0 %v7032
        %v7060 = vpop.f32.mrf.mxu0
        %v7061 = vadd.f32 0.0, %v7060
        %7062 = vmatmul.f32.gmra.mxu0 %v7035
        %v7063 = vpop.f32.mrf.mxu0
        %v7064 = vadd.f32 0.0, %v7063
        %7065 = vmatmul.f32.gmra.mxu0 %v7038
        %v7066 = vpop.f32.mrf.mxu0
        %v7067 = vadd.f32 0.0, %v7066
        %7068 = vdwg.mxu0
        %v7070 = vsel %vm3832, %v5239, 0
        %v7073 = vsel %vm3832, %v5254, 0
        %v7076 = vsel %vm3832, %v5269, 0
        %v7079 = vsel %vm3832, %v5284, 0
        %7081 = vmatpush.msra.mxu0 0.0
        %7082 = vmatpush.msra.mxu0 0.0
        %7083 = vmatpush.msra.mxu0 0.0
        %7084 = vmatpush.msra.mxu0 0.0
        %7085 = vmatpush.msra.mxu0 0.0
        %7086 = vmatpush.msra.mxu0 0.0
        %7087 = vmatpush.msra.mxu0 0.0
        %7088 = vmatpush.msra.mxu0 0.0
        %7089 = vmatpush.msra.mxu0 0.0
        %7090 = vmatpush.msra.mxu0 0.0
        %7091 = vmatpush.msra.mxu0 0.0
        %7092 = vmatpush.msra.mxu0 0.0
        %7093 = vmatpush.msra.mxu0 %v1406
        %7094 = vmatpush.msra.mxu0 %v1403
        %7095 = vmatpush.msra.mxu0 %v1400
        %7096 = vmatpush.msra.mxu0 %v1397
        %7097 = vmatmul.f32.gmra.mxu0 %v7070
        %v7098 = vpop.f32.mrf.mxu0
        %v7099 = vadd.f32 0.0, %v7098
        %7100 = vmatmul.f32.gmra.mxu0 %v7073
        %v7101 = vpop.f32.mrf.mxu0
        %v7102 = vadd.f32 0.0, %v7101
        %7103 = vmatmul.f32.gmra.mxu0 %v7076
        %v7104 = vpop.f32.mrf.mxu0
        %v7105 = vadd.f32 0.0, %v7104
        %7106 = vmatmul.f32.gmra.mxu0 %v7079
        %v7107 = vpop.f32.mrf.mxu0
        %v7108 = vadd.f32 0.0, %v7107
        %7109 = vdwg.mxu0
        %v7111 = vsel %vm3832, %v5299, 0
        %v7114 = vsel %vm3832, %v5314, 0
        %v7117 = vsel %vm3832, %v5329, 0
        %v7120 = vsel %vm3832, %v5344, 0
        %7122 = vmatpush.msra.mxu0 0.0
        %7123 = vmatpush.msra.mxu0 0.0
        %7124 = vmatpush.msra.mxu0 0.0
        %7125 = vmatpush.msra.mxu0 0.0
        %7126 = vmatpush.msra.mxu0 0.0
        %7127 = vmatpush.msra.mxu0 0.0
        %7128 = vmatpush.msra.mxu0 0.0
        %7129 = vmatpush.msra.mxu0 0.0
        %7130 = vmatpush.msra.mxu0 0.0
        %7131 = vmatpush.msra.mxu0 0.0
        %7132 = vmatpush.msra.mxu0 0.0
        %7133 = vmatpush.msra.mxu0 0.0
        %7134 = vmatpush.msra.mxu0 %v1418
        %7135 = vmatpush.msra.mxu0 %v1415
        %7136 = vmatpush.msra.mxu0 %v1412
        %7137 = vmatpush.msra.mxu0 %v1409
        %7138 = vmatmul.f32.gmra.mxu0 %v7111
        %v7139 = vpop.f32.mrf.mxu0
        %v7140 = vadd.f32 0.0, %v7139
        %7141 = vmatmul.f32.gmra.mxu0 %v7114
        %v7142 = vpop.f32.mrf.mxu0
        %v7143 = vadd.f32 0.0, %v7142
        %7144 = vmatmul.f32.gmra.mxu0 %v7117
        %v7145 = vpop.f32.mrf.mxu0
        %v7146 = vadd.f32 0.0, %v7145
        %7147 = vmatmul.f32.gmra.mxu0 %v7120
        %v7148 = vpop.f32.mrf.mxu0
        %v7149 = vadd.f32 0.0, %v7148
        %7150 = vdwg.mxu0
        %v7152 = vsel %vm3832, %v5359, 0
        %v7155 = vsel %vm3832, %v5374, 0
        %v7158 = vsel %vm3832, %v5389, 0
        %v7161 = vsel %vm3832, %v5404, 0
        %7163 = vmatpush.msra.mxu0 0.0
        %7164 = vmatpush.msra.mxu0 0.0
        %7165 = vmatpush.msra.mxu0 0.0
        %7166 = vmatpush.msra.mxu0 0.0
        %7167 = vmatpush.msra.mxu0 0.0
        %7168 = vmatpush.msra.mxu0 0.0
        %7169 = vmatpush.msra.mxu0 0.0
        %7170 = vmatpush.msra.mxu0 0.0
        %7171 = vmatpush.msra.mxu0 0.0
        %7172 = vmatpush.msra.mxu0 0.0
        %7173 = vmatpush.msra.mxu0 0.0
        %7174 = vmatpush.msra.mxu0 0.0
        %7175 = vmatpush.msra.mxu0 %v1430
        %7176 = vmatpush.msra.mxu0 %v1427
        %7177 = vmatpush.msra.mxu0 %v1424
        %7178 = vmatpush.msra.mxu0 %v1421
        %7179 = vmatmul.f32.gmra.mxu0 %v7152
        %v7180 = vpop.f32.mrf.mxu0
        %v7181 = vadd.f32 0.0, %v7180
        %7182 = vmatmul.f32.gmra.mxu0 %v7155
        %v7183 = vpop.f32.mrf.mxu0
        %v7184 = vadd.f32 0.0, %v7183
        %7185 = vmatmul.f32.gmra.mxu0 %v7158
        %v7186 = vpop.f32.mrf.mxu0
        %v7187 = vadd.f32 0.0, %v7186
        %7188 = vmatmul.f32.gmra.mxu0 %v7161
        %v7189 = vpop.f32.mrf.mxu0
        %v7190 = vadd.f32 0.0, %v7189
        %7191 = vdwg.mxu0
        %v7193 = vsel %vm3832, %v5419, 0
        %v7196 = vsel %vm3832, %v5434, 0
        %v7199 = vsel %vm3832, %v5449, 0
        %v7202 = vsel %vm3832, %v5464, 0
        %7204 = vmatpush.msra.mxu0 0.0
        %7205 = vmatpush.msra.mxu0 0.0
        %7206 = vmatpush.msra.mxu0 0.0
        %7207 = vmatpush.msra.mxu0 0.0
        %7208 = vmatpush.msra.mxu0 0.0
        %7209 = vmatpush.msra.mxu0 0.0
        %7210 = vmatpush.msra.mxu0 0.0
        %7211 = vmatpush.msra.mxu0 0.0
        %7212 = vmatpush.msra.mxu0 0.0
        %7213 = vmatpush.msra.mxu0 0.0
        %7214 = vmatpush.msra.mxu0 0.0
        %7215 = vmatpush.msra.mxu0 0.0
        %7216 = vmatpush.msra.mxu0 %v1442
        %7217 = vmatpush.msra.mxu0 %v1439
        %7218 = vmatpush.msra.mxu0 %v1436
        %7219 = vmatpush.msra.mxu0 %v1433
        %7220 = vmatmul.f32.gmra.mxu0 %v7193
        %v7221 = vpop.f32.mrf.mxu0
        %v7222 = vadd.f32 0.0, %v7221
        %7223 = vmatmul.f32.gmra.mxu0 %v7196
        %v7224 = vpop.f32.mrf.mxu0
        %v7225 = vadd.f32 0.0, %v7224
        %7226 = vmatmul.f32.gmra.mxu0 %v7199
        %v7227 = vpop.f32.mrf.mxu0
        %v7228 = vadd.f32 0.0, %v7227
        %7229 = vmatmul.f32.gmra.mxu0 %v7202
        %v7230 = vpop.f32.mrf.mxu0
        %v7231 = vadd.f32 0.0, %v7230
        %7232 = vdwg.mxu0
        %v7234 = vsel %vm3832, %v5479, 0
        %v7237 = vsel %vm3832, %v5494, 0
        %v7240 = vsel %vm3832, %v5509, 0
        %v7243 = vsel %vm3832, %v5524, 0
        %7245 = vmatpush.msra.mxu0 0.0
        %7246 = vmatpush.msra.mxu0 0.0
        %7247 = vmatpush.msra.mxu0 0.0
        %7248 = vmatpush.msra.mxu0 0.0
        %7249 = vmatpush.msra.mxu0 0.0
        %7250 = vmatpush.msra.mxu0 0.0
        %7251 = vmatpush.msra.mxu0 0.0
        %7252 = vmatpush.msra.mxu0 0.0
        %7253 = vmatpush.msra.mxu0 0.0
        %7254 = vmatpush.msra.mxu0 0.0
        %7255 = vmatpush.msra.mxu0 0.0
        %7256 = vmatpush.msra.mxu0 0.0
        %7257 = vmatpush.msra.mxu0 %v1707
        %7258 = vmatpush.msra.mxu0 %v1705
        %7259 = vmatpush.msra.mxu0 %v1703
        %7260 = vmatpush.msra.mxu0 %v1701
        %7261 = vmatmul.f32.gmra.mxu0 %v7234
        %v7262 = vpop.f32.mrf.mxu0
        %v7263 = vadd.f32 0.0, %v7262
        %7264 = vmatmul.f32.gmra.mxu0 %v7237
        %v7265 = vpop.f32.mrf.mxu0
        %v7266 = vadd.f32 0.0, %v7265
        %7267 = vmatmul.f32.gmra.mxu0 %v7240
        %v7268 = vpop.f32.mrf.mxu0
        %v7269 = vadd.f32 0.0, %v7268
        %7270 = vmatmul.f32.gmra.mxu0 %v7243
        %v7271 = vpop.f32.mrf.mxu0
        %v7272 = vadd.f32 0.0, %v7271
        %7273 = vdwg.mxu0
        %v7275 = vsel %vm3832, %v5539, 0
        %v7278 = vsel %vm3832, %v5554, 0
        %v7281 = vsel %vm3832, %v5569, 0
        %v7284 = vsel %vm3832, %v5584, 0
        %7286 = vmatpush.msra.mxu0 0.0
        %7287 = vmatpush.msra.mxu0 0.0
        %7288 = vmatpush.msra.mxu0 0.0
        %7289 = vmatpush.msra.mxu0 0.0
        %7290 = vmatpush.msra.mxu0 0.0
        %7291 = vmatpush.msra.mxu0 0.0
        %7292 = vmatpush.msra.mxu0 0.0
        %7293 = vmatpush.msra.mxu0 0.0
        %7294 = vmatpush.msra.mxu0 0.0
        %7295 = vmatpush.msra.mxu0 0.0
        %7296 = vmatpush.msra.mxu0 0.0
        %7297 = vmatpush.msra.mxu0 0.0
        %7298 = vmatpush.msra.mxu0 %v1715
        %7299 = vmatpush.msra.mxu0 %v1713
        %7300 = vmatpush.msra.mxu0 %v1711
        %7301 = vmatpush.msra.mxu0 %v1709
        %7302 = vmatmul.f32.gmra.mxu0 %v7275
        %v7303 = vpop.f32.mrf.mxu0
        %v7304 = vadd.f32 0.0, %v7303
        %7305 = vmatmul.f32.gmra.mxu0 %v7278
        %v7306 = vpop.f32.mrf.mxu0
        %v7307 = vadd.f32 0.0, %v7306
        %7308 = vmatmul.f32.gmra.mxu0 %v7281
        %v7309 = vpop.f32.mrf.mxu0
        %v7310 = vadd.f32 0.0, %v7309
        %7311 = vmatmul.f32.gmra.mxu0 %v7284
        %v7312 = vpop.f32.mrf.mxu0
        %v7313 = vadd.f32 0.0, %v7312
        %7314 = vdwg.mxu0
        %v7316 = vsel %vm3832, %v5599, 0
        %v7319 = vsel %vm3832, %v5614, 0
        %v7322 = vsel %vm3832, %v5629, 0
        %v7325 = vsel %vm3832, %v5644, 0
        %7327 = vmatpush.msra.mxu0 0.0
        %7328 = vmatpush.msra.mxu0 0.0
        %7329 = vmatpush.msra.mxu0 0.0
        %7330 = vmatpush.msra.mxu0 0.0
        %7331 = vmatpush.msra.mxu0 0.0
        %7332 = vmatpush.msra.mxu0 0.0
        %7333 = vmatpush.msra.mxu0 0.0
        %7334 = vmatpush.msra.mxu0 0.0
        %7335 = vmatpush.msra.mxu0 0.0
        %7336 = vmatpush.msra.mxu0 0.0
        %7337 = vmatpush.msra.mxu0 0.0
        %7338 = vmatpush.msra.mxu0 0.0
        %7339 = vmatpush.msra.mxu0 %v1723
        %7340 = vmatpush.msra.mxu0 %v1721
        %7341 = vmatpush.msra.mxu0 %v1719
        %7342 = vmatpush.msra.mxu0 %v1717
        %7343 = vmatmul.f32.gmra.mxu0 %v7316
        %v7344 = vpop.f32.mrf.mxu0
        %v7345 = vadd.f32 0.0, %v7344
        %7346 = vmatmul.f32.gmra.mxu0 %v7319
        %v7347 = vpop.f32.mrf.mxu0
        %v7348 = vadd.f32 0.0, %v7347
        %7349 = vmatmul.f32.gmra.mxu0 %v7322
        %v7350 = vpop.f32.mrf.mxu0
        %v7351 = vadd.f32 0.0, %v7350
        %7352 = vmatmul.f32.gmra.mxu0 %v7325
        %v7353 = vpop.f32.mrf.mxu0
        %v7354 = vadd.f32 0.0, %v7353
        %7355 = vdwg.mxu0
        %v7357 = vsel %vm3832, %v5659, 0
        %v7360 = vsel %vm3832, %v5674, 0
        %v7363 = vsel %vm3832, %v5689, 0
        %v7366 = vsel %vm3832, %v5704, 0
        %7368 = vmatpush.msra.mxu0 0.0
        %7369 = vmatpush.msra.mxu0 0.0
        %7370 = vmatpush.msra.mxu0 0.0
        %7371 = vmatpush.msra.mxu0 0.0
        %7372 = vmatpush.msra.mxu0 0.0
        %7373 = vmatpush.msra.mxu0 0.0
        %7374 = vmatpush.msra.mxu0 0.0
        %7375 = vmatpush.msra.mxu0 0.0
        %7376 = vmatpush.msra.mxu0 0.0
        %7377 = vmatpush.msra.mxu0 0.0
        %7378 = vmatpush.msra.mxu0 0.0
        %7379 = vmatpush.msra.mxu0 0.0
        %7380 = vmatpush.msra.mxu0 %v1731
        %7381 = vmatpush.msra.mxu0 %v1729
        %7382 = vmatpush.msra.mxu0 %v1727
        %7383 = vmatpush.msra.mxu0 %v1725
        %7384 = vmatmul.f32.gmra.mxu0 %v7357
        %v7385 = vpop.f32.mrf.mxu0
        %v7386 = vadd.f32 0.0, %v7385
        %7387 = vmatmul.f32.gmra.mxu0 %v7360
        %v7388 = vpop.f32.mrf.mxu0
        %v7389 = vadd.f32 0.0, %v7388
        %7390 = vmatmul.f32.gmra.mxu0 %v7363
        %v7391 = vpop.f32.mrf.mxu0
        %v7392 = vadd.f32 0.0, %v7391
        %7393 = vmatmul.f32.gmra.mxu0 %v7366
        %v7394 = vpop.f32.mrf.mxu0
        %v7395 = vadd.f32 0.0, %v7394
        %7396 = vdwg.mxu0
        %v7398 = vsel %vm3832, %v5719, 0
        %v7401 = vsel %vm3832, %v5734, 0
        %v7404 = vsel %vm3832, %v5749, 0
        %v7407 = vsel %vm3832, %v5764, 0
        %7409 = vmatpush.msra.mxu0 0.0
        %7410 = vmatpush.msra.mxu0 0.0
        %7411 = vmatpush.msra.mxu0 0.0
        %7412 = vmatpush.msra.mxu0 0.0
        %7413 = vmatpush.msra.mxu0 0.0
        %7414 = vmatpush.msra.mxu0 0.0
        %7415 = vmatpush.msra.mxu0 0.0
        %7416 = vmatpush.msra.mxu0 0.0
        %7417 = vmatpush.msra.mxu0 0.0
        %7418 = vmatpush.msra.mxu0 0.0
        %7419 = vmatpush.msra.mxu0 0.0
        %7420 = vmatpush.msra.mxu0 0.0
        %7421 = vmatpush.msra.mxu0 %v1739
        %7422 = vmatpush.msra.mxu0 %v1737
        %7423 = vmatpush.msra.mxu0 %v1735
        %7424 = vmatpush.msra.mxu0 %v1733
        %7425 = vmatmul.f32.gmra.mxu0 %v7398
        %v7426 = vpop.f32.mrf.mxu0
        %v7427 = vadd.f32 0.0, %v7426
        %7428 = vmatmul.f32.gmra.mxu0 %v7401
        %v7429 = vpop.f32.mrf.mxu0
        %v7430 = vadd.f32 0.0, %v7429
        %7431 = vmatmul.f32.gmra.mxu0 %v7404
        %v7432 = vpop.f32.mrf.mxu0
        %v7433 = vadd.f32 0.0, %v7432
        %7434 = vmatmul.f32.gmra.mxu0 %v7407
        %v7435 = vpop.f32.mrf.mxu0
        %v7436 = vadd.f32 0.0, %v7435
        %7437 = vdwg.mxu0
        %v7439 = vsel %vm3832, %v5779, 0
        %v7442 = vsel %vm3832, %v5794, 0
        %v7445 = vsel %vm3832, %v5809, 0
        %v7448 = vsel %vm3832, %v5824, 0
        %7450 = vmatpush.msra.mxu0 0.0
        %7451 = vmatpush.msra.mxu0 0.0
        %7452 = vmatpush.msra.mxu0 0.0
        %7453 = vmatpush.msra.mxu0 0.0
        %7454 = vmatpush.msra.mxu0 0.0
        %7455 = vmatpush.msra.mxu0 0.0
        %7456 = vmatpush.msra.mxu0 0.0
        %7457 = vmatpush.msra.mxu0 0.0
        %7458 = vmatpush.msra.mxu0 0.0
        %7459 = vmatpush.msra.mxu0 0.0
        %7460 = vmatpush.msra.mxu0 0.0
        %7461 = vmatpush.msra.mxu0 0.0
        %7462 = vmatpush.msra.mxu0 %v1747
        %7463 = vmatpush.msra.mxu0 %v1745
        %7464 = vmatpush.msra.mxu0 %v1743
        %7465 = vmatpush.msra.mxu0 %v1741
        %7466 = vmatmul.f32.gmra.mxu0 %v7439
        %v7467 = vpop.f32.mrf.mxu0
        %v7468 = vadd.f32 0.0, %v7467
        %7469 = vmatmul.f32.gmra.mxu0 %v7442
        %v7470 = vpop.f32.mrf.mxu0
        %v7471 = vadd.f32 0.0, %v7470
        %7472 = vmatmul.f32.gmra.mxu0 %v7445
        %v7473 = vpop.f32.mrf.mxu0
        %v7474 = vadd.f32 0.0, %v7473
        %7475 = vmatmul.f32.gmra.mxu0 %v7448
        %v7476 = vpop.f32.mrf.mxu0
        %v7477 = vadd.f32 0.0, %v7476
        %7478 = vdwg.mxu0
        %v7480 = vsel %vm3832, %v5839, 0
        %v7483 = vsel %vm3832, %v5854, 0
        %v7486 = vsel %vm3832, %v5869, 0
        %v7489 = vsel %vm3832, %v5884, 0
        %7491 = vmatpush.msra.mxu0 0.0
        %7492 = vmatpush.msra.mxu0 0.0
        %7493 = vmatpush.msra.mxu0 0.0
        %7494 = vmatpush.msra.mxu0 0.0
        %7495 = vmatpush.msra.mxu0 0.0
        %7496 = vmatpush.msra.mxu0 0.0
        %7497 = vmatpush.msra.mxu0 0.0
        %7498 = vmatpush.msra.mxu0 0.0
        %7499 = vmatpush.msra.mxu0 0.0
        %7500 = vmatpush.msra.mxu0 0.0
        %7501 = vmatpush.msra.mxu0 0.0
        %7502 = vmatpush.msra.mxu0 0.0
        %7503 = vmatpush.msra.mxu0 %v1755
        %7504 = vmatpush.msra.mxu0 %v1753
        %7505 = vmatpush.msra.mxu0 %v1751
        %7506 = vmatpush.msra.mxu0 %v1749
        %7507 = vmatmul.f32.gmra.mxu0 %v7480
        %v7508 = vpop.f32.mrf.mxu0
        %v7509 = vadd.f32 0.0, %v7508
        %7510 = vmatmul.f32.gmra.mxu0 %v7483
        %v7511 = vpop.f32.mrf.mxu0
        %v7512 = vadd.f32 0.0, %v7511
        %7513 = vmatmul.f32.gmra.mxu0 %v7486
        %v7514 = vpop.f32.mrf.mxu0
        %v7515 = vadd.f32 0.0, %v7514
        %7516 = vmatmul.f32.gmra.mxu0 %v7489
        %v7517 = vpop.f32.mrf.mxu0
        %v7518 = vadd.f32 0.0, %v7517
        %7519 = vdwg.mxu0
        %v7521 = vsel %vm3832, %v5899, 0
        %v7524 = vsel %vm3832, %v5914, 0
        %v7527 = vsel %vm3832, %v5929, 0
        %v7530 = vsel %vm3832, %v5944, 0
        %7532 = vmatpush.msra.mxu0 0.0
        %7533 = vmatpush.msra.mxu0 0.0
        %7534 = vmatpush.msra.mxu0 0.0
        %7535 = vmatpush.msra.mxu0 0.0
        %7536 = vmatpush.msra.mxu0 0.0
        %7537 = vmatpush.msra.mxu0 0.0
        %7538 = vmatpush.msra.mxu0 0.0
        %7539 = vmatpush.msra.mxu0 0.0
        %7540 = vmatpush.msra.mxu0 0.0
        %7541 = vmatpush.msra.mxu0 0.0
        %7542 = vmatpush.msra.mxu0 0.0
        %7543 = vmatpush.msra.mxu0 0.0
        %7544 = vmatpush.msra.mxu0 %v1763
        %7545 = vmatpush.msra.mxu0 %v1761
        %7546 = vmatpush.msra.mxu0 %v1759
        %7547 = vmatpush.msra.mxu0 %v1757
        %7548 = vmatmul.f32.gmra.mxu0 %v7521
        %v7549 = vpop.f32.mrf.mxu0
        %v7550 = vadd.f32 0.0, %v7549
        %7551 = vmatmul.f32.gmra.mxu0 %v7524
        %v7552 = vpop.f32.mrf.mxu0
        %v7553 = vadd.f32 0.0, %v7552
        %7554 = vmatmul.f32.gmra.mxu0 %v7527
        %v7555 = vpop.f32.mrf.mxu0
        %v7556 = vadd.f32 0.0, %v7555
        %7557 = vmatmul.f32.gmra.mxu0 %v7530
        %v7558 = vpop.f32.mrf.mxu0
        %v7559 = vadd.f32 0.0, %v7558
        %7560 = vdwg.mxu0
        %v7562 = vsel %vm3832, %v5959, 0
        %v7565 = vsel %vm3832, %v5974, 0
        %v7568 = vsel %vm3832, %v5989, 0
        %v7571 = vsel %vm3832, %v6004, 0
        %7573 = vmatpush.msra.mxu0 0.0
        %7574 = vmatpush.msra.mxu0 0.0
        %7575 = vmatpush.msra.mxu0 0.0
        %7576 = vmatpush.msra.mxu0 0.0
        %7577 = vmatpush.msra.mxu0 0.0
        %7578 = vmatpush.msra.mxu0 0.0
        %7579 = vmatpush.msra.mxu0 0.0
        %7580 = vmatpush.msra.mxu0 0.0
        %7581 = vmatpush.msra.mxu0 0.0
        %7582 = vmatpush.msra.mxu0 0.0
        %7583 = vmatpush.msra.mxu0 0.0
        %7584 = vmatpush.msra.mxu0 0.0
        %7585 = vmatpush.msra.mxu0 %v1803
        %7586 = vmatpush.msra.mxu0 %v1801
        %7587 = vmatpush.msra.mxu0 %v1799
        %7588 = vmatpush.msra.mxu0 %v1797
        %7589 = vmatmul.f32.gmra.mxu0 %v7562
        %v7590 = vpop.f32.mrf.mxu0
        %v7591 = vadd.f32 0.0, %v7590
        %7592 = vmatmul.f32.gmra.mxu0 %v7565
        %v7593 = vpop.f32.mrf.mxu0
        %v7594 = vadd.f32 0.0, %v7593
        %7595 = vmatmul.f32.gmra.mxu0 %v7568
        %v7596 = vpop.f32.mrf.mxu0
        %v7597 = vadd.f32 0.0, %v7596
        %7598 = vmatmul.f32.gmra.mxu0 %v7571
        %v7599 = vpop.f32.mrf.mxu0
        %v7600 = vadd.f32 0.0, %v7599
        %7601 = vdwg.mxu0
        %v7603 = vsel %vm3832, %v6019, 0
        %v7606 = vsel %vm3832, %v6034, 0
        %v7609 = vsel %vm3832, %v6049, 0
        %v7612 = vsel %vm3832, %v6064, 0
        %7614 = vmatpush.msra.mxu0 0.0
        %7615 = vmatpush.msra.mxu0 0.0
        %7616 = vmatpush.msra.mxu0 0.0
        %7617 = vmatpush.msra.mxu0 0.0
        %7618 = vmatpush.msra.mxu0 0.0
        %7619 = vmatpush.msra.mxu0 0.0
        %7620 = vmatpush.msra.mxu0 0.0
        %7621 = vmatpush.msra.mxu0 0.0
        %7622 = vmatpush.msra.mxu0 0.0
        %7623 = vmatpush.msra.mxu0 0.0
        %7624 = vmatpush.msra.mxu0 0.0
        %7625 = vmatpush.msra.mxu0 0.0
        %7626 = vmatpush.msra.mxu0 %v1811
        %7627 = vmatpush.msra.mxu0 %v1809
        %7628 = vmatpush.msra.mxu0 %v1807
        %7629 = vmatpush.msra.mxu0 %v1805
        %7630 = vmatmul.f32.gmra.mxu0 %v7603
        %v7631 = vpop.f32.mrf.mxu0
        %v7632 = vadd.f32 0.0, %v7631
        %7633 = vmatmul.f32.gmra.mxu0 %v7606
        %v7634 = vpop.f32.mrf.mxu0
        %v7635 = vadd.f32 0.0, %v7634
        %7636 = vmatmul.f32.gmra.mxu0 %v7609
        %v7637 = vpop.f32.mrf.mxu0
        %v7638 = vadd.f32 0.0, %v7637
        %7639 = vmatmul.f32.gmra.mxu0 %v7612
        %v7640 = vpop.f32.mrf.mxu0
        %v7641 = vadd.f32 0.0, %v7640
        %7642 = vdwg.mxu0
        %v7644 = vsel %vm3832, %v6079, 0
        %v7647 = vsel %vm3832, %v6094, 0
        %v7650 = vsel %vm3832, %v6109, 0
        %v7653 = vsel %vm3832, %v6124, 0
        %7655 = vmatpush.msra.mxu0 0.0
        %7656 = vmatpush.msra.mxu0 0.0
        %7657 = vmatpush.msra.mxu0 0.0
        %7658 = vmatpush.msra.mxu0 0.0
        %7659 = vmatpush.msra.mxu0 0.0
        %7660 = vmatpush.msra.mxu0 0.0
        %7661 = vmatpush.msra.mxu0 0.0
        %7662 = vmatpush.msra.mxu0 0.0
        %7663 = vmatpush.msra.mxu0 0.0
        %7664 = vmatpush.msra.mxu0 0.0
        %7665 = vmatpush.msra.mxu0 0.0
        %7666 = vmatpush.msra.mxu0 0.0
        %7667 = vmatpush.msra.mxu0 %v1819
        %7668 = vmatpush.msra.mxu0 %v1817
        %7669 = vmatpush.msra.mxu0 %v1815
        %7670 = vmatpush.msra.mxu0 %v1813
        %7671 = vmatmul.f32.gmra.mxu0 %v7644
        %v7672 = vpop.f32.mrf.mxu0
        %v7673 = vadd.f32 0.0, %v7672
        %7674 = vmatmul.f32.gmra.mxu0 %v7647
        %v7675 = vpop.f32.mrf.mxu0
        %v7676 = vadd.f32 0.0, %v7675
        %7677 = vmatmul.f32.gmra.mxu0 %v7650
        %v7678 = vpop.f32.mrf.mxu0
        %v7679 = vadd.f32 0.0, %v7678
        %7680 = vmatmul.f32.gmra.mxu0 %v7653
        %v7681 = vpop.f32.mrf.mxu0
        %v7682 = vadd.f32 0.0, %v7681
        %7683 = vdwg.mxu0
        %v7685 = vsel %vm3832, %v6139, 0
        %v7688 = vsel %vm3832, %v6154, 0
        %v7691 = vsel %vm3832, %v6169, 0
        %v7694 = vsel %vm3832, %v6184, 0
        %7696 = vmatpush.msra.mxu0 0.0
        %7697 = vmatpush.msra.mxu0 0.0
        %7698 = vmatpush.msra.mxu0 0.0
        %7699 = vmatpush.msra.mxu0 0.0
        %7700 = vmatpush.msra.mxu0 0.0
        %7701 = vmatpush.msra.mxu0 0.0
        %7702 = vmatpush.msra.mxu0 0.0
        %7703 = vmatpush.msra.mxu0 0.0
        %7704 = vmatpush.msra.mxu0 0.0
        %7705 = vmatpush.msra.mxu0 0.0
        %7706 = vmatpush.msra.mxu0 0.0
        %7707 = vmatpush.msra.mxu0 0.0
        %7708 = vmatpush.msra.mxu0 %v1827
        %7709 = vmatpush.msra.mxu0 %v1825
        %7710 = vmatpush.msra.mxu0 %v1823
        %7711 = vmatpush.msra.mxu0 %v1821
        %7712 = vmatmul.f32.gmra.mxu0 %v7685
        %v7713 = vpop.f32.mrf.mxu0
        %v7714 = vadd.f32 0.0, %v7713
        %7715 = vmatmul.f32.gmra.mxu0 %v7688
        %v7716 = vpop.f32.mrf.mxu0
        %v7717 = vadd.f32 0.0, %v7716
        %7718 = vmatmul.f32.gmra.mxu0 %v7691
        %v7719 = vpop.f32.mrf.mxu0
        %v7720 = vadd.f32 0.0, %v7719
        %7721 = vmatmul.f32.gmra.mxu0 %v7694
        %v7722 = vpop.f32.mrf.mxu0
        %v7723 = vadd.f32 0.0, %v7722
        %7724 = vdwg.mxu0
        %v7726 = vsel %vm3832, %v6199, 0
        %v7729 = vsel %vm3832, %v6214, 0
        %v7732 = vsel %vm3832, %v6229, 0
        %v7735 = vsel %vm3832, %v6244, 0
        %7737 = vmatpush.msra.mxu0 0.0
        %7738 = vmatpush.msra.mxu0 0.0
        %7739 = vmatpush.msra.mxu0 0.0
        %7740 = vmatpush.msra.mxu0 0.0
        %7741 = vmatpush.msra.mxu0 0.0
        %7742 = vmatpush.msra.mxu0 0.0
        %7743 = vmatpush.msra.mxu0 0.0
        %7744 = vmatpush.msra.mxu0 0.0
        %7745 = vmatpush.msra.mxu0 0.0
        %7746 = vmatpush.msra.mxu0 0.0
        %7747 = vmatpush.msra.mxu0 0.0
        %7748 = vmatpush.msra.mxu0 0.0
        %7749 = vmatpush.msra.mxu0 %v1835
        %7750 = vmatpush.msra.mxu0 %v1833
        %7751 = vmatpush.msra.mxu0 %v1831
        %7752 = vmatpush.msra.mxu0 %v1829
        %7753 = vmatmul.f32.gmra.mxu0 %v7726
        %v7754 = vpop.f32.mrf.mxu0
        %v7755 = vadd.f32 0.0, %v7754
        %7756 = vmatmul.f32.gmra.mxu0 %v7729
        %v7757 = vpop.f32.mrf.mxu0
        %v7758 = vadd.f32 0.0, %v7757
        %7759 = vmatmul.f32.gmra.mxu0 %v7732
        %v7760 = vpop.f32.mrf.mxu0
        %v7761 = vadd.f32 0.0, %v7760
        %7762 = vmatmul.f32.gmra.mxu0 %v7735
        %v7763 = vpop.f32.mrf.mxu0
        %v7764 = vadd.f32 0.0, %v7763
        %7765 = vdwg.mxu0
        %v7767 = vsel %vm3832, %v6259, 0
        %v7770 = vsel %vm3832, %v6274, 0
        %v7773 = vsel %vm3832, %v6289, 0
        %v7776 = vsel %vm3832, %v6304, 0
        %7778 = vmatpush.msra.mxu0 0.0
        %7779 = vmatpush.msra.mxu0 0.0
        %7780 = vmatpush.msra.mxu0 0.0
        %7781 = vmatpush.msra.mxu0 0.0
        %7782 = vmatpush.msra.mxu0 0.0
        %7783 = vmatpush.msra.mxu0 0.0
        %7784 = vmatpush.msra.mxu0 0.0
        %7785 = vmatpush.msra.mxu0 0.0
        %7786 = vmatpush.msra.mxu0 0.0
        %7787 = vmatpush.msra.mxu0 0.0
        %7788 = vmatpush.msra.mxu0 0.0
        %7789 = vmatpush.msra.mxu0 0.0
        %7790 = vmatpush.msra.mxu0 %v1843
        %7791 = vmatpush.msra.mxu0 %v1841
        %7792 = vmatpush.msra.mxu0 %v1839
        %7793 = vmatpush.msra.mxu0 %v1837
        %7794 = vmatmul.f32.gmra.mxu0 %v7767
        %v7795 = vpop.f32.mrf.mxu0
        %v7796 = vadd.f32 0.0, %v7795
        %7797 = vmatmul.f32.gmra.mxu0 %v7770
        %v7798 = vpop.f32.mrf.mxu0
        %v7799 = vadd.f32 0.0, %v7798
        %7800 = vmatmul.f32.gmra.mxu0 %v7773
        %v7801 = vpop.f32.mrf.mxu0
        %v7802 = vadd.f32 0.0, %v7801
        %7803 = vmatmul.f32.gmra.mxu0 %v7776
        %v7804 = vpop.f32.mrf.mxu0
        %v7805 = vadd.f32 0.0, %v7804
        %7806 = vdwg.mxu0
        %v7808 = vsel %vm3832, %v6319, 0
        %v7811 = vsel %vm3832, %v6334, 0
        %v7814 = vsel %vm3832, %v6349, 0
        %v7817 = vsel %vm3832, %v6364, 0
        %7819 = vmatpush.msra.mxu0 0.0
        %7820 = vmatpush.msra.mxu0 0.0
        %7821 = vmatpush.msra.mxu0 0.0
        %7822 = vmatpush.msra.mxu0 0.0
        %7823 = vmatpush.msra.mxu0 0.0
        %7824 = vmatpush.msra.mxu0 0.0
        %7825 = vmatpush.msra.mxu0 0.0
        %7826 = vmatpush.msra.mxu0 0.0
        %7827 = vmatpush.msra.mxu0 0.0
        %7828 = vmatpush.msra.mxu0 0.0
        %7829 = vmatpush.msra.mxu0 0.0
        %7830 = vmatpush.msra.mxu0 0.0
        %7831 = vmatpush.msra.mxu0 %v1851
        %7832 = vmatpush.msra.mxu0 %v1849
        %7833 = vmatpush.msra.mxu0 %v1847
        %7834 = vmatpush.msra.mxu0 %v1845
        %7835 = vmatmul.f32.gmra.mxu0 %v7808
        %v7836 = vpop.f32.mrf.mxu0
        %v7837 = vadd.f32 0.0, %v7836
        %7838 = vmatmul.f32.gmra.mxu0 %v7811
        %v7839 = vpop.f32.mrf.mxu0
        %v7840 = vadd.f32 0.0, %v7839
        %7841 = vmatmul.f32.gmra.mxu0 %v7814
        %v7842 = vpop.f32.mrf.mxu0
        %v7843 = vadd.f32 0.0, %v7842
        %7844 = vmatmul.f32.gmra.mxu0 %v7817
        %v7845 = vpop.f32.mrf.mxu0
        %v7846 = vadd.f32 0.0, %v7845
        %7847 = vdwg.mxu0
        %v7849 = vsel %vm3832, %v6379, 0
        %v7852 = vsel %vm3832, %v6394, 0
        %v7855 = vsel %vm3832, %v6409, 0
        %v7858 = vsel %vm3832, %v6424, 0
        %7860 = vmatpush.msra.mxu0 0.0
        %7861 = vmatpush.msra.mxu0 0.0
        %7862 = vmatpush.msra.mxu0 0.0
        %7863 = vmatpush.msra.mxu0 0.0
        %7864 = vmatpush.msra.mxu0 0.0
        %7865 = vmatpush.msra.mxu0 0.0
        %7866 = vmatpush.msra.mxu0 0.0
        %7867 = vmatpush.msra.mxu0 0.0
        %7868 = vmatpush.msra.mxu0 0.0
        %7869 = vmatpush.msra.mxu0 0.0
        %7870 = vmatpush.msra.mxu0 0.0
        %7871 = vmatpush.msra.mxu0 0.0
        %7872 = vmatpush.msra.mxu0 %v1859
        %7873 = vmatpush.msra.mxu0 %v1857
        %7874 = vmatpush.msra.mxu0 %v1855
        %7875 = vmatpush.msra.mxu0 %v1853
        %7876 = vmatmul.f32.gmra.mxu0 %v7849
        %v7877 = vpop.f32.mrf.mxu0
        %v7878 = vadd.f32 0.0, %v7877
        %7879 = vmatmul.f32.gmra.mxu0 %v7852
        %v7880 = vpop.f32.mrf.mxu0
        %v7881 = vadd.f32 0.0, %v7880
        %7882 = vmatmul.f32.gmra.mxu0 %v7855
        %v7883 = vpop.f32.mrf.mxu0
        %v7884 = vadd.f32 0.0, %v7883
        %7885 = vmatmul.f32.gmra.mxu0 %v7858
        %v7886 = vpop.f32.mrf.mxu0
        %v7887 = vadd.f32 0.0, %v7886
        %7888 = vdwg.mxu0
        %v7890 = vsel %vm3832, %v6439, 0
        %v7893 = vsel %vm3832, %v6454, 0
        %v7896 = vsel %vm3832, %v6469, 0
        %v7899 = vsel %vm3832, %v6484, 0
        %7901 = vmatpush.msra.mxu0 0.0
        %7902 = vmatpush.msra.mxu0 0.0
        %7903 = vmatpush.msra.mxu0 0.0
        %7904 = vmatpush.msra.mxu0 0.0
        %7905 = vmatpush.msra.mxu0 0.0
        %7906 = vmatpush.msra.mxu0 0.0
        %7907 = vmatpush.msra.mxu0 0.0
        %7908 = vmatpush.msra.mxu0 0.0
        %7909 = vmatpush.msra.mxu0 0.0
        %7910 = vmatpush.msra.mxu0 0.0
        %7911 = vmatpush.msra.mxu0 0.0
        %7912 = vmatpush.msra.mxu0 0.0
        %7913 = vmatpush.msra.mxu0 %v1899
        %7914 = vmatpush.msra.mxu0 %v1897
        %7915 = vmatpush.msra.mxu0 %v1895
        %7916 = vmatpush.msra.mxu0 %v1893
        %7917 = vmatmul.f32.gmra.mxu0 %v7890
        %v7918 = vpop.f32.mrf.mxu0
        %v7919 = vadd.f32 0.0, %v7918
        %7920 = vmatmul.f32.gmra.mxu0 %v7893
        %v7921 = vpop.f32.mrf.mxu0
        %v7922 = vadd.f32 0.0, %v7921
        %7923 = vmatmul.f32.gmra.mxu0 %v7896
        %v7924 = vpop.f32.mrf.mxu0
        %v7925 = vadd.f32 0.0, %v7924
        %7926 = vmatmul.f32.gmra.mxu0 %v7899
        %v7927 = vpop.f32.mrf.mxu0
        %v7928 = vadd.f32 0.0, %v7927
        %7929 = vdwg.mxu0
        %v7931 = vsel %vm3832, %v6499, 0
        %v7934 = vsel %vm3832, %v6514, 0
        %v7937 = vsel %vm3832, %v6529, 0
        %v7940 = vsel %vm3832, %v6544, 0
        %7942 = vmatpush.msra.mxu0 0.0
        %7943 = vmatpush.msra.mxu0 0.0
        %7944 = vmatpush.msra.mxu0 0.0
        %7945 = vmatpush.msra.mxu0 0.0
        %7946 = vmatpush.msra.mxu0 0.0
        %7947 = vmatpush.msra.mxu0 0.0
        %7948 = vmatpush.msra.mxu0 0.0
        %7949 = vmatpush.msra.mxu0 0.0
        %7950 = vmatpush.msra.mxu0 0.0
        %7951 = vmatpush.msra.mxu0 0.0
        %7952 = vmatpush.msra.mxu0 0.0
        %7953 = vmatpush.msra.mxu0 0.0
        %7954 = vmatpush.msra.mxu0 %v1907
        %7955 = vmatpush.msra.mxu0 %v1905
        %7956 = vmatpush.msra.mxu0 %v1903
        %7957 = vmatpush.msra.mxu0 %v1901
        %7958 = vmatmul.f32.gmra.mxu0 %v7931
        %v7959 = vpop.f32.mrf.mxu0
        %v7960 = vadd.f32 0.0, %v7959
        %7961 = vmatmul.f32.gmra.mxu0 %v7934
        %v7962 = vpop.f32.mrf.mxu0
        %v7963 = vadd.f32 0.0, %v7962
        %7964 = vmatmul.f32.gmra.mxu0 %v7937
        %v7965 = vpop.f32.mrf.mxu0
        %v7966 = vadd.f32 0.0, %v7965
        %7967 = vmatmul.f32.gmra.mxu0 %v7940
        %v7968 = vpop.f32.mrf.mxu0
        %v7969 = vadd.f32 0.0, %v7968
        %7970 = vdwg.mxu0
        %v7972 = vsel %vm3832, %v6559, 0
        %v7975 = vsel %vm3832, %v6574, 0
        %v7978 = vsel %vm3832, %v6589, 0
        %v7981 = vsel %vm3832, %v6604, 0
        %7983 = vmatpush.msra.mxu0 0.0
        %7984 = vmatpush.msra.mxu0 0.0
        %7985 = vmatpush.msra.mxu0 0.0
        %7986 = vmatpush.msra.mxu0 0.0
        %7987 = vmatpush.msra.mxu0 0.0
        %7988 = vmatpush.msra.mxu0 0.0
        %7989 = vmatpush.msra.mxu0 0.0
        %7990 = vmatpush.msra.mxu0 0.0
        %7991 = vmatpush.msra.mxu0 0.0
        %7992 = vmatpush.msra.mxu0 0.0
        %7993 = vmatpush.msra.mxu0 0.0
        %7994 = vmatpush.msra.mxu0 0.0
        %7995 = vmatpush.msra.mxu0 %v1915
        %7996 = vmatpush.msra.mxu0 %v1913
        %7997 = vmatpush.msra.mxu0 %v1911
        %7998 = vmatpush.msra.mxu0 %v1909
        %7999 = vmatmul.f32.gmra.mxu0 %v7972
        %v8000 = vpop.f32.mrf.mxu0
        %v8001 = vadd.f32 0.0, %v8000
        %8002 = vmatmul.f32.gmra.mxu0 %v7975
        %v8003 = vpop.f32.mrf.mxu0
        %v8004 = vadd.f32 0.0, %v8003
        %8005 = vmatmul.f32.gmra.mxu0 %v7978
        %v8006 = vpop.f32.mrf.mxu0
        %v8007 = vadd.f32 0.0, %v8006
        %8008 = vmatmul.f32.gmra.mxu0 %v7981
        %v8009 = vpop.f32.mrf.mxu0
        %v8010 = vadd.f32 0.0, %v8009
        %8011 = vdwg.mxu0
        %v8013 = vsel %vm3832, %v6619, 0
        %v8016 = vsel %vm3832, %v6634, 0
        %v8019 = vsel %vm3832, %v6649, 0
        %v8022 = vsel %vm3832, %v6664, 0
        %8024 = vmatpush.msra.mxu0 0.0
        %8025 = vmatpush.msra.mxu0 0.0
        %8026 = vmatpush.msra.mxu0 0.0
        %8027 = vmatpush.msra.mxu0 0.0
        %8028 = vmatpush.msra.mxu0 0.0
        %8029 = vmatpush.msra.mxu0 0.0
        %8030 = vmatpush.msra.mxu0 0.0
        %8031 = vmatpush.msra.mxu0 0.0
        %8032 = vmatpush.msra.mxu0 0.0
        %8033 = vmatpush.msra.mxu0 0.0
        %8034 = vmatpush.msra.mxu0 0.0
        %8035 = vmatpush.msra.mxu0 0.0
        %8036 = vmatpush.msra.mxu0 %v1923
        %8037 = vmatpush.msra.mxu0 %v1921
        %8038 = vmatpush.msra.mxu0 %v1919
        %8039 = vmatpush.msra.mxu0 %v1917
        %8040 = vmatmul.f32.gmra.mxu0 %v8013
        %v8041 = vpop.f32.mrf.mxu0
        %v8042 = vadd.f32 0.0, %v8041
        %8043 = vmatmul.f32.gmra.mxu0 %v8016
        %v8044 = vpop.f32.mrf.mxu0
        %v8045 = vadd.f32 0.0, %v8044
        %8046 = vmatmul.f32.gmra.mxu0 %v8019
        %v8047 = vpop.f32.mrf.mxu0
        %v8048 = vadd.f32 0.0, %v8047
        %8049 = vmatmul.f32.gmra.mxu0 %v8022
        %v8050 = vpop.f32.mrf.mxu0
        %v8051 = vadd.f32 0.0, %v8050
        %8052 = vdwg.mxu0
        %v8054 = vsel %vm3832, %v6679, 0
        %v8057 = vsel %vm3832, %v6694, 0
        %v8060 = vsel %vm3832, %v6709, 0
        %v8063 = vsel %vm3832, %v6724, 0
        %8065 = vmatpush.msra.mxu0 0.0
        %8066 = vmatpush.msra.mxu0 0.0
        %8067 = vmatpush.msra.mxu0 0.0
        %8068 = vmatpush.msra.mxu0 0.0
        %8069 = vmatpush.msra.mxu0 0.0
        %8070 = vmatpush.msra.mxu0 0.0
        %8071 = vmatpush.msra.mxu0 0.0
        %8072 = vmatpush.msra.mxu0 0.0
        %8073 = vmatpush.msra.mxu0 0.0
        %8074 = vmatpush.msra.mxu0 0.0
        %8075 = vmatpush.msra.mxu0 0.0
        %8076 = vmatpush.msra.mxu0 0.0
        %8077 = vmatpush.msra.mxu0 %v1931
        %8078 = vmatpush.msra.mxu0 %v1929
        %8079 = vmatpush.msra.mxu0 %v1927
        %8080 = vmatpush.msra.mxu0 %v1925
        %8081 = vmatmul.f32.gmra.mxu0 %v8054
        %v8082 = vpop.f32.mrf.mxu0
        %v8083 = vadd.f32 0.0, %v8082
        %8084 = vmatmul.f32.gmra.mxu0 %v8057
        %v8085 = vpop.f32.mrf.mxu0
        %v8086 = vadd.f32 0.0, %v8085
        %8087 = vmatmul.f32.gmra.mxu0 %v8060
        %v8088 = vpop.f32.mrf.mxu0
        %v8089 = vadd.f32 0.0, %v8088
        %8090 = vmatmul.f32.gmra.mxu0 %v8063
        %v8091 = vpop.f32.mrf.mxu0
        %v8092 = vadd.f32 0.0, %v8091
        %8093 = vdwg.mxu0
        %v8095 = vsel %vm3832, %v6739, 0
        %v8098 = vsel %vm3832, %v6754, 0
        %v8101 = vsel %vm3832, %v6769, 0
        %v8104 = vsel %vm3832, %v6784, 0
        %8106 = vmatpush.msra.mxu0 0.0
        %8107 = vmatpush.msra.mxu0 0.0
        %8108 = vmatpush.msra.mxu0 0.0
        %8109 = vmatpush.msra.mxu0 0.0
        %8110 = vmatpush.msra.mxu0 0.0
        %8111 = vmatpush.msra.mxu0 0.0
        %8112 = vmatpush.msra.mxu0 0.0
        %8113 = vmatpush.msra.mxu0 0.0
        %8114 = vmatpush.msra.mxu0 0.0
        %8115 = vmatpush.msra.mxu0 0.0
        %8116 = vmatpush.msra.mxu0 0.0
        %8117 = vmatpush.msra.mxu0 0.0
        %8118 = vmatpush.msra.mxu0 %v1939
        %8119 = vmatpush.msra.mxu0 %v1937
        %8120 = vmatpush.msra.mxu0 %v1935
        %8121 = vmatpush.msra.mxu0 %v1933
        %8122 = vmatmul.f32.gmra.mxu0 %v8095
        %v8123 = vpop.f32.mrf.mxu0
        %v8124 = vadd.f32 0.0, %v8123
        %8125 = vmatmul.f32.gmra.mxu0 %v8098
        %v8126 = vpop.f32.mrf.mxu0
        %v8127 = vadd.f32 0.0, %v8126
        %8128 = vmatmul.f32.gmra.mxu0 %v8101
        %v8129 = vpop.f32.mrf.mxu0
        %v8130 = vadd.f32 0.0, %v8129
        %8131 = vmatmul.f32.gmra.mxu0 %v8104
        %v8132 = vpop.f32.mrf.mxu0
        %v8133 = vadd.f32 0.0, %v8132
        %8134 = vdwg.mxu0
        %v8136 = vsel %vm3832, %v6799, 0
        %v8139 = vsel %vm3832, %v6814, 0
        %v8142 = vsel %vm3832, %v6829, 0
        %v8145 = vsel %vm3832, %v6844, 0
        %8147 = vmatpush.msra.mxu0 0.0
        %8148 = vmatpush.msra.mxu0 0.0
        %8149 = vmatpush.msra.mxu0 0.0
        %8150 = vmatpush.msra.mxu0 0.0
        %8151 = vmatpush.msra.mxu0 0.0
        %8152 = vmatpush.msra.mxu0 0.0
        %8153 = vmatpush.msra.mxu0 0.0
        %8154 = vmatpush.msra.mxu0 0.0
        %8155 = vmatpush.msra.mxu0 0.0
        %8156 = vmatpush.msra.mxu0 0.0
        %8157 = vmatpush.msra.mxu0 0.0
        %8158 = vmatpush.msra.mxu0 0.0
        %8159 = vmatpush.msra.mxu0 %v1947
        %8160 = vmatpush.msra.mxu0 %v1945
        %8161 = vmatpush.msra.mxu0 %v1943
        %8162 = vmatpush.msra.mxu0 %v1941
        %8163 = vmatmul.f32.gmra.mxu0 %v8136
        %v8164 = vpop.f32.mrf.mxu0
        %v8165 = vadd.f32 0.0, %v8164
        %8166 = vmatmul.f32.gmra.mxu0 %v8139
        %v8167 = vpop.f32.mrf.mxu0
        %v8168 = vadd.f32 0.0, %v8167
        %8169 = vmatmul.f32.gmra.mxu0 %v8142
        %v8170 = vpop.f32.mrf.mxu0
        %v8171 = vadd.f32 0.0, %v8170
        %8172 = vmatmul.f32.gmra.mxu0 %v8145
        %v8173 = vpop.f32.mrf.mxu0
        %v8174 = vadd.f32 0.0, %v8173
        %8175 = vdwg.mxu0
        %v8177 = vsel %vm3832, %v6859, 0
        %v8180 = vsel %vm3832, %v6874, 0
        %v8183 = vsel %vm3832, %v6889, 0
        %v8186 = vsel %vm3832, %v6904, 0
        %8188 = vmatpush.msra.mxu0 0.0
        %8189 = vmatpush.msra.mxu0 0.0
        %8190 = vmatpush.msra.mxu0 0.0
        %8191 = vmatpush.msra.mxu0 0.0
        %8192 = vmatpush.msra.mxu0 0.0
        %8193 = vmatpush.msra.mxu0 0.0
        %8194 = vmatpush.msra.mxu0 0.0
        %8195 = vmatpush.msra.mxu0 0.0
        %8196 = vmatpush.msra.mxu0 0.0
        %8197 = vmatpush.msra.mxu0 0.0
        %8198 = vmatpush.msra.mxu0 0.0
        %8199 = vmatpush.msra.mxu0 0.0
        %8200 = vmatpush.msra.mxu0 %v1955
        %8201 = vmatpush.msra.mxu0 %v1953
        %8202 = vmatpush.msra.mxu0 %v1951
        %8203 = vmatpush.msra.mxu0 %v1949
        %8204 = vmatmul.f32.gmra.mxu0 %v8177
        %v8205 = vpop.f32.mrf.mxu0
        %v8206 = vadd.f32 0.0, %v8205
        %8207 = vmatmul.f32.gmra.mxu0 %v8180
        %v8208 = vpop.f32.mrf.mxu0
        %v8209 = vadd.f32 0.0, %v8208
        %8210 = vmatmul.f32.gmra.mxu0 %v8183
        %v8211 = vpop.f32.mrf.mxu0
        %v8212 = vadd.f32 0.0, %v8211
        %8213 = vmatmul.f32.gmra.mxu0 %v8186
        %v8214 = vpop.f32.mrf.mxu0
        %v8215 = vadd.f32 0.0, %v8214
        %8216 = vdwg.mxu0
        %8249 = vrot.lane.b32.xlu0 %v7263, 16
        %v8250 = vpop.permute.xlu0 %8249
        %8251 = vrot.lane.b32.xlu0 %v7266, 16
        %v8252 = vpop.permute.xlu0 %8251
        %8253 = vrot.lane.b32.xlu0 %v7269, 16
        %v8254 = vpop.permute.xlu0 %8253
        %8255 = vrot.lane.b32.xlu0 %v7272, 16
        %v8256 = vpop.permute.xlu0 %8255
        %8257 = vrot.lane.b32.xlu0 %v7304, 16
        %v8258 = vpop.permute.xlu0 %8257
        %8259 = vrot.lane.b32.xlu0 %v7307, 16
        %v8260 = vpop.permute.xlu0 %8259
        %8261 = vrot.lane.b32.xlu0 %v7310, 16
        %v8262 = vpop.permute.xlu0 %8261
        %8263 = vrot.lane.b32.xlu0 %v7313, 16
        %v8264 = vpop.permute.xlu0 %8263
        %8265 = vrot.lane.b32.xlu0 %v7345, 16
        %v8266 = vpop.permute.xlu0 %8265
        %8267 = vrot.lane.b32.xlu0 %v7348, 16
        %v8268 = vpop.permute.xlu0 %8267
        %8269 = vrot.lane.b32.xlu0 %v7351, 16
        %v8270 = vpop.permute.xlu0 %8269
        %8271 = vrot.lane.b32.xlu0 %v7354, 16
        %v8272 = vpop.permute.xlu0 %8271
        %8273 = vrot.lane.b32.xlu0 %v7386, 16
        %v8274 = vpop.permute.xlu0 %8273
        %8275 = vrot.lane.b32.xlu0 %v7389, 16
        %v8276 = vpop.permute.xlu0 %8275
        %8277 = vrot.lane.b32.xlu0 %v7392, 16
        %v8278 = vpop.permute.xlu0 %8277
        %8279 = vrot.lane.b32.xlu0 %v7395, 16
        %v8280 = vpop.permute.xlu0 %8279
        %8281 = vrot.lane.b32.xlu0 %v7427, 16
        %v8282 = vpop.permute.xlu0 %8281
        %8283 = vrot.lane.b32.xlu0 %v7430, 16
        %v8284 = vpop.permute.xlu0 %8283
        %8285 = vrot.lane.b32.xlu0 %v7433, 16
        %v8286 = vpop.permute.xlu0 %8285
        %8287 = vrot.lane.b32.xlu0 %v7436, 16
        %v8288 = vpop.permute.xlu0 %8287
        %8289 = vrot.lane.b32.xlu0 %v7468, 16
        %v8290 = vpop.permute.xlu0 %8289
        %8291 = vrot.lane.b32.xlu0 %v7471, 16
        %v8292 = vpop.permute.xlu0 %8291
        %8293 = vrot.lane.b32.xlu0 %v7474, 16
        %v8294 = vpop.permute.xlu0 %8293
        %8295 = vrot.lane.b32.xlu0 %v7477, 16
        %v8296 = vpop.permute.xlu0 %8295
        %8297 = vrot.lane.b32.xlu0 %v7509, 16
        %v8298 = vpop.permute.xlu0 %8297
        %8299 = vrot.lane.b32.xlu0 %v7512, 16
        %v8300 = vpop.permute.xlu0 %8299
        %8301 = vrot.lane.b32.xlu0 %v7515, 16
        %v8302 = vpop.permute.xlu0 %8301
        %8303 = vrot.lane.b32.xlu0 %v7518, 16
        %v8304 = vpop.permute.xlu0 %8303
        %8305 = vrot.lane.b32.xlu0 %v7550, 16
        %v8306 = vpop.permute.xlu0 %8305
        %8307 = vrot.lane.b32.xlu0 %v7553, 16
        %v8308 = vpop.permute.xlu0 %8307
        %8309 = vrot.lane.b32.xlu0 %v7556, 16
        %v8310 = vpop.permute.xlu0 %8309
        %8311 = vrot.lane.b32.xlu0 %v7559, 16
        %v8312 = vpop.permute.xlu0 %8311
        %8377 = vrot.lane.b32.xlu0 %v7591, 32
        %v8378 = vpop.permute.xlu0 %8377
        %8379 = vrot.lane.b32.xlu0 %v7594, 32
        %v8380 = vpop.permute.xlu0 %8379
        %8381 = vrot.lane.b32.xlu0 %v7597, 32
        %v8382 = vpop.permute.xlu0 %8381
        %8383 = vrot.lane.b32.xlu0 %v7600, 32
        %v8384 = vpop.permute.xlu0 %8383
        %8385 = vrot.lane.b32.xlu0 %v7632, 32
        %v8386 = vpop.permute.xlu0 %8385
        %8387 = vrot.lane.b32.xlu0 %v7635, 32
        %v8388 = vpop.permute.xlu0 %8387
        %8389 = vrot.lane.b32.xlu0 %v7638, 32
        %v8390 = vpop.permute.xlu0 %8389
        %8391 = vrot.lane.b32.xlu0 %v7641, 32
        %v8392 = vpop.permute.xlu0 %8391
        %8393 = vrot.lane.b32.xlu0 %v7673, 32
        %v8394 = vpop.permute.xlu0 %8393
        %8395 = vrot.lane.b32.xlu0 %v7676, 32
        %v8396 = vpop.permute.xlu0 %8395
        %8397 = vrot.lane.b32.xlu0 %v7679, 32
        %v8398 = vpop.permute.xlu0 %8397
        %8399 = vrot.lane.b32.xlu0 %v7682, 32
        %v8400 = vpop.permute.xlu0 %8399
        %8401 = vrot.lane.b32.xlu0 %v7714, 32
        %v8402 = vpop.permute.xlu0 %8401
        %8403 = vrot.lane.b32.xlu0 %v7717, 32
        %v8404 = vpop.permute.xlu0 %8403
        %8405 = vrot.lane.b32.xlu0 %v7720, 32
        %v8406 = vpop.permute.xlu0 %8405
        %8407 = vrot.lane.b32.xlu0 %v7723, 32
        %v8408 = vpop.permute.xlu0 %8407
        %8409 = vrot.lane.b32.xlu0 %v7755, 32
        %v8410 = vpop.permute.xlu0 %8409
        %8411 = vrot.lane.b32.xlu0 %v7758, 32
        %v8412 = vpop.permute.xlu0 %8411
        %8413 = vrot.lane.b32.xlu0 %v7761, 32
        %v8414 = vpop.permute.xlu0 %8413
        %8415 = vrot.lane.b32.xlu0 %v7764, 32
        %v8416 = vpop.permute.xlu0 %8415
        %8417 = vrot.lane.b32.xlu0 %v7796, 32
        %v8418 = vpop.permute.xlu0 %8417
        %8419 = vrot.lane.b32.xlu0 %v7799, 32
        %v8420 = vpop.permute.xlu0 %8419
        %8421 = vrot.lane.b32.xlu0 %v7802, 32
        %v8422 = vpop.permute.xlu0 %8421
        %8423 = vrot.lane.b32.xlu0 %v7805, 32
        %v8424 = vpop.permute.xlu0 %8423
        %8425 = vrot.lane.b32.xlu0 %v7837, 32
        %v8426 = vpop.permute.xlu0 %8425
        %8427 = vrot.lane.b32.xlu0 %v7840, 32
        %v8428 = vpop.permute.xlu0 %8427
        %8429 = vrot.lane.b32.xlu0 %v7843, 32
        %v8430 = vpop.permute.xlu0 %8429
        %8431 = vrot.lane.b32.xlu0 %v7846, 32
        %v8432 = vpop.permute.xlu0 %8431
        %8433 = vrot.lane.b32.xlu0 %v7878, 32
        %v8434 = vpop.permute.xlu0 %8433
        %8435 = vrot.lane.b32.xlu0 %v7881, 32
        %v8436 = vpop.permute.xlu0 %8435
        %8437 = vrot.lane.b32.xlu0 %v7884, 32
        %v8438 = vpop.permute.xlu0 %8437
        %8439 = vrot.lane.b32.xlu0 %v7887, 32
        %v8440 = vpop.permute.xlu0 %8439
        %8505 = vrot.lane.b32.xlu0 %v7919, 48
        %v8506 = vpop.permute.xlu0 %8505
        %8507 = vrot.lane.b32.xlu0 %v7922, 48
        %v8508 = vpop.permute.xlu0 %8507
        %8509 = vrot.lane.b32.xlu0 %v7925, 48
        %v8510 = vpop.permute.xlu0 %8509
        %8511 = vrot.lane.b32.xlu0 %v7928, 48
        %v8512 = vpop.permute.xlu0 %8511
        %8513 = vrot.lane.b32.xlu0 %v7960, 48
        %v8514 = vpop.permute.xlu0 %8513
        %8515 = vrot.lane.b32.xlu0 %v7963, 48
        %v8516 = vpop.permute.xlu0 %8515
        %8517 = vrot.lane.b32.xlu0 %v7966, 48
        %v8518 = vpop.permute.xlu0 %8517
        %8519 = vrot.lane.b32.xlu0 %v7969, 48
        %v8520 = vpop.permute.xlu0 %8519
        %8521 = vrot.lane.b32.xlu0 %v8001, 48
        %v8522 = vpop.permute.xlu0 %8521
        %8523 = vrot.lane.b32.xlu0 %v8004, 48
        %v8524 = vpop.permute.xlu0 %8523
        %8525 = vrot.lane.b32.xlu0 %v8007, 48
        %v8526 = vpop.permute.xlu0 %8525
        %8527 = vrot.lane.b32.xlu0 %v8010, 48
        %v8528 = vpop.permute.xlu0 %8527
        %8529 = vrot.lane.b32.xlu0 %v8042, 48
        %v8530 = vpop.permute.xlu0 %8529
        %8531 = vrot.lane.b32.xlu0 %v8045, 48
        %v8532 = vpop.permute.xlu0 %8531
        %8533 = vrot.lane.b32.xlu0 %v8048, 48
        %v8534 = vpop.permute.xlu0 %8533
        %8535 = vrot.lane.b32.xlu0 %v8051, 48
        %v8536 = vpop.permute.xlu0 %8535
        %8537 = vrot.lane.b32.xlu0 %v8083, 48
        %v8538 = vpop.permute.xlu0 %8537
        %8539 = vrot.lane.b32.xlu0 %v8086, 48
        %v8540 = vpop.permute.xlu0 %8539
        %8541 = vrot.lane.b32.xlu0 %v8089, 48
        %v8542 = vpop.permute.xlu0 %8541
        %8543 = vrot.lane.b32.xlu0 %v8092, 48
        %v8544 = vpop.permute.xlu0 %8543
        %8545 = vrot.lane.b32.xlu0 %v8124, 48
        %v8546 = vpop.permute.xlu0 %8545
        %8547 = vrot.lane.b32.xlu0 %v8127, 48
        %v8548 = vpop.permute.xlu0 %8547
        %8549 = vrot.lane.b32.xlu0 %v8130, 48
        %v8550 = vpop.permute.xlu0 %8549
        %8551 = vrot.lane.b32.xlu0 %v8133, 48
        %v8552 = vpop.permute.xlu0 %8551
        %8553 = vrot.lane.b32.xlu0 %v8165, 48
        %v8554 = vpop.permute.xlu0 %8553
        %8555 = vrot.lane.b32.xlu0 %v8168, 48
        %v8556 = vpop.permute.xlu0 %8555
        %8557 = vrot.lane.b32.xlu0 %v8171, 48
        %v8558 = vpop.permute.xlu0 %8557
        %8559 = vrot.lane.b32.xlu0 %v8174, 48
        %v8560 = vpop.permute.xlu0 %8559
        %8561 = vrot.lane.b32.xlu0 %v8206, 48
        %v8562 = vpop.permute.xlu0 %8561
        %8563 = vrot.lane.b32.xlu0 %v8209, 48
        %v8564 = vpop.permute.xlu0 %8563
        %8565 = vrot.lane.b32.xlu0 %v8212, 48
        %v8566 = vpop.permute.xlu0 %8565
        %8567 = vrot.lane.b32.xlu0 %v8215, 48
        %v8568 = vpop.permute.xlu0 %8567
        %v8601 = vsel %vm2007, %v6935, %v8250
        %v8602 = vsel %vm2007, %v6938, %v8252
        %v8603 = vsel %vm2007, %v6941, %v8254
        %v8604 = vsel %vm2007, %v6944, %v8256
        %v8605 = vsel %vm2007, %v6976, %v8258
        %v8606 = vsel %vm2007, %v6979, %v8260
        %v8607 = vsel %vm2007, %v6982, %v8262
        %v8608 = vsel %vm2007, %v6985, %v8264
        %v8609 = vsel %vm2007, %v7017, %v8266
        %v8610 = vsel %vm2007, %v7020, %v8268
        %v8611 = vsel %vm2007, %v7023, %v8270
        %v8612 = vsel %vm2007, %v7026, %v8272
        %v8613 = vsel %vm2007, %v7058, %v8274
        %v8614 = vsel %vm2007, %v7061, %v8276
        %v8615 = vsel %vm2007, %v7064, %v8278
        %v8616 = vsel %vm2007, %v7067, %v8280
        %v8617 = vsel %vm2007, %v7099, %v8282
        %v8618 = vsel %vm2007, %v7102, %v8284
        %v8619 = vsel %vm2007, %v7105, %v8286
        %v8620 = vsel %vm2007, %v7108, %v8288
        %v8621 = vsel %vm2007, %v7140, %v8290
        %v8622 = vsel %vm2007, %v7143, %v8292
        %v8623 = vsel %vm2007, %v7146, %v8294
        %v8624 = vsel %vm2007, %v7149, %v8296
        %v8625 = vsel %vm2007, %v7181, %v8298
        %v8626 = vsel %vm2007, %v7184, %v8300
        %v8627 = vsel %vm2007, %v7187, %v8302
        %v8628 = vsel %vm2007, %v7190, %v8304
        %v8629 = vsel %vm2007, %v7222, %v8306
        %v8630 = vsel %vm2007, %v7225, %v8308
        %v8631 = vsel %vm2007, %v7228, %v8310
        %v8632 = vsel %vm2007, %v7231, %v8312
        %v8633 = vsel %vm3832, %v8601, %v8378
        %v8634 = vsel %vm3832, %v8602, %v8380
        %v8635 = vsel %vm3832, %v8603, %v8382
        %v8636 = vsel %vm3832, %v8604, %v8384
        %v8637 = vsel %vm3832, %v8605, %v8386
        %v8638 = vsel %vm3832, %v8606, %v8388
        %v8639 = vsel %vm3832, %v8607, %v8390
        %v8640 = vsel %vm3832, %v8608, %v8392
        %v8641 = vsel %vm3832, %v8609, %v8394
        %v8642 = vsel %vm3832, %v8610, %v8396
        %v8643 = vsel %vm3832, %v8611, %v8398
        %v8644 = vsel %vm3832, %v8612, %v8400
        %v8645 = vsel %vm3832, %v8613, %v8402
        %v8646 = vsel %vm3832, %v8614, %v8404
        %v8647 = vsel %vm3832, %v8615, %v8406
        %v8648 = vsel %vm3832, %v8616, %v8408
        %v8649 = vsel %vm3832, %v8617, %v8410
        %v8650 = vsel %vm3832, %v8618, %v8412
        %v8651 = vsel %vm3832, %v8619, %v8414
        %v8652 = vsel %vm3832, %v8620, %v8416
        %v8653 = vsel %vm3832, %v8621, %v8418
        %v8654 = vsel %vm3832, %v8622, %v8420
        %v8655 = vsel %vm3832, %v8623, %v8422
        %v8656 = vsel %vm3832, %v8624, %v8424
        %v8657 = vsel %vm3832, %v8625, %v8426
        %v8658 = vsel %vm3832, %v8626, %v8428
        %v8659 = vsel %vm3832, %v8627, %v8430
        %v8660 = vsel %vm3832, %v8628, %v8432
        %v8661 = vsel %vm3832, %v8629, %v8434
        %v8662 = vsel %vm3832, %v8630, %v8436
        %v8663 = vsel %vm3832, %v8631, %v8438
        %v8664 = vsel %vm3832, %v8632, %v8440
        %vm8665 = vcmask 392192
        %v8666 = vsel %vm8665, %v8633, %v8506
        %v8667 = vsel %vm8665, %v8634, %v8508
        %v8668 = vsel %vm8665, %v8635, %v8510
        %v8669 = vsel %vm8665, %v8636, %v8512
        %v8670 = vsel %vm8665, %v8637, %v8514
        %v8671 = vsel %vm8665, %v8638, %v8516
        %v8672 = vsel %vm8665, %v8639, %v8518
        %v8673 = vsel %vm8665, %v8640, %v8520
        %v8674 = vsel %vm8665, %v8641, %v8522
        %v8675 = vsel %vm8665, %v8642, %v8524
        %v8676 = vsel %vm8665, %v8643, %v8526
        %v8677 = vsel %vm8665, %v8644, %v8528
        %v8678 = vsel %vm8665, %v8645, %v8530
        %v8679 = vsel %vm8665, %v8646, %v8532
        %v8680 = vsel %vm8665, %v8647, %v8534
        %v8681 = vsel %vm8665, %v8648, %v8536
        %v8682 = vsel %vm8665, %v8649, %v8538
        %v8683 = vsel %vm8665, %v8650, %v8540
        %v8684 = vsel %vm8665, %v8651, %v8542
        %v8685 = vsel %vm8665, %v8652, %v8544
        %v8686 = vsel %vm8665, %v8653, %v8546
        %v8687 = vsel %vm8665, %v8654, %v8548
        %v8688 = vsel %vm8665, %v8655, %v8550
        %v8689 = vsel %vm8665, %v8656, %v8552
        %v8690 = vsel %vm8665, %v8657, %v8554
        %v8691 = vsel %vm8665, %v8658, %v8556
        %v8692 = vsel %vm8665, %v8659, %v8558
        %v8693 = vsel %vm8665, %v8660, %v8560
        %v8694 = vsel %vm8665, %v8661, %v8562
        %v8695 = vsel %vm8665, %v8662, %v8564
        %v8696 = vsel %vm8665, %v8663, %v8566
        %v8697 = vsel %vm8665, %v8664, %v8568
        %v8698 = vld [vmem:[%s3] sm:$0xff]
        %v8699 = vld [vmem:[%s3 + $0x8] sm:$0xff]
        %v8700 = vld [vmem:[%s3 + $0x10] sm:$0xff]
        %v8701 = vld [vmem:[%s3 + $0x18] sm:$0xff]
        %v8702 = vld [vmem:[%s3 + $0x20] sm:$0xff]
        %v8703 = vld [vmem:[%s3 + $0x28] sm:$0xff]
        %v8704 = vld [vmem:[%s3 + $0x30] sm:$0xff]
        %v8705 = vld [vmem:[%s3 + $0x38] sm:$0xff]
        %v8706 = vld [vmem:[%s4] sm:$0x1]
        %v8708 = vperm.slane %v8706, 0
        %v8711 = vsel %vm388, %v8666, 0
        %v8714 = vsel %vm388, %v8667, 0
        %v8717 = vsel %vm388, %v8668, 0
        %v8720 = vsel %vm388, %v8669, 0
        %v8723 = vsel %vm388, %v8670, 0
        %v8726 = vsel %vm388, %v8671, 0
        %v8729 = vsel %vm388, %v8672, 0
        %v8732 = vsel %vm388, %v8673, 0
        %v8735 = vsel %vm388, %v8674, 0
        %v8738 = vsel %vm388, %v8675, 0
        %v8741 = vsel %vm388, %v8676, 0
        %v8744 = vsel %vm388, %v8677, 0
        %v8747 = vsel %vm388, %v8678, 0
        %v8750 = vsel %vm388, %v8679, 0
        %v8753 = vsel %vm388, %v8680, 0
        %v8756 = vsel %vm388, %v8681, 0
        %v8759 = vsel %vm388, %v8682, 0
        %v8762 = vsel %vm388, %v8683, 0
        %v8765 = vsel %vm388, %v8684, 0
        %v8768 = vsel %vm388, %v8685, 0
        %v8771 = vsel %vm388, %v8686, 0
        %v8774 = vsel %vm388, %v8687, 0
        %v8777 = vsel %vm388, %v8688, 0
        %v8780 = vsel %vm388, %v8689, 0
        %v8783 = vsel %vm388, %v8690, 0
        %v8786 = vsel %vm388, %v8691, 0
        %v8789 = vsel %vm388, %v8692, 0
        %v8792 = vsel %vm388, %v8693, 0
        %v8795 = vsel %vm388, %v8694, 0
        %v8798 = vsel %vm388, %v8695, 0
        %v8801 = vsel %vm388, %v8696, 0
        %v8804 = vsel %vm388, %v8697, 0
        %8806 = vmatpush.msra.mxu0 0.0
        %8807 = vmatpush.msra.mxu0 0.0
        %8808 = vmatpush.msra.mxu0 0.0
        %8809 = vmatpush.msra.mxu0 0.0
        %8810 = vmatpush.msra.mxu0 0.0
        %8811 = vmatpush.msra.mxu0 0.0
        %8812 = vmatpush.msra.mxu0 0.0
        %8813 = vmatpush.msra.mxu0 0.0
        %8814 = vmatpush.msra.mxu0 %v8705
        %8815 = vmatpush.msra.mxu0 %v8704
        %8816 = vmatpush.msra.mxu0 %v8703
        %8817 = vmatpush.msra.mxu0 %v8702
        %8818 = vmatpush.msra.mxu0 %v8701
        %8819 = vmatpush.msra.mxu0 %v8700
        %8820 = vmatpush.msra.mxu0 %v8699
        %8821 = vmatpush.msra.mxu0 %v8698
        %8822 = vmatmul.f32.gmra.mxu0 %v8711
        %v8823 = vpop.f32.mrf.mxu0
        %v8824 = vadd.f32 %v8708, %v8823
        %8825 = vmatmul.f32.gmra.mxu0 %v8714
        %v8826 = vpop.f32.mrf.mxu0
        %v8827 = vadd.f32 %v8708, %v8826
        %8828 = vmatmul.f32.gmra.mxu0 %v8717
        %v8829 = vpop.f32.mrf.mxu0
        %v8830 = vadd.f32 %v8708, %v8829
        %8831 = vmatmul.f32.gmra.mxu0 %v8720
        %v8832 = vpop.f32.mrf.mxu0
        %v8833 = vadd.f32 %v8708, %v8832
        %8834 = vmatmul.f32.gmra.mxu0 %v8723
        %v8835 = vpop.f32.mrf.mxu0
        %v8836 = vadd.f32 %v8708, %v8835
        %8837 = vmatmul.f32.gmra.mxu0 %v8726
        %v8838 = vpop.f32.mrf.mxu0
        %v8839 = vadd.f32 %v8708, %v8838
        %8840 = vmatmul.f32.gmra.mxu0 %v8729
        %v8841 = vpop.f32.mrf.mxu0
        %v8842 = vadd.f32 %v8708, %v8841
        %8843 = vmatmul.f32.gmra.mxu0 %v8732
        %v8844 = vpop.f32.mrf.mxu0
        %v8845 = vadd.f32 %v8708, %v8844
        %8846 = vmatmul.f32.gmra.mxu0 %v8735
        %v8847 = vpop.f32.mrf.mxu0
        %v8848 = vadd.f32 %v8708, %v8847
        %8849 = vmatmul.f32.gmra.mxu0 %v8738
        %v8850 = vpop.f32.mrf.mxu0
        %v8851 = vadd.f32 %v8708, %v8850
        %8852 = vmatmul.f32.gmra.mxu0 %v8741
        %v8853 = vpop.f32.mrf.mxu0
        %v8854 = vadd.f32 %v8708, %v8853
        %8855 = vmatmul.f32.gmra.mxu0 %v8744
        %v8856 = vpop.f32.mrf.mxu0
        %v8857 = vadd.f32 %v8708, %v8856
        %8858 = vmatmul.f32.gmra.mxu0 %v8747
        %v8859 = vpop.f32.mrf.mxu0
        %v8860 = vadd.f32 %v8708, %v8859
        %8861 = vmatmul.f32.gmra.mxu0 %v8750
        %v8862 = vpop.f32.mrf.mxu0
        %v8863 = vadd.f32 %v8708, %v8862
        %8864 = vmatmul.f32.gmra.mxu0 %v8753
        %v8865 = vpop.f32.mrf.mxu0
        %v8866 = vadd.f32 %v8708, %v8865
        %8867 = vmatmul.f32.gmra.mxu0 %v8756
        %v8868 = vpop.f32.mrf.mxu0
        %v8869 = vadd.f32 %v8708, %v8868
        %8870 = vmatmul.f32.gmra.mxu0 %v8759
        %v8871 = vpop.f32.mrf.mxu0
        %v8872 = vadd.f32 %v8708, %v8871
        %8873 = vmatmul.f32.gmra.mxu0 %v8762
        %v8874 = vpop.f32.mrf.mxu0
        %v8875 = vadd.f32 %v8708, %v8874
        %8876 = vmatmul.f32.gmra.mxu0 %v8765
        %v8877 = vpop.f32.mrf.mxu0
        %v8878 = vadd.f32 %v8708, %v8877
        %8879 = vmatmul.f32.gmra.mxu0 %v8768
        %v8880 = vpop.f32.mrf.mxu0
        %v8881 = vadd.f32 %v8708, %v8880
        %8882 = vmatmul.f32.gmra.mxu0 %v8771
        %v8883 = vpop.f32.mrf.mxu0
        %v8884 = vadd.f32 %v8708, %v8883
        %8885 = vmatmul.f32.gmra.mxu0 %v8774
        %v8886 = vpop.f32.mrf.mxu0
        %v8887 = vadd.f32 %v8708, %v8886
        %8888 = vmatmul.f32.gmra.mxu0 %v8777
        %v8889 = vpop.f32.mrf.mxu0
        %v8890 = vadd.f32 %v8708, %v8889
        %8891 = vmatmul.f32.gmra.mxu0 %v8780
        %v8892 = vpop.f32.mrf.mxu0
        %v8893 = vadd.f32 %v8708, %v8892
        %8894 = vmatmul.f32.gmra.mxu0 %v8783
        %v8895 = vpop.f32.mrf.mxu0
        %v8896 = vadd.f32 %v8708, %v8895
        %8897 = vmatmul.f32.gmra.mxu0 %v8786
        %v8898 = vpop.f32.mrf.mxu0
        %v8899 = vadd.f32 %v8708, %v8898
        %8900 = vmatmul.f32.gmra.mxu0 %v8789
        %v8901 = vpop.f32.mrf.mxu0
        %v8902 = vadd.f32 %v8708, %v8901
        %8903 = vmatmul.f32.gmra.mxu0 %v8792
        %v8904 = vpop.f32.mrf.mxu0
        %v8905 = vadd.f32 %v8708, %v8904
        %8906 = vmatmul.f32.gmra.mxu0 %v8795
        %v8907 = vpop.f32.mrf.mxu0
        %v8908 = vadd.f32 %v8708, %v8907
        %8909 = vmatmul.f32.gmra.mxu0 %v8798
        %v8910 = vpop.f32.mrf.mxu0
        %v8911 = vadd.f32 %v8708, %v8910
        %8912 = vmatmul.f32.gmra.mxu0 %v8801
        %v8913 = vpop.f32.mrf.mxu0
        %v8914 = vadd.f32 %v8708, %v8913
        %8915 = vmatmul.f32.gmra.mxu0 %v8804
        %v8916 = vpop.f32.mrf.mxu0
        %v8917 = vadd.f32 %v8708, %v8916
        %8918 = vdwg.mxu0
        %v8919 = vadd.f32 %v356, %v8824
        %v8920 = vadd.f32 %v357, %v8827
        %v8921 = vadd.f32 %v358, %v8830
        %v8922 = vadd.f32 %v359, %v8833
        %v8923 = vadd.f32 %v360, %v8836
        %v8924 = vadd.f32 %v361, %v8839
        %v8925 = vadd.f32 %v362, %v8842
        %v8926 = vadd.f32 %v363, %v8845
        %v8927 = vadd.f32 %v364, %v8848
        %v8928 = vadd.f32 %v365, %v8851
        %v8929 = vadd.f32 %v366, %v8854
        %v8930 = vadd.f32 %v367, %v8857
        %v8931 = vadd.f32 %v368, %v8860
        %v8932 = vadd.f32 %v369, %v8863
        %v8933 = vadd.f32 %v370, %v8866
        %v8934 = vadd.f32 %v371, %v8869
        %v8935 = vadd.f32 %v372, %v8872
        %v8936 = vadd.f32 %v373, %v8875
        %v8937 = vadd.f32 %v374, %v8878
        %v8938 = vadd.f32 %v375, %v8881
        %v8939 = vadd.f32 %v376, %v8884
        %v8940 = vadd.f32 %v377, %v8887
        %v8941 = vadd.f32 %v378, %v8890
        %v8942 = vadd.f32 %v379, %v8893
        %v8943 = vadd.f32 %v380, %v8896
        %v8944 = vadd.f32 %v381, %v8899
        %v8945 = vadd.f32 %v382, %v8902
        %v8946 = vadd.f32 %v383, %v8905
        %v8947 = vadd.f32 %v384, %v8908
        %v8948 = vadd.f32 %v385, %v8911
        %v8949 = vadd.f32 %v386, %v8914
        %v8950 = vadd.f32 %v387, %v8917
        %v8951 = vsel %vm388, %v8919, 0.0
        %8952 = vadd.xlane.f32.xlu0 %v8951
        %v8953 = vpop.xlane.xlu0 %8952
        %v8954 = vsel %vm388, %v8920, 0.0
        %8955 = vadd.xlane.f32.xlu0 %v8954
        %v8956 = vpop.xlane.xlu0 %8955
        %v8957 = vsel %vm388, %v8921, 0.0
        %8958 = vadd.xlane.f32.xlu0 %v8957
        %v8959 = vpop.xlane.xlu0 %8958
        %v8960 = vsel %vm388, %v8922, 0.0
        %8961 = vadd.xlane.f32.xlu0 %v8960
        %v8962 = vpop.xlane.xlu0 %8961
        %v8963 = vsel %vm388, %v8923, 0.0
        %8964 = vadd.xlane.f32.xlu0 %v8963
        %v8965 = vpop.xlane.xlu0 %8964
        %v8966 = vsel %vm388, %v8924, 0.0
        %8967 = vadd.xlane.f32.xlu0 %v8966
        %v8968 = vpop.xlane.xlu0 %8967
        %v8969 = vsel %vm388, %v8925, 0.0
        %8970 = vadd.xlane.f32.xlu0 %v8969
        %v8971 = vpop.xlane.xlu0 %8970
        %v8972 = vsel %vm388, %v8926, 0.0
        %8973 = vadd.xlane.f32.xlu0 %v8972
        %v8974 = vpop.xlane.xlu0 %8973
        %v8975 = vsel %vm388, %v8927, 0.0
        %8976 = vadd.xlane.f32.xlu0 %v8975
        %v8977 = vpop.xlane.xlu0 %8976
        %v8978 = vsel %vm388, %v8928, 0.0
        %8979 = vadd.xlane.f32.xlu0 %v8978
        %v8980 = vpop.xlane.xlu0 %8979
        %v8981 = vsel %vm388, %v8929, 0.0
        %8982 = vadd.xlane.f32.xlu0 %v8981
        %v8983 = vpop.xlane.xlu0 %8982
        %v8984 = vsel %vm388, %v8930, 0.0
        %8985 = vadd.xlane.f32.xlu0 %v8984
        %v8986 = vpop.xlane.xlu0 %8985
        %v8987 = vsel %vm388, %v8931, 0.0
        %8988 = vadd.xlane.f32.xlu0 %v8987
        %v8989 = vpop.xlane.xlu0 %8988
        %v8990 = vsel %vm388, %v8932, 0.0
        %8991 = vadd.xlane.f32.xlu0 %v8990
        %v8992 = vpop.xlane.xlu0 %8991
        %v8993 = vsel %vm388, %v8933, 0.0
        %8994 = vadd.xlane.f32.xlu0 %v8993
        %v8995 = vpop.xlane.xlu0 %8994
        %v8996 = vsel %vm388, %v8934, 0.0
        %8997 = vadd.xlane.f32.xlu0 %v8996
        %v8998 = vpop.xlane.xlu0 %8997
        %v8999 = vsel %vm388, %v8935, 0.0
        %9000 = vadd.xlane.f32.xlu0 %v8999
        %v9001 = vpop.xlane.xlu0 %9000
        %v9002 = vsel %vm388, %v8936, 0.0
        %9003 = vadd.xlane.f32.xlu0 %v9002
        %v9004 = vpop.xlane.xlu0 %9003
        %v9005 = vsel %vm388, %v8937, 0.0
        %9006 = vadd.xlane.f32.xlu0 %v9005
        %v9007 = vpop.xlane.xlu0 %9006
        %v9008 = vsel %vm388, %v8938, 0.0
        %9009 = vadd.xlane.f32.xlu0 %v9008
        %v9010 = vpop.xlane.xlu0 %9009
        %v9011 = vsel %vm388, %v8939, 0.0
        %9012 = vadd.xlane.f32.xlu0 %v9011
        %v9013 = vpop.xlane.xlu0 %9012
        %v9014 = vsel %vm388, %v8940, 0.0
        %9015 = vadd.xlane.f32.xlu0 %v9014
        %v9016 = vpop.xlane.xlu0 %9015
        %v9017 = vsel %vm388, %v8941, 0.0
        %9018 = vadd.xlane.f32.xlu0 %v9017
        %v9019 = vpop.xlane.xlu0 %9018
        %v9020 = vsel %vm388, %v8942, 0.0
        %9021 = vadd.xlane.f32.xlu0 %v9020
        %v9022 = vpop.xlane.xlu0 %9021
        %v9023 = vsel %vm388, %v8943, 0.0
        %9024 = vadd.xlane.f32.xlu0 %v9023
        %v9025 = vpop.xlane.xlu0 %9024
        %v9026 = vsel %vm388, %v8944, 0.0
        %9027 = vadd.xlane.f32.xlu0 %v9026
        %v9028 = vpop.xlane.xlu0 %9027
        %v9029 = vsel %vm388, %v8945, 0.0
        %9030 = vadd.xlane.f32.xlu0 %v9029
        %v9031 = vpop.xlane.xlu0 %9030
        %v9032 = vsel %vm388, %v8946, 0.0
        %9033 = vadd.xlane.f32.xlu0 %v9032
        %v9034 = vpop.xlane.xlu0 %9033
        %v9035 = vsel %vm388, %v8947, 0.0
        %9036 = vadd.xlane.f32.xlu0 %v9035
        %v9037 = vpop.xlane.xlu0 %9036
        %v9038 = vsel %vm388, %v8948, 0.0
        %9039 = vadd.xlane.f32.xlu0 %v9038
        %v9040 = vpop.xlane.xlu0 %9039
        %v9041 = vsel %vm388, %v8949, 0.0
        %9042 = vadd.xlane.f32.xlu0 %v9041
        %v9043 = vpop.xlane.xlu0 %9042
        %v9044 = vsel %vm388, %v8950, 0.0
        %9045 = vadd.xlane.f32.xlu0 %v9044
        %v9046 = vpop.xlane.xlu0 %9045
        %v9047 = vmul.f32 %v8953, %v491
        %v9048 = vmul.f32 %v8956, %v491
        %v9049 = vmul.f32 %v8959, %v491
        %v9050 = vmul.f32 %v8962, %v491
        %v9051 = vmul.f32 %v8965, %v491
        %v9052 = vmul.f32 %v8968, %v491
        %v9053 = vmul.f32 %v8971, %v491
        %v9054 = vmul.f32 %v8974, %v491
        %v9055 = vmul.f32 %v8977, %v491
        %v9056 = vmul.f32 %v8980, %v491
        %v9057 = vmul.f32 %v8983, %v491
        %v9058 = vmul.f32 %v8986, %v491
        %v9059 = vmul.f32 %v8989, %v491
        %v9060 = vmul.f32 %v8992, %v491
        %v9061 = vmul.f32 %v8995, %v491
        %v9062 = vmul.f32 %v8998, %v491
        %v9063 = vmul.f32 %v9001, %v491
        %v9064 = vmul.f32 %v9004, %v491
        %v9065 = vmul.f32 %v9007, %v491
        %v9066 = vmul.f32 %v9010, %v491
        %v9067 = vmul.f32 %v9013, %v491
        %v9068 = vmul.f32 %v9016, %v491
        %v9069 = vmul.f32 %v9019, %v491
        %v9070 = vmul.f32 %v9022, %v491
        %v9071 = vmul.f32 %v9025, %v491
        %v9072 = vmul.f32 %v9028, %v491
        %v9073 = vmul.f32 %v9031, %v491
        %v9074 = vmul.f32 %v9034, %v491
        %v9075 = vmul.f32 %v9037, %v491
        %v9076 = vmul.f32 %v9040, %v491
        %v9077 = vmul.f32 %v9043, %v491
        %v9078 = vmul.f32 %v9046, %v491
        %v9079 = vsub.f32 %v8919, %v9047
        %v9080 = vsub.f32 %v8920, %v9048
        %v9081 = vsub.f32 %v8921, %v9049
        %v9082 = vsub.f32 %v8922, %v9050
        %v9083 = vsub.f32 %v8923, %v9051
        %v9084 = vsub.f32 %v8924, %v9052
        %v9085 = vsub.f32 %v8925, %v9053
        %v9086 = vsub.f32 %v8926, %v9054
        %v9087 = vsub.f32 %v8927, %v9055
        %v9088 = vsub.f32 %v8928, %v9056
        %v9089 = vsub.f32 %v8929, %v9057
        %v9090 = vsub.f32 %v8930, %v9058
        %v9091 = vsub.f32 %v8931, %v9059
        %v9092 = vsub.f32 %v8932, %v9060
        %v9093 = vsub.f32 %v8933, %v9061
        %v9094 = vsub.f32 %v8934, %v9062
        %v9095 = vsub.f32 %v8935, %v9063
        %v9096 = vsub.f32 %v8936, %v9064
        %v9097 = vsub.f32 %v8937, %v9065
        %v9098 = vsub.f32 %v8938, %v9066
        %v9099 = vsub.f32 %v8939, %v9067
        %v9100 = vsub.f32 %v8940, %v9068
        %v9101 = vsub.f32 %v8941, %v9069
        %v9102 = vsub.f32 %v8942, %v9070
        %v9103 = vsub.f32 %v8943, %v9071
        %v9104 = vsub.f32 %v8944, %v9072
        %v9105 = vsub.f32 %v8945, %v9073
        %v9106 = vsub.f32 %v8946, %v9074
        %v9107 = vsub.f32 %v8947, %v9075
        %v9108 = vsub.f32 %v8948, %v9076
        %v9109 = vsub.f32 %v8949, %v9077
        %v9110 = vsub.f32 %v8950, %v9078
        %v9111 = vmul.f32 %v9079, %v9079
        %v9112 = vmul.f32 %v9080, %v9080
        %v9113 = vmul.f32 %v9081, %v9081
        %v9114 = vmul.f32 %v9082, %v9082
        %v9115 = vmul.f32 %v9083, %v9083
        %v9116 = vmul.f32 %v9084, %v9084
        %v9117 = vmul.f32 %v9085, %v9085
        %v9118 = vmul.f32 %v9086, %v9086
        %v9119 = vmul.f32 %v9087, %v9087
        %v9120 = vmul.f32 %v9088, %v9088
        %v9121 = vmul.f32 %v9089, %v9089
        %v9122 = vmul.f32 %v9090, %v9090
        %v9123 = vmul.f32 %v9091, %v9091
        %v9124 = vmul.f32 %v9092, %v9092
        %v9125 = vmul.f32 %v9093, %v9093
        %v9126 = vmul.f32 %v9094, %v9094
        %v9127 = vmul.f32 %v9095, %v9095
        %v9128 = vmul.f32 %v9096, %v9096
        %v9129 = vmul.f32 %v9097, %v9097
        %v9130 = vmul.f32 %v9098, %v9098
        %v9131 = vmul.f32 %v9099, %v9099
        %v9132 = vmul.f32 %v9100, %v9100
        %v9133 = vmul.f32 %v9101, %v9101
        %v9134 = vmul.f32 %v9102, %v9102
        %v9135 = vmul.f32 %v9103, %v9103
        %v9136 = vmul.f32 %v9104, %v9104
        %v9137 = vmul.f32 %v9105, %v9105
        %v9138 = vmul.f32 %v9106, %v9106
        %v9139 = vmul.f32 %v9107, %v9107
        %v9140 = vmul.f32 %v9108, %v9108
        %v9141 = vmul.f32 %v9109, %v9109
        %v9142 = vmul.f32 %v9110, %v9110
        %v9143 = vsel %vm388, %v9111, 0.0
        %9144 = vadd.xlane.f32.xlu0 %v9143
        %v9145 = vpop.xlane.xlu0 %9144
        %v9146 = vsel %vm388, %v9112, 0.0
        %9147 = vadd.xlane.f32.xlu0 %v9146
        %v9148 = vpop.xlane.xlu0 %9147
        %v9149 = vsel %vm388, %v9113, 0.0
        %9150 = vadd.xlane.f32.xlu0 %v9149
        %v9151 = vpop.xlane.xlu0 %9150
        %v9152 = vsel %vm388, %v9114, 0.0
        %9153 = vadd.xlane.f32.xlu0 %v9152
        %v9154 = vpop.xlane.xlu0 %9153
        %v9155 = vsel %vm388, %v9115, 0.0
        %9156 = vadd.xlane.f32.xlu0 %v9155
        %v9157 = vpop.xlane.xlu0 %9156
        %v9158 = vsel %vm388, %v9116, 0.0
        %9159 = vadd.xlane.f32.xlu0 %v9158
        %v9160 = vpop.xlane.xlu0 %9159
        %v9161 = vsel %vm388, %v9117, 0.0
        %9162 = vadd.xlane.f32.xlu0 %v9161
        %v9163 = vpop.xlane.xlu0 %9162
        %v9164 = vsel %vm388, %v9118, 0.0
        %9165 = vadd.xlane.f32.xlu0 %v9164
        %v9166 = vpop.xlane.xlu0 %9165
        %v9167 = vsel %vm388, %v9119, 0.0
        %9168 = vadd.xlane.f32.xlu0 %v9167
        %v9169 = vpop.xlane.xlu0 %9168
        %v9170 = vsel %vm388, %v9120, 0.0
        %9171 = vadd.xlane.f32.xlu0 %v9170
        %v9172 = vpop.xlane.xlu0 %9171
        %v9173 = vsel %vm388, %v9121, 0.0
        %9174 = vadd.xlane.f32.xlu0 %v9173
        %v9175 = vpop.xlane.xlu0 %9174
        %v9176 = vsel %vm388, %v9122, 0.0
        %9177 = vadd.xlane.f32.xlu0 %v9176
        %v9178 = vpop.xlane.xlu0 %9177
        %v9179 = vsel %vm388, %v9123, 0.0
        %9180 = vadd.xlane.f32.xlu0 %v9179
        %v9181 = vpop.xlane.xlu0 %9180
        %v9182 = vsel %vm388, %v9124, 0.0
        %9183 = vadd.xlane.f32.xlu0 %v9182
        %v9184 = vpop.xlane.xlu0 %9183
        %v9185 = vsel %vm388, %v9125, 0.0
        %9186 = vadd.xlane.f32.xlu0 %v9185
        %v9187 = vpop.xlane.xlu0 %9186
        %v9188 = vsel %vm388, %v9126, 0.0
        %9189 = vadd.xlane.f32.xlu0 %v9188
        %v9190 = vpop.xlane.xlu0 %9189
        %v9191 = vsel %vm388, %v9127, 0.0
        %9192 = vadd.xlane.f32.xlu0 %v9191
        %v9193 = vpop.xlane.xlu0 %9192
        %v9194 = vsel %vm388, %v9128, 0.0
        %9195 = vadd.xlane.f32.xlu0 %v9194
        %v9196 = vpop.xlane.xlu0 %9195
        %v9197 = vsel %vm388, %v9129, 0.0
        %9198 = vadd.xlane.f32.xlu0 %v9197
        %v9199 = vpop.xlane.xlu0 %9198
        %v9200 = vsel %vm388, %v9130, 0.0
        %9201 = vadd.xlane.f32.xlu0 %v9200
        %v9202 = vpop.xlane.xlu0 %9201
        %v9203 = vsel %vm388, %v9131, 0.0
        %9204 = vadd.xlane.f32.xlu0 %v9203
        %v9205 = vpop.xlane.xlu0 %9204
        %v9206 = vsel %vm388, %v9132, 0.0
        %9207 = vadd.xlane.f32.xlu0 %v9206
        %v9208 = vpop.xlane.xlu0 %9207
        %v9209 = vsel %vm388, %v9133, 0.0
        %9210 = vadd.xlane.f32.xlu0 %v9209
        %v9211 = vpop.xlane.xlu0 %9210
        %v9212 = vsel %vm388, %v9134, 0.0
        %9213 = vadd.xlane.f32.xlu0 %v9212
        %v9214 = vpop.xlane.xlu0 %9213
        %v9215 = vsel %vm388, %v9135, 0.0
        %9216 = vadd.xlane.f32.xlu0 %v9215
        %v9217 = vpop.xlane.xlu0 %9216
        %v9218 = vsel %vm388, %v9136, 0.0
        %9219 = vadd.xlane.f32.xlu0 %v9218
        %v9220 = vpop.xlane.xlu0 %9219
        %v9221 = vsel %vm388, %v9137, 0.0
        %9222 = vadd.xlane.f32.xlu0 %v9221
        %v9223 = vpop.xlane.xlu0 %9222
        %v9224 = vsel %vm388, %v9138, 0.0
        %9225 = vadd.xlane.f32.xlu0 %v9224
        %v9226 = vpop.xlane.xlu0 %9225
        %v9227 = vsel %vm388, %v9139, 0.0
        %9228 = vadd.xlane.f32.xlu0 %v9227
        %v9229 = vpop.xlane.xlu0 %9228
        %v9230 = vsel %vm388, %v9140, 0.0
        %9231 = vadd.xlane.f32.xlu0 %v9230
        %v9232 = vpop.xlane.xlu0 %9231
        %v9233 = vsel %vm388, %v9141, 0.0
        %9234 = vadd.xlane.f32.xlu0 %v9233
        %v9235 = vpop.xlane.xlu0 %9234
        %v9236 = vsel %vm388, %v9142, 0.0
        %9237 = vadd.xlane.f32.xlu0 %v9236
        %v9238 = vpop.xlane.xlu0 %9237
        %v9239 = vmul.f32 %v9145, %v491
        %v9240 = vmul.f32 %v9148, %v491
        %v9241 = vmul.f32 %v9151, %v491
        %v9242 = vmul.f32 %v9154, %v491
        %v9243 = vmul.f32 %v9157, %v491
        %v9244 = vmul.f32 %v9160, %v491
        %v9245 = vmul.f32 %v9163, %v491
        %v9246 = vmul.f32 %v9166, %v491
        %v9247 = vmul.f32 %v9169, %v491
        %v9248 = vmul.f32 %v9172, %v491
        %v9249 = vmul.f32 %v9175, %v491
        %v9250 = vmul.f32 %v9178, %v491
        %v9251 = vmul.f32 %v9181, %v491
        %v9252 = vmul.f32 %v9184, %v491
        %v9253 = vmul.f32 %v9187, %v491
        %v9254 = vmul.f32 %v9190, %v491
        %v9255 = vmul.f32 %v9193, %v491
        %v9256 = vmul.f32 %v9196, %v491
        %v9257 = vmul.f32 %v9199, %v491
        %v9258 = vmul.f32 %v9202, %v491
        %v9259 = vmul.f32 %v9205, %v491
        %v9260 = vmul.f32 %v9208, %v491
        %v9261 = vmul.f32 %v9211, %v491
        %v9262 = vmul.f32 %v9214, %v491
        %v9263 = vmul.f32 %v9217, %v491
        %v9264 = vmul.f32 %v9220, %v491
        %v9265 = vmul.f32 %v9223, %v491
        %v9266 = vmul.f32 %v9226, %v491
        %v9267 = vmul.f32 %v9229, %v491
        %v9268 = vmul.f32 %v9232, %v491
        %v9269 = vmul.f32 %v9235, %v491
        %v9270 = vmul.f32 %v9238, %v491
        %v9271 = vadd.f32 %v9239, 1e-05
        %v9272 = vadd.f32 %v9240, 1e-05
        %v9273 = vadd.f32 %v9241, 1e-05
        %v9274 = vadd.f32 %v9242, 1e-05
        %v9275 = vadd.f32 %v9243, 1e-05
        %v9276 = vadd.f32 %v9244, 1e-05
        %v9277 = vadd.f32 %v9245, 1e-05
        %v9278 = vadd.f32 %v9246, 1e-05
        %v9279 = vadd.f32 %v9247, 1e-05
        %v9280 = vadd.f32 %v9248, 1e-05
        %v9281 = vadd.f32 %v9249, 1e-05
        %v9282 = vadd.f32 %v9250, 1e-05
        %v9283 = vadd.f32 %v9251, 1e-05
        %v9284 = vadd.f32 %v9252, 1e-05
        %v9285 = vadd.f32 %v9253, 1e-05
        %v9286 = vadd.f32 %v9254, 1e-05
        %v9287 = vadd.f32 %v9255, 1e-05
        %v9288 = vadd.f32 %v9256, 1e-05
        %v9289 = vadd.f32 %v9257, 1e-05
        %v9290 = vadd.f32 %v9258, 1e-05
        %v9291 = vadd.f32 %v9259, 1e-05
        %v9292 = vadd.f32 %v9260, 1e-05
        %v9293 = vadd.f32 %v9261, 1e-05
        %v9294 = vadd.f32 %v9262, 1e-05
        %v9295 = vadd.f32 %v9263, 1e-05
        %v9296 = vadd.f32 %v9264, 1e-05
        %v9297 = vadd.f32 %v9265, 1e-05
        %v9298 = vadd.f32 %v9266, 1e-05
        %v9299 = vadd.f32 %v9267, 1e-05
        %v9300 = vadd.f32 %v9268, 1e-05
        %v9301 = vadd.f32 %v9269, 1e-05
        %v9302 = vadd.f32 %v9270, 1e-05
        %v9303 = vrsqrt.pop %v9271
        %v9304 = vmul.f32 %v9303, %v9271
        %v9305 = vmul.f32 %v9304, %v9303
        %v9306 = vmul.f32 0.5, %v9305
        %v9307 = vsub.f32 1.5, %v9306
        %v9308 = vmul.f32 %v9303, %v9307
        %vm9309 = vweird.f32 %v9271
        %vm9310 = vweird.f32 %v9303
        %vm9311 = vmor %vm9309, %vm9310
        %v9312 = vsel %vm9311, %v9303, %v9308
        %v9313 = vrsqrt.pop %v9272
        %v9314 = vmul.f32 %v9313, %v9272
        %v9315 = vmul.f32 %v9314, %v9313
        %v9316 = vmul.f32 0.5, %v9315
        %v9317 = vsub.f32 1.5, %v9316
        %v9318 = vmul.f32 %v9313, %v9317
        %vm9319 = vweird.f32 %v9272
        %vm9320 = vweird.f32 %v9313
        %vm9321 = vmor %vm9319, %vm9320
        %v9322 = vsel %vm9321, %v9313, %v9318
        %v9323 = vrsqrt.pop %v9273
        %v9324 = vmul.f32 %v9323, %v9273
        %v9325 = vmul.f32 %v9324, %v9323
        %v9326 = vmul.f32 0.5, %v9325
        %v9327 = vsub.f32 1.5, %v9326
        %v9328 = vmul.f32 %v9323, %v9327
        %vm9329 = vweird.f32 %v9273
        %vm9330 = vweird.f32 %v9323
        %vm9331 = vmor %vm9329, %vm9330
        %v9332 = vsel %vm9331, %v9323, %v9328
        %v9333 = vrsqrt.pop %v9274
        %v9334 = vmul.f32 %v9333, %v9274
        %v9335 = vmul.f32 %v9334, %v9333
        %v9336 = vmul.f32 0.5, %v9335
        %v9337 = vsub.f32 1.5, %v9336
        %v9338 = vmul.f32 %v9333, %v9337
        %vm9339 = vweird.f32 %v9274
        %vm9340 = vweird.f32 %v9333
        %vm9341 = vmor %vm9339, %vm9340
        %v9342 = vsel %vm9341, %v9333, %v9338
        %v9343 = vrsqrt.pop %v9275
        %v9344 = vmul.f32 %v9343, %v9275
        %v9345 = vmul.f32 %v9344, %v9343
        %v9346 = vmul.f32 0.5, %v9345
        %v9347 = vsub.f32 1.5, %v9346
        %v9348 = vmul.f32 %v9343, %v9347
        %vm9349 = vweird.f32 %v9275
        %vm9350 = vweird.f32 %v9343
        %vm9351 = vmor %vm9349, %vm9350
        %v9352 = vsel %vm9351, %v9343, %v9348
        %v9353 = vrsqrt.pop %v9276
        %v9354 = vmul.f32 %v9353, %v9276
        %v9355 = vmul.f32 %v9354, %v9353
        %v9356 = vmul.f32 0.5, %v9355
        %v9357 = vsub.f32 1.5, %v9356
        %v9358 = vmul.f32 %v9353, %v9357
        %vm9359 = vweird.f32 %v9276
        %vm9360 = vweird.f32 %v9353
        %vm9361 = vmor %vm9359, %vm9360
        %v9362 = vsel %vm9361, %v9353, %v9358
        %v9363 = vrsqrt.pop %v9277
        %v9364 = vmul.f32 %v9363, %v9277
        %v9365 = vmul.f32 %v9364, %v9363
        %v9366 = vmul.f32 0.5, %v9365
        %v9367 = vsub.f32 1.5, %v9366
        %v9368 = vmul.f32 %v9363, %v9367
        %vm9369 = vweird.f32 %v9277
        %vm9370 = vweird.f32 %v9363
        %vm9371 = vmor %vm9369, %vm9370
        %v9372 = vsel %vm9371, %v9363, %v9368
        %v9373 = vrsqrt.pop %v9278
        %v9374 = vmul.f32 %v9373, %v9278
        %v9375 = vmul.f32 %v9374, %v9373
        %v9376 = vmul.f32 0.5, %v9375
        %v9377 = vsub.f32 1.5, %v9376
        %v9378 = vmul.f32 %v9373, %v9377
        %vm9379 = vweird.f32 %v9278
        %vm9380 = vweird.f32 %v9373
        %vm9381 = vmor %vm9379, %vm9380
        %v9382 = vsel %vm9381, %v9373, %v9378
        %v9383 = vrsqrt.pop %v9279
        %v9384 = vmul.f32 %v9383, %v9279
        %v9385 = vmul.f32 %v9384, %v9383
        %v9386 = vmul.f32 0.5, %v9385
        %v9387 = vsub.f32 1.5, %v9386
        %v9388 = vmul.f32 %v9383, %v9387
        %vm9389 = vweird.f32 %v9279
        %vm9390 = vweird.f32 %v9383
        %vm9391 = vmor %vm9389, %vm9390
        %v9392 = vsel %vm9391, %v9383, %v9388
        %v9393 = vrsqrt.pop %v9280
        %v9394 = vmul.f32 %v9393, %v9280
        %v9395 = vmul.f32 %v9394, %v9393
        %v9396 = vmul.f32 0.5, %v9395
        %v9397 = vsub.f32 1.5, %v9396
        %v9398 = vmul.f32 %v9393, %v9397
        %vm9399 = vweird.f32 %v9280
        %vm9400 = vweird.f32 %v9393
        %vm9401 = vmor %vm9399, %vm9400
        %v9402 = vsel %vm9401, %v9393, %v9398
        %v9403 = vrsqrt.pop %v9281
        %v9404 = vmul.f32 %v9403, %v9281
        %v9405 = vmul.f32 %v9404, %v9403
        %v9406 = vmul.f32 0.5, %v9405
        %v9407 = vsub.f32 1.5, %v9406
        %v9408 = vmul.f32 %v9403, %v9407
        %vm9409 = vweird.f32 %v9281
        %vm9410 = vweird.f32 %v9403
        %vm9411 = vmor %vm9409, %vm9410
        %v9412 = vsel %vm9411, %v9403, %v9408
        %v9413 = vrsqrt.pop %v9282
        %v9414 = vmul.f32 %v9413, %v9282
        %v9415 = vmul.f32 %v9414, %v9413
        %v9416 = vmul.f32 0.5, %v9415
        %v9417 = vsub.f32 1.5, %v9416
        %v9418 = vmul.f32 %v9413, %v9417
        %vm9419 = vweird.f32 %v9282
        %vm9420 = vweird.f32 %v9413
        %vm9421 = vmor %vm9419, %vm9420
        %v9422 = vsel %vm9421, %v9413, %v9418
        %v9423 = vrsqrt.pop %v9283
        %v9424 = vmul.f32 %v9423, %v9283
        %v9425 = vmul.f32 %v9424, %v9423
        %v9426 = vmul.f32 0.5, %v9425
        %v9427 = vsub.f32 1.5, %v9426
        %v9428 = vmul.f32 %v9423, %v9427
        %vm9429 = vweird.f32 %v9283
        %vm9430 = vweird.f32 %v9423
        %vm9431 = vmor %vm9429, %vm9430
        %v9432 = vsel %vm9431, %v9423, %v9428
        %v9433 = vrsqrt.pop %v9284
        %v9434 = vmul.f32 %v9433, %v9284
        %v9435 = vmul.f32 %v9434, %v9433
        %v9436 = vmul.f32 0.5, %v9435
        %v9437 = vsub.f32 1.5, %v9436
        %v9438 = vmul.f32 %v9433, %v9437
        %vm9439 = vweird.f32 %v9284
        %vm9440 = vweird.f32 %v9433
        %vm9441 = vmor %vm9439, %vm9440
        %v9442 = vsel %vm9441, %v9433, %v9438
        %v9443 = vrsqrt.pop %v9285
        %v9444 = vmul.f32 %v9443, %v9285
        %v9445 = vmul.f32 %v9444, %v9443
        %v9446 = vmul.f32 0.5, %v9445
        %v9447 = vsub.f32 1.5, %v9446
        %v9448 = vmul.f32 %v9443, %v9447
        %vm9449 = vweird.f32 %v9285
        %vm9450 = vweird.f32 %v9443
        %vm9451 = vmor %vm9449, %vm9450
        %v9452 = vsel %vm9451, %v9443, %v9448
        %v9453 = vrsqrt.pop %v9286
        %v9454 = vmul.f32 %v9453, %v9286
        %v9455 = vmul.f32 %v9454, %v9453
        %v9456 = vmul.f32 0.5, %v9455
        %v9457 = vsub.f32 1.5, %v9456
        %v9458 = vmul.f32 %v9453, %v9457
        %vm9459 = vweird.f32 %v9286
        %vm9460 = vweird.f32 %v9453
        %vm9461 = vmor %vm9459, %vm9460
        %v9462 = vsel %vm9461, %v9453, %v9458
        %v9463 = vrsqrt.pop %v9287
        %v9464 = vmul.f32 %v9463, %v9287
        %v9465 = vmul.f32 %v9464, %v9463
        %v9466 = vmul.f32 0.5, %v9465
        %v9467 = vsub.f32 1.5, %v9466
        %v9468 = vmul.f32 %v9463, %v9467
        %vm9469 = vweird.f32 %v9287
        %vm9470 = vweird.f32 %v9463
        %vm9471 = vmor %vm9469, %vm9470
        %v9472 = vsel %vm9471, %v9463, %v9468
        %v9473 = vrsqrt.pop %v9288
        %v9474 = vmul.f32 %v9473, %v9288
        %v9475 = vmul.f32 %v9474, %v9473
        %v9476 = vmul.f32 0.5, %v9475
        %v9477 = vsub.f32 1.5, %v9476
        %v9478 = vmul.f32 %v9473, %v9477
        %vm9479 = vweird.f32 %v9288
        %vm9480 = vweird.f32 %v9473
        %vm9481 = vmor %vm9479, %vm9480
        %v9482 = vsel %vm9481, %v9473, %v9478
        %v9483 = vrsqrt.pop %v9289
        %v9484 = vmul.f32 %v9483, %v9289
        %v9485 = vmul.f32 %v9484, %v9483
        %v9486 = vmul.f32 0.5, %v9485
        %v9487 = vsub.f32 1.5, %v9486
        %v9488 = vmul.f32 %v9483, %v9487
        %vm9489 = vweird.f32 %v9289
        %vm9490 = vweird.f32 %v9483
        %vm9491 = vmor %vm9489, %vm9490
        %v9492 = vsel %vm9491, %v9483, %v9488
        %v9493 = vrsqrt.pop %v9290
        %v9494 = vmul.f32 %v9493, %v9290
        %v9495 = vmul.f32 %v9494, %v9493
        %v9496 = vmul.f32 0.5, %v9495
        %v9497 = vsub.f32 1.5, %v9496
        %v9498 = vmul.f32 %v9493, %v9497
        %vm9499 = vweird.f32 %v9290
        %vm9500 = vweird.f32 %v9493
        %vm9501 = vmor %vm9499, %vm9500
        %v9502 = vsel %vm9501, %v9493, %v9498
        %v9503 = vrsqrt.pop %v9291
        %v9504 = vmul.f32 %v9503, %v9291
        %v9505 = vmul.f32 %v9504, %v9503
        %v9506 = vmul.f32 0.5, %v9505
        %v9507 = vsub.f32 1.5, %v9506
        %v9508 = vmul.f32 %v9503, %v9507
        %vm9509 = vweird.f32 %v9291
        %vm9510 = vweird.f32 %v9503
        %vm9511 = vmor %vm9509, %vm9510
        %v9512 = vsel %vm9511, %v9503, %v9508
        %v9513 = vrsqrt.pop %v9292
        %v9514 = vmul.f32 %v9513, %v9292
        %v9515 = vmul.f32 %v9514, %v9513
        %v9516 = vmul.f32 0.5, %v9515
        %v9517 = vsub.f32 1.5, %v9516
        %v9518 = vmul.f32 %v9513, %v9517
        %vm9519 = vweird.f32 %v9292
        %vm9520 = vweird.f32 %v9513
        %vm9521 = vmor %vm9519, %vm9520
        %v9522 = vsel %vm9521, %v9513, %v9518
        %v9523 = vrsqrt.pop %v9293
        %v9524 = vmul.f32 %v9523, %v9293
        %v9525 = vmul.f32 %v9524, %v9523
        %v9526 = vmul.f32 0.5, %v9525
        %v9527 = vsub.f32 1.5, %v9526
        %v9528 = vmul.f32 %v9523, %v9527
        %vm9529 = vweird.f32 %v9293
        %vm9530 = vweird.f32 %v9523
        %vm9531 = vmor %vm9529, %vm9530
        %v9532 = vsel %vm9531, %v9523, %v9528
        %v9533 = vrsqrt.pop %v9294
        %v9534 = vmul.f32 %v9533, %v9294
        %v9535 = vmul.f32 %v9534, %v9533
        %v9536 = vmul.f32 0.5, %v9535
        %v9537 = vsub.f32 1.5, %v9536
        %v9538 = vmul.f32 %v9533, %v9537
        %vm9539 = vweird.f32 %v9294
        %vm9540 = vweird.f32 %v9533
        %vm9541 = vmor %vm9539, %vm9540
        %v9542 = vsel %vm9541, %v9533, %v9538
        %v9543 = vrsqrt.pop %v9295
        %v9544 = vmul.f32 %v9543, %v9295
        %v9545 = vmul.f32 %v9544, %v9543
        %v9546 = vmul.f32 0.5, %v9545
        %v9547 = vsub.f32 1.5, %v9546
        %v9548 = vmul.f32 %v9543, %v9547
        %vm9549 = vweird.f32 %v9295
        %vm9550 = vweird.f32 %v9543
        %vm9551 = vmor %vm9549, %vm9550
        %v9552 = vsel %vm9551, %v9543, %v9548
        %v9553 = vrsqrt.pop %v9296
        %v9554 = vmul.f32 %v9553, %v9296
        %v9555 = vmul.f32 %v9554, %v9553
        %v9556 = vmul.f32 0.5, %v9555
        %v9557 = vsub.f32 1.5, %v9556
        %v9558 = vmul.f32 %v9553, %v9557
        %vm9559 = vweird.f32 %v9296
        %vm9560 = vweird.f32 %v9553
        %vm9561 = vmor %vm9559, %vm9560
        %v9562 = vsel %vm9561, %v9553, %v9558
        %v9563 = vrsqrt.pop %v9297
        %v9564 = vmul.f32 %v9563, %v9297
        %v9565 = vmul.f32 %v9564, %v9563
        %v9566 = vmul.f32 0.5, %v9565
        %v9567 = vsub.f32 1.5, %v9566
        %v9568 = vmul.f32 %v9563, %v9567
        %vm9569 = vweird.f32 %v9297
        %vm9570 = vweird.f32 %v9563
        %vm9571 = vmor %vm9569, %vm9570
        %v9572 = vsel %vm9571, %v9563, %v9568
        %v9573 = vrsqrt.pop %v9298
        %v9574 = vmul.f32 %v9573, %v9298
        %v9575 = vmul.f32 %v9574, %v9573
        %v9576 = vmul.f32 0.5, %v9575
        %v9577 = vsub.f32 1.5, %v9576
        %v9578 = vmul.f32 %v9573, %v9577
        %vm9579 = vweird.f32 %v9298
        %vm9580 = vweird.f32 %v9573
        %vm9581 = vmor %vm9579, %vm9580
        %v9582 = vsel %vm9581, %v9573, %v9578
        %v9583 = vrsqrt.pop %v9299
        %v9584 = vmul.f32 %v9583, %v9299
        %v9585 = vmul.f32 %v9584, %v9583
        %v9586 = vmul.f32 0.5, %v9585
        %v9587 = vsub.f32 1.5, %v9586
        %v9588 = vmul.f32 %v9583, %v9587
        %vm9589 = vweird.f32 %v9299
        %vm9590 = vweird.f32 %v9583
        %vm9591 = vmor %vm9589, %vm9590
        %v9592 = vsel %vm9591, %v9583, %v9588
        %v9593 = vrsqrt.pop %v9300
        %v9594 = vmul.f32 %v9593, %v9300
        %v9595 = vmul.f32 %v9594, %v9593
        %v9596 = vmul.f32 0.5, %v9595
        %v9597 = vsub.f32 1.5, %v9596
        %v9598 = vmul.f32 %v9593, %v9597
        %vm9599 = vweird.f32 %v9300
        %vm9600 = vweird.f32 %v9593
        %vm9601 = vmor %vm9599, %vm9600
        %v9602 = vsel %vm9601, %v9593, %v9598
        %v9603 = vrsqrt.pop %v9301
        %v9604 = vmul.f32 %v9603, %v9301
        %v9605 = vmul.f32 %v9604, %v9603
        %v9606 = vmul.f32 0.5, %v9605
        %v9607 = vsub.f32 1.5, %v9606
        %v9608 = vmul.f32 %v9603, %v9607
        %vm9609 = vweird.f32 %v9301
        %vm9610 = vweird.f32 %v9603
        %vm9611 = vmor %vm9609, %vm9610
        %v9612 = vsel %vm9611, %v9603, %v9608
        %v9613 = vrsqrt.pop %v9302
        %v9614 = vmul.f32 %v9613, %v9302
        %v9615 = vmul.f32 %v9614, %v9613
        %v9616 = vmul.f32 0.5, %v9615
        %v9617 = vsub.f32 1.5, %v9616
        %v9618 = vmul.f32 %v9613, %v9617
        %vm9619 = vweird.f32 %v9302
        %vm9620 = vweird.f32 %v9613
        %vm9621 = vmor %vm9619, %vm9620
        %v9622 = vsel %vm9621, %v9613, %v9618
        %v9623 = vmul.f32 %v9079, %v9312
        %v9624 = vmul.f32 %v9080, %v9322
        %v9625 = vmul.f32 %v9081, %v9332
        %v9626 = vmul.f32 %v9082, %v9342
        %v9627 = vmul.f32 %v9083, %v9352
        %v9628 = vmul.f32 %v9084, %v9362
        %v9629 = vmul.f32 %v9085, %v9372
        %v9630 = vmul.f32 %v9086, %v9382
        %v9631 = vmul.f32 %v9087, %v9392
        %v9632 = vmul.f32 %v9088, %v9402
        %v9633 = vmul.f32 %v9089, %v9412
        %v9634 = vmul.f32 %v9090, %v9422
        %v9635 = vmul.f32 %v9091, %v9432
        %v9636 = vmul.f32 %v9092, %v9442
        %v9637 = vmul.f32 %v9093, %v9452
        %v9638 = vmul.f32 %v9094, %v9462
        %v9639 = vmul.f32 %v9095, %v9472
        %v9640 = vmul.f32 %v9096, %v9482
        %v9641 = vmul.f32 %v9097, %v9492
        %v9642 = vmul.f32 %v9098, %v9502
        %v9643 = vmul.f32 %v9099, %v9512
        %v9644 = vmul.f32 %v9100, %v9522
        %v9645 = vmul.f32 %v9101, %v9532
        %v9646 = vmul.f32 %v9102, %v9542
        %v9647 = vmul.f32 %v9103, %v9552
        %v9648 = vmul.f32 %v9104, %v9562
        %v9649 = vmul.f32 %v9105, %v9572
        %v9650 = vmul.f32 %v9106, %v9582
        %v9651 = vmul.f32 %v9107, %v9592
        %v9652 = vmul.f32 %v9108, %v9602
        %v9653 = vmul.f32 %v9109, %v9612
        %v9654 = vmul.f32 %v9110, %v9622
        %v9655 = vld [vmem:[%s5] sm:$0xff]
        %v9656 = vld [vmem:[%s5 + $0x8] sm:$0xff]
        %v9657 = vld [vmem:[%s5 + $0x10] sm:$0xff]
        %v9658 = vld [vmem:[%s5 + $0x18] sm:$0xff]
        %v9659 = vld [vmem:[%s5 + $0x20] sm:$0xff]
        %v9660 = vld [vmem:[%s5 + $0x28] sm:$0xff]
        %v9661 = vld [vmem:[%s5 + $0x30] sm:$0xff]
        %v9662 = vld [vmem:[%s5 + $0x38] sm:$0xff]
        %v9663 = vld [vmem:[%s5 + $0x40] sm:$0xff]
        %v9664 = vld [vmem:[%s5 + $0x48] sm:$0xff]
        %v9665 = vld [vmem:[%s5 + $0x50] sm:$0xff]
        %v9666 = vld [vmem:[%s5 + $0x58] sm:$0xff]
        %v9667 = vld [vmem:[%s5 + $0x60] sm:$0xff]
        %v9668 = vld [vmem:[%s5 + $0x68] sm:$0xff]
        %v9669 = vld [vmem:[%s5 + $0x70] sm:$0xff]
        %v9670 = vld [vmem:[%s5 + $0x78] sm:$0xff]
        %v9671 = vld [vmem:[%s6] sm:$0x3]
        %v9673 = vperm.slane %v9671, 0
        %v9674 = vperm.slane %v9671, 1
        %v9678 = vsel %vm388, %v9623, 0
        %v9681 = vsel %vm388, %v9624, 0
        %v9684 = vsel %vm388, %v9625, 0
        %v9687 = vsel %vm388, %v9626, 0
        %v9690 = vsel %vm388, %v9627, 0
        %v9693 = vsel %vm388, %v9628, 0
        %v9696 = vsel %vm388, %v9629, 0
        %v9699 = vsel %vm388, %v9630, 0
        %v9702 = vsel %vm388, %v9631, 0
        %v9705 = vsel %vm388, %v9632, 0
        %v9708 = vsel %vm388, %v9633, 0
        %v9711 = vsel %vm388, %v9634, 0
        %v9714 = vsel %vm388, %v9635, 0
        %v9717 = vsel %vm388, %v9636, 0
        %v9720 = vsel %vm388, %v9637, 0
        %v9723 = vsel %vm388, %v9638, 0
        %v9726 = vsel %vm388, %v9639, 0
        %v9729 = vsel %vm388, %v9640, 0
        %v9732 = vsel %vm388, %v9641, 0
        %v9735 = vsel %vm388, %v9642, 0
        %v9738 = vsel %vm388, %v9643, 0
        %v9741 = vsel %vm388, %v9644, 0
        %v9744 = vsel %vm388, %v9645, 0
        %v9747 = vsel %vm388, %v9646, 0
        %v9750 = vsel %vm388, %v9647, 0
        %v9753 = vsel %vm388, %v9648, 0
        %v9756 = vsel %vm388, %v9649, 0
        %v9759 = vsel %vm388, %v9650, 0
        %v9762 = vsel %vm388, %v9651, 0
        %v9765 = vsel %vm388, %v9652, 0
        %v9768 = vsel %vm388, %v9653, 0
        %v9771 = vsel %vm388, %v9654, 0
        %9773 = vmatpush.msra.mxu0 0.0
        %9774 = vmatpush.msra.mxu0 0.0
        %9775 = vmatpush.msra.mxu0 0.0
        %9776 = vmatpush.msra.mxu0 0.0
        %9777 = vmatpush.msra.mxu0 0.0
        %9778 = vmatpush.msra.mxu0 0.0
        %9779 = vmatpush.msra.mxu0 0.0
        %9780 = vmatpush.msra.mxu0 0.0
        %9781 = vmatpush.msra.mxu0 %v9669
        %9782 = vmatpush.msra.mxu0 %v9667
        %9783 = vmatpush.msra.mxu0 %v9665
        %9784 = vmatpush.msra.mxu0 %v9663
        %9785 = vmatpush.msra.mxu0 %v9661
        %9786 = vmatpush.msra.mxu0 %v9659
        %9787 = vmatpush.msra.mxu0 %v9657
        %9788 = vmatpush.msra.mxu0 %v9655
        %9789 = vmatmul.f32.gmra.mxu0 %v9678
        %v9790 = vpop.f32.mrf.mxu0
        %v9791 = vadd.f32 %v9673, %v9790
        %9792 = vmatmul.f32.gmra.mxu0 %v9681
        %v9793 = vpop.f32.mrf.mxu0
        %v9794 = vadd.f32 %v9673, %v9793
        %9795 = vmatmul.f32.gmra.mxu0 %v9684
        %v9796 = vpop.f32.mrf.mxu0
        %v9797 = vadd.f32 %v9673, %v9796
        %9798 = vmatmul.f32.gmra.mxu0 %v9687
        %v9799 = vpop.f32.mrf.mxu0
        %v9800 = vadd.f32 %v9673, %v9799
        %9801 = vmatmul.f32.gmra.mxu0 %v9690
        %v9802 = vpop.f32.mrf.mxu0
        %v9803 = vadd.f32 %v9673, %v9802
        %9804 = vmatmul.f32.gmra.mxu0 %v9693
        %v9805 = vpop.f32.mrf.mxu0
        %v9806 = vadd.f32 %v9673, %v9805
        %9807 = vmatmul.f32.gmra.mxu0 %v9696
        %v9808 = vpop.f32.mrf.mxu0
        %v9809 = vadd.f32 %v9673, %v9808
        %9810 = vmatmul.f32.gmra.mxu0 %v9699
        %v9811 = vpop.f32.mrf.mxu0
        %v9812 = vadd.f32 %v9673, %v9811
        %9813 = vmatmul.f32.gmra.mxu0 %v9702
        %v9814 = vpop.f32.mrf.mxu0
        %v9815 = vadd.f32 %v9673, %v9814
        %9816 = vmatmul.f32.gmra.mxu0 %v9705
        %v9817 = vpop.f32.mrf.mxu0
        %v9818 = vadd.f32 %v9673, %v9817
        %9819 = vmatmul.f32.gmra.mxu0 %v9708
        %v9820 = vpop.f32.mrf.mxu0
        %v9821 = vadd.f32 %v9673, %v9820
        %9822 = vmatmul.f32.gmra.mxu0 %v9711
        %v9823 = vpop.f32.mrf.mxu0
        %v9824 = vadd.f32 %v9673, %v9823
        %9825 = vmatmul.f32.gmra.mxu0 %v9714
        %v9826 = vpop.f32.mrf.mxu0
        %v9827 = vadd.f32 %v9673, %v9826
        %9828 = vmatmul.f32.gmra.mxu0 %v9717
        %v9829 = vpop.f32.mrf.mxu0
        %v9830 = vadd.f32 %v9673, %v9829
        %9831 = vmatmul.f32.gmra.mxu0 %v9720
        %v9832 = vpop.f32.mrf.mxu0
        %v9833 = vadd.f32 %v9673, %v9832
        %9834 = vmatmul.f32.gmra.mxu0 %v9723
        %v9835 = vpop.f32.mrf.mxu0
        %v9836 = vadd.f32 %v9673, %v9835
        %9837 = vmatmul.f32.gmra.mxu0 %v9726
        %v9838 = vpop.f32.mrf.mxu0
        %v9839 = vadd.f32 %v9673, %v9838
        %9840 = vmatmul.f32.gmra.mxu0 %v9729
        %v9841 = vpop.f32.mrf.mxu0
        %v9842 = vadd.f32 %v9673, %v9841
        %9843 = vmatmul.f32.gmra.mxu0 %v9732
        %v9844 = vpop.f32.mrf.mxu0
        %v9845 = vadd.f32 %v9673, %v9844
        %9846 = vmatmul.f32.gmra.mxu0 %v9735
        %v9847 = vpop.f32.mrf.mxu0
        %v9848 = vadd.f32 %v9673, %v9847
        %9849 = vmatmul.f32.gmra.mxu0 %v9738
        %v9850 = vpop.f32.mrf.mxu0
        %v9851 = vadd.f32 %v9673, %v9850
        %9852 = vmatmul.f32.gmra.mxu0 %v9741
        %v9853 = vpop.f32.mrf.mxu0
        %v9854 = vadd.f32 %v9673, %v9853
        %9855 = vmatmul.f32.gmra.mxu0 %v9744
        %v9856 = vpop.f32.mrf.mxu0
        %v9857 = vadd.f32 %v9673, %v9856
        %9858 = vmatmul.f32.gmra.mxu0 %v9747
        %v9859 = vpop.f32.mrf.mxu0
        %v9860 = vadd.f32 %v9673, %v9859
        %9861 = vmatmul.f32.gmra.mxu0 %v9750
        %v9862 = vpop.f32.mrf.mxu0
        %v9863 = vadd.f32 %v9673, %v9862
        %9864 = vmatmul.f32.gmra.mxu0 %v9753
        %v9865 = vpop.f32.mrf.mxu0
        %v9866 = vadd.f32 %v9673, %v9865
        %9867 = vmatmul.f32.gmra.mxu0 %v9756
        %v9868 = vpop.f32.mrf.mxu0
        %v9869 = vadd.f32 %v9673, %v9868
        %9870 = vmatmul.f32.gmra.mxu0 %v9759
        %v9871 = vpop.f32.mrf.mxu0
        %v9872 = vadd.f32 %v9673, %v9871
        %9873 = vmatmul.f32.gmra.mxu0 %v9762
        %v9874 = vpop.f32.mrf.mxu0
        %v9875 = vadd.f32 %v9673, %v9874
        %9876 = vmatmul.f32.gmra.mxu0 %v9765
        %v9877 = vpop.f32.mrf.mxu0
        %v9878 = vadd.f32 %v9673, %v9877
        %9879 = vmatmul.f32.gmra.mxu0 %v9768
        %v9880 = vpop.f32.mrf.mxu0
        %v9881 = vadd.f32 %v9673, %v9880
        %9882 = vmatmul.f32.gmra.mxu0 %v9771
        %v9883 = vpop.f32.mrf.mxu0
        %v9884 = vadd.f32 %v9673, %v9883
        %9885 = vdwg.mxu0
        %9886 = vmatpush.msra.mxu0 0.0
        %9887 = vmatpush.msra.mxu0 0.0
        %9888 = vmatpush.msra.mxu0 0.0
        %9889 = vmatpush.msra.mxu0 0.0
        %9890 = vmatpush.msra.mxu0 0.0
        %9891 = vmatpush.msra.mxu0 0.0
        %9892 = vmatpush.msra.mxu0 0.0
        %9893 = vmatpush.msra.mxu0 0.0
        %9894 = vmatpush.msra.mxu0 %v9670
        %9895 = vmatpush.msra.mxu0 %v9668
        %9896 = vmatpush.msra.mxu0 %v9666
        %9897 = vmatpush.msra.mxu0 %v9664
        %9898 = vmatpush.msra.mxu0 %v9662
        %9899 = vmatpush.msra.mxu0 %v9660
        %9900 = vmatpush.msra.mxu0 %v9658
        %9901 = vmatpush.msra.mxu0 %v9656
        %9902 = vmatmul.f32.gmra.mxu0 %v9678
        %v9903 = vpop.f32.mrf.mxu0
        %v9904 = vadd.f32 %v9674, %v9903
        %9905 = vmatmul.f32.gmra.mxu0 %v9681
        %v9906 = vpop.f32.mrf.mxu0
        %v9907 = vadd.f32 %v9674, %v9906
        %9908 = vmatmul.f32.gmra.mxu0 %v9684
        %v9909 = vpop.f32.mrf.mxu0
        %v9910 = vadd.f32 %v9674, %v9909
        %9911 = vmatmul.f32.gmra.mxu0 %v9687
        %v9912 = vpop.f32.mrf.mxu0
        %v9913 = vadd.f32 %v9674, %v9912
        %9914 = vmatmul.f32.gmra.mxu0 %v9690
        %v9915 = vpop.f32.mrf.mxu0
        %v9916 = vadd.f32 %v9674, %v9915
        %9917 = vmatmul.f32.gmra.mxu0 %v9693
        %v9918 = vpop.f32.mrf.mxu0
        %v9919 = vadd.f32 %v9674, %v9918
        %9920 = vmatmul.f32.gmra.mxu0 %v9696
        %v9921 = vpop.f32.mrf.mxu0
        %v9922 = vadd.f32 %v9674, %v9921
        %9923 = vmatmul.f32.gmra.mxu0 %v9699
        %v9924 = vpop.f32.mrf.mxu0
        %v9925 = vadd.f32 %v9674, %v9924
        %9926 = vmatmul.f32.gmra.mxu0 %v9702
        %v9927 = vpop.f32.mrf.mxu0
        %v9928 = vadd.f32 %v9674, %v9927
        %9929 = vmatmul.f32.gmra.mxu0 %v9705
        %v9930 = vpop.f32.mrf.mxu0
        %v9931 = vadd.f32 %v9674, %v9930
        %9932 = vmatmul.f32.gmra.mxu0 %v9708
        %v9933 = vpop.f32.mrf.mxu0
        %v9934 = vadd.f32 %v9674, %v9933
        %9935 = vmatmul.f32.gmra.mxu0 %v9711
        %v9936 = vpop.f32.mrf.mxu0
        %v9937 = vadd.f32 %v9674, %v9936
        %9938 = vmatmul.f32.gmra.mxu0 %v9714
        %v9939 = vpop.f32.mrf.mxu0
        %v9940 = vadd.f32 %v9674, %v9939
        %9941 = vmatmul.f32.gmra.mxu0 %v9717
        %v9942 = vpop.f32.mrf.mxu0
        %v9943 = vadd.f32 %v9674, %v9942
        %9944 = vmatmul.f32.gmra.mxu0 %v9720
        %v9945 = vpop.f32.mrf.mxu0
        %v9946 = vadd.f32 %v9674, %v9945
        %9947 = vmatmul.f32.gmra.mxu0 %v9723
        %v9948 = vpop.f32.mrf.mxu0
        %v9949 = vadd.f32 %v9674, %v9948
        %9950 = vmatmul.f32.gmra.mxu0 %v9726
        %v9951 = vpop.f32.mrf.mxu0
        %v9952 = vadd.f32 %v9674, %v9951
        %9953 = vmatmul.f32.gmra.mxu0 %v9729
        %v9954 = vpop.f32.mrf.mxu0
        %v9955 = vadd.f32 %v9674, %v9954
        %9956 = vmatmul.f32.gmra.mxu0 %v9732
        %v9957 = vpop.f32.mrf.mxu0
        %v9958 = vadd.f32 %v9674, %v9957
        %9959 = vmatmul.f32.gmra.mxu0 %v9735
        %v9960 = vpop.f32.mrf.mxu0
        %v9961 = vadd.f32 %v9674, %v9960
        %9962 = vmatmul.f32.gmra.mxu0 %v9738
        %v9963 = vpop.f32.mrf.mxu0
        %v9964 = vadd.f32 %v9674, %v9963
        %9965 = vmatmul.f32.gmra.mxu0 %v9741
        %v9966 = vpop.f32.mrf.mxu0
        %v9967 = vadd.f32 %v9674, %v9966
        %9968 = vmatmul.f32.gmra.mxu0 %v9744
        %v9969 = vpop.f32.mrf.mxu0
        %v9970 = vadd.f32 %v9674, %v9969
        %9971 = vmatmul.f32.gmra.mxu0 %v9747
        %v9972 = vpop.f32.mrf.mxu0
        %v9973 = vadd.f32 %v9674, %v9972
        %9974 = vmatmul.f32.gmra.mxu0 %v9750
        %v9975 = vpop.f32.mrf.mxu0
        %v9976 = vadd.f32 %v9674, %v9975
        %9977 = vmatmul.f32.gmra.mxu0 %v9753
        %v9978 = vpop.f32.mrf.mxu0
        %v9979 = vadd.f32 %v9674, %v9978
        %9980 = vmatmul.f32.gmra.mxu0 %v9756
        %v9981 = vpop.f32.mrf.mxu0
        %v9982 = vadd.f32 %v9674, %v9981
        %9983 = vmatmul.f32.gmra.mxu0 %v9759
        %v9984 = vpop.f32.mrf.mxu0
        %v9985 = vadd.f32 %v9674, %v9984
        %9986 = vmatmul.f32.gmra.mxu0 %v9762
        %v9987 = vpop.f32.mrf.mxu0
        %v9988 = vadd.f32 %v9674, %v9987
        %9989 = vmatmul.f32.gmra.mxu0 %v9765
        %v9990 = vpop.f32.mrf.mxu0
        %v9991 = vadd.f32 %v9674, %v9990
        %9992 = vmatmul.f32.gmra.mxu0 %v9768
        %v9993 = vpop.f32.mrf.mxu0
        %v9994 = vadd.f32 %v9674, %v9993
        %9995 = vmatmul.f32.gmra.mxu0 %v9771
        %v9996 = vpop.f32.mrf.mxu0
        %v9997 = vadd.f32 %v9674, %v9996
        %9998 = vdwg.mxu0
        %v9999 = vmax.f32 %v9791, 0.0
        %v10000 = vmax.f32 %v9904, 0.0
        %v10001 = vmax.f32 %v9794, 0.0
        %v10002 = vmax.f32 %v9907, 0.0
        %v10003 = vmax.f32 %v9797, 0.0
        %v10004 = vmax.f32 %v9910, 0.0
        %v10005 = vmax.f32 %v9800, 0.0
        %v10006 = vmax.f32 %v9913, 0.0
        %v10007 = vmax.f32 %v9803, 0.0
        %v10008 = vmax.f32 %v9916, 0.0
        %v10009 = vmax.f32 %v9806, 0.0
        %v10010 = vmax.f32 %v9919, 0.0
        %v10011 = vmax.f32 %v9809, 0.0
        %v10012 = vmax.f32 %v9922, 0.0
        %v10013 = vmax.f32 %v9812, 0.0
        %v10014 = vmax.f32 %v9925, 0.0
        %v10015 = vmax.f32 %v9815, 0.0
        %v10016 = vmax.f32 %v9928, 0.0
        %v10017 = vmax.f32 %v9818, 0.0
        %v10018 = vmax.f32 %v9931, 0.0
        %v10019 = vmax.f32 %v9821, 0.0
        %v10020 = vmax.f32 %v9934, 0.0
        %v10021 = vmax.f32 %v9824, 0.0
        %v10022 = vmax.f32 %v9937, 0.0
        %v10023 = vmax.f32 %v9827, 0.0
        %v10024 = vmax.f32 %v9940, 0.0
        %v10025 = vmax.f32 %v9830, 0.0
        %v10026 = vmax.f32 %v9943, 0.0
        %v10027 = vmax.f32 %v9833, 0.0
        %v10028 = vmax.f32 %v9946, 0.0
        %v10029 = vmax.f32 %v9836, 0.0
        %v10030 = vmax.f32 %v9949, 0.0
        %v10031 = vmax.f32 %v9839, 0.0
        %v10032 = vmax.f32 %v9952, 0.0
        %v10033 = vmax.f32 %v9842, 0.0
        %v10034 = vmax.f32 %v9955, 0.0
        %v10035 = vmax.f32 %v9845, 0.0
        %v10036 = vmax.f32 %v9958, 0.0
        %v10037 = vmax.f32 %v9848, 0.0
        %v10038 = vmax.f32 %v9961, 0.0
        %v10039 = vmax.f32 %v9851, 0.0
        %v10040 = vmax.f32 %v9964, 0.0
        %v10041 = vmax.f32 %v9854, 0.0
        %v10042 = vmax.f32 %v9967, 0.0
        %v10043 = vmax.f32 %v9857, 0.0
        %v10044 = vmax.f32 %v9970, 0.0
        %v10045 = vmax.f32 %v9860, 0.0
        %v10046 = vmax.f32 %v9973, 0.0
        %v10047 = vmax.f32 %v9863, 0.0
        %v10048 = vmax.f32 %v9976, 0.0
        %v10049 = vmax.f32 %v9866, 0.0
        %v10050 = vmax.f32 %v9979, 0.0
        %v10051 = vmax.f32 %v9869, 0.0
        %v10052 = vmax.f32 %v9982, 0.0
        %v10053 = vmax.f32 %v9872, 0.0
        %v10054 = vmax.f32 %v9985, 0.0
        %v10055 = vmax.f32 %v9875, 0.0
        %v10056 = vmax.f32 %v9988, 0.0
        %v10057 = vmax.f32 %v9878, 0.0
        %v10058 = vmax.f32 %v9991, 0.0
        %v10059 = vmax.f32 %v9881, 0.0
        %v10060 = vmax.f32 %v9994, 0.0
        %v10061 = vmax.f32 %v9884, 0.0
        %v10062 = vmax.f32 %v9997, 0.0
        %v10063 = vld [vmem:[%s7] sm:$0xff]
        %v10064 = vld [vmem:[%s7 + $0x8] sm:$0xff]
        %v10065 = vld [vmem:[%s7 + $0x10] sm:$0xff]
        %v10066 = vld [vmem:[%s7 + $0x18] sm:$0xff]
        %v10067 = vld [vmem:[%s7 + $0x20] sm:$0xff]
        %v10068 = vld [vmem:[%s7 + $0x28] sm:$0xff]
        %v10069 = vld [vmem:[%s7 + $0x30] sm:$0xff]
        %v10070 = vld [vmem:[%s7 + $0x38] sm:$0xff]
        %v10071 = vld [vmem:[%s7 + $0x40] sm:$0xff]
        %v10072 = vld [vmem:[%s7 + $0x48] sm:$0xff]
        %v10073 = vld [vmem:[%s7 + $0x50] sm:$0xff]
        %v10074 = vld [vmem:[%s7 + $0x58] sm:$0xff]
        %v10075 = vld [vmem:[%s7 + $0x60] sm:$0xff]
        %v10076 = vld [vmem:[%s7 + $0x68] sm:$0xff]
        %v10077 = vld [vmem:[%s7 + $0x70] sm:$0xff]
        %v10078 = vld [vmem:[%s7 + $0x78] sm:$0xff]
        %v10079 = vld [vmem:[%s7 + $0x80] sm:$0xff]
        %v10080 = vld [vmem:[%s7 + $0x88] sm:$0xff]
        %v10081 = vld [vmem:[%s7 + $0x90] sm:$0xff]
        %v10082 = vld [vmem:[%s7 + $0x98] sm:$0xff]
        %v10083 = vld [vmem:[%s7 + $0xa0] sm:$0xff]
        %v10084 = vld [vmem:[%s7 + $0xa8] sm:$0xff]
        %v10085 = vld [vmem:[%s7 + $0xb0] sm:$0xff]
        %v10086 = vld [vmem:[%s7 + $0xb8] sm:$0xff]
        %v10087 = vld [vmem:[%s7 + $0xc0] sm:$0xff]
        %v10088 = vld [vmem:[%s7 + $0xc8] sm:$0xff]
        %v10089 = vld [vmem:[%s7 + $0xd0] sm:$0xff]
        %v10090 = vld [vmem:[%s7 + $0xd8] sm:$0xff]
        %v10091 = vld [vmem:[%s7 + $0xe0] sm:$0xff]
        %v10092 = vld [vmem:[%s7 + $0xe8] sm:$0xff]
        %v10093 = vld [vmem:[%s7 + $0xf0] sm:$0xff]
        %v10094 = vld [vmem:[%s7 + $0xf8] sm:$0xff]
        %v10095 = vld [vmem:[%s8] sm:$0x1]
        %v10097 = vperm.slane %v10095, 0
        %10099 = vmatpush.msra.mxu0 %v10078
        %10100 = vmatpush.msra.mxu0 %v10077
        %10101 = vmatpush.msra.mxu0 %v10076
        %10102 = vmatpush.msra.mxu0 %v10075
        %10103 = vmatpush.msra.mxu0 %v10074
        %10104 = vmatpush.msra.mxu0 %v10073
        %10105 = vmatpush.msra.mxu0 %v10072
        %10106 = vmatpush.msra.mxu0 %v10071
        %10107 = vmatpush.msra.mxu0 %v10070
        %10108 = vmatpush.msra.mxu0 %v10069
        %10109 = vmatpush.msra.mxu0 %v10068
        %10110 = vmatpush.msra.mxu0 %v10067
        %10111 = vmatpush.msra.mxu0 %v10066
        %10112 = vmatpush.msra.mxu0 %v10065
        %10113 = vmatpush.msra.mxu0 %v10064
        %10114 = vmatpush.msra.mxu0 %v10063
        %10115 = vmatmul.f32.gmra.mxu0 %v9999
        %v10116 = vpop.f32.mrf.mxu0
        %v10117 = vadd.f32 %v10097, %v10116
        %10118 = vmatmul.f32.gmra.mxu0 %v10001
        %v10119 = vpop.f32.mrf.mxu0
        %v10120 = vadd.f32 %v10097, %v10119
        %10121 = vmatmul.f32.gmra.mxu0 %v10003
        %v10122 = vpop.f32.mrf.mxu0
        %v10123 = vadd.f32 %v10097, %v10122
        %10124 = vmatmul.f32.gmra.mxu0 %v10005
        %v10125 = vpop.f32.mrf.mxu0
        %v10126 = vadd.f32 %v10097, %v10125
        %10127 = vmatmul.f32.gmra.mxu0 %v10007
        %v10128 = vpop.f32.mrf.mxu0
        %v10129 = vadd.f32 %v10097, %v10128
        %10130 = vmatmul.f32.gmra.mxu0 %v10009
        %v10131 = vpop.f32.mrf.mxu0
        %v10132 = vadd.f32 %v10097, %v10131
        %10133 = vmatmul.f32.gmra.mxu0 %v10011
        %v10134 = vpop.f32.mrf.mxu0
        %v10135 = vadd.f32 %v10097, %v10134
        %10136 = vmatmul.f32.gmra.mxu0 %v10013
        %v10137 = vpop.f32.mrf.mxu0
        %v10138 = vadd.f32 %v10097, %v10137
        %10139 = vmatmul.f32.gmra.mxu0 %v10015
        %v10140 = vpop.f32.mrf.mxu0
        %v10141 = vadd.f32 %v10097, %v10140
        %10142 = vmatmul.f32.gmra.mxu0 %v10017
        %v10143 = vpop.f32.mrf.mxu0
        %v10144 = vadd.f32 %v10097, %v10143
        %10145 = vmatmul.f32.gmra.mxu0 %v10019
        %v10146 = vpop.f32.mrf.mxu0
        %v10147 = vadd.f32 %v10097, %v10146
        %10148 = vmatmul.f32.gmra.mxu0 %v10021
        %v10149 = vpop.f32.mrf.mxu0
        %v10150 = vadd.f32 %v10097, %v10149
        %10151 = vmatmul.f32.gmra.mxu0 %v10023
        %v10152 = vpop.f32.mrf.mxu0
        %v10153 = vadd.f32 %v10097, %v10152
        %10154 = vmatmul.f32.gmra.mxu0 %v10025
        %v10155 = vpop.f32.mrf.mxu0
        %v10156 = vadd.f32 %v10097, %v10155
        %10157 = vmatmul.f32.gmra.mxu0 %v10027
        %v10158 = vpop.f32.mrf.mxu0
        %v10159 = vadd.f32 %v10097, %v10158
        %10160 = vmatmul.f32.gmra.mxu0 %v10029
        %v10161 = vpop.f32.mrf.mxu0
        %v10162 = vadd.f32 %v10097, %v10161
        %10163 = vmatmul.f32.gmra.mxu0 %v10031
        %v10164 = vpop.f32.mrf.mxu0
        %v10165 = vadd.f32 %v10097, %v10164
        %10166 = vmatmul.f32.gmra.mxu0 %v10033
        %v10167 = vpop.f32.mrf.mxu0
        %v10168 = vadd.f32 %v10097, %v10167
        %10169 = vmatmul.f32.gmra.mxu0 %v10035
        %v10170 = vpop.f32.mrf.mxu0
        %v10171 = vadd.f32 %v10097, %v10170
        %10172 = vmatmul.f32.gmra.mxu0 %v10037
        %v10173 = vpop.f32.mrf.mxu0
        %v10174 = vadd.f32 %v10097, %v10173
        %10175 = vmatmul.f32.gmra.mxu0 %v10039
        %v10176 = vpop.f32.mrf.mxu0
        %v10177 = vadd.f32 %v10097, %v10176
        %10178 = vmatmul.f32.gmra.mxu0 %v10041
        %v10179 = vpop.f32.mrf.mxu0
        %v10180 = vadd.f32 %v10097, %v10179
        %10181 = vmatmul.f32.gmra.mxu0 %v10043
        %v10182 = vpop.f32.mrf.mxu0
        %v10183 = vadd.f32 %v10097, %v10182
        %10184 = vmatmul.f32.gmra.mxu0 %v10045
        %v10185 = vpop.f32.mrf.mxu0
        %v10186 = vadd.f32 %v10097, %v10185
        %10187 = vmatmul.f32.gmra.mxu0 %v10047
        %v10188 = vpop.f32.mrf.mxu0
        %v10189 = vadd.f32 %v10097, %v10188
        %10190 = vmatmul.f32.gmra.mxu0 %v10049
        %v10191 = vpop.f32.mrf.mxu0
        %v10192 = vadd.f32 %v10097, %v10191
        %10193 = vmatmul.f32.gmra.mxu0 %v10051
        %v10194 = vpop.f32.mrf.mxu0
        %v10195 = vadd.f32 %v10097, %v10194
        %10196 = vmatmul.f32.gmra.mxu0 %v10053
        %v10197 = vpop.f32.mrf.mxu0
        %v10198 = vadd.f32 %v10097, %v10197
        %10199 = vmatmul.f32.gmra.mxu0 %v10055
        %v10200 = vpop.f32.mrf.mxu0
        %v10201 = vadd.f32 %v10097, %v10200
        %10202 = vmatmul.f32.gmra.mxu0 %v10057
        %v10203 = vpop.f32.mrf.mxu0
        %v10204 = vadd.f32 %v10097, %v10203
        %10205 = vmatmul.f32.gmra.mxu0 %v10059
        %v10206 = vpop.f32.mrf.mxu0
        %v10207 = vadd.f32 %v10097, %v10206
        %10208 = vmatmul.f32.gmra.mxu0 %v10061
        %v10209 = vpop.f32.mrf.mxu0
        %v10210 = vadd.f32 %v10097, %v10209
        %10211 = vdwg.mxu0
        %10212 = vmatpush.msra.mxu0 %v10094
        %10213 = vmatpush.msra.mxu0 %v10093
        %10214 = vmatpush.msra.mxu0 %v10092
        %10215 = vmatpush.msra.mxu0 %v10091
        %10216 = vmatpush.msra.mxu0 %v10090
        %10217 = vmatpush.msra.mxu0 %v10089
        %10218 = vmatpush.msra.mxu0 %v10088
        %10219 = vmatpush.msra.mxu0 %v10087
        %10220 = vmatpush.msra.mxu0 %v10086
        %10221 = vmatpush.msra.mxu0 %v10085
        %10222 = vmatpush.msra.mxu0 %v10084
        %10223 = vmatpush.msra.mxu0 %v10083
        %10224 = vmatpush.msra.mxu0 %v10082
        %10225 = vmatpush.msra.mxu0 %v10081
        %10226 = vmatpush.msra.mxu0 %v10080
        %10227 = vmatpush.msra.mxu0 %v10079
        %10228 = vmatmul.f32.gmra.mxu0 %v10000
        %v10229 = vpop.f32.mrf.mxu0
        %v10230 = vadd.f32 %v10117, %v10229
        %10231 = vmatmul.f32.gmra.mxu0 %v10002
        %v10232 = vpop.f32.mrf.mxu0
        %v10233 = vadd.f32 %v10120, %v10232
        %10234 = vmatmul.f32.gmra.mxu0 %v10004
        %v10235 = vpop.f32.mrf.mxu0
        %v10236 = vadd.f32 %v10123, %v10235
        %10237 = vmatmul.f32.gmra.mxu0 %v10006
        %v10238 = vpop.f32.mrf.mxu0
        %v10239 = vadd.f32 %v10126, %v10238
        %10240 = vmatmul.f32.gmra.mxu0 %v10008
        %v10241 = vpop.f32.mrf.mxu0
        %v10242 = vadd.f32 %v10129, %v10241
        %10243 = vmatmul.f32.gmra.mxu0 %v10010
        %v10244 = vpop.f32.mrf.mxu0
        %v10245 = vadd.f32 %v10132, %v10244
        %10246 = vmatmul.f32.gmra.mxu0 %v10012
        %v10247 = vpop.f32.mrf.mxu0
        %v10248 = vadd.f32 %v10135, %v10247
        %10249 = vmatmul.f32.gmra.mxu0 %v10014
        %v10250 = vpop.f32.mrf.mxu0
        %v10251 = vadd.f32 %v10138, %v10250
        %10252 = vmatmul.f32.gmra.mxu0 %v10016
        %v10253 = vpop.f32.mrf.mxu0
        %v10254 = vadd.f32 %v10141, %v10253
        %10255 = vmatmul.f32.gmra.mxu0 %v10018
        %v10256 = vpop.f32.mrf.mxu0
        %v10257 = vadd.f32 %v10144, %v10256
        %10258 = vmatmul.f32.gmra.mxu0 %v10020
        %v10259 = vpop.f32.mrf.mxu0
        %v10260 = vadd.f32 %v10147, %v10259
        %10261 = vmatmul.f32.gmra.mxu0 %v10022
        %v10262 = vpop.f32.mrf.mxu0
        %v10263 = vadd.f32 %v10150, %v10262
        %10264 = vmatmul.f32.gmra.mxu0 %v10024
        %v10265 = vpop.f32.mrf.mxu0
        %v10266 = vadd.f32 %v10153, %v10265
        %10267 = vmatmul.f32.gmra.mxu0 %v10026
        %v10268 = vpop.f32.mrf.mxu0
        %v10269 = vadd.f32 %v10156, %v10268
        %10270 = vmatmul.f32.gmra.mxu0 %v10028
        %v10271 = vpop.f32.mrf.mxu0
        %v10272 = vadd.f32 %v10159, %v10271
        %10273 = vmatmul.f32.gmra.mxu0 %v10030
        %v10274 = vpop.f32.mrf.mxu0
        %v10275 = vadd.f32 %v10162, %v10274
        %10276 = vmatmul.f32.gmra.mxu0 %v10032
        %v10277 = vpop.f32.mrf.mxu0
        %v10278 = vadd.f32 %v10165, %v10277
        %10279 = vmatmul.f32.gmra.mxu0 %v10034
        %v10280 = vpop.f32.mrf.mxu0
        %v10281 = vadd.f32 %v10168, %v10280
        %10282 = vmatmul.f32.gmra.mxu0 %v10036
        %v10283 = vpop.f32.mrf.mxu0
        %v10284 = vadd.f32 %v10171, %v10283
        %10285 = vmatmul.f32.gmra.mxu0 %v10038
        %v10286 = vpop.f32.mrf.mxu0
        %v10287 = vadd.f32 %v10174, %v10286
        %10288 = vmatmul.f32.gmra.mxu0 %v10040
        %v10289 = vpop.f32.mrf.mxu0
        %v10290 = vadd.f32 %v10177, %v10289
        %10291 = vmatmul.f32.gmra.mxu0 %v10042
        %v10292 = vpop.f32.mrf.mxu0
        %v10293 = vadd.f32 %v10180, %v10292
        %10294 = vmatmul.f32.gmra.mxu0 %v10044
        %v10295 = vpop.f32.mrf.mxu0
        %v10296 = vadd.f32 %v10183, %v10295
        %10297 = vmatmul.f32.gmra.mxu0 %v10046
        %v10298 = vpop.f32.mrf.mxu0
        %v10299 = vadd.f32 %v10186, %v10298
        %10300 = vmatmul.f32.gmra.mxu0 %v10048
        %v10301 = vpop.f32.mrf.mxu0
        %v10302 = vadd.f32 %v10189, %v10301
        %10303 = vmatmul.f32.gmra.mxu0 %v10050
        %v10304 = vpop.f32.mrf.mxu0
        %v10305 = vadd.f32 %v10192, %v10304
        %10306 = vmatmul.f32.gmra.mxu0 %v10052
        %v10307 = vpop.f32.mrf.mxu0
        %v10308 = vadd.f32 %v10195, %v10307
        %10309 = vmatmul.f32.gmra.mxu0 %v10054
        %v10310 = vpop.f32.mrf.mxu0
        %v10311 = vadd.f32 %v10198, %v10310
        %10312 = vmatmul.f32.gmra.mxu0 %v10056
        %v10313 = vpop.f32.mrf.mxu0
        %v10314 = vadd.f32 %v10201, %v10313
        %10315 = vmatmul.f32.gmra.mxu0 %v10058
        %v10316 = vpop.f32.mrf.mxu0
        %v10317 = vadd.f32 %v10204, %v10316
        %10318 = vmatmul.f32.gmra.mxu0 %v10060
        %v10319 = vpop.f32.mrf.mxu0
        %v10320 = vadd.f32 %v10207, %v10319
        %10321 = vmatmul.f32.gmra.mxu0 %v10062
        %v10322 = vpop.f32.mrf.mxu0
        %v10323 = vadd.f32 %v10210, %v10322
        %10324 = vdwg.mxu0
        %v10325 = vadd.f32 %v8919, %v10230
        %v10326 = vadd.f32 %v8920, %v10233
        %v10327 = vadd.f32 %v8921, %v10236
        %v10328 = vadd.f32 %v8922, %v10239
        %v10329 = vadd.f32 %v8923, %v10242
        %v10330 = vadd.f32 %v8924, %v10245
        %v10331 = vadd.f32 %v8925, %v10248
        %v10332 = vadd.f32 %v8926, %v10251
        %v10333 = vadd.f32 %v8927, %v10254
        %v10334 = vadd.f32 %v8928, %v10257
        %v10335 = vadd.f32 %v8929, %v10260
        %v10336 = vadd.f32 %v8930, %v10263
        %v10337 = vadd.f32 %v8931, %v10266
        %v10338 = vadd.f32 %v8932, %v10269
        %v10339 = vadd.f32 %v8933, %v10272
        %v10340 = vadd.f32 %v8934, %v10275
        %v10341 = vadd.f32 %v8935, %v10278
        %v10342 = vadd.f32 %v8936, %v10281
        %v10343 = vadd.f32 %v8937, %v10284
        %v10344 = vadd.f32 %v8938, %v10287
        %v10345 = vadd.f32 %v8939, %v10290
        %v10346 = vadd.f32 %v8940, %v10293
        %v10347 = vadd.f32 %v8941, %v10296
        %v10348 = vadd.f32 %v8942, %v10299
        %v10349 = vadd.f32 %v8943, %v10302
        %v10350 = vadd.f32 %v8944, %v10305
        %v10351 = vadd.f32 %v8945, %v10308
        %v10352 = vadd.f32 %v8946, %v10311
        %v10353 = vadd.f32 %v8947, %v10314
        %v10354 = vadd.f32 %v8948, %v10317
        %v10355 = vadd.f32 %v8949, %v10320
        %v10356 = vadd.f32 %v8950, %v10323
        %10357 = vst.msk [vmem:[%s353] sm:$0xff] %vm388, %v10325
        %10358 = vst.msk [vmem:[%s353 + $0x8] sm:$0xff] %vm388, %v10326
        %10359 = vst.msk [vmem:[%s353 + $0x10] sm:$0xff] %vm388, %v10327
        %10360 = vst.msk [vmem:[%s353 + $0x18] sm:$0xff] %vm388, %v10328
        %10361 = vst.msk [vmem:[%s353 + $0x20] sm:$0xff] %vm388, %v10329
        %10362 = vst.msk [vmem:[%s353 + $0x28] sm:$0xff] %vm388, %v10330
        %10363 = vst.msk [vmem:[%s353 + $0x30] sm:$0xff] %vm388, %v10331
        %10364 = vst.msk [vmem:[%s353 + $0x38] sm:$0xff] %vm388, %v10332
        %10365 = vst.msk [vmem:[%s353 + $0x40] sm:$0xff] %vm388, %v10333
        %10366 = vst.msk [vmem:[%s353 + $0x48] sm:$0xff] %vm388, %v10334
        %10367 = vst.msk [vmem:[%s353 + $0x50] sm:$0xff] %vm388, %v10335
        %10368 = vst.msk [vmem:[%s353 + $0x58] sm:$0xff] %vm388, %v10336
        %10369 = vst.msk [vmem:[%s353 + $0x60] sm:$0xff] %vm388, %v10337
        %10370 = vst.msk [vmem:[%s353 + $0x68] sm:$0xff] %vm388, %v10338
        %10371 = vst.msk [vmem:[%s353 + $0x70] sm:$0xff] %vm388, %v10339
        %10372 = vst.msk [vmem:[%s353 + $0x78] sm:$0xff] %vm388, %v10340
        %10373 = vst.msk [vmem:[%s353 + $0x80] sm:$0xff] %vm388, %v10341
        %10374 = vst.msk [vmem:[%s353 + $0x88] sm:$0xff] %vm388, %v10342
        %10375 = vst.msk [vmem:[%s353 + $0x90] sm:$0xff] %vm388, %v10343
        %10376 = vst.msk [vmem:[%s353 + $0x98] sm:$0xff] %vm388, %v10344
        %10377 = vst.msk [vmem:[%s353 + $0xa0] sm:$0xff] %vm388, %v10345
        %10378 = vst.msk [vmem:[%s353 + $0xa8] sm:$0xff] %vm388, %v10346
        %10379 = vst.msk [vmem:[%s353 + $0xb0] sm:$0xff] %vm388, %v10347
        %10380 = vst.msk [vmem:[%s353 + $0xb8] sm:$0xff] %vm388, %v10348
        %10381 = vst.msk [vmem:[%s353 + $0xc0] sm:$0xff] %vm388, %v10349
        %10382 = vst.msk [vmem:[%s353 + $0xc8] sm:$0xff] %vm388, %v10350
        %10383 = vst.msk [vmem:[%s353 + $0xd0] sm:$0xff] %vm388, %v10351
        %10384 = vst.msk [vmem:[%s353 + $0xd8] sm:$0xff] %vm388, %v10352
        %10385 = vst.msk [vmem:[%s353 + $0xe0] sm:$0xff] %vm388, %v10353
        %10386 = vst.msk [vmem:[%s353 + $0xe8] sm:$0xff] %vm388, %v10354
        %10387 = vst.msk [vmem:[%s353 + $0xf0] sm:$0xff] %vm388, %v10355
        %10388 = vst.msk [vmem:[%s353 + $0xf8] sm:$0xff] %vm388, %v10356
        %s10389 = sand.u32 %s228, 1
        %s10390 = scalar_lea.sflag [#allocation4], %s10389
        %s10391 = sand.u32 %s228, 1
        %s10392 = smul.addr %s10391, 256
        %s10393 = scalar_lea.vmem [#allocation5], %s10392
        // Predicated region
        $region61: #{tpu_custom_call.1} parent=55 // pred_check
          %p10394 = pneg %p238
        $region62: #{tpu_custom_call.1} parent=55 // pred_check_branch
          %10396 = sbr.rel (%p10394) target = $region64
        $region63: #{tpu_custom_call.1} parent=55 // pred_region
          %s10397 = smul.u32 8, %s26
          %10399 = vsyncadd %s10390, 0
          %s10400 = smul.addr %s10397, 4
          %s10401 = smul.addr %s10400, 8
          %s10402 = scalar_lea.hbm %s9, %s10401
          %s10403 = sshll.u32 %s10393, 4
          %s10404 = int_to_ptr.vmem [resolvable:$true] %s10403
          %s10405 = sshll.u32 %s10402, 4
          %s10406 = int_to_ptr.hbm [resolvable:$true] %s10405
          %10411 = dma.vmem_to_hbm [thread:$0]  %s10404, 4096, %s10406, %s10390, 128, 128, 8
        $region64: #{tpu_custom_call.1} parent=55 // pred_fallthru
          _
      $region56: #{tpu_custom_call.1} parent=5 // pred_fallthru
        _
      %p10412 = scmp.le.s32.totalorder 2, %s21
      // Predicated region
      $region65: #{tpu_custom_call.1} parent=5 // pred_check
        %p10413 = pneg %p10412
      $region66: #{tpu_custom_call.1} parent=5 // pred_check_branch
        %10415 = sbr.rel (%p10413) target = $region68
      $region67: #{tpu_custom_call.1} parent=5 // pred_region
        %s10416 = ssub.s32 %s21, 2
        // Predicated region
        $region69: #{tpu_custom_call.1} parent=67 // pred_check
          %p10417 = pneg %p244
        $region70: #{tpu_custom_call.1} parent=67 // pred_check_branch
          %10419 = sbr.rel (%p10417) target = $region72
        $region71: #{tpu_custom_call.1} parent=67 // pred_region
          %s10420 = sand.u32 %s229, 1
          %s10421 = scalar_lea.sflag [#allocation4], %s10420
          %s10422 = sand.u32 %s229, 1
          %s10423 = smul.addr %s10422, 256
          %s10424 = scalar_lea.vmem [#allocation5], %s10423
          %10426 = dma.done %s10421, 4096
        $region72: #{tpu_custom_call.1} parent=67 // pred_fallthru
          _
      $region68: #{tpu_custom_call.1} parent=5 // pred_fallthru
        _
    $region6: #{tpu_custom_call.1} parent=1 // loop_footer
      %s25 = sadd.s32 1, %s21
    $region7: #{tpu_custom_call.1} parent=1 // loop_footer_branch
      %20 = sbr.rel target = $region3
    $region8: #{tpu_custom_call.1} parent=1 // loop_exit
      _
    %10427 = vsyncpa [#allocation3], 1
    %s10428 = scalar_lea.sflag [#allocation3], 1
    %10429 = vsyncpa %s10428, 1
    %10430 = vsyncpa [#allocation4], 1
    %s10431 = scalar_lea.sflag [#allocation4], 1
    %10432 = vsyncpa %s10431, 1

</llo_original>
